<compile_context>
chip_gen: v7x
topology: tpu7x:2x2x1
jax: 0.10.0
libtpu: 0.0.40
codegen_flags: <defaults>
</compile_context>

<pallas_src>
import functools

import jax
import jax.numpy as jnp
from jax import lax
from jax.experimental import pallas as pl
from jax.experimental.pallas import tpu as pltpu

_EPS = 1e-5  # GroupNorm eps (PyTorch default)


def _ode_block_kernel(x_ref,
                      wm1_ref, b1_ref, tm1_ref,
                      wm2_ref, b2_ref, tm2_ref,
                      g1_ref, be1_ref, g2_ref, be2_ref, g3_ref, be3_ref,
                      o_ref, *, c, n, h, w, groups, num_steps, t_start, t_end):
    """Fixed-step RK4 integration of dx/dt = odefunc(t, x), fully VMEM-resident.

    Packed layout: activations are (C*N, H*W); row index = ci*N + nb.

    x_ref / o_ref            : (C*N, H*W) f32
    wm{1,2}_ref              : (9, C, C*N, H*W) masked "diagonal" weight planes
                               wm[tap, s, co*N+nb, p] =
                                 w[tap, ((co+s)%C)+1, co] * border_mask[tap, p]
    b{1,2}_ref / tm{1,2}_ref : (C*N, H*W) conv bias / folded t-channel map
    g*/be*_ref               : (C*N, H*W) GroupNorm gamma / beta (broadcast)
    """
    hw = h * w
    rows = c * n
    cpg = c // groups
    dt = (t_end - t_start) / num_steps
    offs = [dy * w + dx for dy in (-1, 0, 1) for dx in (-1, 0, 1)]

    def group_norm(x, g_ref, be_ref):
        # One fused pass: f32, O(1) activations, eps=1e-5 -> E[x^2]-mean^2 is
        # safe; clamp guards tiny negative values from cancellation.
        s1 = jnp.sum(x, axis=-1, keepdims=True)          # (rows, 1)
        s2 = jnp.sum(x * x, axis=-1, keepdims=True)      # (rows, 1)
        if cpg > 1:
            # TODO(synk): grouped (cpg > 1) path is untraced at C=4
            # (groups = min(32, C) == C => per-channel InstanceNorm).
            s1 = jnp.broadcast_to(
                jnp.sum(s1.reshape(groups, cpg, n, 1), axis=1, keepdims=True),
                (groups, cpg, n, 1)).reshape(rows, 1)
            s2 = jnp.broadcast_to(
                jnp.sum(s2.reshape(groups, cpg, n, 1), axis=1, keepdims=True),
                (groups, cpg, n, 1)).reshape(rows, 1)
        inv_cnt = 1.0 / float(cpg * hw)
        mean = s1 * inv_cnt
        var = jnp.maximum(s2 * inv_cnt - mean * mean, 0.0)
        inv = lax.rsqrt(var + _EPS)                      # EUP, off the VALU
        return (x - mean) * (inv * g_ref[...]) + be_ref[...]

    def concat_conv3x3(x, wm_ref, base):
        # base = bias + t * tmap (the zero-padded constant-t ConcatConv channel
        # is folded into tmap; border masks live inside the wm planes).
        acc = base
        for tap in range(9):
            off = offs[tap]
            shifted = x if off == 0 else pltpu.roll(x, (-off) % hw, axis=1)
            for s in range(c):
                rs = shifted if s == 0 else pltpu.roll(
                    shifted, (rows - s * n) % rows, axis=0)
                acc = acc + wm_ref[tap, s] * rs
        return acc

    def odefunc(x, base1, base2):
        y = group_norm(x, g1_ref, be1_ref)
        y = jnp.maximum(y, 0.0)
        y = concat_conv3x3(y, wm1_ref, base1)
        y = group_norm(y, g2_ref, be2_ref)
        y = jnp.maximum(y, 0.0)
        y = concat_conv3x3(y, wm2_ref, base2)
        return group_norm(y, g3_ref, be3_ref)

    def make_bases(t):
        return (b1_ref[...] + t * tm1_ref[...],
                b2_ref[...] + t * tm2_ref[...])

    def rk4_step(i, x):
        t = t_start + i.astype(jnp.float32) * dt
        k1 = odefunc(x, *make_bases(t))
        bases_mid = make_bases(t + 0.5 * dt)             # shared by evals 2 & 3
        k2 = odefunc(x + (0.5 * dt) * k1, *bases_mid)
        k3 = odefunc(x + (0.5 * dt) * k2, *bases_mid)
        k4 = odefunc(x + dt * k3, *make_bases(t + dt))
        return x + (dt / 6.0) * (k1 + 2.0 * k2 + 2.0 * k3 + k4)

    o_ref[...] = lax.fori_loop(0, num_steps, rk4_step, x_ref[...])


def _pack_invariants(params, c, n, h, w):
    """Fold zero padding, the ConcatConv t-channel, the channel-mix diagonals
    and the GroupNorm affine params into lane/sublane-dense VMEM planes."""
    hw = h * w
    pos = jnp.arange(hw, dtype=jnp.int32)
    hh, ww = pos // w, pos % w
    masks = []
    for dy in (-1, 0, 1):
        for dx in (-1, 0, 1):
            valid = ((hh + dy >= 0) & (hh + dy < h) &
                     (ww + dx >= 0) & (ww + dx < w))
            masks.append(valid.astype(jnp.float32))
    masks = jnp.stack(masks)                                  # (9, HW)

    def bcast_rows(v):                                        # (C,) -> (C*N, HW)
        return jnp.broadcast_to(jnp.repeat(v.astype(jnp.float32), n)[:, None],
                                (c * n, hw))

    def conv_pack(w_flat, bias):
        w9 = w_flat.reshape(9, c + 1, c).astype(jnp.float32)  # (tap, 1+cin, cout)
        # t-channel map: sum over border-valid taps of the cin=0 (t) weights.
        tmap = jnp.einsum('tp,tc->cp', masks, w9[:, 0, :])    # (C, HW)
        tmap_b = jnp.repeat(tmap, n, axis=0)                  # (C*N, HW)
        bias_b = bcast_rows(bias)
        co = jnp.arange(c)
        planes = []
        for tap in range(9):
            for s in range(c):
                wdiag = w9[tap, (co + s) % c + 1, co]         # (C,)
                col = jnp.repeat(wdiag, n)                    # (C*N,)
                planes.append(col[:, None] * masks[tap][None, :])
        wm = jnp.stack(planes).reshape(9, c, c * n, hw)       # (9, C, C*N, HW)
        return wm, bias_b, tmap_b

    wm1, b1, tm1 = conv_pack(params["w1"], params["b1"])
    wm2, b2, tm2 = conv_pack(params["w2"], params["b2"])
    gn = [bcast_rows(params[k])
          for k in ("g1", "be1", "g2", "be2", "g3", "be3")]
    return (wm1, b1, tm1, wm2, b2, tm2, *gn)


def make_params(dim, key):
    """Deterministic parameter init matching the PyTorch ODEfunc shapes/defaults."""
    # TODO(synk): a real PyTorch checkpoint is (Cout, Cin+1, 3, 3); transpose to
    #             (3, 3, Cin+1, Cout) before flattening (t must be channel 0).
    fan_in = (dim + 1) * 9
    bound = 1.0 / (fan_in ** 0.5)
    ks = jax.random.split(key, 4)
    w1 = jax.random.uniform(ks[0], (3, 3, dim + 1, dim), jnp.float32, -bound, bound)
    b1 = jax.random.uniform(ks[1], (dim,), jnp.float32, -bound, bound)
    w2 = jax.random.uniform(ks[2], (3, 3, dim + 1, dim), jnp.float32, -bound, bound)
    b2 = jax.random.uniform(ks[3], (dim,), jnp.float32, -bound, bound)
    ones = jnp.ones((dim,), jnp.float32)
    zeros = jnp.zeros((dim,), jnp.float32)
    return dict(w1=w1.reshape(-1), b1=b1, w2=w2.reshape(-1), b2=b2,
                g1=ones, be1=zeros, g2=ones, be2=zeros, g3=ones, be3=zeros)


@functools.partial(jax.jit, static_argnames=("num_steps",))
def ode_block_forward(x_nchw, params, num_steps=20):
    """ODEBlock.forward: integrate dx/dt = f(t, x) from t=0 to t=5, return x(5)."""
    n, c, h, w = x_nchw.shape
    groups = min(32, c)                 # norm(dim) = GroupNorm(min(32, dim), dim)
    hw = h * w
    # NCHW -> packed (C*N, H*W): channel-major / batch-minor on sublanes.
    x_packed = jnp.transpose(x_nchw.astype(jnp.float32),
                             (1, 0, 2, 3)).reshape(c * n, hw)
    invariants = _pack_invariants(params, c, n, h, w)

    kernel = functools.partial(
        _ode_block_kernel, c=c, n=n, h=h, w=w, groups=groups,
        num_steps=num_steps, t_start=0.0, t_end=5.0)

    vmem = pl.BlockSpec(memory_space=pltpu.MemorySpace.VMEM)
    out = pl.pallas_call(
        kernel,
        out_shape=jax.ShapeDtypeStruct((c * n, hw), jnp.float32),
        in_specs=[vmem] * (1 + len(invariants)),
        out_specs=vmem,
    )(x_packed, *invariants)

    return jnp.transpose(out.reshape(c, n, h, w), (1, 0, 2, 3))   # -> NCHW


if __name__ == "__main__":
    key = jax.random.PRNGKey(0)
    kx, kp = jax.random.split(key)

    N, C, H, W = 2, 4, 16, 16   # small shapes consistent with a CIFAR feature map
    x = jax.random.normal(kx, (N, C, H, W), jnp.float32)
    params = make_params(C, kp)

    out = ode_block_forward(x, params)
    out = jax.block_until_ready(out)

    assert out.shape == (N, C, H, W)
    assert bool(jnp.all(jnp.isfinite(out)))
    print("KERNEL_OK")
</pallas_src>

<mosaic_0001>
module attributes {stable_mosaic.version = 11 : i64} {
  func.func @_ode_block_kernel(%arg0: memref<8x256xf32, #tpu.memory_space<vmem>>, %arg1: memref<9x4x8x256xf32, #tpu.memory_space<vmem>>, %arg2: memref<8x256xf32, #tpu.memory_space<vmem>>, %arg3: memref<8x256xf32, #tpu.memory_space<vmem>>, %arg4: memref<9x4x8x256xf32, #tpu.memory_space<vmem>>, %arg5: memref<8x256xf32, #tpu.memory_space<vmem>>, %arg6: memref<8x256xf32, #tpu.memory_space<vmem>>, %arg7: memref<8x256xf32, #tpu.memory_space<vmem>>, %arg8: memref<8x256xf32, #tpu.memory_space<vmem>>, %arg9: memref<8x256xf32, #tpu.memory_space<vmem>>, %arg10: memref<8x256xf32, #tpu.memory_space<vmem>>, %arg11: memref<8x256xf32, #tpu.memory_space<vmem>>, %arg12: memref<8x256xf32, #tpu.memory_space<vmem>>, %arg13: memref<8x256xf32, #tpu.memory_space<vmem>>) attributes {dimension_semantics = [], scalar_prefetch = 0 : i64, scratch_operands = 0 : i64, tpu.core_type = #tpu.core_type<tc>} {
    %c0 = arith.constant 0 : index
    %c0_0 = arith.constant 0 : index
    %0 = vector.load %arg0[%c0, %c0_0] : memref<8x256xf32, #tpu.memory_space<vmem>>, vector<8x256xf32>
    %c0_i32 = arith.constant 0 : i32
    %c20_i32 = arith.constant 20 : i32
    %1 = arith.addi %c0_i32, %c20_i32 : i32
    %c1_i32 = arith.constant 1 : i32
    %2 = scf.for %arg14 = %c0_i32 to %1 step %c1_i32 iter_args(%arg15 = %0) -> (vector<8x256xf32>)  : i32 {
      %4 = arith.sitofp %arg14 : i32 to f32
      %cst = arith.constant 2.500000e-01 : f32
      %5 = arith.mulf %4, %cst : f32
      %cst_4 = arith.constant 0.000000e+00 : f32
      %6 = arith.addf %cst_4, %5 : f32
      %c0_5 = arith.constant 0 : index
      %c0_6 = arith.constant 0 : index
      %7 = vector.load %arg2[%c0_5, %c0_6] : memref<8x256xf32, #tpu.memory_space<vmem>>, vector<8x256xf32>
      %c0_7 = arith.constant 0 : index
      %c0_8 = arith.constant 0 : index
      %8 = vector.load %arg3[%c0_7, %c0_8] : memref<8x256xf32, #tpu.memory_space<vmem>>, vector<8x256xf32>
      %9 = vector.broadcast %6 : f32 to vector<8x256xf32>
      %10 = arith.mulf %9, %8 : vector<8x256xf32>
      %11 = arith.addf %7, %10 : vector<8x256xf32>
      %c0_9 = arith.constant 0 : index
      %c0_10 = arith.constant 0 : index
      %12 = vector.load %arg5[%c0_9, %c0_10] : memref<8x256xf32, #tpu.memory_space<vmem>>, vector<8x256xf32>
      %c0_11 = arith.constant 0 : index
      %c0_12 = arith.constant 0 : index
      %13 = vector.load %arg6[%c0_11, %c0_12] : memref<8x256xf32, #tpu.memory_space<vmem>>, vector<8x256xf32>
      %14 = vector.broadcast %6 : f32 to vector<8x256xf32>
      %15 = arith.mulf %14, %13 : vector<8x256xf32>
      %16 = arith.addf %12, %15 : vector<8x256xf32>
      %cst_13 = arith.constant dense<0.000000e+00> : vector<8xf32>
      %17 = vector.multi_reduction <add>, %arg15, %cst_13 [1] : vector<8x256xf32> to vector<8xf32>
      %18 = vector.shape_cast %17 : vector<8xf32> to vector<8x1xf32>
      %19 = arith.mulf %arg15, %arg15 : vector<8x256xf32>
      %cst_14 = arith.constant dense<0.000000e+00> : vector<8xf32>
      %20 = vector.multi_reduction <add>, %19, %cst_14 [1] : vector<8x256xf32> to vector<8xf32>
      %21 = vector.shape_cast %20 : vector<8xf32> to vector<8x1xf32>
      %cst_15 = arith.constant 3.906250e-03 : f32
      %22 = vector.broadcast %cst_15 : f32 to vector<8x1xf32>
      %23 = arith.mulf %18, %22 : vector<8x1xf32>
      %cst_16 = arith.constant 3.906250e-03 : f32
      %24 = vector.broadcast %cst_16 : f32 to vector<8x1xf32>
      %25 = arith.mulf %21, %24 : vector<8x1xf32>
      %26 = arith.mulf %23, %23 : vector<8x1xf32>
      %27 = arith.subf %25, %26 : vector<8x1xf32>
      %cst_17 = arith.constant 0.000000e+00 : f32
      %28 = vector.broadcast %cst_17 : f32 to vector<8x1xf32>
      %29 = arith.maximumf %27, %28 : vector<8x1xf32>
      %cst_18 = arith.constant 9.99999974E-6 : f32
      %30 = vector.broadcast %cst_18 : f32 to vector<8x1xf32>
      %31 = arith.addf %29, %30 : vector<8x1xf32>
      %32 = math.rsqrt %31 : vector<8x1xf32>
      %33 = vector.broadcast %23 : vector<8x1xf32> to vector<8x256xf32>
      %34 = arith.subf %arg15, %33 : vector<8x256xf32>
      %c0_19 = arith.constant 0 : index
      %c0_20 = arith.constant 0 : index
      %35 = vector.load %arg7[%c0_19, %c0_20] : memref<8x256xf32, #tpu.memory_space<vmem>>, vector<8x256xf32>
      %36 = vector.broadcast %32 : vector<8x1xf32> to vector<8x256xf32>
      %37 = arith.mulf %36, %35 : vector<8x256xf32>
      %38 = arith.mulf %34, %37 : vector<8x256xf32>
      %c0_21 = arith.constant 0 : index
      %c0_22 = arith.constant 0 : index
      %39 = vector.load %arg8[%c0_21, %c0_22] : memref<8x256xf32, #tpu.memory_space<vmem>>, vector<8x256xf32>
      %40 = arith.addf %38, %39 : vector<8x256xf32>
      %cst_23 = arith.constant 0.000000e+00 : f32
      %41 = vector.broadcast %cst_23 : f32 to vector<8x256xf32>
      %42 = arith.maximumf %40, %41 : vector<8x256xf32>
      %c17_i32 = arith.constant 17 : i32
      %43 = tpu.dynamic_rotate %42 by %c17_i32 dim 1 : vector<8x256xf32>, i32 -> vector<8x256xf32>
      %c0_24 = arith.constant 0 : index
      %c0_25 = arith.constant 0 : index
      %c0_26 = arith.constant 0 : index
      %c0_27 = arith.constant 0 : index
      %44 = vector.load %arg1[%c0_24, %c0_25, %c0_26, %c0_27] : memref<9x4x8x256xf32, #tpu.memory_space<vmem>>, vector<1x1x8x256xf32>
      %45 = vector.shape_cast %44 : vector<1x1x8x256xf32> to vector<8x256xf32>
      %46 = arith.mulf %45, %43 : vector<8x256xf32>
      %47 = arith.addf %11, %46 : vector<8x256xf32>
      %c6_i32 = arith.constant 6 : i32
      %48 = tpu.dynamic_rotate %43 by %c6_i32 dim 0 : vector<8x256xf32>, i32 -> vector<8x256xf32>
      %c0_28 = arith.constant 0 : index
      %c1 = arith.constant 1 : index
      %c0_29 = arith.constant 0 : index
      %c0_30 = arith.constant 0 : index
      %49 = vector.load %arg1[%c0_28, %c1, %c0_29, %c0_30] : memref<9x4x8x256xf32, #tpu.memory_space<vmem>>, vector<1x1x8x256xf32>
      %50 = vector.shape_cast %49 : vector<1x1x8x256xf32> to vector<8x256xf32>
      %51 = arith.mulf %50, %48 : vector<8x256xf32>
      %52 = arith.addf %47, %51 : vector<8x256xf32>
      %c4_i32 = arith.constant 4 : i32
      %53 = tpu.dynamic_rotate %43 by %c4_i32 dim 0 : vector<8x256xf32>, i32 -> vector<8x256xf32>
      %c0_31 = arith.constant 0 : index
      %c2 = arith.constant 2 : index
      %c0_32 = arith.constant 0 : index
      %c0_33 = arith.constant 0 : index
      %54 = vector.load %arg1[%c0_31, %c2, %c0_32, %c0_33] : memref<9x4x8x256xf32, #tpu.memory_space<vmem>>, vector<1x1x8x256xf32>
      %55 = vector.shape_cast %54 : vector<1x1x8x256xf32> to vector<8x256xf32>
      %56 = arith.mulf %55, %53 : vector<8x256xf32>
      %57 = arith.addf %52, %56 : vector<8x256xf32>
      %c2_i32 = arith.constant 2 : i32
      %58 = tpu.dynamic_rotate %43 by %c2_i32 dim 0 : vector<8x256xf32>, i32 -> vector<8x256xf32>
      %c0_34 = arith.constant 0 : index
      %c3 = arith.constant 3 : index
      %c0_35 = arith.constant 0 : index
      %c0_36 = arith.constant 0 : index
      %59 = vector.load %arg1[%c0_34, %c3, %c0_35, %c0_36] : memref<9x4x8x256xf32, #tpu.memory_space<vmem>>, vector<1x1x8x256xf32>
      %60 = vector.shape_cast %59 : vector<1x1x8x256xf32> to vector<8x256xf32>
      %61 = arith.mulf %60, %58 : vector<8x256xf32>
      %62 = arith.addf %57, %61 : vector<8x256xf32>
      %c16_i32 = arith.constant 16 : i32
      %63 = tpu.dynamic_rotate %42 by %c16_i32 dim 1 : vector<8x256xf32>, i32 -> vector<8x256xf32>
      %c1_37 = arith.constant 1 : index
      %c0_38 = arith.constant 0 : index
      %c0_39 = arith.constant 0 : index
      %c0_40 = arith.constant 0 : index
      %64 = vector.load %arg1[%c1_37, %c0_38, %c0_39, %c0_40] : memref<9x4x8x256xf32, #tpu.memory_space<vmem>>, vector<1x1x8x256xf32>
      %65 = vector.shape_cast %64 : vector<1x1x8x256xf32> to vector<8x256xf32>
      %66 = arith.mulf %65, %63 : vector<8x256xf32>
      %67 = arith.addf %62, %66 : vector<8x256xf32>
      %c6_i32_41 = arith.constant 6 : i32
      %68 = tpu.dynamic_rotate %63 by %c6_i32_41 dim 0 : vector<8x256xf32>, i32 -> vector<8x256xf32>
      %c1_42 = arith.constant 1 : index
      %c1_43 = arith.constant 1 : index
      %c0_44 = arith.constant 0 : index
      %c0_45 = arith.constant 0 : index
      %69 = vector.load %arg1[%c1_42, %c1_43, %c0_44, %c0_45] : memref<9x4x8x256xf32, #tpu.memory_space<vmem>>, vector<1x1x8x256xf32>
      %70 = vector.shape_cast %69 : vector<1x1x8x256xf32> to vector<8x256xf32>
      %71 = arith.mulf %70, %68 : vector<8x256xf32>
      %72 = arith.addf %67, %71 : vector<8x256xf32>
      %c4_i32_46 = arith.constant 4 : i32
      %73 = tpu.dynamic_rotate %63 by %c4_i32_46 dim 0 : vector<8x256xf32>, i32 -> vector<8x256xf32>
      %c1_47 = arith.constant 1 : index
      %c2_48 = arith.constant 2 : index
      %c0_49 = arith.constant 0 : index
      %c0_50 = arith.constant 0 : index
      %74 = vector.load %arg1[%c1_47, %c2_48, %c0_49, %c0_50] : memref<9x4x8x256xf32, #tpu.memory_space<vmem>>, vector<1x1x8x256xf32>
      %75 = vector.shape_cast %74 : vector<1x1x8x256xf32> to vector<8x256xf32>
      %76 = arith.mulf %75, %73 : vector<8x256xf32>
      %77 = arith.addf %72, %76 : vector<8x256xf32>
      %c2_i32_51 = arith.constant 2 : i32
      %78 = tpu.dynamic_rotate %63 by %c2_i32_51 dim 0 : vector<8x256xf32>, i32 -> vector<8x256xf32>
      %c1_52 = arith.constant 1 : index
      %c3_53 = arith.constant 3 : index
      %c0_54 = arith.constant 0 : index
      %c0_55 = arith.constant 0 : index
      %79 = vector.load %arg1[%c1_52, %c3_53, %c0_54, %c0_55] : memref<9x4x8x256xf32, #tpu.memory_space<vmem>>, vector<1x1x8x256xf32>
      %80 = vector.shape_cast %79 : vector<1x1x8x256xf32> to vector<8x256xf32>
      %81 = arith.mulf %80, %78 : vector<8x256xf32>
      %82 = arith.addf %77, %81 : vector<8x256xf32>
      %c15_i32 = arith.constant 15 : i32
      %83 = tpu.dynamic_rotate %42 by %c15_i32 dim 1 : vector<8x256xf32>, i32 -> vector<8x256xf32>
      %c2_56 = arith.constant 2 : index
      %c0_57 = arith.constant 0 : index
      %c0_58 = arith.constant 0 : index
      %c0_59 = arith.constant 0 : index
      %84 = vector.load %arg1[%c2_56, %c0_57, %c0_58, %c0_59] : memref<9x4x8x256xf32, #tpu.memory_space<vmem>>, vector<1x1x8x256xf32>
      %85 = vector.shape_cast %84 : vector<1x1x8x256xf32> to vector<8x256xf32>
      %86 = arith.mulf %85, %83 : vector<8x256xf32>
      %87 = arith.addf %82, %86 : vector<8x256xf32>
      %c6_i32_60 = arith.constant 6 : i32
      %88 = tpu.dynamic_rotate %83 by %c6_i32_60 dim 0 : vector<8x256xf32>, i32 -> vector<8x256xf32>
      %c2_61 = arith.constant 2 : index
      %c1_62 = arith.constant 1 : index
      %c0_63 = arith.constant 0 : index
      %c0_64 = arith.constant 0 : index
      %89 = vector.load %arg1[%c2_61, %c1_62, %c0_63, %c0_64] : memref<9x4x8x256xf32, #tpu.memory_space<vmem>>, vector<1x1x8x256xf32>
      %90 = vector.shape_cast %89 : vector<1x1x8x256xf32> to vector<8x256xf32>
      %91 = arith.mulf %90, %88 : vector<8x256xf32>
      %92 = arith.addf %87, %91 : vector<8x256xf32>
      %c4_i32_65 = arith.constant 4 : i32
      %93 = tpu.dynamic_rotate %83 by %c4_i32_65 dim 0 : vector<8x256xf32>, i32 -> vector<8x256xf32>
      %c2_66 = arith.constant 2 : index
      %c2_67 = arith.constant 2 : index
      %c0_68 = arith.constant 0 : index
      %c0_69 = arith.constant 0 : index
      %94 = vector.load %arg1[%c2_66, %c2_67, %c0_68, %c0_69] : memref<9x4x8x256xf32, #tpu.memory_space<vmem>>, vector<1x1x8x256xf32>
      %95 = vector.shape_cast %94 : vector<1x1x8x256xf32> to vector<8x256xf32>
      %96 = arith.mulf %95, %93 : vector<8x256xf32>
      %97 = arith.addf %92, %96 : vector<8x256xf32>
      %c2_i32_70 = arith.constant 2 : i32
      %98 = tpu.dynamic_rotate %83 by %c2_i32_70 dim 0 : vector<8x256xf32>, i32 -> vector<8x256xf32>
      %c2_71 = arith.constant 2 : index
      %c3_72 = arith.constant 3 : index
      %c0_73 = arith.constant 0 : index
      %c0_74 = arith.constant 0 : index
      %99 = vector.load %arg1[%c2_71, %c3_72, %c0_73, %c0_74] : memref<9x4x8x256xf32, #tpu.memory_space<vmem>>, vector<1x1x8x256xf32>
      %100 = vector.shape_cast %99 : vector<1x1x8x256xf32> to vector<8x256xf32>
      %101 = arith.mulf %100, %98 : vector<8x256xf32>
      %102 = arith.addf %97, %101 : vector<8x256xf32>
      %c1_i32_75 = arith.constant 1 : i32
      %103 = tpu.dynamic_rotate %42 by %c1_i32_75 dim 1 : vector<8x256xf32>, i32 -> vector<8x256xf32>
      %c3_76 = arith.constant 3 : index
      %c0_77 = arith.constant 0 : index
      %c0_78 = arith.constant 0 : index
      %c0_79 = arith.constant 0 : index
      %104 = vector.load %arg1[%c3_76, %c0_77, %c0_78, %c0_79] : memref<9x4x8x256xf32, #tpu.memory_space<vmem>>, vector<1x1x8x256xf32>
      %105 = vector.shape_cast %104 : vector<1x1x8x256xf32> to vector<8x256xf32>
      %106 = arith.mulf %105, %103 : vector<8x256xf32>
      %107 = arith.addf %102, %106 : vector<8x256xf32>
      %c6_i32_80 = arith.constant 6 : i32
      %108 = tpu.dynamic_rotate %103 by %c6_i32_80 dim 0 : vector<8x256xf32>, i32 -> vector<8x256xf32>
      %c3_81 = arith.constant 3 : index
      %c1_82 = arith.constant 1 : index
      %c0_83 = arith.constant 0 : index
      %c0_84 = arith.constant 0 : index
      %109 = vector.load %arg1[%c3_81, %c1_82, %c0_83, %c0_84] : memref<9x4x8x256xf32, #tpu.memory_space<vmem>>, vector<1x1x8x256xf32>
      %110 = vector.shape_cast %109 : vector<1x1x8x256xf32> to vector<8x256xf32>
      %111 = arith.mulf %110, %108 : vector<8x256xf32>
      %112 = arith.addf %107, %111 : vector<8x256xf32>
      %c4_i32_85 = arith.constant 4 : i32
      %113 = tpu.dynamic_rotate %103 by %c4_i32_85 dim 0 : vector<8x256xf32>, i32 -> vector<8x256xf32>
      %c3_86 = arith.constant 3 : index
      %c2_87 = arith.constant 2 : index
      %c0_88 = arith.constant 0 : index
      %c0_89 = arith.constant 0 : index
      %114 = vector.load %arg1[%c3_86, %c2_87, %c0_88, %c0_89] : memref<9x4x8x256xf32, #tpu.memory_space<vmem>>, vector<1x1x8x256xf32>
      %115 = vector.shape_cast %114 : vector<1x1x8x256xf32> to vector<8x256xf32>
      %116 = arith.mulf %115, %113 : vector<8x256xf32>
      %117 = arith.addf %112, %116 : vector<8x256xf32>
      %c2_i32_90 = arith.constant 2 : i32
      %118 = tpu.dynamic_rotate %103 by %c2_i32_90 dim 0 : vector<8x256xf32>, i32 -> vector<8x256xf32>
      %c3_91 = arith.constant 3 : index
      %c3_92 = arith.constant 3 : index
      %c0_93 = arith.constant 0 : index
      %c0_94 = arith.constant 0 : index
      %119 = vector.load %arg1[%c3_91, %c3_92, %c0_93, %c0_94] : memref<9x4x8x256xf32, #tpu.memory_space<vmem>>, vector<1x1x8x256xf32>
      %120 = vector.shape_cast %119 : vector<1x1x8x256xf32> to vector<8x256xf32>
      %121 = arith.mulf %120, %118 : vector<8x256xf32>
      %122 = arith.addf %117, %121 : vector<8x256xf32>
      %c4 = arith.constant 4 : index
      %c0_95 = arith.constant 0 : index
      %c0_96 = arith.constant 0 : index
      %c0_97 = arith.constant 0 : index
      %123 = vector.load %arg1[%c4, %c0_95, %c0_96, %c0_97] : memref<9x4x8x256xf32, #tpu.memory_space<vmem>>, vector<1x1x8x256xf32>
      %124 = vector.shape_cast %123 : vector<1x1x8x256xf32> to vector<8x256xf32>
      %125 = arith.mulf %124, %42 : vector<8x256xf32>
      %126 = arith.addf %122, %125 : vector<8x256xf32>
      %c6_i32_98 = arith.constant 6 : i32
      %127 = tpu.dynamic_rotate %42 by %c6_i32_98 dim 0 : vector<8x256xf32>, i32 -> vector<8x256xf32>
      %c4_99 = arith.constant 4 : index
      %c1_100 = arith.constant 1 : index
      %c0_101 = arith.constant 0 : index
      %c0_102 = arith.constant 0 : index
      %128 = vector.load %arg1[%c4_99, %c1_100, %c0_101, %c0_102] : memref<9x4x8x256xf32, #tpu.memory_space<vmem>>, vector<1x1x8x256xf32>
      %129 = vector.shape_cast %128 : vector<1x1x8x256xf32> to vector<8x256xf32>
      %130 = arith.mulf %129, %127 : vector<8x256xf32>
      %131 = arith.addf %126, %130 : vector<8x256xf32>
      %c4_i32_103 = arith.constant 4 : i32
      %132 = tpu.dynamic_rotate %42 by %c4_i32_103 dim 0 : vector<8x256xf32>, i32 -> vector<8x256xf32>
      %c4_104 = arith.constant 4 : index
      %c2_105 = arith.constant 2 : index
      %c0_106 = arith.constant 0 : index
      %c0_107 = arith.constant 0 : index
      %133 = vector.load %arg1[%c4_104, %c2_105, %c0_106, %c0_107] : memref<9x4x8x256xf32, #tpu.memory_space<vmem>>, vector<1x1x8x256xf32>
      %134 = vector.shape_cast %133 : vector<1x1x8x256xf32> to vector<8x256xf32>
      %135 = arith.mulf %134, %132 : vector<8x256xf32>
      %136 = arith.addf %131, %135 : vector<8x256xf32>
      %c2_i32_108 = arith.constant 2 : i32
      %137 = tpu.dynamic_rotate %42 by %c2_i32_108 dim 0 : vector<8x256xf32>, i32 -> vector<8x256xf32>
      %c4_109 = arith.constant 4 : index
      %c3_110 = arith.constant 3 : index
      %c0_111 = arith.constant 0 : index
      %c0_112 = arith.constant 0 : index
      %138 = vector.load %arg1[%c4_109, %c3_110, %c0_111, %c0_112] : memref<9x4x8x256xf32, #tpu.memory_space<vmem>>, vector<1x1x8x256xf32>
      %139 = vector.shape_cast %138 : vector<1x1x8x256xf32> to vector<8x256xf32>
      %140 = arith.mulf %139, %137 : vector<8x256xf32>
      %141 = arith.addf %136, %140 : vector<8x256xf32>
      %c255_i32 = arith.constant 255 : i32
      %142 = tpu.dynamic_rotate %42 by %c255_i32 dim 1 : vector<8x256xf32>, i32 -> vector<8x256xf32>
      %c5 = arith.constant 5 : index
      %c0_113 = arith.constant 0 : index
      %c0_114 = arith.constant 0 : index
      %c0_115 = arith.constant 0 : index
      %143 = vector.load %arg1[%c5, %c0_113, %c0_114, %c0_115] : memref<9x4x8x256xf32, #tpu.memory_space<vmem>>, vector<1x1x8x256xf32>
      %144 = vector.shape_cast %143 : vector<1x1x8x256xf32> to vector<8x256xf32>
      %145 = arith.mulf %144, %142 : vector<8x256xf32>
      %146 = arith.addf %141, %145 : vector<8x256xf32>
      %c6_i32_116 = arith.constant 6 : i32
      %147 = tpu.dynamic_rotate %142 by %c6_i32_116 dim 0 : vector<8x256xf32>, i32 -> vector<8x256xf32>
      %c5_117 = arith.constant 5 : index
      %c1_118 = arith.constant 1 : index
      %c0_119 = arith.constant 0 : index
      %c0_120 = arith.constant 0 : index
      %148 = vector.load %arg1[%c5_117, %c1_118, %c0_119, %c0_120] : memref<9x4x8x256xf32, #tpu.memory_space<vmem>>, vector<1x1x8x256xf32>
      %149 = vector.shape_cast %148 : vector<1x1x8x256xf32> to vector<8x256xf32>
      %150 = arith.mulf %149, %147 : vector<8x256xf32>
      %151 = arith.addf %146, %150 : vector<8x256xf32>
      %c4_i32_121 = arith.constant 4 : i32
      %152 = tpu.dynamic_rotate %142 by %c4_i32_121 dim 0 : vector<8x256xf32>, i32 -> vector<8x256xf32>
      %c5_122 = arith.constant 5 : index
      %c2_123 = arith.constant 2 : index
      %c0_124 = arith.constant 0 : index
      %c0_125 = arith.constant 0 : index
      %153 = vector.load %arg1[%c5_122, %c2_123, %c0_124, %c0_125] : memref<9x4x8x256xf32, #tpu.memory_space<vmem>>, vector<1x1x8x256xf32>
      %154 = vector.shape_cast %153 : vector<1x1x8x256xf32> to vector<8x256xf32>
      %155 = arith.mulf %154, %152 : vector<8x256xf32>
      %156 = arith.addf %151, %155 : vector<8x256xf32>
      %c2_i32_126 = arith.constant 2 : i32
      %157 = tpu.dynamic_rotate %142 by %c2_i32_126 dim 0 : vector<8x256xf32>, i32 -> vector<8x256xf32>
      %c5_127 = arith.constant 5 : index
      %c3_128 = arith.constant 3 : index
      %c0_129 = arith.constant 0 : index
      %c0_130 = arith.constant 0 : index
      %158 = vector.load %arg1[%c5_127, %c3_128, %c0_129, %c0_130] : memref<9x4x8x256xf32, #tpu.memory_space<vmem>>, vector<1x1x8x256xf32>
      %159 = vector.shape_cast %158 : vector<1x1x8x256xf32> to vector<8x256xf32>
      %160 = arith.mulf %159, %157 : vector<8x256xf32>
      %161 = arith.addf %156, %160 : vector<8x256xf32>
      %c241_i32 = arith.constant 241 : i32
      %162 = tpu.dynamic_rotate %42 by %c241_i32 dim 1 : vector<8x256xf32>, i32 -> vector<8x256xf32>
      %c6 = arith.constant 6 : index
      %c0_131 = arith.constant 0 : index
      %c0_132 = arith.constant 0 : index
      %c0_133 = arith.constant 0 : index
      %163 = vector.load %arg1[%c6, %c0_131, %c0_132, %c0_133] : memref<9x4x8x256xf32, #tpu.memory_space<vmem>>, vector<1x1x8x256xf32>
      %164 = vector.shape_cast %163 : vector<1x1x8x256xf32> to vector<8x256xf32>
      %165 = arith.mulf %164, %162 : vector<8x256xf32>
      %166 = arith.addf %161, %165 : vector<8x256xf32>
      %c6_i32_134 = arith.constant 6 : i32
      %167 = tpu.dynamic_rotate %162 by %c6_i32_134 dim 0 : vector<8x256xf32>, i32 -> vector<8x256xf32>
      %c6_135 = arith.constant 6 : index
      %c1_136 = arith.constant 1 : index
      %c0_137 = arith.constant 0 : index
      %c0_138 = arith.constant 0 : index
      %168 = vector.load %arg1[%c6_135, %c1_136, %c0_137, %c0_138] : memref<9x4x8x256xf32, #tpu.memory_space<vmem>>, vector<1x1x8x256xf32>
      %169 = vector.shape_cast %168 : vector<1x1x8x256xf32> to vector<8x256xf32>
      %170 = arith.mulf %169, %167 : vector<8x256xf32>
      %171 = arith.addf %166, %170 : vector<8x256xf32>
      %c4_i32_139 = arith.constant 4 : i32
      %172 = tpu.dynamic_rotate %162 by %c4_i32_139 dim 0 : vector<8x256xf32>, i32 -> vector<8x256xf32>
      %c6_140 = arith.constant 6 : index
      %c2_141 = arith.constant 2 : index
      %c0_142 = arith.constant 0 : index
      %c0_143 = arith.constant 0 : index
      %173 = vector.load %arg1[%c6_140, %c2_141, %c0_142, %c0_143] : memref<9x4x8x256xf32, #tpu.memory_space<vmem>>, vector<1x1x8x256xf32>
      %174 = vector.shape_cast %173 : vector<1x1x8x256xf32> to vector<8x256xf32>
      %175 = arith.mulf %174, %172 : vector<8x256xf32>
      %176 = arith.addf %171, %175 : vector<8x256xf32>
      %c2_i32_144 = arith.constant 2 : i32
      %177 = tpu.dynamic_rotate %162 by %c2_i32_144 dim 0 : vector<8x256xf32>, i32 -> vector<8x256xf32>
      %c6_145 = arith.constant 6 : index
      %c3_146 = arith.constant 3 : index
      %c0_147 = arith.constant 0 : index
      %c0_148 = arith.constant 0 : index
      %178 = vector.load %arg1[%c6_145, %c3_146, %c0_147, %c0_148] : memref<9x4x8x256xf32, #tpu.memory_space<vmem>>, vector<1x1x8x256xf32>
      %179 = vector.shape_cast %178 : vector<1x1x8x256xf32> to vector<8x256xf32>
      %180 = arith.mulf %179, %177 : vector<8x256xf32>
      %181 = arith.addf %176, %180 : vector<8x256xf32>
      %c240_i32 = arith.constant 240 : i32
      %182 = tpu.dynamic_rotate %42 by %c240_i32 dim 1 : vector<8x256xf32>, i32 -> vector<8x256xf32>
      %c7 = arith.constant 7 : index
      %c0_149 = arith.constant 0 : index
      %c0_150 = arith.constant 0 : index
      %c0_151 = arith.constant 0 : index
      %183 = vector.load %arg1[%c7, %c0_149, %c0_150, %c0_151] : memref<9x4x8x256xf32, #tpu.memory_space<vmem>>, vector<1x1x8x256xf32>
      %184 = vector.shape_cast %183 : vector<1x1x8x256xf32> to vector<8x256xf32>
      %185 = arith.mulf %184, %182 : vector<8x256xf32>
      %186 = arith.addf %181, %185 : vector<8x256xf32>
      %c6_i32_152 = arith.constant 6 : i32
      %187 = tpu.dynamic_rotate %182 by %c6_i32_152 dim 0 : vector<8x256xf32>, i32 -> vector<8x256xf32>
      %c7_153 = arith.constant 7 : index
      %c1_154 = arith.constant 1 : index
      %c0_155 = arith.constant 0 : index
      %c0_156 = arith.constant 0 : index
      %188 = vector.load %arg1[%c7_153, %c1_154, %c0_155, %c0_156] : memref<9x4x8x256xf32, #tpu.memory_space<vmem>>, vector<1x1x8x256xf32>
      %189 = vector.shape_cast %188 : vector<1x1x8x256xf32> to vector<8x256xf32>
      %190 = arith.mulf %189, %187 : vector<8x256xf32>
      %191 = arith.addf %186, %190 : vector<8x256xf32>
      %c4_i32_157 = arith.constant 4 : i32
      %192 = tpu.dynamic_rotate %182 by %c4_i32_157 dim 0 : vector<8x256xf32>, i32 -> vector<8x256xf32>
      %c7_158 = arith.constant 7 : index
      %c2_159 = arith.constant 2 : index
      %c0_160 = arith.constant 0 : index
      %c0_161 = arith.constant 0 : index
      %193 = vector.load %arg1[%c7_158, %c2_159, %c0_160, %c0_161] : memref<9x4x8x256xf32, #tpu.memory_space<vmem>>, vector<1x1x8x256xf32>
      %194 = vector.shape_cast %193 : vector<1x1x8x256xf32> to vector<8x256xf32>
      %195 = arith.mulf %194, %192 : vector<8x256xf32>
      %196 = arith.addf %191, %195 : vector<8x256xf32>
      %c2_i32_162 = arith.constant 2 : i32
      %197 = tpu.dynamic_rotate %182 by %c2_i32_162 dim 0 : vector<8x256xf32>, i32 -> vector<8x256xf32>
      %c7_163 = arith.constant 7 : index
      %c3_164 = arith.constant 3 : index
      %c0_165 = arith.constant 0 : index
      %c0_166 = arith.constant 0 : index
      %198 = vector.load %arg1[%c7_163, %c3_164, %c0_165, %c0_166] : memref<9x4x8x256xf32, #tpu.memory_space<vmem>>, vector<1x1x8x256xf32>
      %199 = vector.shape_cast %198 : vector<1x1x8x256xf32> to vector<8x256xf32>
      %200 = arith.mulf %199, %197 : vector<8x256xf32>
      %201 = arith.addf %196, %200 : vector<8x256xf32>
      %c239_i32 = arith.constant 239 : i32
      %202 = tpu.dynamic_rotate %42 by %c239_i32 dim 1 : vector<8x256xf32>, i32 -> vector<8x256xf32>
      %c8 = arith.constant 8 : index
      %c0_167 = arith.constant 0 : index
      %c0_168 = arith.constant 0 : index
      %c0_169 = arith.constant 0 : index
      %203 = vector.load %arg1[%c8, %c0_167, %c0_168, %c0_169] : memref<9x4x8x256xf32, #tpu.memory_space<vmem>>, vector<1x1x8x256xf32>
      %204 = vector.shape_cast %203 : vector<1x1x8x256xf32> to vector<8x256xf32>
      %205 = arith.mulf %204, %202 : vector<8x256xf32>
      %206 = arith.addf %201, %205 : vector<8x256xf32>
      %c6_i32_170 = arith.constant 6 : i32
      %207 = tpu.dynamic_rotate %202 by %c6_i32_170 dim 0 : vector<8x256xf32>, i32 -> vector<8x256xf32>
      %c8_171 = arith.constant 8 : index
      %c1_172 = arith.constant 1 : index
      %c0_173 = arith.constant 0 : index
      %c0_174 = arith.constant 0 : index
      %208 = vector.load %arg1[%c8_171, %c1_172, %c0_173, %c0_174] : memref<9x4x8x256xf32, #tpu.memory_space<vmem>>, vector<1x1x8x256xf32>
      %209 = vector.shape_cast %208 : vector<1x1x8x256xf32> to vector<8x256xf32>
      %210 = arith.mulf %209, %207 : vector<8x256xf32>
      %211 = arith.addf %206, %210 : vector<8x256xf32>
      %c4_i32_175 = arith.constant 4 : i32
      %212 = tpu.dynamic_rotate %202 by %c4_i32_175 dim 0 : vector<8x256xf32>, i32 -> vector<8x256xf32>
      %c8_176 = arith.constant 8 : index
      %c2_177 = arith.constant 2 : index
      %c0_178 = arith.constant 0 : index
      %c0_179 = arith.constant 0 : index
      %213 = vector.load %arg1[%c8_176, %c2_177, %c0_178, %c0_179] : memref<9x4x8x256xf32, #tpu.memory_space<vmem>>, vector<1x1x8x256xf32>
      %214 = vector.shape_cast %213 : vector<1x1x8x256xf32> to vector<8x256xf32>
      %215 = arith.mulf %214, %212 : vector<8x256xf32>
      %216 = arith.addf %211, %215 : vector<8x256xf32>
      %c2_i32_180 = arith.constant 2 : i32
      %217 = tpu.dynamic_rotate %202 by %c2_i32_180 dim 0 : vector<8x256xf32>, i32 -> vector<8x256xf32>
      %c8_181 = arith.constant 8 : index
      %c3_182 = arith.constant 3 : index
      %c0_183 = arith.constant 0 : index
      %c0_184 = arith.constant 0 : index
      %218 = vector.load %arg1[%c8_181, %c3_182, %c0_183, %c0_184] : memref<9x4x8x256xf32, #tpu.memory_space<vmem>>, vector<1x1x8x256xf32>
      %219 = vector.shape_cast %218 : vector<1x1x8x256xf32> to vector<8x256xf32>
      %220 = arith.mulf %219, %217 : vector<8x256xf32>
      %221 = arith.addf %216, %220 : vector<8x256xf32>
      %cst_185 = arith.constant dense<0.000000e+00> : vector<8xf32>
      %222 = vector.multi_reduction <add>, %221, %cst_185 [1] : vector<8x256xf32> to vector<8xf32>
      %223 = vector.shape_cast %222 : vector<8xf32> to vector<8x1xf32>
      %224 = arith.mulf %221, %221 : vector<8x256xf32>
      %cst_186 = arith.constant dense<0.000000e+00> : vector<8xf32>
      %225 = vector.multi_reduction <add>, %224, %cst_186 [1] : vector<8x256xf32> to vector<8xf32>
      %226 = vector.shape_cast %225 : vector<8xf32> to vector<8x1xf32>
      %cst_187 = arith.constant 3.906250e-03 : f32
      %227 = vector.broadcast %cst_187 : f32 to vector<8x1xf32>
      %228 = arith.mulf %223, %227 : vector<8x1xf32>
      %cst_188 = arith.constant 3.906250e-03 : f32
      %229 = vector.broadcast %cst_188 : f32 to vector<8x1xf32>
      %230 = arith.mulf %226, %229 : vector<8x1xf32>
      %231 = arith.mulf %228, %228 : vector<8x1xf32>
      %232 = arith.subf %230, %231 : vector<8x1xf32>
      %cst_189 = arith.constant 0.000000e+00 : f32
      %233 = vector.broadcast %cst_189 : f32 to vector<8x1xf32>
      %234 = arith.maximumf %232, %233 : vector<8x1xf32>
      %cst_190 = arith.constant 9.99999974E-6 : f32
      %235 = vector.broadcast %cst_190 : f32 to vector<8x1xf32>
      %236 = arith.addf %234, %235 : vector<8x1xf32>
      %237 = math.rsqrt %236 : vector<8x1xf32>
      %238 = vector.broadcast %228 : vector<8x1xf32> to vector<8x256xf32>
      %239 = arith.subf %221, %238 : vector<8x256xf32>
      %c0_191 = arith.constant 0 : index
      %c0_192 = arith.constant 0 : index
      %240 = vector.load %arg9[%c0_191, %c0_192] : memref<8x256xf32, #tpu.memory_space<vmem>>, vector<8x256xf32>
      %241 = vector.broadcast %237 : vector<8x1xf32> to vector<8x256xf32>
      %242 = arith.mulf %241, %240 : vector<8x256xf32>
      %243 = arith.mulf %239, %242 : vector<8x256xf32>
      %c0_193 = arith.constant 0 : index
      %c0_194 = arith.constant 0 : index
      %244 = vector.load %arg10[%c0_193, %c0_194] : memref<8x256xf32, #tpu.memory_space<vmem>>, vector<8x256xf32>
      %245 = arith.addf %243, %244 : vector<8x256xf32>
      %cst_195 = arith.constant 0.000000e+00 : f32
      %246 = vector.broadcast %cst_195 : f32 to vector<8x256xf32>
      %247 = arith.maximumf %245, %246 : vector<8x256xf32>
      %c17_i32_196 = arith.constant 17 : i32
      %248 = tpu.dynamic_rotate %247 by %c17_i32_196 dim 1 : vector<8x256xf32>, i32 -> vector<8x256xf32>
      %c0_197 = arith.constant 0 : index
      %c0_198 = arith.constant 0 : index
      %c0_199 = arith.constant 0 : index
      %c0_200 = arith.constant 0 : index
      %249 = vector.load %arg4[%c0_197, %c0_198, %c0_199, %c0_200] : memref<9x4x8x256xf32, #tpu.memory_space<vmem>>, vector<1x1x8x256xf32>
      %250 = vector.shape_cast %249 : vector<1x1x8x256xf32> to vector<8x256xf32>
      %251 = arith.mulf %250, %248 : vector<8x256xf32>
      %252 = arith.addf %16, %251 : vector<8x256xf32>
      %c6_i32_201 = arith.constant 6 : i32
      %253 = tpu.dynamic_rotate %248 by %c6_i32_201 dim 0 : vector<8x256xf32>, i32 -> vector<8x256xf32>
      %c0_202 = arith.constant 0 : index
      %c1_203 = arith.constant 1 : index
      %c0_204 = arith.constant 0 : index
      %c0_205 = arith.constant 0 : index
      %254 = vector.load %arg4[%c0_202, %c1_203, %c0_204, %c0_205] : memref<9x4x8x256xf32, #tpu.memory_space<vmem>>, vector<1x1x8x256xf32>
      %255 = vector.shape_cast %254 : vector<1x1x8x256xf32> to vector<8x256xf32>
      %256 = arith.mulf %255, %253 : vector<8x256xf32>
      %257 = arith.addf %252, %256 : vector<8x256xf32>
      %c4_i32_206 = arith.constant 4 : i32
      %258 = tpu.dynamic_rotate %248 by %c4_i32_206 dim 0 : vector<8x256xf32>, i32 -> vector<8x256xf32>
      %c0_207 = arith.constant 0 : index
      %c2_208 = arith.constant 2 : index
      %c0_209 = arith.constant 0 : index
      %c0_210 = arith.constant 0 : index
      %259 = vector.load %arg4[%c0_207, %c2_208, %c0_209, %c0_210] : memref<9x4x8x256xf32, #tpu.memory_space<vmem>>, vector<1x1x8x256xf32>
      %260 = vector.shape_cast %259 : vector<1x1x8x256xf32> to vector<8x256xf32>
      %261 = arith.mulf %260, %258 : vector<8x256xf32>
      %262 = arith.addf %257, %261 : vector<8x256xf32>
      %c2_i32_211 = arith.constant 2 : i32
      %263 = tpu.dynamic_rotate %248 by %c2_i32_211 dim 0 : vector<8x256xf32>, i32 -> vector<8x256xf32>
      %c0_212 = arith.constant 0 : index
      %c3_213 = arith.constant 3 : index
      %c0_214 = arith.constant 0 : index
      %c0_215 = arith.constant 0 : index
      %264 = vector.load %arg4[%c0_212, %c3_213, %c0_214, %c0_215] : memref<9x4x8x256xf32, #tpu.memory_space<vmem>>, vector<1x1x8x256xf32>
      %265 = vector.shape_cast %264 : vector<1x1x8x256xf32> to vector<8x256xf32>
      %266 = arith.mulf %265, %263 : vector<8x256xf32>
      %267 = arith.addf %262, %266 : vector<8x256xf32>
      %c16_i32_216 = arith.constant 16 : i32
      %268 = tpu.dynamic_rotate %247 by %c16_i32_216 dim 1 : vector<8x256xf32>, i32 -> vector<8x256xf32>
      %c1_217 = arith.constant 1 : index
      %c0_218 = arith.constant 0 : index
      %c0_219 = arith.constant 0 : index
      %c0_220 = arith.constant 0 : index
      %269 = vector.load %arg4[%c1_217, %c0_218, %c0_219, %c0_220] : memref<9x4x8x256xf32, #tpu.memory_space<vmem>>, vector<1x1x8x256xf32>
      %270 = vector.shape_cast %269 : vector<1x1x8x256xf32> to vector<8x256xf32>
      %271 = arith.mulf %270, %268 : vector<8x256xf32>
      %272 = arith.addf %267, %271 : vector<8x256xf32>
      %c6_i32_221 = arith.constant 6 : i32
      %273 = tpu.dynamic_rotate %268 by %c6_i32_221 dim 0 : vector<8x256xf32>, i32 -> vector<8x256xf32>
      %c1_222 = arith.constant 1 : index
      %c1_223 = arith.constant 1 : index
      %c0_224 = arith.constant 0 : index
      %c0_225 = arith.constant 0 : index
      %274 = vector.load %arg4[%c1_222, %c1_223, %c0_224, %c0_225] : memref<9x4x8x256xf32, #tpu.memory_space<vmem>>, vector<1x1x8x256xf32>
      %275 = vector.shape_cast %274 : vector<1x1x8x256xf32> to vector<8x256xf32>
      %276 = arith.mulf %275, %273 : vector<8x256xf32>
      %277 = arith.addf %272, %276 : vector<8x256xf32>
      %c4_i32_226 = arith.constant 4 : i32
      %278 = tpu.dynamic_rotate %268 by %c4_i32_226 dim 0 : vector<8x256xf32>, i32 -> vector<8x256xf32>
      %c1_227 = arith.constant 1 : index
      %c2_228 = arith.constant 2 : index
      %c0_229 = arith.constant 0 : index
      %c0_230 = arith.constant 0 : index
      %279 = vector.load %arg4[%c1_227, %c2_228, %c0_229, %c0_230] : memref<9x4x8x256xf32, #tpu.memory_space<vmem>>, vector<1x1x8x256xf32>
      %280 = vector.shape_cast %279 : vector<1x1x8x256xf32> to vector<8x256xf32>
      %281 = arith.mulf %280, %278 : vector<8x256xf32>
      %282 = arith.addf %277, %281 : vector<8x256xf32>
      %c2_i32_231 = arith.constant 2 : i32
      %283 = tpu.dynamic_rotate %268 by %c2_i32_231 dim 0 : vector<8x256xf32>, i32 -> vector<8x256xf32>
      %c1_232 = arith.constant 1 : index
      %c3_233 = arith.constant 3 : index
      %c0_234 = arith.constant 0 : index
      %c0_235 = arith.constant 0 : index
      %284 = vector.load %arg4[%c1_232, %c3_233, %c0_234, %c0_235] : memref<9x4x8x256xf32, #tpu.memory_space<vmem>>, vector<1x1x8x256xf32>
      %285 = vector.shape_cast %284 : vector<1x1x8x256xf32> to vector<8x256xf32>
      %286 = arith.mulf %285, %283 : vector<8x256xf32>
      %287 = arith.addf %282, %286 : vector<8x256xf32>
      %c15_i32_236 = arith.constant 15 : i32
      %288 = tpu.dynamic_rotate %247 by %c15_i32_236 dim 1 : vector<8x256xf32>, i32 -> vector<8x256xf32>
      %c2_237 = arith.constant 2 : index
      %c0_238 = arith.constant 0 : index
      %c0_239 = arith.constant 0 : index
      %c0_240 = arith.constant 0 : index
      %289 = vector.load %arg4[%c2_237, %c0_238, %c0_239, %c0_240] : memref<9x4x8x256xf32, #tpu.memory_space<vmem>>, vector<1x1x8x256xf32>
      %290 = vector.shape_cast %289 : vector<1x1x8x256xf32> to vector<8x256xf32>
      %291 = arith.mulf %290, %288 : vector<8x256xf32>
      %292 = arith.addf %287, %291 : vector<8x256xf32>
      %c6_i32_241 = arith.constant 6 : i32
      %293 = tpu.dynamic_rotate %288 by %c6_i32_241 dim 0 : vector<8x256xf32>, i32 -> vector<8x256xf32>
      %c2_242 = arith.constant 2 : index
      %c1_243 = arith.constant 1 : index
      %c0_244 = arith.constant 0 : index
      %c0_245 = arith.constant 0 : index
      %294 = vector.load %arg4[%c2_242, %c1_243, %c0_244, %c0_245] : memref<9x4x8x256xf32, #tpu.memory_space<vmem>>, vector<1x1x8x256xf32>
      %295 = vector.shape_cast %294 : vector<1x1x8x256xf32> to vector<8x256xf32>
      %296 = arith.mulf %295, %293 : vector<8x256xf32>
      %297 = arith.addf %292, %296 : vector<8x256xf32>
      %c4_i32_246 = arith.constant 4 : i32
      %298 = tpu.dynamic_rotate %288 by %c4_i32_246 dim 0 : vector<8x256xf32>, i32 -> vector<8x256xf32>
      %c2_247 = arith.constant 2 : index
      %c2_248 = arith.constant 2 : index
      %c0_249 = arith.constant 0 : index
      %c0_250 = arith.constant 0 : index
      %299 = vector.load %arg4[%c2_247, %c2_248, %c0_249, %c0_250] : memref<9x4x8x256xf32, #tpu.memory_space<vmem>>, vector<1x1x8x256xf32>
      %300 = vector.shape_cast %299 : vector<1x1x8x256xf32> to vector<8x256xf32>
      %301 = arith.mulf %300, %298 : vector<8x256xf32>
      %302 = arith.addf %297, %301 : vector<8x256xf32>
      %c2_i32_251 = arith.constant 2 : i32
      %303 = tpu.dynamic_rotate %288 by %c2_i32_251 dim 0 : vector<8x256xf32>, i32 -> vector<8x256xf32>
      %c2_252 = arith.constant 2 : index
      %c3_253 = arith.constant 3 : index
      %c0_254 = arith.constant 0 : index
      %c0_255 = arith.constant 0 : index
      %304 = vector.load %arg4[%c2_252, %c3_253, %c0_254, %c0_255] : memref<9x4x8x256xf32, #tpu.memory_space<vmem>>, vector<1x1x8x256xf32>
      %305 = vector.shape_cast %304 : vector<1x1x8x256xf32> to vector<8x256xf32>
      %306 = arith.mulf %305, %303 : vector<8x256xf32>
      %307 = arith.addf %302, %306 : vector<8x256xf32>
      %c1_i32_256 = arith.constant 1 : i32
      %308 = tpu.dynamic_rotate %247 by %c1_i32_256 dim 1 : vector<8x256xf32>, i32 -> vector<8x256xf32>
      %c3_257 = arith.constant 3 : index
      %c0_258 = arith.constant 0 : index
      %c0_259 = arith.constant 0 : index
      %c0_260 = arith.constant 0 : index
      %309 = vector.load %arg4[%c3_257, %c0_258, %c0_259, %c0_260] : memref<9x4x8x256xf32, #tpu.memory_space<vmem>>, vector<1x1x8x256xf32>
      %310 = vector.shape_cast %309 : vector<1x1x8x256xf32> to vector<8x256xf32>
      %311 = arith.mulf %310, %308 : vector<8x256xf32>
      %312 = arith.addf %307, %311 : vector<8x256xf32>
      %c6_i32_261 = arith.constant 6 : i32
      %313 = tpu.dynamic_rotate %308 by %c6_i32_261 dim 0 : vector<8x256xf32>, i32 -> vector<8x256xf32>
      %c3_262 = arith.constant 3 : index
      %c1_263 = arith.constant 1 : index
      %c0_264 = arith.constant 0 : index
      %c0_265 = arith.constant 0 : index
      %314 = vector.load %arg4[%c3_262, %c1_263, %c0_264, %c0_265] : memref<9x4x8x256xf32, #tpu.memory_space<vmem>>, vector<1x1x8x256xf32>
      %315 = vector.shape_cast %314 : vector<1x1x8x256xf32> to vector<8x256xf32>
      %316 = arith.mulf %315, %313 : vector<8x256xf32>
      %317 = arith.addf %312, %316 : vector<8x256xf32>
      %c4_i32_266 = arith.constant 4 : i32
      %318 = tpu.dynamic_rotate %308 by %c4_i32_266 dim 0 : vector<8x256xf32>, i32 -> vector<8x256xf32>
      %c3_267 = arith.constant 3 : index
      %c2_268 = arith.constant 2 : index
      %c0_269 = arith.constant 0 : index
      %c0_270 = arith.constant 0 : index
      %319 = vector.load %arg4[%c3_267, %c2_268, %c0_269, %c0_270] : memref<9x4x8x256xf32, #tpu.memory_space<vmem>>, vector<1x1x8x256xf32>
      %320 = vector.shape_cast %319 : vector<1x1x8x256xf32> to vector<8x256xf32>
      %321 = arith.mulf %320, %318 : vector<8x256xf32>
      %322 = arith.addf %317, %321 : vector<8x256xf32>
      %c2_i32_271 = arith.constant 2 : i32
      %323 = tpu.dynamic_rotate %308 by %c2_i32_271 dim 0 : vector<8x256xf32>, i32 -> vector<8x256xf32>
      %c3_272 = arith.constant 3 : index
      %c3_273 = arith.constant 3 : index
      %c0_274 = arith.constant 0 : index
      %c0_275 = arith.constant 0 : index
      %324 = vector.load %arg4[%c3_272, %c3_273, %c0_274, %c0_275] : memref<9x4x8x256xf32, #tpu.memory_space<vmem>>, vector<1x1x8x256xf32>
      %325 = vector.shape_cast %324 : vector<1x1x8x256xf32> to vector<8x256xf32>
      %326 = arith.mulf %325, %323 : vector<8x256xf32>
      %327 = arith.addf %322, %326 : vector<8x256xf32>
      %c4_276 = arith.constant 4 : index
      %c0_277 = arith.constant 0 : index
      %c0_278 = arith.constant 0 : index
      %c0_279 = arith.constant 0 : index
      %328 = vector.load %arg4[%c4_276, %c0_277, %c0_278, %c0_279] : memref<9x4x8x256xf32, #tpu.memory_space<vmem>>, vector<1x1x8x256xf32>
      %329 = vector.shape_cast %328 : vector<1x1x8x256xf32> to vector<8x256xf32>
      %330 = arith.mulf %329, %247 : vector<8x256xf32>
      %331 = arith.addf %327, %330 : vector<8x256xf32>
      %c6_i32_280 = arith.constant 6 : i32
      %332 = tpu.dynamic_rotate %247 by %c6_i32_280 dim 0 : vector<8x256xf32>, i32 -> vector<8x256xf32>
      %c4_281 = arith.constant 4 : index
      %c1_282 = arith.constant 1 : index
      %c0_283 = arith.constant 0 : index
      %c0_284 = arith.constant 0 : index
      %333 = vector.load %arg4[%c4_281, %c1_282, %c0_283, %c0_284] : memref<9x4x8x256xf32, #tpu.memory_space<vmem>>, vector<1x1x8x256xf32>
      %334 = vector.shape_cast %333 : vector<1x1x8x256xf32> to vector<8x256xf32>
      %335 = arith.mulf %334, %332 : vector<8x256xf32>
      %336 = arith.addf %331, %335 : vector<8x256xf32>
      %c4_i32_285 = arith.constant 4 : i32
      %337 = tpu.dynamic_rotate %247 by %c4_i32_285 dim 0 : vector<8x256xf32>, i32 -> vector<8x256xf32>
      %c4_286 = arith.constant 4 : index
      %c2_287 = arith.constant 2 : index
      %c0_288 = arith.constant 0 : index
      %c0_289 = arith.constant 0 : index
      %338 = vector.load %arg4[%c4_286, %c2_287, %c0_288, %c0_289] : memref<9x4x8x256xf32, #tpu.memory_space<vmem>>, vector<1x1x8x256xf32>
      %339 = vector.shape_cast %338 : vector<1x1x8x256xf32> to vector<8x256xf32>
      %340 = arith.mulf %339, %337 : vector<8x256xf32>
      %341 = arith.addf %336, %340 : vector<8x256xf32>
      %c2_i32_290 = arith.constant 2 : i32
      %342 = tpu.dynamic_rotate %247 by %c2_i32_290 dim 0 : vector<8x256xf32>, i32 -> vector<8x256xf32>
      %c4_291 = arith.constant 4 : index
      %c3_292 = arith.constant 3 : index
      %c0_293 = arith.constant 0 : index
      %c0_294 = arith.constant 0 : index
      %343 = vector.load %arg4[%c4_291, %c3_292, %c0_293, %c0_294] : memref<9x4x8x256xf32, #tpu.memory_space<vmem>>, vector<1x1x8x256xf32>
      %344 = vector.shape_cast %343 : vector<1x1x8x256xf32> to vector<8x256xf32>
      %345 = arith.mulf %344, %342 : vector<8x256xf32>
      %346 = arith.addf %341, %345 : vector<8x256xf32>
      %c255_i32_295 = arith.constant 255 : i32
      %347 = tpu.dynamic_rotate %247 by %c255_i32_295 dim 1 : vector<8x256xf32>, i32 -> vector<8x256xf32>
      %c5_296 = arith.constant 5 : index
      %c0_297 = arith.constant 0 : index
      %c0_298 = arith.constant 0 : index
      %c0_299 = arith.constant 0 : index
      %348 = vector.load %arg4[%c5_296, %c0_297, %c0_298, %c0_299] : memref<9x4x8x256xf32, #tpu.memory_space<vmem>>, vector<1x1x8x256xf32>
      %349 = vector.shape_cast %348 : vector<1x1x8x256xf32> to vector<8x256xf32>
      %350 = arith.mulf %349, %347 : vector<8x256xf32>
      %351 = arith.addf %346, %350 : vector<8x256xf32>
      %c6_i32_300 = arith.constant 6 : i32
      %352 = tpu.dynamic_rotate %347 by %c6_i32_300 dim 0 : vector<8x256xf32>, i32 -> vector<8x256xf32>
      %c5_301 = arith.constant 5 : index
      %c1_302 = arith.constant 1 : index
      %c0_303 = arith.constant 0 : index
      %c0_304 = arith.constant 0 : index
      %353 = vector.load %arg4[%c5_301, %c1_302, %c0_303, %c0_304] : memref<9x4x8x256xf32, #tpu.memory_space<vmem>>, vector<1x1x8x256xf32>
      %354 = vector.shape_cast %353 : vector<1x1x8x256xf32> to vector<8x256xf32>
      %355 = arith.mulf %354, %352 : vector<8x256xf32>
      %356 = arith.addf %351, %355 : vector<8x256xf32>
      %c4_i32_305 = arith.constant 4 : i32
      %357 = tpu.dynamic_rotate %347 by %c4_i32_305 dim 0 : vector<8x256xf32>, i32 -> vector<8x256xf32>
      %c5_306 = arith.constant 5 : index
      %c2_307 = arith.constant 2 : index
      %c0_308 = arith.constant 0 : index
      %c0_309 = arith.constant 0 : index
      %358 = vector.load %arg4[%c5_306, %c2_307, %c0_308, %c0_309] : memref<9x4x8x256xf32, #tpu.memory_space<vmem>>, vector<1x1x8x256xf32>
      %359 = vector.shape_cast %358 : vector<1x1x8x256xf32> to vector<8x256xf32>
      %360 = arith.mulf %359, %357 : vector<8x256xf32>
      %361 = arith.addf %356, %360 : vector<8x256xf32>
      %c2_i32_310 = arith.constant 2 : i32
      %362 = tpu.dynamic_rotate %347 by %c2_i32_310 dim 0 : vector<8x256xf32>, i32 -> vector<8x256xf32>
      %c5_311 = arith.constant 5 : index
      %c3_312 = arith.constant 3 : index
      %c0_313 = arith.constant 0 : index
      %c0_314 = arith.constant 0 : index
      %363 = vector.load %arg4[%c5_311, %c3_312, %c0_313, %c0_314] : memref<9x4x8x256xf32, #tpu.memory_space<vmem>>, vector<1x1x8x256xf32>
      %364 = vector.shape_cast %363 : vector<1x1x8x256xf32> to vector<8x256xf32>
      %365 = arith.mulf %364, %362 : vector<8x256xf32>
      %366 = arith.addf %361, %365 : vector<8x256xf32>
      %c241_i32_315 = arith.constant 241 : i32
      %367 = tpu.dynamic_rotate %247 by %c241_i32_315 dim 1 : vector<8x256xf32>, i32 -> vector<8x256xf32>
      %c6_316 = arith.constant 6 : index
      %c0_317 = arith.constant 0 : index
      %c0_318 = arith.constant 0 : index
      %c0_319 = arith.constant 0 : index
      %368 = vector.load %arg4[%c6_316, %c0_317, %c0_318, %c0_319] : memref<9x4x8x256xf32, #tpu.memory_space<vmem>>, vector<1x1x8x256xf32>
      %369 = vector.shape_cast %368 : vector<1x1x8x256xf32> to vector<8x256xf32>
      %370 = arith.mulf %369, %367 : vector<8x256xf32>
      %371 = arith.addf %366, %370 : vector<8x256xf32>
      %c6_i32_320 = arith.constant 6 : i32
      %372 = tpu.dynamic_rotate %367 by %c6_i32_320 dim 0 : vector<8x256xf32>, i32 -> vector<8x256xf32>
      %c6_321 = arith.constant 6 : index
      %c1_322 = arith.constant 1 : index
      %c0_323 = arith.constant 0 : index
      %c0_324 = arith.constant 0 : index
      %373 = vector.load %arg4[%c6_321, %c1_322, %c0_323, %c0_324] : memref<9x4x8x256xf32, #tpu.memory_space<vmem>>, vector<1x1x8x256xf32>
      %374 = vector.shape_cast %373 : vector<1x1x8x256xf32> to vector<8x256xf32>
      %375 = arith.mulf %374, %372 : vector<8x256xf32>
      %376 = arith.addf %371, %375 : vector<8x256xf32>
      %c4_i32_325 = arith.constant 4 : i32
      %377 = tpu.dynamic_rotate %367 by %c4_i32_325 dim 0 : vector<8x256xf32>, i32 -> vector<8x256xf32>
      %c6_326 = arith.constant 6 : index
      %c2_327 = arith.constant 2 : index
      %c0_328 = arith.constant 0 : index
      %c0_329 = arith.constant 0 : index
      %378 = vector.load %arg4[%c6_326, %c2_327, %c0_328, %c0_329] : memref<9x4x8x256xf32, #tpu.memory_space<vmem>>, vector<1x1x8x256xf32>
      %379 = vector.shape_cast %378 : vector<1x1x8x256xf32> to vector<8x256xf32>
      %380 = arith.mulf %379, %377 : vector<8x256xf32>
      %381 = arith.addf %376, %380 : vector<8x256xf32>
      %c2_i32_330 = arith.constant 2 : i32
      %382 = tpu.dynamic_rotate %367 by %c2_i32_330 dim 0 : vector<8x256xf32>, i32 -> vector<8x256xf32>
      %c6_331 = arith.constant 6 : index
      %c3_332 = arith.constant 3 : index
      %c0_333 = arith.constant 0 : index
      %c0_334 = arith.constant 0 : index
      %383 = vector.load %arg4[%c6_331, %c3_332, %c0_333, %c0_334] : memref<9x4x8x256xf32, #tpu.memory_space<vmem>>, vector<1x1x8x256xf32>
      %384 = vector.shape_cast %383 : vector<1x1x8x256xf32> to vector<8x256xf32>
      %385 = arith.mulf %384, %382 : vector<8x256xf32>
      %386 = arith.addf %381, %385 : vector<8x256xf32>
      %c240_i32_335 = arith.constant 240 : i32
      %387 = tpu.dynamic_rotate %247 by %c240_i32_335 dim 1 : vector<8x256xf32>, i32 -> vector<8x256xf32>
      %c7_336 = arith.constant 7 : index
      %c0_337 = arith.constant 0 : index
      %c0_338 = arith.constant 0 : index
      %c0_339 = arith.constant 0 : index
      %388 = vector.load %arg4[%c7_336, %c0_337, %c0_338, %c0_339] : memref<9x4x8x256xf32, #tpu.memory_space<vmem>>, vector<1x1x8x256xf32>
      %389 = vector.shape_cast %388 : vector<1x1x8x256xf32> to vector<8x256xf32>
      %390 = arith.mulf %389, %387 : vector<8x256xf32>
      %391 = arith.addf %386, %390 : vector<8x256xf32>
      %c6_i32_340 = arith.constant 6 : i32
      %392 = tpu.dynamic_rotate %387 by %c6_i32_340 dim 0 : vector<8x256xf32>, i32 -> vector<8x256xf32>
      %c7_341 = arith.constant 7 : index
      %c1_342 = arith.constant 1 : index
      %c0_343 = arith.constant 0 : index
      %c0_344 = arith.constant 0 : index
      %393 = vector.load %arg4[%c7_341, %c1_342, %c0_343, %c0_344] : memref<9x4x8x256xf32, #tpu.memory_space<vmem>>, vector<1x1x8x256xf32>
      %394 = vector.shape_cast %393 : vector<1x1x8x256xf32> to vector<8x256xf32>
      %395 = arith.mulf %394, %392 : vector<8x256xf32>
      %396 = arith.addf %391, %395 : vector<8x256xf32>
      %c4_i32_345 = arith.constant 4 : i32
      %397 = tpu.dynamic_rotate %387 by %c4_i32_345 dim 0 : vector<8x256xf32>, i32 -> vector<8x256xf32>
      %c7_346 = arith.constant 7 : index
      %c2_347 = arith.constant 2 : index
      %c0_348 = arith.constant 0 : index
      %c0_349 = arith.constant 0 : index
      %398 = vector.load %arg4[%c7_346, %c2_347, %c0_348, %c0_349] : memref<9x4x8x256xf32, #tpu.memory_space<vmem>>, vector<1x1x8x256xf32>
      %399 = vector.shape_cast %398 : vector<1x1x8x256xf32> to vector<8x256xf32>
      %400 = arith.mulf %399, %397 : vector<8x256xf32>
      %401 = arith.addf %396, %400 : vector<8x256xf32>
      %c2_i32_350 = arith.constant 2 : i32
      %402 = tpu.dynamic_rotate %387 by %c2_i32_350 dim 0 : vector<8x256xf32>, i32 -> vector<8x256xf32>
      %c7_351 = arith.constant 7 : index
      %c3_352 = arith.constant 3 : index
      %c0_353 = arith.constant 0 : index
      %c0_354 = arith.constant 0 : index
      %403 = vector.load %arg4[%c7_351, %c3_352, %c0_353, %c0_354] : memref<9x4x8x256xf32, #tpu.memory_space<vmem>>, vector<1x1x8x256xf32>
      %404 = vector.shape_cast %403 : vector<1x1x8x256xf32> to vector<8x256xf32>
      %405 = arith.mulf %404, %402 : vector<8x256xf32>
      %406 = arith.addf %401, %405 : vector<8x256xf32>
      %c239_i32_355 = arith.constant 239 : i32
      %407 = tpu.dynamic_rotate %247 by %c239_i32_355 dim 1 : vector<8x256xf32>, i32 -> vector<8x256xf32>
      %c8_356 = arith.constant 8 : index
      %c0_357 = arith.constant 0 : index
      %c0_358 = arith.constant 0 : index
      %c0_359 = arith.constant 0 : index
      %408 = vector.load %arg4[%c8_356, %c0_357, %c0_358, %c0_359] : memref<9x4x8x256xf32, #tpu.memory_space<vmem>>, vector<1x1x8x256xf32>
      %409 = vector.shape_cast %408 : vector<1x1x8x256xf32> to vector<8x256xf32>
      %410 = arith.mulf %409, %407 : vector<8x256xf32>
      %411 = arith.addf %406, %410 : vector<8x256xf32>
      %c6_i32_360 = arith.constant 6 : i32
      %412 = tpu.dynamic_rotate %407 by %c6_i32_360 dim 0 : vector<8x256xf32>, i32 -> vector<8x256xf32>
      %c8_361 = arith.constant 8 : index
      %c1_362 = arith.constant 1 : index
      %c0_363 = arith.constant 0 : index
      %c0_364 = arith.constant 0 : index
      %413 = vector.load %arg4[%c8_361, %c1_362, %c0_363, %c0_364] : memref<9x4x8x256xf32, #tpu.memory_space<vmem>>, vector<1x1x8x256xf32>
      %414 = vector.shape_cast %413 : vector<1x1x8x256xf32> to vector<8x256xf32>
      %415 = arith.mulf %414, %412 : vector<8x256xf32>
      %416 = arith.addf %411, %415 : vector<8x256xf32>
      %c4_i32_365 = arith.constant 4 : i32
      %417 = tpu.dynamic_rotate %407 by %c4_i32_365 dim 0 : vector<8x256xf32>, i32 -> vector<8x256xf32>
      %c8_366 = arith.constant 8 : index
      %c2_367 = arith.constant 2 : index
      %c0_368 = arith.constant 0 : index
      %c0_369 = arith.constant 0 : index
      %418 = vector.load %arg4[%c8_366, %c2_367, %c0_368, %c0_369] : memref<9x4x8x256xf32, #tpu.memory_space<vmem>>, vector<1x1x8x256xf32>
      %419 = vector.shape_cast %418 : vector<1x1x8x256xf32> to vector<8x256xf32>
      %420 = arith.mulf %419, %417 : vector<8x256xf32>
      %421 = arith.addf %416, %420 : vector<8x256xf32>
      %c2_i32_370 = arith.constant 2 : i32
      %422 = tpu.dynamic_rotate %407 by %c2_i32_370 dim 0 : vector<8x256xf32>, i32 -> vector<8x256xf32>
      %c8_371 = arith.constant 8 : index
      %c3_372 = arith.constant 3 : index
      %c0_373 = arith.constant 0 : index
      %c0_374 = arith.constant 0 : index
      %423 = vector.load %arg4[%c8_371, %c3_372, %c0_373, %c0_374] : memref<9x4x8x256xf32, #tpu.memory_space<vmem>>, vector<1x1x8x256xf32>
      %424 = vector.shape_cast %423 : vector<1x1x8x256xf32> to vector<8x256xf32>
      %425 = arith.mulf %424, %422 : vector<8x256xf32>
      %426 = arith.addf %421, %425 : vector<8x256xf32>
      %cst_375 = arith.constant dense<0.000000e+00> : vector<8xf32>
      %427 = vector.multi_reduction <add>, %426, %cst_375 [1] : vector<8x256xf32> to vector<8xf32>
      %428 = vector.shape_cast %427 : vector<8xf32> to vector<8x1xf32>
      %429 = arith.mulf %426, %426 : vector<8x256xf32>
      %cst_376 = arith.constant dense<0.000000e+00> : vector<8xf32>
      %430 = vector.multi_reduction <add>, %429, %cst_376 [1] : vector<8x256xf32> to vector<8xf32>
      %431 = vector.shape_cast %430 : vector<8xf32> to vector<8x1xf32>
      %cst_377 = arith.constant 3.906250e-03 : f32
      %432 = vector.broadcast %cst_377 : f32 to vector<8x1xf32>
      %433 = arith.mulf %428, %432 : vector<8x1xf32>
      %cst_378 = arith.constant 3.906250e-03 : f32
      %434 = vector.broadcast %cst_378 : f32 to vector<8x1xf32>
      %435 = arith.mulf %431, %434 : vector<8x1xf32>
      %436 = arith.mulf %433, %433 : vector<8x1xf32>
      %437 = arith.subf %435, %436 : vector<8x1xf32>
      %cst_379 = arith.constant 0.000000e+00 : f32
      %438 = vector.broadcast %cst_379 : f32 to vector<8x1xf32>
      %439 = arith.maximumf %437, %438 : vector<8x1xf32>
      %cst_380 = arith.constant 9.99999974E-6 : f32
      %440 = vector.broadcast %cst_380 : f32 to vector<8x1xf32>
      %441 = arith.addf %439, %440 : vector<8x1xf32>
      %442 = math.rsqrt %441 : vector<8x1xf32>
      %443 = vector.broadcast %433 : vector<8x1xf32> to vector<8x256xf32>
      %444 = arith.subf %426, %443 : vector<8x256xf32>
      %c0_381 = arith.constant 0 : index
      %c0_382 = arith.constant 0 : index
      %445 = vector.load %arg11[%c0_381, %c0_382] : memref<8x256xf32, #tpu.memory_space<vmem>>, vector<8x256xf32>
      %446 = vector.broadcast %442 : vector<8x1xf32> to vector<8x256xf32>
      %447 = arith.mulf %446, %445 : vector<8x256xf32>
      %448 = arith.mulf %444, %447 : vector<8x256xf32>
      %c0_383 = arith.constant 0 : index
      %c0_384 = arith.constant 0 : index
      %449 = vector.load %arg12[%c0_383, %c0_384] : memref<8x256xf32, #tpu.memory_space<vmem>>, vector<8x256xf32>
      %450 = arith.addf %448, %449 : vector<8x256xf32>
      %cst_385 = arith.constant 1.250000e-01 : f32
      %451 = arith.addf %6, %cst_385 : f32
      %c0_386 = arith.constant 0 : index
      %c0_387 = arith.constant 0 : index
      %452 = vector.load %arg2[%c0_386, %c0_387] : memref<8x256xf32, #tpu.memory_space<vmem>>, vector<8x256xf32>
      %c0_388 = arith.constant 0 : index
      %c0_389 = arith.constant 0 : index
      %453 = vector.load %arg3[%c0_388, %c0_389] : memref<8x256xf32, #tpu.memory_space<vmem>>, vector<8x256xf32>
      %454 = vector.broadcast %451 : f32 to vector<8x256xf32>
      %455 = arith.mulf %454, %453 : vector<8x256xf32>
      %456 = arith.addf %452, %455 : vector<8x256xf32>
      %c0_390 = arith.constant 0 : index
      %c0_391 = arith.constant 0 : index
      %457 = vector.load %arg5[%c0_390, %c0_391] : memref<8x256xf32, #tpu.memory_space<vmem>>, vector<8x256xf32>
      %c0_392 = arith.constant 0 : index
      %c0_393 = arith.constant 0 : index
      %458 = vector.load %arg6[%c0_392, %c0_393] : memref<8x256xf32, #tpu.memory_space<vmem>>, vector<8x256xf32>
      %459 = vector.broadcast %451 : f32 to vector<8x256xf32>
      %460 = arith.mulf %459, %458 : vector<8x256xf32>
      %461 = arith.addf %457, %460 : vector<8x256xf32>
      %cst_394 = arith.constant 1.250000e-01 : f32
      %462 = vector.broadcast %cst_394 : f32 to vector<8x256xf32>
      %463 = arith.mulf %462, %450 : vector<8x256xf32>
      %464 = arith.addf %arg15, %463 : vector<8x256xf32>
      %cst_395 = arith.constant dense<0.000000e+00> : vector<8xf32>
      %465 = vector.multi_reduction <add>, %464, %cst_395 [1] : vector<8x256xf32> to vector<8xf32>
      %466 = vector.shape_cast %465 : vector<8xf32> to vector<8x1xf32>
      %467 = arith.mulf %464, %464 : vector<8x256xf32>
      %cst_396 = arith.constant dense<0.000000e+00> : vector<8xf32>
      %468 = vector.multi_reduction <add>, %467, %cst_396 [1] : vector<8x256xf32> to vector<8xf32>
      %469 = vector.shape_cast %468 : vector<8xf32> to vector<8x1xf32>
      %cst_397 = arith.constant 3.906250e-03 : f32
      %470 = vector.broadcast %cst_397 : f32 to vector<8x1xf32>
      %471 = arith.mulf %466, %470 : vector<8x1xf32>
      %cst_398 = arith.constant 3.906250e-03 : f32
      %472 = vector.broadcast %cst_398 : f32 to vector<8x1xf32>
      %473 = arith.mulf %469, %472 : vector<8x1xf32>
      %474 = arith.mulf %471, %471 : vector<8x1xf32>
      %475 = arith.subf %473, %474 : vector<8x1xf32>
      %cst_399 = arith.constant 0.000000e+00 : f32
      %476 = vector.broadcast %cst_399 : f32 to vector<8x1xf32>
      %477 = arith.maximumf %475, %476 : vector<8x1xf32>
      %cst_400 = arith.constant 9.99999974E-6 : f32
      %478 = vector.broadcast %cst_400 : f32 to vector<8x1xf32>
      %479 = arith.addf %477, %478 : vector<8x1xf32>
      %480 = math.rsqrt %479 : vector<8x1xf32>
      %481 = vector.broadcast %471 : vector<8x1xf32> to vector<8x256xf32>
      %482 = arith.subf %464, %481 : vector<8x256xf32>
      %c0_401 = arith.constant 0 : index
      %c0_402 = arith.constant 0 : index
      %483 = vector.load %arg7[%c0_401, %c0_402] : memref<8x256xf32, #tpu.memory_space<vmem>>, vector<8x256xf32>
      %484 = vector.broadcast %480 : vector<8x1xf32> to vector<8x256xf32>
      %485 = arith.mulf %484, %483 : vector<8x256xf32>
      %486 = arith.mulf %482, %485 : vector<8x256xf32>
      %c0_403 = arith.constant 0 : index
      %c0_404 = arith.constant 0 : index
      %487 = vector.load %arg8[%c0_403, %c0_404] : memref<8x256xf32, #tpu.memory_space<vmem>>, vector<8x256xf32>
      %488 = arith.addf %486, %487 : vector<8x256xf32>
      %cst_405 = arith.constant 0.000000e+00 : f32
      %489 = vector.broadcast %cst_405 : f32 to vector<8x256xf32>
      %490 = arith.maximumf %488, %489 : vector<8x256xf32>
      %c17_i32_406 = arith.constant 17 : i32
      %491 = tpu.dynamic_rotate %490 by %c17_i32_406 dim 1 : vector<8x256xf32>, i32 -> vector<8x256xf32>
      %c0_407 = arith.constant 0 : index
      %c0_408 = arith.constant 0 : index
      %c0_409 = arith.constant 0 : index
      %c0_410 = arith.constant 0 : index
      %492 = vector.load %arg1[%c0_407, %c0_408, %c0_409, %c0_410] : memref<9x4x8x256xf32, #tpu.memory_space<vmem>>, vector<1x1x8x256xf32>
      %493 = vector.shape_cast %492 : vector<1x1x8x256xf32> to vector<8x256xf32>
      %494 = arith.mulf %493, %491 : vector<8x256xf32>
      %495 = arith.addf %456, %494 : vector<8x256xf32>
      %c6_i32_411 = arith.constant 6 : i32
      %496 = tpu.dynamic_rotate %491 by %c6_i32_411 dim 0 : vector<8x256xf32>, i32 -> vector<8x256xf32>
      %c0_412 = arith.constant 0 : index
      %c1_413 = arith.constant 1 : index
      %c0_414 = arith.constant 0 : index
      %c0_415 = arith.constant 0 : index
      %497 = vector.load %arg1[%c0_412, %c1_413, %c0_414, %c0_415] : memref<9x4x8x256xf32, #tpu.memory_space<vmem>>, vector<1x1x8x256xf32>
      %498 = vector.shape_cast %497 : vector<1x1x8x256xf32> to vector<8x256xf32>
      %499 = arith.mulf %498, %496 : vector<8x256xf32>
      %500 = arith.addf %495, %499 : vector<8x256xf32>
      %c4_i32_416 = arith.constant 4 : i32
      %501 = tpu.dynamic_rotate %491 by %c4_i32_416 dim 0 : vector<8x256xf32>, i32 -> vector<8x256xf32>
      %c0_417 = arith.constant 0 : index
      %c2_418 = arith.constant 2 : index
      %c0_419 = arith.constant 0 : index
      %c0_420 = arith.constant 0 : index
      %502 = vector.load %arg1[%c0_417, %c2_418, %c0_419, %c0_420] : memref<9x4x8x256xf32, #tpu.memory_space<vmem>>, vector<1x1x8x256xf32>
      %503 = vector.shape_cast %502 : vector<1x1x8x256xf32> to vector<8x256xf32>
      %504 = arith.mulf %503, %501 : vector<8x256xf32>
      %505 = arith.addf %500, %504 : vector<8x256xf32>
      %c2_i32_421 = arith.constant 2 : i32
      %506 = tpu.dynamic_rotate %491 by %c2_i32_421 dim 0 : vector<8x256xf32>, i32 -> vector<8x256xf32>
      %c0_422 = arith.constant 0 : index
      %c3_423 = arith.constant 3 : index
      %c0_424 = arith.constant 0 : index
      %c0_425 = arith.constant 0 : index
      %507 = vector.load %arg1[%c0_422, %c3_423, %c0_424, %c0_425] : memref<9x4x8x256xf32, #tpu.memory_space<vmem>>, vector<1x1x8x256xf32>
      %508 = vector.shape_cast %507 : vector<1x1x8x256xf32> to vector<8x256xf32>
      %509 = arith.mulf %508, %506 : vector<8x256xf32>
      %510 = arith.addf %505, %509 : vector<8x256xf32>
      %c16_i32_426 = arith.constant 16 : i32
      %511 = tpu.dynamic_rotate %490 by %c16_i32_426 dim 1 : vector<8x256xf32>, i32 -> vector<8x256xf32>
      %c1_427 = arith.constant 1 : index
      %c0_428 = arith.constant 0 : index
      %c0_429 = arith.constant 0 : index
      %c0_430 = arith.constant 0 : index
      %512 = vector.load %arg1[%c1_427, %c0_428, %c0_429, %c0_430] : memref<9x4x8x256xf32, #tpu.memory_space<vmem>>, vector<1x1x8x256xf32>
      %513 = vector.shape_cast %512 : vector<1x1x8x256xf32> to vector<8x256xf32>
      %514 = arith.mulf %513, %511 : vector<8x256xf32>
      %515 = arith.addf %510, %514 : vector<8x256xf32>
      %c6_i32_431 = arith.constant 6 : i32
      %516 = tpu.dynamic_rotate %511 by %c6_i32_431 dim 0 : vector<8x256xf32>, i32 -> vector<8x256xf32>
      %c1_432 = arith.constant 1 : index
      %c1_433 = arith.constant 1 : index
      %c0_434 = arith.constant 0 : index
      %c0_435 = arith.constant 0 : index
      %517 = vector.load %arg1[%c1_432, %c1_433, %c0_434, %c0_435] : memref<9x4x8x256xf32, #tpu.memory_space<vmem>>, vector<1x1x8x256xf32>
      %518 = vector.shape_cast %517 : vector<1x1x8x256xf32> to vector<8x256xf32>
      %519 = arith.mulf %518, %516 : vector<8x256xf32>
      %520 = arith.addf %515, %519 : vector<8x256xf32>
      %c4_i32_436 = arith.constant 4 : i32
      %521 = tpu.dynamic_rotate %511 by %c4_i32_436 dim 0 : vector<8x256xf32>, i32 -> vector<8x256xf32>
      %c1_437 = arith.constant 1 : index
      %c2_438 = arith.constant 2 : index
      %c0_439 = arith.constant 0 : index
      %c0_440 = arith.constant 0 : index
      %522 = vector.load %arg1[%c1_437, %c2_438, %c0_439, %c0_440] : memref<9x4x8x256xf32, #tpu.memory_space<vmem>>, vector<1x1x8x256xf32>
      %523 = vector.shape_cast %522 : vector<1x1x8x256xf32> to vector<8x256xf32>
      %524 = arith.mulf %523, %521 : vector<8x256xf32>
      %525 = arith.addf %520, %524 : vector<8x256xf32>
      %c2_i32_441 = arith.constant 2 : i32
      %526 = tpu.dynamic_rotate %511 by %c2_i32_441 dim 0 : vector<8x256xf32>, i32 -> vector<8x256xf32>
      %c1_442 = arith.constant 1 : index
      %c3_443 = arith.constant 3 : index
      %c0_444 = arith.constant 0 : index
      %c0_445 = arith.constant 0 : index
      %527 = vector.load %arg1[%c1_442, %c3_443, %c0_444, %c0_445] : memref<9x4x8x256xf32, #tpu.memory_space<vmem>>, vector<1x1x8x256xf32>
      %528 = vector.shape_cast %527 : vector<1x1x8x256xf32> to vector<8x256xf32>
      %529 = arith.mulf %528, %526 : vector<8x256xf32>
      %530 = arith.addf %525, %529 : vector<8x256xf32>
      %c15_i32_446 = arith.constant 15 : i32
      %531 = tpu.dynamic_rotate %490 by %c15_i32_446 dim 1 : vector<8x256xf32>, i32 -> vector<8x256xf32>
      %c2_447 = arith.constant 2 : index
      %c0_448 = arith.constant 0 : index
      %c0_449 = arith.constant 0 : index
      %c0_450 = arith.constant 0 : index
      %532 = vector.load %arg1[%c2_447, %c0_448, %c0_449, %c0_450] : memref<9x4x8x256xf32, #tpu.memory_space<vmem>>, vector<1x1x8x256xf32>
      %533 = vector.shape_cast %532 : vector<1x1x8x256xf32> to vector<8x256xf32>
      %534 = arith.mulf %533, %531 : vector<8x256xf32>
      %535 = arith.addf %530, %534 : vector<8x256xf32>
      %c6_i32_451 = arith.constant 6 : i32
      %536 = tpu.dynamic_rotate %531 by %c6_i32_451 dim 0 : vector<8x256xf32>, i32 -> vector<8x256xf32>
      %c2_452 = arith.constant 2 : index
      %c1_453 = arith.constant 1 : index
      %c0_454 = arith.constant 0 : index
      %c0_455 = arith.constant 0 : index
      %537 = vector.load %arg1[%c2_452, %c1_453, %c0_454, %c0_455] : memref<9x4x8x256xf32, #tpu.memory_space<vmem>>, vector<1x1x8x256xf32>
      %538 = vector.shape_cast %537 : vector<1x1x8x256xf32> to vector<8x256xf32>
      %539 = arith.mulf %538, %536 : vector<8x256xf32>
      %540 = arith.addf %535, %539 : vector<8x256xf32>
      %c4_i32_456 = arith.constant 4 : i32
      %541 = tpu.dynamic_rotate %531 by %c4_i32_456 dim 0 : vector<8x256xf32>, i32 -> vector<8x256xf32>
      %c2_457 = arith.constant 2 : index
      %c2_458 = arith.constant 2 : index
      %c0_459 = arith.constant 0 : index
      %c0_460 = arith.constant 0 : index
      %542 = vector.load %arg1[%c2_457, %c2_458, %c0_459, %c0_460] : memref<9x4x8x256xf32, #tpu.memory_space<vmem>>, vector<1x1x8x256xf32>
      %543 = vector.shape_cast %542 : vector<1x1x8x256xf32> to vector<8x256xf32>
      %544 = arith.mulf %543, %541 : vector<8x256xf32>
      %545 = arith.addf %540, %544 : vector<8x256xf32>
      %c2_i32_461 = arith.constant 2 : i32
      %546 = tpu.dynamic_rotate %531 by %c2_i32_461 dim 0 : vector<8x256xf32>, i32 -> vector<8x256xf32>
      %c2_462 = arith.constant 2 : index
      %c3_463 = arith.constant 3 : index
      %c0_464 = arith.constant 0 : index
      %c0_465 = arith.constant 0 : index
      %547 = vector.load %arg1[%c2_462, %c3_463, %c0_464, %c0_465] : memref<9x4x8x256xf32, #tpu.memory_space<vmem>>, vector<1x1x8x256xf32>
      %548 = vector.shape_cast %547 : vector<1x1x8x256xf32> to vector<8x256xf32>
      %549 = arith.mulf %548, %546 : vector<8x256xf32>
      %550 = arith.addf %545, %549 : vector<8x256xf32>
      %c1_i32_466 = arith.constant 1 : i32
      %551 = tpu.dynamic_rotate %490 by %c1_i32_466 dim 1 : vector<8x256xf32>, i32 -> vector<8x256xf32>
      %c3_467 = arith.constant 3 : index
      %c0_468 = arith.constant 0 : index
      %c0_469 = arith.constant 0 : index
      %c0_470 = arith.constant 0 : index
      %552 = vector.load %arg1[%c3_467, %c0_468, %c0_469, %c0_470] : memref<9x4x8x256xf32, #tpu.memory_space<vmem>>, vector<1x1x8x256xf32>
      %553 = vector.shape_cast %552 : vector<1x1x8x256xf32> to vector<8x256xf32>
      %554 = arith.mulf %553, %551 : vector<8x256xf32>
      %555 = arith.addf %550, %554 : vector<8x256xf32>
      %c6_i32_471 = arith.constant 6 : i32
      %556 = tpu.dynamic_rotate %551 by %c6_i32_471 dim 0 : vector<8x256xf32>, i32 -> vector<8x256xf32>
      %c3_472 = arith.constant 3 : index
      %c1_473 = arith.constant 1 : index
      %c0_474 = arith.constant 0 : index
      %c0_475 = arith.constant 0 : index
      %557 = vector.load %arg1[%c3_472, %c1_473, %c0_474, %c0_475] : memref<9x4x8x256xf32, #tpu.memory_space<vmem>>, vector<1x1x8x256xf32>
      %558 = vector.shape_cast %557 : vector<1x1x8x256xf32> to vector<8x256xf32>
      %559 = arith.mulf %558, %556 : vector<8x256xf32>
      %560 = arith.addf %555, %559 : vector<8x256xf32>
      %c4_i32_476 = arith.constant 4 : i32
      %561 = tpu.dynamic_rotate %551 by %c4_i32_476 dim 0 : vector<8x256xf32>, i32 -> vector<8x256xf32>
      %c3_477 = arith.constant 3 : index
      %c2_478 = arith.constant 2 : index
      %c0_479 = arith.constant 0 : index
      %c0_480 = arith.constant 0 : index
      %562 = vector.load %arg1[%c3_477, %c2_478, %c0_479, %c0_480] : memref<9x4x8x256xf32, #tpu.memory_space<vmem>>, vector<1x1x8x256xf32>
      %563 = vector.shape_cast %562 : vector<1x1x8x256xf32> to vector<8x256xf32>
      %564 = arith.mulf %563, %561 : vector<8x256xf32>
      %565 = arith.addf %560, %564 : vector<8x256xf32>
      %c2_i32_481 = arith.constant 2 : i32
      %566 = tpu.dynamic_rotate %551 by %c2_i32_481 dim 0 : vector<8x256xf32>, i32 -> vector<8x256xf32>
      %c3_482 = arith.constant 3 : index
      %c3_483 = arith.constant 3 : index
      %c0_484 = arith.constant 0 : index
      %c0_485 = arith.constant 0 : index
      %567 = vector.load %arg1[%c3_482, %c3_483, %c0_484, %c0_485] : memref<9x4x8x256xf32, #tpu.memory_space<vmem>>, vector<1x1x8x256xf32>
      %568 = vector.shape_cast %567 : vector<1x1x8x256xf32> to vector<8x256xf32>
      %569 = arith.mulf %568, %566 : vector<8x256xf32>
      %570 = arith.addf %565, %569 : vector<8x256xf32>
      %c4_486 = arith.constant 4 : index
      %c0_487 = arith.constant 0 : index
      %c0_488 = arith.constant 0 : index
      %c0_489 = arith.constant 0 : index
      %571 = vector.load %arg1[%c4_486, %c0_487, %c0_488, %c0_489] : memref<9x4x8x256xf32, #tpu.memory_space<vmem>>, vector<1x1x8x256xf32>
      %572 = vector.shape_cast %571 : vector<1x1x8x256xf32> to vector<8x256xf32>
      %573 = arith.mulf %572, %490 : vector<8x256xf32>
      %574 = arith.addf %570, %573 : vector<8x256xf32>
      %c6_i32_490 = arith.constant 6 : i32
      %575 = tpu.dynamic_rotate %490 by %c6_i32_490 dim 0 : vector<8x256xf32>, i32 -> vector<8x256xf32>
      %c4_491 = arith.constant 4 : index
      %c1_492 = arith.constant 1 : index
      %c0_493 = arith.constant 0 : index
      %c0_494 = arith.constant 0 : index
      %576 = vector.load %arg1[%c4_491, %c1_492, %c0_493, %c0_494] : memref<9x4x8x256xf32, #tpu.memory_space<vmem>>, vector<1x1x8x256xf32>
      %577 = vector.shape_cast %576 : vector<1x1x8x256xf32> to vector<8x256xf32>
      %578 = arith.mulf %577, %575 : vector<8x256xf32>
      %579 = arith.addf %574, %578 : vector<8x256xf32>
      %c4_i32_495 = arith.constant 4 : i32
      %580 = tpu.dynamic_rotate %490 by %c4_i32_495 dim 0 : vector<8x256xf32>, i32 -> vector<8x256xf32>
      %c4_496 = arith.constant 4 : index
      %c2_497 = arith.constant 2 : index
      %c0_498 = arith.constant 0 : index
      %c0_499 = arith.constant 0 : index
      %581 = vector.load %arg1[%c4_496, %c2_497, %c0_498, %c0_499] : memref<9x4x8x256xf32, #tpu.memory_space<vmem>>, vector<1x1x8x256xf32>
      %582 = vector.shape_cast %581 : vector<1x1x8x256xf32> to vector<8x256xf32>
      %583 = arith.mulf %582, %580 : vector<8x256xf32>
      %584 = arith.addf %579, %583 : vector<8x256xf32>
      %c2_i32_500 = arith.constant 2 : i32
      %585 = tpu.dynamic_rotate %490 by %c2_i32_500 dim 0 : vector<8x256xf32>, i32 -> vector<8x256xf32>
      %c4_501 = arith.constant 4 : index
      %c3_502 = arith.constant 3 : index
      %c0_503 = arith.constant 0 : index
      %c0_504 = arith.constant 0 : index
      %586 = vector.load %arg1[%c4_501, %c3_502, %c0_503, %c0_504] : memref<9x4x8x256xf32, #tpu.memory_space<vmem>>, vector<1x1x8x256xf32>
      %587 = vector.shape_cast %586 : vector<1x1x8x256xf32> to vector<8x256xf32>
      %588 = arith.mulf %587, %585 : vector<8x256xf32>
      %589 = arith.addf %584, %588 : vector<8x256xf32>
      %c255_i32_505 = arith.constant 255 : i32
      %590 = tpu.dynamic_rotate %490 by %c255_i32_505 dim 1 : vector<8x256xf32>, i32 -> vector<8x256xf32>
      %c5_506 = arith.constant 5 : index
      %c0_507 = arith.constant 0 : index
      %c0_508 = arith.constant 0 : index
      %c0_509 = arith.constant 0 : index
      %591 = vector.load %arg1[%c5_506, %c0_507, %c0_508, %c0_509] : memref<9x4x8x256xf32, #tpu.memory_space<vmem>>, vector<1x1x8x256xf32>
      %592 = vector.shape_cast %591 : vector<1x1x8x256xf32> to vector<8x256xf32>
      %593 = arith.mulf %592, %590 : vector<8x256xf32>
      %594 = arith.addf %589, %593 : vector<8x256xf32>
      %c6_i32_510 = arith.constant 6 : i32
      %595 = tpu.dynamic_rotate %590 by %c6_i32_510 dim 0 : vector<8x256xf32>, i32 -> vector<8x256xf32>
      %c5_511 = arith.constant 5 : index
      %c1_512 = arith.constant 1 : index
      %c0_513 = arith.constant 0 : index
      %c0_514 = arith.constant 0 : index
      %596 = vector.load %arg1[%c5_511, %c1_512, %c0_513, %c0_514] : memref<9x4x8x256xf32, #tpu.memory_space<vmem>>, vector<1x1x8x256xf32>
      %597 = vector.shape_cast %596 : vector<1x1x8x256xf32> to vector<8x256xf32>
      %598 = arith.mulf %597, %595 : vector<8x256xf32>
      %599 = arith.addf %594, %598 : vector<8x256xf32>
      %c4_i32_515 = arith.constant 4 : i32
      %600 = tpu.dynamic_rotate %590 by %c4_i32_515 dim 0 : vector<8x256xf32>, i32 -> vector<8x256xf32>
      %c5_516 = arith.constant 5 : index
      %c2_517 = arith.constant 2 : index
      %c0_518 = arith.constant 0 : index
      %c0_519 = arith.constant 0 : index
      %601 = vector.load %arg1[%c5_516, %c2_517, %c0_518, %c0_519] : memref<9x4x8x256xf32, #tpu.memory_space<vmem>>, vector<1x1x8x256xf32>
      %602 = vector.shape_cast %601 : vector<1x1x8x256xf32> to vector<8x256xf32>
      %603 = arith.mulf %602, %600 : vector<8x256xf32>
      %604 = arith.addf %599, %603 : vector<8x256xf32>
      %c2_i32_520 = arith.constant 2 : i32
      %605 = tpu.dynamic_rotate %590 by %c2_i32_520 dim 0 : vector<8x256xf32>, i32 -> vector<8x256xf32>
      %c5_521 = arith.constant 5 : index
      %c3_522 = arith.constant 3 : index
      %c0_523 = arith.constant 0 : index
      %c0_524 = arith.constant 0 : index
      %606 = vector.load %arg1[%c5_521, %c3_522, %c0_523, %c0_524] : memref<9x4x8x256xf32, #tpu.memory_space<vmem>>, vector<1x1x8x256xf32>
      %607 = vector.shape_cast %606 : vector<1x1x8x256xf32> to vector<8x256xf32>
      %608 = arith.mulf %607, %605 : vector<8x256xf32>
      %609 = arith.addf %604, %608 : vector<8x256xf32>
      %c241_i32_525 = arith.constant 241 : i32
      %610 = tpu.dynamic_rotate %490 by %c241_i32_525 dim 1 : vector<8x256xf32>, i32 -> vector<8x256xf32>
      %c6_526 = arith.constant 6 : index
      %c0_527 = arith.constant 0 : index
      %c0_528 = arith.constant 0 : index
      %c0_529 = arith.constant 0 : index
      %611 = vector.load %arg1[%c6_526, %c0_527, %c0_528, %c0_529] : memref<9x4x8x256xf32, #tpu.memory_space<vmem>>, vector<1x1x8x256xf32>
      %612 = vector.shape_cast %611 : vector<1x1x8x256xf32> to vector<8x256xf32>
      %613 = arith.mulf %612, %610 : vector<8x256xf32>
      %614 = arith.addf %609, %613 : vector<8x256xf32>
      %c6_i32_530 = arith.constant 6 : i32
      %615 = tpu.dynamic_rotate %610 by %c6_i32_530 dim 0 : vector<8x256xf32>, i32 -> vector<8x256xf32>
      %c6_531 = arith.constant 6 : index
      %c1_532 = arith.constant 1 : index
      %c0_533 = arith.constant 0 : index
      %c0_534 = arith.constant 0 : index
      %616 = vector.load %arg1[%c6_531, %c1_532, %c0_533, %c0_534] : memref<9x4x8x256xf32, #tpu.memory_space<vmem>>, vector<1x1x8x256xf32>
      %617 = vector.shape_cast %616 : vector<1x1x8x256xf32> to vector<8x256xf32>
      %618 = arith.mulf %617, %615 : vector<8x256xf32>
      %619 = arith.addf %614, %618 : vector<8x256xf32>
      %c4_i32_535 = arith.constant 4 : i32
      %620 = tpu.dynamic_rotate %610 by %c4_i32_535 dim 0 : vector<8x256xf32>, i32 -> vector<8x256xf32>
      %c6_536 = arith.constant 6 : index
      %c2_537 = arith.constant 2 : index
      %c0_538 = arith.constant 0 : index
      %c0_539 = arith.constant 0 : index
      %621 = vector.load %arg1[%c6_536, %c2_537, %c0_538, %c0_539] : memref<9x4x8x256xf32, #tpu.memory_space<vmem>>, vector<1x1x8x256xf32>
      %622 = vector.shape_cast %621 : vector<1x1x8x256xf32> to vector<8x256xf32>
      %623 = arith.mulf %622, %620 : vector<8x256xf32>
      %624 = arith.addf %619, %623 : vector<8x256xf32>
      %c2_i32_540 = arith.constant 2 : i32
      %625 = tpu.dynamic_rotate %610 by %c2_i32_540 dim 0 : vector<8x256xf32>, i32 -> vector<8x256xf32>
      %c6_541 = arith.constant 6 : index
      %c3_542 = arith.constant 3 : index
      %c0_543 = arith.constant 0 : index
      %c0_544 = arith.constant 0 : index
      %626 = vector.load %arg1[%c6_541, %c3_542, %c0_543, %c0_544] : memref<9x4x8x256xf32, #tpu.memory_space<vmem>>, vector<1x1x8x256xf32>
      %627 = vector.shape_cast %626 : vector<1x1x8x256xf32> to vector<8x256xf32>
      %628 = arith.mulf %627, %625 : vector<8x256xf32>
      %629 = arith.addf %624, %628 : vector<8x256xf32>
      %c240_i32_545 = arith.constant 240 : i32
      %630 = tpu.dynamic_rotate %490 by %c240_i32_545 dim 1 : vector<8x256xf32>, i32 -> vector<8x256xf32>
      %c7_546 = arith.constant 7 : index
      %c0_547 = arith.constant 0 : index
      %c0_548 = arith.constant 0 : index
      %c0_549 = arith.constant 0 : index
      %631 = vector.load %arg1[%c7_546, %c0_547, %c0_548, %c0_549] : memref<9x4x8x256xf32, #tpu.memory_space<vmem>>, vector<1x1x8x256xf32>
      %632 = vector.shape_cast %631 : vector<1x1x8x256xf32> to vector<8x256xf32>
      %633 = arith.mulf %632, %630 : vector<8x256xf32>
      %634 = arith.addf %629, %633 : vector<8x256xf32>
      %c6_i32_550 = arith.constant 6 : i32
      %635 = tpu.dynamic_rotate %630 by %c6_i32_550 dim 0 : vector<8x256xf32>, i32 -> vector<8x256xf32>
      %c7_551 = arith.constant 7 : index
      %c1_552 = arith.constant 1 : index
      %c0_553 = arith.constant 0 : index
      %c0_554 = arith.constant 0 : index
      %636 = vector.load %arg1[%c7_551, %c1_552, %c0_553, %c0_554] : memref<9x4x8x256xf32, #tpu.memory_space<vmem>>, vector<1x1x8x256xf32>
      %637 = vector.shape_cast %636 : vector<1x1x8x256xf32> to vector<8x256xf32>
      %638 = arith.mulf %637, %635 : vector<8x256xf32>
      %639 = arith.addf %634, %638 : vector<8x256xf32>
      %c4_i32_555 = arith.constant 4 : i32
      %640 = tpu.dynamic_rotate %630 by %c4_i32_555 dim 0 : vector<8x256xf32>, i32 -> vector<8x256xf32>
      %c7_556 = arith.constant 7 : index
      %c2_557 = arith.constant 2 : index
      %c0_558 = arith.constant 0 : index
      %c0_559 = arith.constant 0 : index
      %641 = vector.load %arg1[%c7_556, %c2_557, %c0_558, %c0_559] : memref<9x4x8x256xf32, #tpu.memory_space<vmem>>, vector<1x1x8x256xf32>
      %642 = vector.shape_cast %641 : vector<1x1x8x256xf32> to vector<8x256xf32>
      %643 = arith.mulf %642, %640 : vector<8x256xf32>
      %644 = arith.addf %639, %643 : vector<8x256xf32>
      %c2_i32_560 = arith.constant 2 : i32
      %645 = tpu.dynamic_rotate %630 by %c2_i32_560 dim 0 : vector<8x256xf32>, i32 -> vector<8x256xf32>
      %c7_561 = arith.constant 7 : index
      %c3_562 = arith.constant 3 : index
      %c0_563 = arith.constant 0 : index
      %c0_564 = arith.constant 0 : index
      %646 = vector.load %arg1[%c7_561, %c3_562, %c0_563, %c0_564] : memref<9x4x8x256xf32, #tpu.memory_space<vmem>>, vector<1x1x8x256xf32>
      %647 = vector.shape_cast %646 : vector<1x1x8x256xf32> to vector<8x256xf32>
      %648 = arith.mulf %647, %645 : vector<8x256xf32>
      %649 = arith.addf %644, %648 : vector<8x256xf32>
      %c239_i32_565 = arith.constant 239 : i32
      %650 = tpu.dynamic_rotate %490 by %c239_i32_565 dim 1 : vector<8x256xf32>, i32 -> vector<8x256xf32>
      %c8_566 = arith.constant 8 : index
      %c0_567 = arith.constant 0 : index
      %c0_568 = arith.constant 0 : index
      %c0_569 = arith.constant 0 : index
      %651 = vector.load %arg1[%c8_566, %c0_567, %c0_568, %c0_569] : memref<9x4x8x256xf32, #tpu.memory_space<vmem>>, vector<1x1x8x256xf32>
      %652 = vector.shape_cast %651 : vector<1x1x8x256xf32> to vector<8x256xf32>
      %653 = arith.mulf %652, %650 : vector<8x256xf32>
      %654 = arith.addf %649, %653 : vector<8x256xf32>
      %c6_i32_570 = arith.constant 6 : i32
      %655 = tpu.dynamic_rotate %650 by %c6_i32_570 dim 0 : vector<8x256xf32>, i32 -> vector<8x256xf32>
      %c8_571 = arith.constant 8 : index
      %c1_572 = arith.constant 1 : index
      %c0_573 = arith.constant 0 : index
      %c0_574 = arith.constant 0 : index
      %656 = vector.load %arg1[%c8_571, %c1_572, %c0_573, %c0_574] : memref<9x4x8x256xf32, #tpu.memory_space<vmem>>, vector<1x1x8x256xf32>
      %657 = vector.shape_cast %656 : vector<1x1x8x256xf32> to vector<8x256xf32>
      %658 = arith.mulf %657, %655 : vector<8x256xf32>
      %659 = arith.addf %654, %658 : vector<8x256xf32>
      %c4_i32_575 = arith.constant 4 : i32
      %660 = tpu.dynamic_rotate %650 by %c4_i32_575 dim 0 : vector<8x256xf32>, i32 -> vector<8x256xf32>
      %c8_576 = arith.constant 8 : index
      %c2_577 = arith.constant 2 : index
      %c0_578 = arith.constant 0 : index
      %c0_579 = arith.constant 0 : index
      %661 = vector.load %arg1[%c8_576, %c2_577, %c0_578, %c0_579] : memref<9x4x8x256xf32, #tpu.memory_space<vmem>>, vector<1x1x8x256xf32>
      %662 = vector.shape_cast %661 : vector<1x1x8x256xf32> to vector<8x256xf32>
      %663 = arith.mulf %662, %660 : vector<8x256xf32>
      %664 = arith.addf %659, %663 : vector<8x256xf32>
      %c2_i32_580 = arith.constant 2 : i32
      %665 = tpu.dynamic_rotate %650 by %c2_i32_580 dim 0 : vector<8x256xf32>, i32 -> vector<8x256xf32>
      %c8_581 = arith.constant 8 : index
      %c3_582 = arith.constant 3 : index
      %c0_583 = arith.constant 0 : index
      %c0_584 = arith.constant 0 : index
      %666 = vector.load %arg1[%c8_581, %c3_582, %c0_583, %c0_584] : memref<9x4x8x256xf32, #tpu.memory_space<vmem>>, vector<1x1x8x256xf32>
      %667 = vector.shape_cast %666 : vector<1x1x8x256xf32> to vector<8x256xf32>
      %668 = arith.mulf %667, %665 : vector<8x256xf32>
      %669 = arith.addf %664, %668 : vector<8x256xf32>
      %cst_585 = arith.constant dense<0.000000e+00> : vector<8xf32>
      %670 = vector.multi_reduction <add>, %669, %cst_585 [1] : vector<8x256xf32> to vector<8xf32>
      %671 = vector.shape_cast %670 : vector<8xf32> to vector<8x1xf32>
      %672 = arith.mulf %669, %669 : vector<8x256xf32>
      %cst_586 = arith.constant dense<0.000000e+00> : vector<8xf32>
      %673 = vector.multi_reduction <add>, %672, %cst_586 [1] : vector<8x256xf32> to vector<8xf32>
      %674 = vector.shape_cast %673 : vector<8xf32> to vector<8x1xf32>
      %cst_587 = arith.constant 3.906250e-03 : f32
      %675 = vector.broadcast %cst_587 : f32 to vector<8x1xf32>
      %676 = arith.mulf %671, %675 : vector<8x1xf32>
      %cst_588 = arith.constant 3.906250e-03 : f32
      %677 = vector.broadcast %cst_588 : f32 to vector<8x1xf32>
      %678 = arith.mulf %674, %677 : vector<8x1xf32>
      %679 = arith.mulf %676, %676 : vector<8x1xf32>
      %680 = arith.subf %678, %679 : vector<8x1xf32>
      %cst_589 = arith.constant 0.000000e+00 : f32
      %681 = vector.broadcast %cst_589 : f32 to vector<8x1xf32>
      %682 = arith.maximumf %680, %681 : vector<8x1xf32>
      %cst_590 = arith.constant 9.99999974E-6 : f32
      %683 = vector.broadcast %cst_590 : f32 to vector<8x1xf32>
      %684 = arith.addf %682, %683 : vector<8x1xf32>
      %685 = math.rsqrt %684 : vector<8x1xf32>
      %686 = vector.broadcast %676 : vector<8x1xf32> to vector<8x256xf32>
      %687 = arith.subf %669, %686 : vector<8x256xf32>
      %c0_591 = arith.constant 0 : index
      %c0_592 = arith.constant 0 : index
      %688 = vector.load %arg9[%c0_591, %c0_592] : memref<8x256xf32, #tpu.memory_space<vmem>>, vector<8x256xf32>
      %689 = vector.broadcast %685 : vector<8x1xf32> to vector<8x256xf32>
      %690 = arith.mulf %689, %688 : vector<8x256xf32>
      %691 = arith.mulf %687, %690 : vector<8x256xf32>
      %c0_593 = arith.constant 0 : index
      %c0_594 = arith.constant 0 : index
      %692 = vector.load %arg10[%c0_593, %c0_594] : memref<8x256xf32, #tpu.memory_space<vmem>>, vector<8x256xf32>
      %693 = arith.addf %691, %692 : vector<8x256xf32>
      %cst_595 = arith.constant 0.000000e+00 : f32
      %694 = vector.broadcast %cst_595 : f32 to vector<8x256xf32>
      %695 = arith.maximumf %693, %694 : vector<8x256xf32>
      %c17_i32_596 = arith.constant 17 : i32
      %696 = tpu.dynamic_rotate %695 by %c17_i32_596 dim 1 : vector<8x256xf32>, i32 -> vector<8x256xf32>
      %c0_597 = arith.constant 0 : index
      %c0_598 = arith.constant 0 : index
      %c0_599 = arith.constant 0 : index
      %c0_600 = arith.constant 0 : index
      %697 = vector.load %arg4[%c0_597, %c0_598, %c0_599, %c0_600] : memref<9x4x8x256xf32, #tpu.memory_space<vmem>>, vector<1x1x8x256xf32>
      %698 = vector.shape_cast %697 : vector<1x1x8x256xf32> to vector<8x256xf32>
      %699 = arith.mulf %698, %696 : vector<8x256xf32>
      %700 = arith.addf %461, %699 : vector<8x256xf32>
      %c6_i32_601 = arith.constant 6 : i32
      %701 = tpu.dynamic_rotate %696 by %c6_i32_601 dim 0 : vector<8x256xf32>, i32 -> vector<8x256xf32>
      %c0_602 = arith.constant 0 : index
      %c1_603 = arith.constant 1 : index
      %c0_604 = arith.constant 0 : index
      %c0_605 = arith.constant 0 : index
      %702 = vector.load %arg4[%c0_602, %c1_603, %c0_604, %c0_605] : memref<9x4x8x256xf32, #tpu.memory_space<vmem>>, vector<1x1x8x256xf32>
      %703 = vector.shape_cast %702 : vector<1x1x8x256xf32> to vector<8x256xf32>
      %704 = arith.mulf %703, %701 : vector<8x256xf32>
      %705 = arith.addf %700, %704 : vector<8x256xf32>
      %c4_i32_606 = arith.constant 4 : i32
      %706 = tpu.dynamic_rotate %696 by %c4_i32_606 dim 0 : vector<8x256xf32>, i32 -> vector<8x256xf32>
      %c0_607 = arith.constant 0 : index
      %c2_608 = arith.constant 2 : index
      %c0_609 = arith.constant 0 : index
      %c0_610 = arith.constant 0 : index
      %707 = vector.load %arg4[%c0_607, %c2_608, %c0_609, %c0_610] : memref<9x4x8x256xf32, #tpu.memory_space<vmem>>, vector<1x1x8x256xf32>
      %708 = vector.shape_cast %707 : vector<1x1x8x256xf32> to vector<8x256xf32>
      %709 = arith.mulf %708, %706 : vector<8x256xf32>
      %710 = arith.addf %705, %709 : vector<8x256xf32>
      %c2_i32_611 = arith.constant 2 : i32
      %711 = tpu.dynamic_rotate %696 by %c2_i32_611 dim 0 : vector<8x256xf32>, i32 -> vector<8x256xf32>
      %c0_612 = arith.constant 0 : index
      %c3_613 = arith.constant 3 : index
      %c0_614 = arith.constant 0 : index
      %c0_615 = arith.constant 0 : index
      %712 = vector.load %arg4[%c0_612, %c3_613, %c0_614, %c0_615] : memref<9x4x8x256xf32, #tpu.memory_space<vmem>>, vector<1x1x8x256xf32>
      %713 = vector.shape_cast %712 : vector<1x1x8x256xf32> to vector<8x256xf32>
      %714 = arith.mulf %713, %711 : vector<8x256xf32>
      %715 = arith.addf %710, %714 : vector<8x256xf32>
      %c16_i32_616 = arith.constant 16 : i32
      %716 = tpu.dynamic_rotate %695 by %c16_i32_616 dim 1 : vector<8x256xf32>, i32 -> vector<8x256xf32>
      %c1_617 = arith.constant 1 : index
      %c0_618 = arith.constant 0 : index
      %c0_619 = arith.constant 0 : index
      %c0_620 = arith.constant 0 : index
      %717 = vector.load %arg4[%c1_617, %c0_618, %c0_619, %c0_620] : memref<9x4x8x256xf32, #tpu.memory_space<vmem>>, vector<1x1x8x256xf32>
      %718 = vector.shape_cast %717 : vector<1x1x8x256xf32> to vector<8x256xf32>
      %719 = arith.mulf %718, %716 : vector<8x256xf32>
      %720 = arith.addf %715, %719 : vector<8x256xf32>
      %c6_i32_621 = arith.constant 6 : i32
      %721 = tpu.dynamic_rotate %716 by %c6_i32_621 dim 0 : vector<8x256xf32>, i32 -> vector<8x256xf32>
      %c1_622 = arith.constant 1 : index
      %c1_623 = arith.constant 1 : index
      %c0_624 = arith.constant 0 : index
      %c0_625 = arith.constant 0 : index
      %722 = vector.load %arg4[%c1_622, %c1_623, %c0_624, %c0_625] : memref<9x4x8x256xf32, #tpu.memory_space<vmem>>, vector<1x1x8x256xf32>
      %723 = vector.shape_cast %722 : vector<1x1x8x256xf32> to vector<8x256xf32>
      %724 = arith.mulf %723, %721 : vector<8x256xf32>
      %725 = arith.addf %720, %724 : vector<8x256xf32>
      %c4_i32_626 = arith.constant 4 : i32
      %726 = tpu.dynamic_rotate %716 by %c4_i32_626 dim 0 : vector<8x256xf32>, i32 -> vector<8x256xf32>
      %c1_627 = arith.constant 1 : index
      %c2_628 = arith.constant 2 : index
      %c0_629 = arith.constant 0 : index
      %c0_630 = arith.constant 0 : index
      %727 = vector.load %arg4[%c1_627, %c2_628, %c0_629, %c0_630] : memref<9x4x8x256xf32, #tpu.memory_space<vmem>>, vector<1x1x8x256xf32>
      %728 = vector.shape_cast %727 : vector<1x1x8x256xf32> to vector<8x256xf32>
      %729 = arith.mulf %728, %726 : vector<8x256xf32>
      %730 = arith.addf %725, %729 : vector<8x256xf32>
      %c2_i32_631 = arith.constant 2 : i32
      %731 = tpu.dynamic_rotate %716 by %c2_i32_631 dim 0 : vector<8x256xf32>, i32 -> vector<8x256xf32>
      %c1_632 = arith.constant 1 : index
      %c3_633 = arith.constant 3 : index
      %c0_634 = arith.constant 0 : index
      %c0_635 = arith.constant 0 : index
      %732 = vector.load %arg4[%c1_632, %c3_633, %c0_634, %c0_635] : memref<9x4x8x256xf32, #tpu.memory_space<vmem>>, vector<1x1x8x256xf32>
      %733 = vector.shape_cast %732 : vector<1x1x8x256xf32> to vector<8x256xf32>
      %734 = arith.mulf %733, %731 : vector<8x256xf32>
      %735 = arith.addf %730, %734 : vector<8x256xf32>
      %c15_i32_636 = arith.constant 15 : i32
      %736 = tpu.dynamic_rotate %695 by %c15_i32_636 dim 1 : vector<8x256xf32>, i32 -> vector<8x256xf32>
      %c2_637 = arith.constant 2 : index
      %c0_638 = arith.constant 0 : index
      %c0_639 = arith.constant 0 : index
      %c0_640 = arith.constant 0 : index
      %737 = vector.load %arg4[%c2_637, %c0_638, %c0_639, %c0_640] : memref<9x4x8x256xf32, #tpu.memory_space<vmem>>, vector<1x1x8x256xf32>
      %738 = vector.shape_cast %737 : vector<1x1x8x256xf32> to vector<8x256xf32>
      %739 = arith.mulf %738, %736 : vector<8x256xf32>
      %740 = arith.addf %735, %739 : vector<8x256xf32>
      %c6_i32_641 = arith.constant 6 : i32
      %741 = tpu.dynamic_rotate %736 by %c6_i32_641 dim 0 : vector<8x256xf32>, i32 -> vector<8x256xf32>
      %c2_642 = arith.constant 2 : index
      %c1_643 = arith.constant 1 : index
      %c0_644 = arith.constant 0 : index
      %c0_645 = arith.constant 0 : index
      %742 = vector.load %arg4[%c2_642, %c1_643, %c0_644, %c0_645] : memref<9x4x8x256xf32, #tpu.memory_space<vmem>>, vector<1x1x8x256xf32>
      %743 = vector.shape_cast %742 : vector<1x1x8x256xf32> to vector<8x256xf32>
      %744 = arith.mulf %743, %741 : vector<8x256xf32>
      %745 = arith.addf %740, %744 : vector<8x256xf32>
      %c4_i32_646 = arith.constant 4 : i32
      %746 = tpu.dynamic_rotate %736 by %c4_i32_646 dim 0 : vector<8x256xf32>, i32 -> vector<8x256xf32>
      %c2_647 = arith.constant 2 : index
      %c2_648 = arith.constant 2 : index
      %c0_649 = arith.constant 0 : index
      %c0_650 = arith.constant 0 : index
      %747 = vector.load %arg4[%c2_647, %c2_648, %c0_649, %c0_650] : memref<9x4x8x256xf32, #tpu.memory_space<vmem>>, vector<1x1x8x256xf32>
      %748 = vector.shape_cast %747 : vector<1x1x8x256xf32> to vector<8x256xf32>
      %749 = arith.mulf %748, %746 : vector<8x256xf32>
      %750 = arith.addf %745, %749 : vector<8x256xf32>
      %c2_i32_651 = arith.constant 2 : i32
      %751 = tpu.dynamic_rotate %736 by %c2_i32_651 dim 0 : vector<8x256xf32>, i32 -> vector<8x256xf32>
      %c2_652 = arith.constant 2 : index
      %c3_653 = arith.constant 3 : index
      %c0_654 = arith.constant 0 : index
      %c0_655 = arith.constant 0 : index
      %752 = vector.load %arg4[%c2_652, %c3_653, %c0_654, %c0_655] : memref<9x4x8x256xf32, #tpu.memory_space<vmem>>, vector<1x1x8x256xf32>
      %753 = vector.shape_cast %752 : vector<1x1x8x256xf32> to vector<8x256xf32>
      %754 = arith.mulf %753, %751 : vector<8x256xf32>
      %755 = arith.addf %750, %754 : vector<8x256xf32>
      %c1_i32_656 = arith.constant 1 : i32
      %756 = tpu.dynamic_rotate %695 by %c1_i32_656 dim 1 : vector<8x256xf32>, i32 -> vector<8x256xf32>
      %c3_657 = arith.constant 3 : index
      %c0_658 = arith.constant 0 : index
      %c0_659 = arith.constant 0 : index
      %c0_660 = arith.constant 0 : index
      %757 = vector.load %arg4[%c3_657, %c0_658, %c0_659, %c0_660] : memref<9x4x8x256xf32, #tpu.memory_space<vmem>>, vector<1x1x8x256xf32>
      %758 = vector.shape_cast %757 : vector<1x1x8x256xf32> to vector<8x256xf32>
      %759 = arith.mulf %758, %756 : vector<8x256xf32>
      %760 = arith.addf %755, %759 : vector<8x256xf32>
      %c6_i32_661 = arith.constant 6 : i32
      %761 = tpu.dynamic_rotate %756 by %c6_i32_661 dim 0 : vector<8x256xf32>, i32 -> vector<8x256xf32>
      %c3_662 = arith.constant 3 : index
      %c1_663 = arith.constant 1 : index
      %c0_664 = arith.constant 0 : index
      %c0_665 = arith.constant 0 : index
      %762 = vector.load %arg4[%c3_662, %c1_663, %c0_664, %c0_665] : memref<9x4x8x256xf32, #tpu.memory_space<vmem>>, vector<1x1x8x256xf32>
      %763 = vector.shape_cast %762 : vector<1x1x8x256xf32> to vector<8x256xf32>
      %764 = arith.mulf %763, %761 : vector<8x256xf32>
      %765 = arith.addf %760, %764 : vector<8x256xf32>
      %c4_i32_666 = arith.constant 4 : i32
      %766 = tpu.dynamic_rotate %756 by %c4_i32_666 dim 0 : vector<8x256xf32>, i32 -> vector<8x256xf32>
      %c3_667 = arith.constant 3 : index
      %c2_668 = arith.constant 2 : index
      %c0_669 = arith.constant 0 : index
      %c0_670 = arith.constant 0 : index
      %767 = vector.load %arg4[%c3_667, %c2_668, %c0_669, %c0_670] : memref<9x4x8x256xf32, #tpu.memory_space<vmem>>, vector<1x1x8x256xf32>
      %768 = vector.shape_cast %767 : vector<1x1x8x256xf32> to vector<8x256xf32>
      %769 = arith.mulf %768, %766 : vector<8x256xf32>
      %770 = arith.addf %765, %769 : vector<8x256xf32>
      %c2_i32_671 = arith.constant 2 : i32
      %771 = tpu.dynamic_rotate %756 by %c2_i32_671 dim 0 : vector<8x256xf32>, i32 -> vector<8x256xf32>
      %c3_672 = arith.constant 3 : index
      %c3_673 = arith.constant 3 : index
      %c0_674 = arith.constant 0 : index
      %c0_675 = arith.constant 0 : index
      %772 = vector.load %arg4[%c3_672, %c3_673, %c0_674, %c0_675] : memref<9x4x8x256xf32, #tpu.memory_space<vmem>>, vector<1x1x8x256xf32>
      %773 = vector.shape_cast %772 : vector<1x1x8x256xf32> to vector<8x256xf32>
      %774 = arith.mulf %773, %771 : vector<8x256xf32>
      %775 = arith.addf %770, %774 : vector<8x256xf32>
      %c4_676 = arith.constant 4 : index
      %c0_677 = arith.constant 0 : index
      %c0_678 = arith.constant 0 : index
      %c0_679 = arith.constant 0 : index
      %776 = vector.load %arg4[%c4_676, %c0_677, %c0_678, %c0_679] : memref<9x4x8x256xf32, #tpu.memory_space<vmem>>, vector<1x1x8x256xf32>
      %777 = vector.shape_cast %776 : vector<1x1x8x256xf32> to vector<8x256xf32>
      %778 = arith.mulf %777, %695 : vector<8x256xf32>
      %779 = arith.addf %775, %778 : vector<8x256xf32>
      %c6_i32_680 = arith.constant 6 : i32
      %780 = tpu.dynamic_rotate %695 by %c6_i32_680 dim 0 : vector<8x256xf32>, i32 -> vector<8x256xf32>
      %c4_681 = arith.constant 4 : index
      %c1_682 = arith.constant 1 : index
      %c0_683 = arith.constant 0 : index
      %c0_684 = arith.constant 0 : index
      %781 = vector.load %arg4[%c4_681, %c1_682, %c0_683, %c0_684] : memref<9x4x8x256xf32, #tpu.memory_space<vmem>>, vector<1x1x8x256xf32>
      %782 = vector.shape_cast %781 : vector<1x1x8x256xf32> to vector<8x256xf32>
      %783 = arith.mulf %782, %780 : vector<8x256xf32>
      %784 = arith.addf %779, %783 : vector<8x256xf32>
      %c4_i32_685 = arith.constant 4 : i32
      %785 = tpu.dynamic_rotate %695 by %c4_i32_685 dim 0 : vector<8x256xf32>, i32 -> vector<8x256xf32>
      %c4_686 = arith.constant 4 : index
      %c2_687 = arith.constant 2 : index
      %c0_688 = arith.constant 0 : index
      %c0_689 = arith.constant 0 : index
      %786 = vector.load %arg4[%c4_686, %c2_687, %c0_688, %c0_689] : memref<9x4x8x256xf32, #tpu.memory_space<vmem>>, vector<1x1x8x256xf32>
      %787 = vector.shape_cast %786 : vector<1x1x8x256xf32> to vector<8x256xf32>
      %788 = arith.mulf %787, %785 : vector<8x256xf32>
      %789 = arith.addf %784, %788 : vector<8x256xf32>
      %c2_i32_690 = arith.constant 2 : i32
      %790 = tpu.dynamic_rotate %695 by %c2_i32_690 dim 0 : vector<8x256xf32>, i32 -> vector<8x256xf32>
      %c4_691 = arith.constant 4 : index
      %c3_692 = arith.constant 3 : index
      %c0_693 = arith.constant 0 : index
      %c0_694 = arith.constant 0 : index
      %791 = vector.load %arg4[%c4_691, %c3_692, %c0_693, %c0_694] : memref<9x4x8x256xf32, #tpu.memory_space<vmem>>, vector<1x1x8x256xf32>
      %792 = vector.shape_cast %791 : vector<1x1x8x256xf32> to vector<8x256xf32>
      %793 = arith.mulf %792, %790 : vector<8x256xf32>
      %794 = arith.addf %789, %793 : vector<8x256xf32>
      %c255_i32_695 = arith.constant 255 : i32
      %795 = tpu.dynamic_rotate %695 by %c255_i32_695 dim 1 : vector<8x256xf32>, i32 -> vector<8x256xf32>
      %c5_696 = arith.constant 5 : index
      %c0_697 = arith.constant 0 : index
      %c0_698 = arith.constant 0 : index
      %c0_699 = arith.constant 0 : index
      %796 = vector.load %arg4[%c5_696, %c0_697, %c0_698, %c0_699] : memref<9x4x8x256xf32, #tpu.memory_space<vmem>>, vector<1x1x8x256xf32>
      %797 = vector.shape_cast %796 : vector<1x1x8x256xf32> to vector<8x256xf32>
      %798 = arith.mulf %797, %795 : vector<8x256xf32>
      %799 = arith.addf %794, %798 : vector<8x256xf32>
      %c6_i32_700 = arith.constant 6 : i32
      %800 = tpu.dynamic_rotate %795 by %c6_i32_700 dim 0 : vector<8x256xf32>, i32 -> vector<8x256xf32>
      %c5_701 = arith.constant 5 : index
      %c1_702 = arith.constant 1 : index
      %c0_703 = arith.constant 0 : index
      %c0_704 = arith.constant 0 : index
      %801 = vector.load %arg4[%c5_701, %c1_702, %c0_703, %c0_704] : memref<9x4x8x256xf32, #tpu.memory_space<vmem>>, vector<1x1x8x256xf32>
      %802 = vector.shape_cast %801 : vector<1x1x8x256xf32> to vector<8x256xf32>
      %803 = arith.mulf %802, %800 : vector<8x256xf32>
      %804 = arith.addf %799, %803 : vector<8x256xf32>
      %c4_i32_705 = arith.constant 4 : i32
      %805 = tpu.dynamic_rotate %795 by %c4_i32_705 dim 0 : vector<8x256xf32>, i32 -> vector<8x256xf32>
      %c5_706 = arith.constant 5 : index
      %c2_707 = arith.constant 2 : index
      %c0_708 = arith.constant 0 : index
      %c0_709 = arith.constant 0 : index
      %806 = vector.load %arg4[%c5_706, %c2_707, %c0_708, %c0_709] : memref<9x4x8x256xf32, #tpu.memory_space<vmem>>, vector<1x1x8x256xf32>
      %807 = vector.shape_cast %806 : vector<1x1x8x256xf32> to vector<8x256xf32>
      %808 = arith.mulf %807, %805 : vector<8x256xf32>
      %809 = arith.addf %804, %808 : vector<8x256xf32>
      %c2_i32_710 = arith.constant 2 : i32
      %810 = tpu.dynamic_rotate %795 by %c2_i32_710 dim 0 : vector<8x256xf32>, i32 -> vector<8x256xf32>
      %c5_711 = arith.constant 5 : index
      %c3_712 = arith.constant 3 : index
      %c0_713 = arith.constant 0 : index
      %c0_714 = arith.constant 0 : index
      %811 = vector.load %arg4[%c5_711, %c3_712, %c0_713, %c0_714] : memref<9x4x8x256xf32, #tpu.memory_space<vmem>>, vector<1x1x8x256xf32>
      %812 = vector.shape_cast %811 : vector<1x1x8x256xf32> to vector<8x256xf32>
      %813 = arith.mulf %812, %810 : vector<8x256xf32>
      %814 = arith.addf %809, %813 : vector<8x256xf32>
      %c241_i32_715 = arith.constant 241 : i32
      %815 = tpu.dynamic_rotate %695 by %c241_i32_715 dim 1 : vector<8x256xf32>, i32 -> vector<8x256xf32>
      %c6_716 = arith.constant 6 : index
      %c0_717 = arith.constant 0 : index
      %c0_718 = arith.constant 0 : index
      %c0_719 = arith.constant 0 : index
      %816 = vector.load %arg4[%c6_716, %c0_717, %c0_718, %c0_719] : memref<9x4x8x256xf32, #tpu.memory_space<vmem>>, vector<1x1x8x256xf32>
      %817 = vector.shape_cast %816 : vector<1x1x8x256xf32> to vector<8x256xf32>
      %818 = arith.mulf %817, %815 : vector<8x256xf32>
      %819 = arith.addf %814, %818 : vector<8x256xf32>
      %c6_i32_720 = arith.constant 6 : i32
      %820 = tpu.dynamic_rotate %815 by %c6_i32_720 dim 0 : vector<8x256xf32>, i32 -> vector<8x256xf32>
      %c6_721 = arith.constant 6 : index
      %c1_722 = arith.constant 1 : index
      %c0_723 = arith.constant 0 : index
      %c0_724 = arith.constant 0 : index
      %821 = vector.load %arg4[%c6_721, %c1_722, %c0_723, %c0_724] : memref<9x4x8x256xf32, #tpu.memory_space<vmem>>, vector<1x1x8x256xf32>
      %822 = vector.shape_cast %821 : vector<1x1x8x256xf32> to vector<8x256xf32>
      %823 = arith.mulf %822, %820 : vector<8x256xf32>
      %824 = arith.addf %819, %823 : vector<8x256xf32>
      %c4_i32_725 = arith.constant 4 : i32
      %825 = tpu.dynamic_rotate %815 by %c4_i32_725 dim 0 : vector<8x256xf32>, i32 -> vector<8x256xf32>
      %c6_726 = arith.constant 6 : index
      %c2_727 = arith.constant 2 : index
      %c0_728 = arith.constant 0 : index
      %c0_729 = arith.constant 0 : index
      %826 = vector.load %arg4[%c6_726, %c2_727, %c0_728, %c0_729] : memref<9x4x8x256xf32, #tpu.memory_space<vmem>>, vector<1x1x8x256xf32>
      %827 = vector.shape_cast %826 : vector<1x1x8x256xf32> to vector<8x256xf32>
      %828 = arith.mulf %827, %825 : vector<8x256xf32>
      %829 = arith.addf %824, %828 : vector<8x256xf32>
      %c2_i32_730 = arith.constant 2 : i32
      %830 = tpu.dynamic_rotate %815 by %c2_i32_730 dim 0 : vector<8x256xf32>, i32 -> vector<8x256xf32>
      %c6_731 = arith.constant 6 : index
      %c3_732 = arith.constant 3 : index
      %c0_733 = arith.constant 0 : index
      %c0_734 = arith.constant 0 : index
      %831 = vector.load %arg4[%c6_731, %c3_732, %c0_733, %c0_734] : memref<9x4x8x256xf32, #tpu.memory_space<vmem>>, vector<1x1x8x256xf32>
      %832 = vector.shape_cast %831 : vector<1x1x8x256xf32> to vector<8x256xf32>
      %833 = arith.mulf %832, %830 : vector<8x256xf32>
      %834 = arith.addf %829, %833 : vector<8x256xf32>
      %c240_i32_735 = arith.constant 240 : i32
      %835 = tpu.dynamic_rotate %695 by %c240_i32_735 dim 1 : vector<8x256xf32>, i32 -> vector<8x256xf32>
      %c7_736 = arith.constant 7 : index
      %c0_737 = arith.constant 0 : index
      %c0_738 = arith.constant 0 : index
      %c0_739 = arith.constant 0 : index
      %836 = vector.load %arg4[%c7_736, %c0_737, %c0_738, %c0_739] : memref<9x4x8x256xf32, #tpu.memory_space<vmem>>, vector<1x1x8x256xf32>
      %837 = vector.shape_cast %836 : vector<1x1x8x256xf32> to vector<8x256xf32>
      %838 = arith.mulf %837, %835 : vector<8x256xf32>
      %839 = arith.addf %834, %838 : vector<8x256xf32>
      %c6_i32_740 = arith.constant 6 : i32
      %840 = tpu.dynamic_rotate %835 by %c6_i32_740 dim 0 : vector<8x256xf32>, i32 -> vector<8x256xf32>
      %c7_741 = arith.constant 7 : index
      %c1_742 = arith.constant 1 : index
      %c0_743 = arith.constant 0 : index
      %c0_744 = arith.constant 0 : index
      %841 = vector.load %arg4[%c7_741, %c1_742, %c0_743, %c0_744] : memref<9x4x8x256xf32, #tpu.memory_space<vmem>>, vector<1x1x8x256xf32>
      %842 = vector.shape_cast %841 : vector<1x1x8x256xf32> to vector<8x256xf32>
      %843 = arith.mulf %842, %840 : vector<8x256xf32>
      %844 = arith.addf %839, %843 : vector<8x256xf32>
      %c4_i32_745 = arith.constant 4 : i32
      %845 = tpu.dynamic_rotate %835 by %c4_i32_745 dim 0 : vector<8x256xf32>, i32 -> vector<8x256xf32>
      %c7_746 = arith.constant 7 : index
      %c2_747 = arith.constant 2 : index
      %c0_748 = arith.constant 0 : index
      %c0_749 = arith.constant 0 : index
      %846 = vector.load %arg4[%c7_746, %c2_747, %c0_748, %c0_749] : memref<9x4x8x256xf32, #tpu.memory_space<vmem>>, vector<1x1x8x256xf32>
      %847 = vector.shape_cast %846 : vector<1x1x8x256xf32> to vector<8x256xf32>
      %848 = arith.mulf %847, %845 : vector<8x256xf32>
      %849 = arith.addf %844, %848 : vector<8x256xf32>
      %c2_i32_750 = arith.constant 2 : i32
      %850 = tpu.dynamic_rotate %835 by %c2_i32_750 dim 0 : vector<8x256xf32>, i32 -> vector<8x256xf32>
      %c7_751 = arith.constant 7 : index
      %c3_752 = arith.constant 3 : index
      %c0_753 = arith.constant 0 : index
      %c0_754 = arith.constant 0 : index
      %851 = vector.load %arg4[%c7_751, %c3_752, %c0_753, %c0_754] : memref<9x4x8x256xf32, #tpu.memory_space<vmem>>, vector<1x1x8x256xf32>
      %852 = vector.shape_cast %851 : vector<1x1x8x256xf32> to vector<8x256xf32>
      %853 = arith.mulf %852, %850 : vector<8x256xf32>
      %854 = arith.addf %849, %853 : vector<8x256xf32>
      %c239_i32_755 = arith.constant 239 : i32
      %855 = tpu.dynamic_rotate %695 by %c239_i32_755 dim 1 : vector<8x256xf32>, i32 -> vector<8x256xf32>
      %c8_756 = arith.constant 8 : index
      %c0_757 = arith.constant 0 : index
      %c0_758 = arith.constant 0 : index
      %c0_759 = arith.constant 0 : index
      %856 = vector.load %arg4[%c8_756, %c0_757, %c0_758, %c0_759] : memref<9x4x8x256xf32, #tpu.memory_space<vmem>>, vector<1x1x8x256xf32>
      %857 = vector.shape_cast %856 : vector<1x1x8x256xf32> to vector<8x256xf32>
      %858 = arith.mulf %857, %855 : vector<8x256xf32>
      %859 = arith.addf %854, %858 : vector<8x256xf32>
      %c6_i32_760 = arith.constant 6 : i32
      %860 = tpu.dynamic_rotate %855 by %c6_i32_760 dim 0 : vector<8x256xf32>, i32 -> vector<8x256xf32>
      %c8_761 = arith.constant 8 : index
      %c1_762 = arith.constant 1 : index
      %c0_763 = arith.constant 0 : index
      %c0_764 = arith.constant 0 : index
      %861 = vector.load %arg4[%c8_761, %c1_762, %c0_763, %c0_764] : memref<9x4x8x256xf32, #tpu.memory_space<vmem>>, vector<1x1x8x256xf32>
      %862 = vector.shape_cast %861 : vector<1x1x8x256xf32> to vector<8x256xf32>
      %863 = arith.mulf %862, %860 : vector<8x256xf32>
      %864 = arith.addf %859, %863 : vector<8x256xf32>
      %c4_i32_765 = arith.constant 4 : i32
      %865 = tpu.dynamic_rotate %855 by %c4_i32_765 dim 0 : vector<8x256xf32>, i32 -> vector<8x256xf32>
      %c8_766 = arith.constant 8 : index
      %c2_767 = arith.constant 2 : index
      %c0_768 = arith.constant 0 : index
      %c0_769 = arith.constant 0 : index
      %866 = vector.load %arg4[%c8_766, %c2_767, %c0_768, %c0_769] : memref<9x4x8x256xf32, #tpu.memory_space<vmem>>, vector<1x1x8x256xf32>
      %867 = vector.shape_cast %866 : vector<1x1x8x256xf32> to vector<8x256xf32>
      %868 = arith.mulf %867, %865 : vector<8x256xf32>
      %869 = arith.addf %864, %868 : vector<8x256xf32>
      %c2_i32_770 = arith.constant 2 : i32
      %870 = tpu.dynamic_rotate %855 by %c2_i32_770 dim 0 : vector<8x256xf32>, i32 -> vector<8x256xf32>
      %c8_771 = arith.constant 8 : index
      %c3_772 = arith.constant 3 : index
      %c0_773 = arith.constant 0 : index
      %c0_774 = arith.constant 0 : index
      %871 = vector.load %arg4[%c8_771, %c3_772, %c0_773, %c0_774] : memref<9x4x8x256xf32, #tpu.memory_space<vmem>>, vector<1x1x8x256xf32>
      %872 = vector.shape_cast %871 : vector<1x1x8x256xf32> to vector<8x256xf32>
      %873 = arith.mulf %872, %870 : vector<8x256xf32>
      %874 = arith.addf %869, %873 : vector<8x256xf32>
      %cst_775 = arith.constant dense<0.000000e+00> : vector<8xf32>
      %875 = vector.multi_reduction <add>, %874, %cst_775 [1] : vector<8x256xf32> to vector<8xf32>
      %876 = vector.shape_cast %875 : vector<8xf32> to vector<8x1xf32>
      %877 = arith.mulf %874, %874 : vector<8x256xf32>
      %cst_776 = arith.constant dense<0.000000e+00> : vector<8xf32>
      %878 = vector.multi_reduction <add>, %877, %cst_776 [1] : vector<8x256xf32> to vector<8xf32>
      %879 = vector.shape_cast %878 : vector<8xf32> to vector<8x1xf32>
      %cst_777 = arith.constant 3.906250e-03 : f32
      %880 = vector.broadcast %cst_777 : f32 to vector<8x1xf32>
      %881 = arith.mulf %876, %880 : vector<8x1xf32>
      %cst_778 = arith.constant 3.906250e-03 : f32
      %882 = vector.broadcast %cst_778 : f32 to vector<8x1xf32>
      %883 = arith.mulf %879, %882 : vector<8x1xf32>
      %884 = arith.mulf %881, %881 : vector<8x1xf32>
      %885 = arith.subf %883, %884 : vector<8x1xf32>
      %cst_779 = arith.constant 0.000000e+00 : f32
      %886 = vector.broadcast %cst_779 : f32 to vector<8x1xf32>
      %887 = arith.maximumf %885, %886 : vector<8x1xf32>
      %cst_780 = arith.constant 9.99999974E-6 : f32
      %888 = vector.broadcast %cst_780 : f32 to vector<8x1xf32>
      %889 = arith.addf %887, %888 : vector<8x1xf32>
      %890 = math.rsqrt %889 : vector<8x1xf32>
      %891 = vector.broadcast %881 : vector<8x1xf32> to vector<8x256xf32>
      %892 = arith.subf %874, %891 : vector<8x256xf32>
      %c0_781 = arith.constant 0 : index
      %c0_782 = arith.constant 0 : index
      %893 = vector.load %arg11[%c0_781, %c0_782] : memref<8x256xf32, #tpu.memory_space<vmem>>, vector<8x256xf32>
      %894 = vector.broadcast %890 : vector<8x1xf32> to vector<8x256xf32>
      %895 = arith.mulf %894, %893 : vector<8x256xf32>
      %896 = arith.mulf %892, %895 : vector<8x256xf32>
      %c0_783 = arith.constant 0 : index
      %c0_784 = arith.constant 0 : index
      %897 = vector.load %arg12[%c0_783, %c0_784] : memref<8x256xf32, #tpu.memory_space<vmem>>, vector<8x256xf32>
      %898 = arith.addf %896, %897 : vector<8x256xf32>
      %cst_785 = arith.constant 1.250000e-01 : f32
      %899 = vector.broadcast %cst_785 : f32 to vector<8x256xf32>
      %900 = arith.mulf %899, %898 : vector<8x256xf32>
      %901 = arith.addf %arg15, %900 : vector<8x256xf32>
      %cst_786 = arith.constant dense<0.000000e+00> : vector<8xf32>
      %902 = vector.multi_reduction <add>, %901, %cst_786 [1] : vector<8x256xf32> to vector<8xf32>
      %903 = vector.shape_cast %902 : vector<8xf32> to vector<8x1xf32>
      %904 = arith.mulf %901, %901 : vector<8x256xf32>
      %cst_787 = arith.constant dense<0.000000e+00> : vector<8xf32>
      %905 = vector.multi_reduction <add>, %904, %cst_787 [1] : vector<8x256xf32> to vector<8xf32>
      %906 = vector.shape_cast %905 : vector<8xf32> to vector<8x1xf32>
      %cst_788 = arith.constant 3.906250e-03 : f32
      %907 = vector.broadcast %cst_788 : f32 to vector<8x1xf32>
      %908 = arith.mulf %903, %907 : vector<8x1xf32>
      %cst_789 = arith.constant 3.906250e-03 : f32
      %909 = vector.broadcast %cst_789 : f32 to vector<8x1xf32>
      %910 = arith.mulf %906, %909 : vector<8x1xf32>
      %911 = arith.mulf %908, %908 : vector<8x1xf32>
      %912 = arith.subf %910, %911 : vector<8x1xf32>
      %cst_790 = arith.constant 0.000000e+00 : f32
      %913 = vector.broadcast %cst_790 : f32 to vector<8x1xf32>
      %914 = arith.maximumf %912, %913 : vector<8x1xf32>
      %cst_791 = arith.constant 9.99999974E-6 : f32
      %915 = vector.broadcast %cst_791 : f32 to vector<8x1xf32>
      %916 = arith.addf %914, %915 : vector<8x1xf32>
      %917 = math.rsqrt %916 : vector<8x1xf32>
      %918 = vector.broadcast %908 : vector<8x1xf32> to vector<8x256xf32>
      %919 = arith.subf %901, %918 : vector<8x256xf32>
      %c0_792 = arith.constant 0 : index
      %c0_793 = arith.constant 0 : index
      %920 = vector.load %arg7[%c0_792, %c0_793] : memref<8x256xf32, #tpu.memory_space<vmem>>, vector<8x256xf32>
      %921 = vector.broadcast %917 : vector<8x1xf32> to vector<8x256xf32>
      %922 = arith.mulf %921, %920 : vector<8x256xf32>
      %923 = arith.mulf %919, %922 : vector<8x256xf32>
      %c0_794 = arith.constant 0 : index
      %c0_795 = arith.constant 0 : index
      %924 = vector.load %arg8[%c0_794, %c0_795] : memref<8x256xf32, #tpu.memory_space<vmem>>, vector<8x256xf32>
      %925 = arith.addf %923, %924 : vector<8x256xf32>
      %cst_796 = arith.constant 0.000000e+00 : f32
      %926 = vector.broadcast %cst_796 : f32 to vector<8x256xf32>
      %927 = arith.maximumf %925, %926 : vector<8x256xf32>
      %c17_i32_797 = arith.constant 17 : i32
      %928 = tpu.dynamic_rotate %927 by %c17_i32_797 dim 1 : vector<8x256xf32>, i32 -> vector<8x256xf32>
      %c0_798 = arith.constant 0 : index
      %c0_799 = arith.constant 0 : index
      %c0_800 = arith.constant 0 : index
      %c0_801 = arith.constant 0 : index
      %929 = vector.load %arg1[%c0_798, %c0_799, %c0_800, %c0_801] : memref<9x4x8x256xf32, #tpu.memory_space<vmem>>, vector<1x1x8x256xf32>
      %930 = vector.shape_cast %929 : vector<1x1x8x256xf32> to vector<8x256xf32>
      %931 = arith.mulf %930, %928 : vector<8x256xf32>
      %932 = arith.addf %456, %931 : vector<8x256xf32>
      %c6_i32_802 = arith.constant 6 : i32
      %933 = tpu.dynamic_rotate %928 by %c6_i32_802 dim 0 : vector<8x256xf32>, i32 -> vector<8x256xf32>
      %c0_803 = arith.constant 0 : index
      %c1_804 = arith.constant 1 : index
      %c0_805 = arith.constant 0 : index
      %c0_806 = arith.constant 0 : index
      %934 = vector.load %arg1[%c0_803, %c1_804, %c0_805, %c0_806] : memref<9x4x8x256xf32, #tpu.memory_space<vmem>>, vector<1x1x8x256xf32>
      %935 = vector.shape_cast %934 : vector<1x1x8x256xf32> to vector<8x256xf32>
      %936 = arith.mulf %935, %933 : vector<8x256xf32>
      %937 = arith.addf %932, %936 : vector<8x256xf32>
      %c4_i32_807 = arith.constant 4 : i32
      %938 = tpu.dynamic_rotate %928 by %c4_i32_807 dim 0 : vector<8x256xf32>, i32 -> vector<8x256xf32>
      %c0_808 = arith.constant 0 : index
      %c2_809 = arith.constant 2 : index
      %c0_810 = arith.constant 0 : index
      %c0_811 = arith.constant 0 : index
      %939 = vector.load %arg1[%c0_808, %c2_809, %c0_810, %c0_811] : memref<9x4x8x256xf32, #tpu.memory_space<vmem>>, vector<1x1x8x256xf32>
      %940 = vector.shape_cast %939 : vector<1x1x8x256xf32> to vector<8x256xf32>
      %941 = arith.mulf %940, %938 : vector<8x256xf32>
      %942 = arith.addf %937, %941 : vector<8x256xf32>
      %c2_i32_812 = arith.constant 2 : i32
      %943 = tpu.dynamic_rotate %928 by %c2_i32_812 dim 0 : vector<8x256xf32>, i32 -> vector<8x256xf32>
      %c0_813 = arith.constant 0 : index
      %c3_814 = arith.constant 3 : index
      %c0_815 = arith.constant 0 : index
      %c0_816 = arith.constant 0 : index
      %944 = vector.load %arg1[%c0_813, %c3_814, %c0_815, %c0_816] : memref<9x4x8x256xf32, #tpu.memory_space<vmem>>, vector<1x1x8x256xf32>
      %945 = vector.shape_cast %944 : vector<1x1x8x256xf32> to vector<8x256xf32>
      %946 = arith.mulf %945, %943 : vector<8x256xf32>
      %947 = arith.addf %942, %946 : vector<8x256xf32>
      %c16_i32_817 = arith.constant 16 : i32
      %948 = tpu.dynamic_rotate %927 by %c16_i32_817 dim 1 : vector<8x256xf32>, i32 -> vector<8x256xf32>
      %c1_818 = arith.constant 1 : index
      %c0_819 = arith.constant 0 : index
      %c0_820 = arith.constant 0 : index
      %c0_821 = arith.constant 0 : index
      %949 = vector.load %arg1[%c1_818, %c0_819, %c0_820, %c0_821] : memref<9x4x8x256xf32, #tpu.memory_space<vmem>>, vector<1x1x8x256xf32>
      %950 = vector.shape_cast %949 : vector<1x1x8x256xf32> to vector<8x256xf32>
      %951 = arith.mulf %950, %948 : vector<8x256xf32>
      %952 = arith.addf %947, %951 : vector<8x256xf32>
      %c6_i32_822 = arith.constant 6 : i32
      %953 = tpu.dynamic_rotate %948 by %c6_i32_822 dim 0 : vector<8x256xf32>, i32 -> vector<8x256xf32>
      %c1_823 = arith.constant 1 : index
      %c1_824 = arith.constant 1 : index
      %c0_825 = arith.constant 0 : index
      %c0_826 = arith.constant 0 : index
      %954 = vector.load %arg1[%c1_823, %c1_824, %c0_825, %c0_826] : memref<9x4x8x256xf32, #tpu.memory_space<vmem>>, vector<1x1x8x256xf32>
      %955 = vector.shape_cast %954 : vector<1x1x8x256xf32> to vector<8x256xf32>
      %956 = arith.mulf %955, %953 : vector<8x256xf32>
      %957 = arith.addf %952, %956 : vector<8x256xf32>
      %c4_i32_827 = arith.constant 4 : i32
      %958 = tpu.dynamic_rotate %948 by %c4_i32_827 dim 0 : vector<8x256xf32>, i32 -> vector<8x256xf32>
      %c1_828 = arith.constant 1 : index
      %c2_829 = arith.constant 2 : index
      %c0_830 = arith.constant 0 : index
      %c0_831 = arith.constant 0 : index
      %959 = vector.load %arg1[%c1_828, %c2_829, %c0_830, %c0_831] : memref<9x4x8x256xf32, #tpu.memory_space<vmem>>, vector<1x1x8x256xf32>
      %960 = vector.shape_cast %959 : vector<1x1x8x256xf32> to vector<8x256xf32>
      %961 = arith.mulf %960, %958 : vector<8x256xf32>
      %962 = arith.addf %957, %961 : vector<8x256xf32>
      %c2_i32_832 = arith.constant 2 : i32
      %963 = tpu.dynamic_rotate %948 by %c2_i32_832 dim 0 : vector<8x256xf32>, i32 -> vector<8x256xf32>
      %c1_833 = arith.constant 1 : index
      %c3_834 = arith.constant 3 : index
      %c0_835 = arith.constant 0 : index
      %c0_836 = arith.constant 0 : index
      %964 = vector.load %arg1[%c1_833, %c3_834, %c0_835, %c0_836] : memref<9x4x8x256xf32, #tpu.memory_space<vmem>>, vector<1x1x8x256xf32>
      %965 = vector.shape_cast %964 : vector<1x1x8x256xf32> to vector<8x256xf32>
      %966 = arith.mulf %965, %963 : vector<8x256xf32>
      %967 = arith.addf %962, %966 : vector<8x256xf32>
      %c15_i32_837 = arith.constant 15 : i32
      %968 = tpu.dynamic_rotate %927 by %c15_i32_837 dim 1 : vector<8x256xf32>, i32 -> vector<8x256xf32>
      %c2_838 = arith.constant 2 : index
      %c0_839 = arith.constant 0 : index
      %c0_840 = arith.constant 0 : index
      %c0_841 = arith.constant 0 : index
      %969 = vector.load %arg1[%c2_838, %c0_839, %c0_840, %c0_841] : memref<9x4x8x256xf32, #tpu.memory_space<vmem>>, vector<1x1x8x256xf32>
      %970 = vector.shape_cast %969 : vector<1x1x8x256xf32> to vector<8x256xf32>
      %971 = arith.mulf %970, %968 : vector<8x256xf32>
      %972 = arith.addf %967, %971 : vector<8x256xf32>
      %c6_i32_842 = arith.constant 6 : i32
      %973 = tpu.dynamic_rotate %968 by %c6_i32_842 dim 0 : vector<8x256xf32>, i32 -> vector<8x256xf32>
      %c2_843 = arith.constant 2 : index
      %c1_844 = arith.constant 1 : index
      %c0_845 = arith.constant 0 : index
      %c0_846 = arith.constant 0 : index
      %974 = vector.load %arg1[%c2_843, %c1_844, %c0_845, %c0_846] : memref<9x4x8x256xf32, #tpu.memory_space<vmem>>, vector<1x1x8x256xf32>
      %975 = vector.shape_cast %974 : vector<1x1x8x256xf32> to vector<8x256xf32>
      %976 = arith.mulf %975, %973 : vector<8x256xf32>
      %977 = arith.addf %972, %976 : vector<8x256xf32>
      %c4_i32_847 = arith.constant 4 : i32
      %978 = tpu.dynamic_rotate %968 by %c4_i32_847 dim 0 : vector<8x256xf32>, i32 -> vector<8x256xf32>
      %c2_848 = arith.constant 2 : index
      %c2_849 = arith.constant 2 : index
      %c0_850 = arith.constant 0 : index
      %c0_851 = arith.constant 0 : index
      %979 = vector.load %arg1[%c2_848, %c2_849, %c0_850, %c0_851] : memref<9x4x8x256xf32, #tpu.memory_space<vmem>>, vector<1x1x8x256xf32>
      %980 = vector.shape_cast %979 : vector<1x1x8x256xf32> to vector<8x256xf32>
      %981 = arith.mulf %980, %978 : vector<8x256xf32>
      %982 = arith.addf %977, %981 : vector<8x256xf32>
      %c2_i32_852 = arith.constant 2 : i32
      %983 = tpu.dynamic_rotate %968 by %c2_i32_852 dim 0 : vector<8x256xf32>, i32 -> vector<8x256xf32>
      %c2_853 = arith.constant 2 : index
      %c3_854 = arith.constant 3 : index
      %c0_855 = arith.constant 0 : index
      %c0_856 = arith.constant 0 : index
      %984 = vector.load %arg1[%c2_853, %c3_854, %c0_855, %c0_856] : memref<9x4x8x256xf32, #tpu.memory_space<vmem>>, vector<1x1x8x256xf32>
      %985 = vector.shape_cast %984 : vector<1x1x8x256xf32> to vector<8x256xf32>
      %986 = arith.mulf %985, %983 : vector<8x256xf32>
      %987 = arith.addf %982, %986 : vector<8x256xf32>
      %c1_i32_857 = arith.constant 1 : i32
      %988 = tpu.dynamic_rotate %927 by %c1_i32_857 dim 1 : vector<8x256xf32>, i32 -> vector<8x256xf32>
      %c3_858 = arith.constant 3 : index
      %c0_859 = arith.constant 0 : index
      %c0_860 = arith.constant 0 : index
      %c0_861 = arith.constant 0 : index
      %989 = vector.load %arg1[%c3_858, %c0_859, %c0_860, %c0_861] : memref<9x4x8x256xf32, #tpu.memory_space<vmem>>, vector<1x1x8x256xf32>
      %990 = vector.shape_cast %989 : vector<1x1x8x256xf32> to vector<8x256xf32>
      %991 = arith.mulf %990, %988 : vector<8x256xf32>
      %992 = arith.addf %987, %991 : vector<8x256xf32>
      %c6_i32_862 = arith.constant 6 : i32
      %993 = tpu.dynamic_rotate %988 by %c6_i32_862 dim 0 : vector<8x256xf32>, i32 -> vector<8x256xf32>
      %c3_863 = arith.constant 3 : index
      %c1_864 = arith.constant 1 : index
      %c0_865 = arith.constant 0 : index
      %c0_866 = arith.constant 0 : index
      %994 = vector.load %arg1[%c3_863, %c1_864, %c0_865, %c0_866] : memref<9x4x8x256xf32, #tpu.memory_space<vmem>>, vector<1x1x8x256xf32>
      %995 = vector.shape_cast %994 : vector<1x1x8x256xf32> to vector<8x256xf32>
      %996 = arith.mulf %995, %993 : vector<8x256xf32>
      %997 = arith.addf %992, %996 : vector<8x256xf32>
      %c4_i32_867 = arith.constant 4 : i32
      %998 = tpu.dynamic_rotate %988 by %c4_i32_867 dim 0 : vector<8x256xf32>, i32 -> vector<8x256xf32>
      %c3_868 = arith.constant 3 : index
      %c2_869 = arith.constant 2 : index
      %c0_870 = arith.constant 0 : index
      %c0_871 = arith.constant 0 : index
      %999 = vector.load %arg1[%c3_868, %c2_869, %c0_870, %c0_871] : memref<9x4x8x256xf32, #tpu.memory_space<vmem>>, vector<1x1x8x256xf32>
      %1000 = vector.shape_cast %999 : vector<1x1x8x256xf32> to vector<8x256xf32>
      %1001 = arith.mulf %1000, %998 : vector<8x256xf32>
      %1002 = arith.addf %997, %1001 : vector<8x256xf32>
      %c2_i32_872 = arith.constant 2 : i32
      %1003 = tpu.dynamic_rotate %988 by %c2_i32_872 dim 0 : vector<8x256xf32>, i32 -> vector<8x256xf32>
      %c3_873 = arith.constant 3 : index
      %c3_874 = arith.constant 3 : index
      %c0_875 = arith.constant 0 : index
      %c0_876 = arith.constant 0 : index
      %1004 = vector.load %arg1[%c3_873, %c3_874, %c0_875, %c0_876] : memref<9x4x8x256xf32, #tpu.memory_space<vmem>>, vector<1x1x8x256xf32>
      %1005 = vector.shape_cast %1004 : vector<1x1x8x256xf32> to vector<8x256xf32>
      %1006 = arith.mulf %1005, %1003 : vector<8x256xf32>
      %1007 = arith.addf %1002, %1006 : vector<8x256xf32>
      %c4_877 = arith.constant 4 : index
      %c0_878 = arith.constant 0 : index
      %c0_879 = arith.constant 0 : index
      %c0_880 = arith.constant 0 : index
      %1008 = vector.load %arg1[%c4_877, %c0_878, %c0_879, %c0_880] : memref<9x4x8x256xf32, #tpu.memory_space<vmem>>, vector<1x1x8x256xf32>
      %1009 = vector.shape_cast %1008 : vector<1x1x8x256xf32> to vector<8x256xf32>
      %1010 = arith.mulf %1009, %927 : vector<8x256xf32>
      %1011 = arith.addf %1007, %1010 : vector<8x256xf32>
      %c6_i32_881 = arith.constant 6 : i32
      %1012 = tpu.dynamic_rotate %927 by %c6_i32_881 dim 0 : vector<8x256xf32>, i32 -> vector<8x256xf32>
      %c4_882 = arith.constant 4 : index
      %c1_883 = arith.constant 1 : index
      %c0_884 = arith.constant 0 : index
      %c0_885 = arith.constant 0 : index
      %1013 = vector.load %arg1[%c4_882, %c1_883, %c0_884, %c0_885] : memref<9x4x8x256xf32, #tpu.memory_space<vmem>>, vector<1x1x8x256xf32>
      %1014 = vector.shape_cast %1013 : vector<1x1x8x256xf32> to vector<8x256xf32>
      %1015 = arith.mulf %1014, %1012 : vector<8x256xf32>
      %1016 = arith.addf %1011, %1015 : vector<8x256xf32>
      %c4_i32_886 = arith.constant 4 : i32
      %1017 = tpu.dynamic_rotate %927 by %c4_i32_886 dim 0 : vector<8x256xf32>, i32 -> vector<8x256xf32>
      %c4_887 = arith.constant 4 : index
      %c2_888 = arith.constant 2 : index
      %c0_889 = arith.constant 0 : index
      %c0_890 = arith.constant 0 : index
      %1018 = vector.load %arg1[%c4_887, %c2_888, %c0_889, %c0_890] : memref<9x4x8x256xf32, #tpu.memory_space<vmem>>, vector<1x1x8x256xf32>
      %1019 = vector.shape_cast %1018 : vector<1x1x8x256xf32> to vector<8x256xf32>
      %1020 = arith.mulf %1019, %1017 : vector<8x256xf32>
      %1021 = arith.addf %1016, %1020 : vector<8x256xf32>
      %c2_i32_891 = arith.constant 2 : i32
      %1022 = tpu.dynamic_rotate %927 by %c2_i32_891 dim 0 : vector<8x256xf32>, i32 -> vector<8x256xf32>
      %c4_892 = arith.constant 4 : index
      %c3_893 = arith.constant 3 : index
      %c0_894 = arith.constant 0 : index
      %c0_895 = arith.constant 0 : index
      %1023 = vector.load %arg1[%c4_892, %c3_893, %c0_894, %c0_895] : memref<9x4x8x256xf32, #tpu.memory_space<vmem>>, vector<1x1x8x256xf32>
      %1024 = vector.shape_cast %1023 : vector<1x1x8x256xf32> to vector<8x256xf32>
      %1025 = arith.mulf %1024, %1022 : vector<8x256xf32>
      %1026 = arith.addf %1021, %1025 : vector<8x256xf32>
      %c255_i32_896 = arith.constant 255 : i32
      %1027 = tpu.dynamic_rotate %927 by %c255_i32_896 dim 1 : vector<8x256xf32>, i32 -> vector<8x256xf32>
      %c5_897 = arith.constant 5 : index
      %c0_898 = arith.constant 0 : index
      %c0_899 = arith.constant 0 : index
      %c0_900 = arith.constant 0 : index
      %1028 = vector.load %arg1[%c5_897, %c0_898, %c0_899, %c0_900] : memref<9x4x8x256xf32, #tpu.memory_space<vmem>>, vector<1x1x8x256xf32>
      %1029 = vector.shape_cast %1028 : vector<1x1x8x256xf32> to vector<8x256xf32>
      %1030 = arith.mulf %1029, %1027 : vector<8x256xf32>
      %1031 = arith.addf %1026, %1030 : vector<8x256xf32>
      %c6_i32_901 = arith.constant 6 : i32
      %1032 = tpu.dynamic_rotate %1027 by %c6_i32_901 dim 0 : vector<8x256xf32>, i32 -> vector<8x256xf32>
      %c5_902 = arith.constant 5 : index
      %c1_903 = arith.constant 1 : index
      %c0_904 = arith.constant 0 : index
      %c0_905 = arith.constant 0 : index
      %1033 = vector.load %arg1[%c5_902, %c1_903, %c0_904, %c0_905] : memref<9x4x8x256xf32, #tpu.memory_space<vmem>>, vector<1x1x8x256xf32>
      %1034 = vector.shape_cast %1033 : vector<1x1x8x256xf32> to vector<8x256xf32>
      %1035 = arith.mulf %1034, %1032 : vector<8x256xf32>
      %1036 = arith.addf %1031, %1035 : vector<8x256xf32>
      %c4_i32_906 = arith.constant 4 : i32
      %1037 = tpu.dynamic_rotate %1027 by %c4_i32_906 dim 0 : vector<8x256xf32>, i32 -> vector<8x256xf32>
      %c5_907 = arith.constant 5 : index
      %c2_908 = arith.constant 2 : index
      %c0_909 = arith.constant 0 : index
      %c0_910 = arith.constant 0 : index
      %1038 = vector.load %arg1[%c5_907, %c2_908, %c0_909, %c0_910] : memref<9x4x8x256xf32, #tpu.memory_space<vmem>>, vector<1x1x8x256xf32>
      %1039 = vector.shape_cast %1038 : vector<1x1x8x256xf32> to vector<8x256xf32>
      %1040 = arith.mulf %1039, %1037 : vector<8x256xf32>
      %1041 = arith.addf %1036, %1040 : vector<8x256xf32>
      %c2_i32_911 = arith.constant 2 : i32
      %1042 = tpu.dynamic_rotate %1027 by %c2_i32_911 dim 0 : vector<8x256xf32>, i32 -> vector<8x256xf32>
      %c5_912 = arith.constant 5 : index
      %c3_913 = arith.constant 3 : index
      %c0_914 = arith.constant 0 : index
      %c0_915 = arith.constant 0 : index
      %1043 = vector.load %arg1[%c5_912, %c3_913, %c0_914, %c0_915] : memref<9x4x8x256xf32, #tpu.memory_space<vmem>>, vector<1x1x8x256xf32>
      %1044 = vector.shape_cast %1043 : vector<1x1x8x256xf32> to vector<8x256xf32>
      %1045 = arith.mulf %1044, %1042 : vector<8x256xf32>
      %1046 = arith.addf %1041, %1045 : vector<8x256xf32>
      %c241_i32_916 = arith.constant 241 : i32
      %1047 = tpu.dynamic_rotate %927 by %c241_i32_916 dim 1 : vector<8x256xf32>, i32 -> vector<8x256xf32>
      %c6_917 = arith.constant 6 : index
      %c0_918 = arith.constant 0 : index
      %c0_919 = arith.constant 0 : index
      %c0_920 = arith.constant 0 : index
      %1048 = vector.load %arg1[%c6_917, %c0_918, %c0_919, %c0_920] : memref<9x4x8x256xf32, #tpu.memory_space<vmem>>, vector<1x1x8x256xf32>
      %1049 = vector.shape_cast %1048 : vector<1x1x8x256xf32> to vector<8x256xf32>
      %1050 = arith.mulf %1049, %1047 : vector<8x256xf32>
      %1051 = arith.addf %1046, %1050 : vector<8x256xf32>
      %c6_i32_921 = arith.constant 6 : i32
      %1052 = tpu.dynamic_rotate %1047 by %c6_i32_921 dim 0 : vector<8x256xf32>, i32 -> vector<8x256xf32>
      %c6_922 = arith.constant 6 : index
      %c1_923 = arith.constant 1 : index
      %c0_924 = arith.constant 0 : index
      %c0_925 = arith.constant 0 : index
      %1053 = vector.load %arg1[%c6_922, %c1_923, %c0_924, %c0_925] : memref<9x4x8x256xf32, #tpu.memory_space<vmem>>, vector<1x1x8x256xf32>
      %1054 = vector.shape_cast %1053 : vector<1x1x8x256xf32> to vector<8x256xf32>
      %1055 = arith.mulf %1054, %1052 : vector<8x256xf32>
      %1056 = arith.addf %1051, %1055 : vector<8x256xf32>
      %c4_i32_926 = arith.constant 4 : i32
      %1057 = tpu.dynamic_rotate %1047 by %c4_i32_926 dim 0 : vector<8x256xf32>, i32 -> vector<8x256xf32>
      %c6_927 = arith.constant 6 : index
      %c2_928 = arith.constant 2 : index
      %c0_929 = arith.constant 0 : index
      %c0_930 = arith.constant 0 : index
      %1058 = vector.load %arg1[%c6_927, %c2_928, %c0_929, %c0_930] : memref<9x4x8x256xf32, #tpu.memory_space<vmem>>, vector<1x1x8x256xf32>
      %1059 = vector.shape_cast %1058 : vector<1x1x8x256xf32> to vector<8x256xf32>
      %1060 = arith.mulf %1059, %1057 : vector<8x256xf32>
      %1061 = arith.addf %1056, %1060 : vector<8x256xf32>
      %c2_i32_931 = arith.constant 2 : i32
      %1062 = tpu.dynamic_rotate %1047 by %c2_i32_931 dim 0 : vector<8x256xf32>, i32 -> vector<8x256xf32>
      %c6_932 = arith.constant 6 : index
      %c3_933 = arith.constant 3 : index
      %c0_934 = arith.constant 0 : index
      %c0_935 = arith.constant 0 : index
      %1063 = vector.load %arg1[%c6_932, %c3_933, %c0_934, %c0_935] : memref<9x4x8x256xf32, #tpu.memory_space<vmem>>, vector<1x1x8x256xf32>
      %1064 = vector.shape_cast %1063 : vector<1x1x8x256xf32> to vector<8x256xf32>
      %1065 = arith.mulf %1064, %1062 : vector<8x256xf32>
      %1066 = arith.addf %1061, %1065 : vector<8x256xf32>
      %c240_i32_936 = arith.constant 240 : i32
      %1067 = tpu.dynamic_rotate %927 by %c240_i32_936 dim 1 : vector<8x256xf32>, i32 -> vector<8x256xf32>
      %c7_937 = arith.constant 7 : index
      %c0_938 = arith.constant 0 : index
      %c0_939 = arith.constant 0 : index
      %c0_940 = arith.constant 0 : index
      %1068 = vector.load %arg1[%c7_937, %c0_938, %c0_939, %c0_940] : memref<9x4x8x256xf32, #tpu.memory_space<vmem>>, vector<1x1x8x256xf32>
      %1069 = vector.shape_cast %1068 : vector<1x1x8x256xf32> to vector<8x256xf32>
      %1070 = arith.mulf %1069, %1067 : vector<8x256xf32>
      %1071 = arith.addf %1066, %1070 : vector<8x256xf32>
      %c6_i32_941 = arith.constant 6 : i32
      %1072 = tpu.dynamic_rotate %1067 by %c6_i32_941 dim 0 : vector<8x256xf32>, i32 -> vector<8x256xf32>
      %c7_942 = arith.constant 7 : index
      %c1_943 = arith.constant 1 : index
      %c0_944 = arith.constant 0 : index
      %c0_945 = arith.constant 0 : index
      %1073 = vector.load %arg1[%c7_942, %c1_943, %c0_944, %c0_945] : memref<9x4x8x256xf32, #tpu.memory_space<vmem>>, vector<1x1x8x256xf32>
      %1074 = vector.shape_cast %1073 : vector<1x1x8x256xf32> to vector<8x256xf32>
      %1075 = arith.mulf %1074, %1072 : vector<8x256xf32>
      %1076 = arith.addf %1071, %1075 : vector<8x256xf32>
      %c4_i32_946 = arith.constant 4 : i32
      %1077 = tpu.dynamic_rotate %1067 by %c4_i32_946 dim 0 : vector<8x256xf32>, i32 -> vector<8x256xf32>
      %c7_947 = arith.constant 7 : index
      %c2_948 = arith.constant 2 : index
      %c0_949 = arith.constant 0 : index
      %c0_950 = arith.constant 0 : index
      %1078 = vector.load %arg1[%c7_947, %c2_948, %c0_949, %c0_950] : memref<9x4x8x256xf32, #tpu.memory_space<vmem>>, vector<1x1x8x256xf32>
      %1079 = vector.shape_cast %1078 : vector<1x1x8x256xf32> to vector<8x256xf32>
      %1080 = arith.mulf %1079, %1077 : vector<8x256xf32>
      %1081 = arith.addf %1076, %1080 : vector<8x256xf32>
      %c2_i32_951 = arith.constant 2 : i32
      %1082 = tpu.dynamic_rotate %1067 by %c2_i32_951 dim 0 : vector<8x256xf32>, i32 -> vector<8x256xf32>
      %c7_952 = arith.constant 7 : index
      %c3_953 = arith.constant 3 : index
      %c0_954 = arith.constant 0 : index
      %c0_955 = arith.constant 0 : index
      %1083 = vector.load %arg1[%c7_952, %c3_953, %c0_954, %c0_955] : memref<9x4x8x256xf32, #tpu.memory_space<vmem>>, vector<1x1x8x256xf32>
      %1084 = vector.shape_cast %1083 : vector<1x1x8x256xf32> to vector<8x256xf32>
      %1085 = arith.mulf %1084, %1082 : vector<8x256xf32>
      %1086 = arith.addf %1081, %1085 : vector<8x256xf32>
      %c239_i32_956 = arith.constant 239 : i32
      %1087 = tpu.dynamic_rotate %927 by %c239_i32_956 dim 1 : vector<8x256xf32>, i32 -> vector<8x256xf32>
      %c8_957 = arith.constant 8 : index
      %c0_958 = arith.constant 0 : index
      %c0_959 = arith.constant 0 : index
      %c0_960 = arith.constant 0 : index
      %1088 = vector.load %arg1[%c8_957, %c0_958, %c0_959, %c0_960] : memref<9x4x8x256xf32, #tpu.memory_space<vmem>>, vector<1x1x8x256xf32>
      %1089 = vector.shape_cast %1088 : vector<1x1x8x256xf32> to vector<8x256xf32>
      %1090 = arith.mulf %1089, %1087 : vector<8x256xf32>
      %1091 = arith.addf %1086, %1090 : vector<8x256xf32>
      %c6_i32_961 = arith.constant 6 : i32
      %1092 = tpu.dynamic_rotate %1087 by %c6_i32_961 dim 0 : vector<8x256xf32>, i32 -> vector<8x256xf32>
      %c8_962 = arith.constant 8 : index
      %c1_963 = arith.constant 1 : index
      %c0_964 = arith.constant 0 : index
      %c0_965 = arith.constant 0 : index
      %1093 = vector.load %arg1[%c8_962, %c1_963, %c0_964, %c0_965] : memref<9x4x8x256xf32, #tpu.memory_space<vmem>>, vector<1x1x8x256xf32>
      %1094 = vector.shape_cast %1093 : vector<1x1x8x256xf32> to vector<8x256xf32>
      %1095 = arith.mulf %1094, %1092 : vector<8x256xf32>
      %1096 = arith.addf %1091, %1095 : vector<8x256xf32>
      %c4_i32_966 = arith.constant 4 : i32
      %1097 = tpu.dynamic_rotate %1087 by %c4_i32_966 dim 0 : vector<8x256xf32>, i32 -> vector<8x256xf32>
      %c8_967 = arith.constant 8 : index
      %c2_968 = arith.constant 2 : index
      %c0_969 = arith.constant 0 : index
      %c0_970 = arith.constant 0 : index
      %1098 = vector.load %arg1[%c8_967, %c2_968, %c0_969, %c0_970] : memref<9x4x8x256xf32, #tpu.memory_space<vmem>>, vector<1x1x8x256xf32>
      %1099 = vector.shape_cast %1098 : vector<1x1x8x256xf32> to vector<8x256xf32>
      %1100 = arith.mulf %1099, %1097 : vector<8x256xf32>
      %1101 = arith.addf %1096, %1100 : vector<8x256xf32>
      %c2_i32_971 = arith.constant 2 : i32
      %1102 = tpu.dynamic_rotate %1087 by %c2_i32_971 dim 0 : vector<8x256xf32>, i32 -> vector<8x256xf32>
      %c8_972 = arith.constant 8 : index
      %c3_973 = arith.constant 3 : index
      %c0_974 = arith.constant 0 : index
      %c0_975 = arith.constant 0 : index
      %1103 = vector.load %arg1[%c8_972, %c3_973, %c0_974, %c0_975] : memref<9x4x8x256xf32, #tpu.memory_space<vmem>>, vector<1x1x8x256xf32>
      %1104 = vector.shape_cast %1103 : vector<1x1x8x256xf32> to vector<8x256xf32>
      %1105 = arith.mulf %1104, %1102 : vector<8x256xf32>
      %1106 = arith.addf %1101, %1105 : vector<8x256xf32>
      %cst_976 = arith.constant dense<0.000000e+00> : vector<8xf32>
      %1107 = vector.multi_reduction <add>, %1106, %cst_976 [1] : vector<8x256xf32> to vector<8xf32>
      %1108 = vector.shape_cast %1107 : vector<8xf32> to vector<8x1xf32>
      %1109 = arith.mulf %1106, %1106 : vector<8x256xf32>
      %cst_977 = arith.constant dense<0.000000e+00> : vector<8xf32>
      %1110 = vector.multi_reduction <add>, %1109, %cst_977 [1] : vector<8x256xf32> to vector<8xf32>
      %1111 = vector.shape_cast %1110 : vector<8xf32> to vector<8x1xf32>
      %cst_978 = arith.constant 3.906250e-03 : f32
      %1112 = vector.broadcast %cst_978 : f32 to vector<8x1xf32>
      %1113 = arith.mulf %1108, %1112 : vector<8x1xf32>
      %cst_979 = arith.constant 3.906250e-03 : f32
      %1114 = vector.broadcast %cst_979 : f32 to vector<8x1xf32>
      %1115 = arith.mulf %1111, %1114 : vector<8x1xf32>
      %1116 = arith.mulf %1113, %1113 : vector<8x1xf32>
      %1117 = arith.subf %1115, %1116 : vector<8x1xf32>
      %cst_980 = arith.constant 0.000000e+00 : f32
      %1118 = vector.broadcast %cst_980 : f32 to vector<8x1xf32>
      %1119 = arith.maximumf %1117, %1118 : vector<8x1xf32>
      %cst_981 = arith.constant 9.99999974E-6 : f32
      %1120 = vector.broadcast %cst_981 : f32 to vector<8x1xf32>
      %1121 = arith.addf %1119, %1120 : vector<8x1xf32>
      %1122 = math.rsqrt %1121 : vector<8x1xf32>
      %1123 = vector.broadcast %1113 : vector<8x1xf32> to vector<8x256xf32>
      %1124 = arith.subf %1106, %1123 : vector<8x256xf32>
      %c0_982 = arith.constant 0 : index
      %c0_983 = arith.constant 0 : index
      %1125 = vector.load %arg9[%c0_982, %c0_983] : memref<8x256xf32, #tpu.memory_space<vmem>>, vector<8x256xf32>
      %1126 = vector.broadcast %1122 : vector<8x1xf32> to vector<8x256xf32>
      %1127 = arith.mulf %1126, %1125 : vector<8x256xf32>
      %1128 = arith.mulf %1124, %1127 : vector<8x256xf32>
      %c0_984 = arith.constant 0 : index
      %c0_985 = arith.constant 0 : index
      %1129 = vector.load %arg10[%c0_984, %c0_985] : memref<8x256xf32, #tpu.memory_space<vmem>>, vector<8x256xf32>
      %1130 = arith.addf %1128, %1129 : vector<8x256xf32>
      %cst_986 = arith.constant 0.000000e+00 : f32
      %1131 = vector.broadcast %cst_986 : f32 to vector<8x256xf32>
      %1132 = arith.maximumf %1130, %1131 : vector<8x256xf32>
      %c17_i32_987 = arith.constant 17 : i32
      %1133 = tpu.dynamic_rotate %1132 by %c17_i32_987 dim 1 : vector<8x256xf32>, i32 -> vector<8x256xf32>
      %c0_988 = arith.constant 0 : index
      %c0_989 = arith.constant 0 : index
      %c0_990 = arith.constant 0 : index
      %c0_991 = arith.constant 0 : index
      %1134 = vector.load %arg4[%c0_988, %c0_989, %c0_990, %c0_991] : memref<9x4x8x256xf32, #tpu.memory_space<vmem>>, vector<1x1x8x256xf32>
      %1135 = vector.shape_cast %1134 : vector<1x1x8x256xf32> to vector<8x256xf32>
      %1136 = arith.mulf %1135, %1133 : vector<8x256xf32>
      %1137 = arith.addf %461, %1136 : vector<8x256xf32>
      %c6_i32_992 = arith.constant 6 : i32
      %1138 = tpu.dynamic_rotate %1133 by %c6_i32_992 dim 0 : vector<8x256xf32>, i32 -> vector<8x256xf32>
      %c0_993 = arith.constant 0 : index
      %c1_994 = arith.constant 1 : index
      %c0_995 = arith.constant 0 : index
      %c0_996 = arith.constant 0 : index
      %1139 = vector.load %arg4[%c0_993, %c1_994, %c0_995, %c0_996] : memref<9x4x8x256xf32, #tpu.memory_space<vmem>>, vector<1x1x8x256xf32>
      %1140 = vector.shape_cast %1139 : vector<1x1x8x256xf32> to vector<8x256xf32>
      %1141 = arith.mulf %1140, %1138 : vector<8x256xf32>
      %1142 = arith.addf %1137, %1141 : vector<8x256xf32>
      %c4_i32_997 = arith.constant 4 : i32
      %1143 = tpu.dynamic_rotate %1133 by %c4_i32_997 dim 0 : vector<8x256xf32>, i32 -> vector<8x256xf32>
      %c0_998 = arith.constant 0 : index
      %c2_999 = arith.constant 2 : index
      %c0_1000 = arith.constant 0 : index
      %c0_1001 = arith.constant 0 : index
      %1144 = vector.load %arg4[%c0_998, %c2_999, %c0_1000, %c0_1001] : memref<9x4x8x256xf32, #tpu.memory_space<vmem>>, vector<1x1x8x256xf32>
      %1145 = vector.shape_cast %1144 : vector<1x1x8x256xf32> to vector<8x256xf32>
      %1146 = arith.mulf %1145, %1143 : vector<8x256xf32>
      %1147 = arith.addf %1142, %1146 : vector<8x256xf32>
      %c2_i32_1002 = arith.constant 2 : i32
      %1148 = tpu.dynamic_rotate %1133 by %c2_i32_1002 dim 0 : vector<8x256xf32>, i32 -> vector<8x256xf32>
      %c0_1003 = arith.constant 0 : index
      %c3_1004 = arith.constant 3 : index
      %c0_1005 = arith.constant 0 : index
      %c0_1006 = arith.constant 0 : index
      %1149 = vector.load %arg4[%c0_1003, %c3_1004, %c0_1005, %c0_1006] : memref<9x4x8x256xf32, #tpu.memory_space<vmem>>, vector<1x1x8x256xf32>
      %1150 = vector.shape_cast %1149 : vector<1x1x8x256xf32> to vector<8x256xf32>
      %1151 = arith.mulf %1150, %1148 : vector<8x256xf32>
      %1152 = arith.addf %1147, %1151 : vector<8x256xf32>
      %c16_i32_1007 = arith.constant 16 : i32
      %1153 = tpu.dynamic_rotate %1132 by %c16_i32_1007 dim 1 : vector<8x256xf32>, i32 -> vector<8x256xf32>
      %c1_1008 = arith.constant 1 : index
      %c0_1009 = arith.constant 0 : index
      %c0_1010 = arith.constant 0 : index
      %c0_1011 = arith.constant 0 : index
      %1154 = vector.load %arg4[%c1_1008, %c0_1009, %c0_1010, %c0_1011] : memref<9x4x8x256xf32, #tpu.memory_space<vmem>>, vector<1x1x8x256xf32>
      %1155 = vector.shape_cast %1154 : vector<1x1x8x256xf32> to vector<8x256xf32>
      %1156 = arith.mulf %1155, %1153 : vector<8x256xf32>
      %1157 = arith.addf %1152, %1156 : vector<8x256xf32>
      %c6_i32_1012 = arith.constant 6 : i32
      %1158 = tpu.dynamic_rotate %1153 by %c6_i32_1012 dim 0 : vector<8x256xf32>, i32 -> vector<8x256xf32>
      %c1_1013 = arith.constant 1 : index
      %c1_1014 = arith.constant 1 : index
      %c0_1015 = arith.constant 0 : index
      %c0_1016 = arith.constant 0 : index
      %1159 = vector.load %arg4[%c1_1013, %c1_1014, %c0_1015, %c0_1016] : memref<9x4x8x256xf32, #tpu.memory_space<vmem>>, vector<1x1x8x256xf32>
      %1160 = vector.shape_cast %1159 : vector<1x1x8x256xf32> to vector<8x256xf32>
      %1161 = arith.mulf %1160, %1158 : vector<8x256xf32>
      %1162 = arith.addf %1157, %1161 : vector<8x256xf32>
      %c4_i32_1017 = arith.constant 4 : i32
      %1163 = tpu.dynamic_rotate %1153 by %c4_i32_1017 dim 0 : vector<8x256xf32>, i32 -> vector<8x256xf32>
      %c1_1018 = arith.constant 1 : index
      %c2_1019 = arith.constant 2 : index
      %c0_1020 = arith.constant 0 : index
      %c0_1021 = arith.constant 0 : index
      %1164 = vector.load %arg4[%c1_1018, %c2_1019, %c0_1020, %c0_1021] : memref<9x4x8x256xf32, #tpu.memory_space<vmem>>, vector<1x1x8x256xf32>
      %1165 = vector.shape_cast %1164 : vector<1x1x8x256xf32> to vector<8x256xf32>
      %1166 = arith.mulf %1165, %1163 : vector<8x256xf32>
      %1167 = arith.addf %1162, %1166 : vector<8x256xf32>
      %c2_i32_1022 = arith.constant 2 : i32
      %1168 = tpu.dynamic_rotate %1153 by %c2_i32_1022 dim 0 : vector<8x256xf32>, i32 -> vector<8x256xf32>
      %c1_1023 = arith.constant 1 : index
      %c3_1024 = arith.constant 3 : index
      %c0_1025 = arith.constant 0 : index
      %c0_1026 = arith.constant 0 : index
      %1169 = vector.load %arg4[%c1_1023, %c3_1024, %c0_1025, %c0_1026] : memref<9x4x8x256xf32, #tpu.memory_space<vmem>>, vector<1x1x8x256xf32>
      %1170 = vector.shape_cast %1169 : vector<1x1x8x256xf32> to vector<8x256xf32>
      %1171 = arith.mulf %1170, %1168 : vector<8x256xf32>
      %1172 = arith.addf %1167, %1171 : vector<8x256xf32>
      %c15_i32_1027 = arith.constant 15 : i32
      %1173 = tpu.dynamic_rotate %1132 by %c15_i32_1027 dim 1 : vector<8x256xf32>, i32 -> vector<8x256xf32>
      %c2_1028 = arith.constant 2 : index
      %c0_1029 = arith.constant 0 : index
      %c0_1030 = arith.constant 0 : index
      %c0_1031 = arith.constant 0 : index
      %1174 = vector.load %arg4[%c2_1028, %c0_1029, %c0_1030, %c0_1031] : memref<9x4x8x256xf32, #tpu.memory_space<vmem>>, vector<1x1x8x256xf32>
      %1175 = vector.shape_cast %1174 : vector<1x1x8x256xf32> to vector<8x256xf32>
      %1176 = arith.mulf %1175, %1173 : vector<8x256xf32>
      %1177 = arith.addf %1172, %1176 : vector<8x256xf32>
      %c6_i32_1032 = arith.constant 6 : i32
      %1178 = tpu.dynamic_rotate %1173 by %c6_i32_1032 dim 0 : vector<8x256xf32>, i32 -> vector<8x256xf32>
      %c2_1033 = arith.constant 2 : index
      %c1_1034 = arith.constant 1 : index
      %c0_1035 = arith.constant 0 : index
      %c0_1036 = arith.constant 0 : index
      %1179 = vector.load %arg4[%c2_1033, %c1_1034, %c0_1035, %c0_1036] : memref<9x4x8x256xf32, #tpu.memory_space<vmem>>, vector<1x1x8x256xf32>
      %1180 = vector.shape_cast %1179 : vector<1x1x8x256xf32> to vector<8x256xf32>
      %1181 = arith.mulf %1180, %1178 : vector<8x256xf32>
      %1182 = arith.addf %1177, %1181 : vector<8x256xf32>
      %c4_i32_1037 = arith.constant 4 : i32
      %1183 = tpu.dynamic_rotate %1173 by %c4_i32_1037 dim 0 : vector<8x256xf32>, i32 -> vector<8x256xf32>
      %c2_1038 = arith.constant 2 : index
      %c2_1039 = arith.constant 2 : index
      %c0_1040 = arith.constant 0 : index
      %c0_1041 = arith.constant 0 : index
      %1184 = vector.load %arg4[%c2_1038, %c2_1039, %c0_1040, %c0_1041] : memref<9x4x8x256xf32, #tpu.memory_space<vmem>>, vector<1x1x8x256xf32>
      %1185 = vector.shape_cast %1184 : vector<1x1x8x256xf32> to vector<8x256xf32>
      %1186 = arith.mulf %1185, %1183 : vector<8x256xf32>
      %1187 = arith.addf %1182, %1186 : vector<8x256xf32>
      %c2_i32_1042 = arith.constant 2 : i32
      %1188 = tpu.dynamic_rotate %1173 by %c2_i32_1042 dim 0 : vector<8x256xf32>, i32 -> vector<8x256xf32>
      %c2_1043 = arith.constant 2 : index
      %c3_1044 = arith.constant 3 : index
      %c0_1045 = arith.constant 0 : index
      %c0_1046 = arith.constant 0 : index
      %1189 = vector.load %arg4[%c2_1043, %c3_1044, %c0_1045, %c0_1046] : memref<9x4x8x256xf32, #tpu.memory_space<vmem>>, vector<1x1x8x256xf32>
      %1190 = vector.shape_cast %1189 : vector<1x1x8x256xf32> to vector<8x256xf32>
      %1191 = arith.mulf %1190, %1188 : vector<8x256xf32>
      %1192 = arith.addf %1187, %1191 : vector<8x256xf32>
      %c1_i32_1047 = arith.constant 1 : i32
      %1193 = tpu.dynamic_rotate %1132 by %c1_i32_1047 dim 1 : vector<8x256xf32>, i32 -> vector<8x256xf32>
      %c3_1048 = arith.constant 3 : index
      %c0_1049 = arith.constant 0 : index
      %c0_1050 = arith.constant 0 : index
      %c0_1051 = arith.constant 0 : index
      %1194 = vector.load %arg4[%c3_1048, %c0_1049, %c0_1050, %c0_1051] : memref<9x4x8x256xf32, #tpu.memory_space<vmem>>, vector<1x1x8x256xf32>
      %1195 = vector.shape_cast %1194 : vector<1x1x8x256xf32> to vector<8x256xf32>
      %1196 = arith.mulf %1195, %1193 : vector<8x256xf32>
      %1197 = arith.addf %1192, %1196 : vector<8x256xf32>
      %c6_i32_1052 = arith.constant 6 : i32
      %1198 = tpu.dynamic_rotate %1193 by %c6_i32_1052 dim 0 : vector<8x256xf32>, i32 -> vector<8x256xf32>
      %c3_1053 = arith.constant 3 : index
      %c1_1054 = arith.constant 1 : index
      %c0_1055 = arith.constant 0 : index
      %c0_1056 = arith.constant 0 : index
      %1199 = vector.load %arg4[%c3_1053, %c1_1054, %c0_1055, %c0_1056] : memref<9x4x8x256xf32, #tpu.memory_space<vmem>>, vector<1x1x8x256xf32>
      %1200 = vector.shape_cast %1199 : vector<1x1x8x256xf32> to vector<8x256xf32>
      %1201 = arith.mulf %1200, %1198 : vector<8x256xf32>
      %1202 = arith.addf %1197, %1201 : vector<8x256xf32>
      %c4_i32_1057 = arith.constant 4 : i32
      %1203 = tpu.dynamic_rotate %1193 by %c4_i32_1057 dim 0 : vector<8x256xf32>, i32 -> vector<8x256xf32>
      %c3_1058 = arith.constant 3 : index
      %c2_1059 = arith.constant 2 : index
      %c0_1060 = arith.constant 0 : index
      %c0_1061 = arith.constant 0 : index
      %1204 = vector.load %arg4[%c3_1058, %c2_1059, %c0_1060, %c0_1061] : memref<9x4x8x256xf32, #tpu.memory_space<vmem>>, vector<1x1x8x256xf32>
      %1205 = vector.shape_cast %1204 : vector<1x1x8x256xf32> to vector<8x256xf32>
      %1206 = arith.mulf %1205, %1203 : vector<8x256xf32>
      %1207 = arith.addf %1202, %1206 : vector<8x256xf32>
      %c2_i32_1062 = arith.constant 2 : i32
      %1208 = tpu.dynamic_rotate %1193 by %c2_i32_1062 dim 0 : vector<8x256xf32>, i32 -> vector<8x256xf32>
      %c3_1063 = arith.constant 3 : index
      %c3_1064 = arith.constant 3 : index
      %c0_1065 = arith.constant 0 : index
      %c0_1066 = arith.constant 0 : index
      %1209 = vector.load %arg4[%c3_1063, %c3_1064, %c0_1065, %c0_1066] : memref<9x4x8x256xf32, #tpu.memory_space<vmem>>, vector<1x1x8x256xf32>
      %1210 = vector.shape_cast %1209 : vector<1x1x8x256xf32> to vector<8x256xf32>
      %1211 = arith.mulf %1210, %1208 : vector<8x256xf32>
      %1212 = arith.addf %1207, %1211 : vector<8x256xf32>
      %c4_1067 = arith.constant 4 : index
      %c0_1068 = arith.constant 0 : index
      %c0_1069 = arith.constant 0 : index
      %c0_1070 = arith.constant 0 : index
      %1213 = vector.load %arg4[%c4_1067, %c0_1068, %c0_1069, %c0_1070] : memref<9x4x8x256xf32, #tpu.memory_space<vmem>>, vector<1x1x8x256xf32>
      %1214 = vector.shape_cast %1213 : vector<1x1x8x256xf32> to vector<8x256xf32>
      %1215 = arith.mulf %1214, %1132 : vector<8x256xf32>
      %1216 = arith.addf %1212, %1215 : vector<8x256xf32>
      %c6_i32_1071 = arith.constant 6 : i32
      %1217 = tpu.dynamic_rotate %1132 by %c6_i32_1071 dim 0 : vector<8x256xf32>, i32 -> vector<8x256xf32>
      %c4_1072 = arith.constant 4 : index
      %c1_1073 = arith.constant 1 : index
      %c0_1074 = arith.constant 0 : index
      %c0_1075 = arith.constant 0 : index
      %1218 = vector.load %arg4[%c4_1072, %c1_1073, %c0_1074, %c0_1075] : memref<9x4x8x256xf32, #tpu.memory_space<vmem>>, vector<1x1x8x256xf32>
      %1219 = vector.shape_cast %1218 : vector<1x1x8x256xf32> to vector<8x256xf32>
      %1220 = arith.mulf %1219, %1217 : vector<8x256xf32>
      %1221 = arith.addf %1216, %1220 : vector<8x256xf32>
      %c4_i32_1076 = arith.constant 4 : i32
      %1222 = tpu.dynamic_rotate %1132 by %c4_i32_1076 dim 0 : vector<8x256xf32>, i32 -> vector<8x256xf32>
      %c4_1077 = arith.constant 4 : index
      %c2_1078 = arith.constant 2 : index
      %c0_1079 = arith.constant 0 : index
      %c0_1080 = arith.constant 0 : index
      %1223 = vector.load %arg4[%c4_1077, %c2_1078, %c0_1079, %c0_1080] : memref<9x4x8x256xf32, #tpu.memory_space<vmem>>, vector<1x1x8x256xf32>
      %1224 = vector.shape_cast %1223 : vector<1x1x8x256xf32> to vector<8x256xf32>
      %1225 = arith.mulf %1224, %1222 : vector<8x256xf32>
      %1226 = arith.addf %1221, %1225 : vector<8x256xf32>
      %c2_i32_1081 = arith.constant 2 : i32
      %1227 = tpu.dynamic_rotate %1132 by %c2_i32_1081 dim 0 : vector<8x256xf32>, i32 -> vector<8x256xf32>
      %c4_1082 = arith.constant 4 : index
      %c3_1083 = arith.constant 3 : index
      %c0_1084 = arith.constant 0 : index
      %c0_1085 = arith.constant 0 : index
      %1228 = vector.load %arg4[%c4_1082, %c3_1083, %c0_1084, %c0_1085] : memref<9x4x8x256xf32, #tpu.memory_space<vmem>>, vector<1x1x8x256xf32>
      %1229 = vector.shape_cast %1228 : vector<1x1x8x256xf32> to vector<8x256xf32>
      %1230 = arith.mulf %1229, %1227 : vector<8x256xf32>
      %1231 = arith.addf %1226, %1230 : vector<8x256xf32>
      %c255_i32_1086 = arith.constant 255 : i32
      %1232 = tpu.dynamic_rotate %1132 by %c255_i32_1086 dim 1 : vector<8x256xf32>, i32 -> vector<8x256xf32>
      %c5_1087 = arith.constant 5 : index
      %c0_1088 = arith.constant 0 : index
      %c0_1089 = arith.constant 0 : index
      %c0_1090 = arith.constant 0 : index
      %1233 = vector.load %arg4[%c5_1087, %c0_1088, %c0_1089, %c0_1090] : memref<9x4x8x256xf32, #tpu.memory_space<vmem>>, vector<1x1x8x256xf32>
      %1234 = vector.shape_cast %1233 : vector<1x1x8x256xf32> to vector<8x256xf32>
      %1235 = arith.mulf %1234, %1232 : vector<8x256xf32>
      %1236 = arith.addf %1231, %1235 : vector<8x256xf32>
      %c6_i32_1091 = arith.constant 6 : i32
      %1237 = tpu.dynamic_rotate %1232 by %c6_i32_1091 dim 0 : vector<8x256xf32>, i32 -> vector<8x256xf32>
      %c5_1092 = arith.constant 5 : index
      %c1_1093 = arith.constant 1 : index
      %c0_1094 = arith.constant 0 : index
      %c0_1095 = arith.constant 0 : index
      %1238 = vector.load %arg4[%c5_1092, %c1_1093, %c0_1094, %c0_1095] : memref<9x4x8x256xf32, #tpu.memory_space<vmem>>, vector<1x1x8x256xf32>
      %1239 = vector.shape_cast %1238 : vector<1x1x8x256xf32> to vector<8x256xf32>
      %1240 = arith.mulf %1239, %1237 : vector<8x256xf32>
      %1241 = arith.addf %1236, %1240 : vector<8x256xf32>
      %c4_i32_1096 = arith.constant 4 : i32
      %1242 = tpu.dynamic_rotate %1232 by %c4_i32_1096 dim 0 : vector<8x256xf32>, i32 -> vector<8x256xf32>
      %c5_1097 = arith.constant 5 : index
      %c2_1098 = arith.constant 2 : index
      %c0_1099 = arith.constant 0 : index
      %c0_1100 = arith.constant 0 : index
      %1243 = vector.load %arg4[%c5_1097, %c2_1098, %c0_1099, %c0_1100] : memref<9x4x8x256xf32, #tpu.memory_space<vmem>>, vector<1x1x8x256xf32>
      %1244 = vector.shape_cast %1243 : vector<1x1x8x256xf32> to vector<8x256xf32>
      %1245 = arith.mulf %1244, %1242 : vector<8x256xf32>
      %1246 = arith.addf %1241, %1245 : vector<8x256xf32>
      %c2_i32_1101 = arith.constant 2 : i32
      %1247 = tpu.dynamic_rotate %1232 by %c2_i32_1101 dim 0 : vector<8x256xf32>, i32 -> vector<8x256xf32>
      %c5_1102 = arith.constant 5 : index
      %c3_1103 = arith.constant 3 : index
      %c0_1104 = arith.constant 0 : index
      %c0_1105 = arith.constant 0 : index
      %1248 = vector.load %arg4[%c5_1102, %c3_1103, %c0_1104, %c0_1105] : memref<9x4x8x256xf32, #tpu.memory_space<vmem>>, vector<1x1x8x256xf32>
      %1249 = vector.shape_cast %1248 : vector<1x1x8x256xf32> to vector<8x256xf32>
      %1250 = arith.mulf %1249, %1247 : vector<8x256xf32>
      %1251 = arith.addf %1246, %1250 : vector<8x256xf32>
      %c241_i32_1106 = arith.constant 241 : i32
      %1252 = tpu.dynamic_rotate %1132 by %c241_i32_1106 dim 1 : vector<8x256xf32>, i32 -> vector<8x256xf32>
      %c6_1107 = arith.constant 6 : index
      %c0_1108 = arith.constant 0 : index
      %c0_1109 = arith.constant 0 : index
      %c0_1110 = arith.constant 0 : index
      %1253 = vector.load %arg4[%c6_1107, %c0_1108, %c0_1109, %c0_1110] : memref<9x4x8x256xf32, #tpu.memory_space<vmem>>, vector<1x1x8x256xf32>
      %1254 = vector.shape_cast %1253 : vector<1x1x8x256xf32> to vector<8x256xf32>
      %1255 = arith.mulf %1254, %1252 : vector<8x256xf32>
      %1256 = arith.addf %1251, %1255 : vector<8x256xf32>
      %c6_i32_1111 = arith.constant 6 : i32
      %1257 = tpu.dynamic_rotate %1252 by %c6_i32_1111 dim 0 : vector<8x256xf32>, i32 -> vector<8x256xf32>
      %c6_1112 = arith.constant 6 : index
      %c1_1113 = arith.constant 1 : index
      %c0_1114 = arith.constant 0 : index
      %c0_1115 = arith.constant 0 : index
      %1258 = vector.load %arg4[%c6_1112, %c1_1113, %c0_1114, %c0_1115] : memref<9x4x8x256xf32, #tpu.memory_space<vmem>>, vector<1x1x8x256xf32>
      %1259 = vector.shape_cast %1258 : vector<1x1x8x256xf32> to vector<8x256xf32>
      %1260 = arith.mulf %1259, %1257 : vector<8x256xf32>
      %1261 = arith.addf %1256, %1260 : vector<8x256xf32>
      %c4_i32_1116 = arith.constant 4 : i32
      %1262 = tpu.dynamic_rotate %1252 by %c4_i32_1116 dim 0 : vector<8x256xf32>, i32 -> vector<8x256xf32>
      %c6_1117 = arith.constant 6 : index
      %c2_1118 = arith.constant 2 : index
      %c0_1119 = arith.constant 0 : index
      %c0_1120 = arith.constant 0 : index
      %1263 = vector.load %arg4[%c6_1117, %c2_1118, %c0_1119, %c0_1120] : memref<9x4x8x256xf32, #tpu.memory_space<vmem>>, vector<1x1x8x256xf32>
      %1264 = vector.shape_cast %1263 : vector<1x1x8x256xf32> to vector<8x256xf32>
      %1265 = arith.mulf %1264, %1262 : vector<8x256xf32>
      %1266 = arith.addf %1261, %1265 : vector<8x256xf32>
      %c2_i32_1121 = arith.constant 2 : i32
      %1267 = tpu.dynamic_rotate %1252 by %c2_i32_1121 dim 0 : vector<8x256xf32>, i32 -> vector<8x256xf32>
      %c6_1122 = arith.constant 6 : index
      %c3_1123 = arith.constant 3 : index
      %c0_1124 = arith.constant 0 : index
      %c0_1125 = arith.constant 0 : index
      %1268 = vector.load %arg4[%c6_1122, %c3_1123, %c0_1124, %c0_1125] : memref<9x4x8x256xf32, #tpu.memory_space<vmem>>, vector<1x1x8x256xf32>
      %1269 = vector.shape_cast %1268 : vector<1x1x8x256xf32> to vector<8x256xf32>
      %1270 = arith.mulf %1269, %1267 : vector<8x256xf32>
      %1271 = arith.addf %1266, %1270 : vector<8x256xf32>
      %c240_i32_1126 = arith.constant 240 : i32
      %1272 = tpu.dynamic_rotate %1132 by %c240_i32_1126 dim 1 : vector<8x256xf32>, i32 -> vector<8x256xf32>
      %c7_1127 = arith.constant 7 : index
      %c0_1128 = arith.constant 0 : index
      %c0_1129 = arith.constant 0 : index
      %c0_1130 = arith.constant 0 : index
      %1273 = vector.load %arg4[%c7_1127, %c0_1128, %c0_1129, %c0_1130] : memref<9x4x8x256xf32, #tpu.memory_space<vmem>>, vector<1x1x8x256xf32>
      %1274 = vector.shape_cast %1273 : vector<1x1x8x256xf32> to vector<8x256xf32>
      %1275 = arith.mulf %1274, %1272 : vector<8x256xf32>
      %1276 = arith.addf %1271, %1275 : vector<8x256xf32>
      %c6_i32_1131 = arith.constant 6 : i32
      %1277 = tpu.dynamic_rotate %1272 by %c6_i32_1131 dim 0 : vector<8x256xf32>, i32 -> vector<8x256xf32>
      %c7_1132 = arith.constant 7 : index
      %c1_1133 = arith.constant 1 : index
      %c0_1134 = arith.constant 0 : index
      %c0_1135 = arith.constant 0 : index
      %1278 = vector.load %arg4[%c7_1132, %c1_1133, %c0_1134, %c0_1135] : memref<9x4x8x256xf32, #tpu.memory_space<vmem>>, vector<1x1x8x256xf32>
      %1279 = vector.shape_cast %1278 : vector<1x1x8x256xf32> to vector<8x256xf32>
      %1280 = arith.mulf %1279, %1277 : vector<8x256xf32>
      %1281 = arith.addf %1276, %1280 : vector<8x256xf32>
      %c4_i32_1136 = arith.constant 4 : i32
      %1282 = tpu.dynamic_rotate %1272 by %c4_i32_1136 dim 0 : vector<8x256xf32>, i32 -> vector<8x256xf32>
      %c7_1137 = arith.constant 7 : index
      %c2_1138 = arith.constant 2 : index
      %c0_1139 = arith.constant 0 : index
      %c0_1140 = arith.constant 0 : index
      %1283 = vector.load %arg4[%c7_1137, %c2_1138, %c0_1139, %c0_1140] : memref<9x4x8x256xf32, #tpu.memory_space<vmem>>, vector<1x1x8x256xf32>
      %1284 = vector.shape_cast %1283 : vector<1x1x8x256xf32> to vector<8x256xf32>
      %1285 = arith.mulf %1284, %1282 : vector<8x256xf32>
      %1286 = arith.addf %1281, %1285 : vector<8x256xf32>
      %c2_i32_1141 = arith.constant 2 : i32
      %1287 = tpu.dynamic_rotate %1272 by %c2_i32_1141 dim 0 : vector<8x256xf32>, i32 -> vector<8x256xf32>
      %c7_1142 = arith.constant 7 : index
      %c3_1143 = arith.constant 3 : index
      %c0_1144 = arith.constant 0 : index
      %c0_1145 = arith.constant 0 : index
      %1288 = vector.load %arg4[%c7_1142, %c3_1143, %c0_1144, %c0_1145] : memref<9x4x8x256xf32, #tpu.memory_space<vmem>>, vector<1x1x8x256xf32>
      %1289 = vector.shape_cast %1288 : vector<1x1x8x256xf32> to vector<8x256xf32>
      %1290 = arith.mulf %1289, %1287 : vector<8x256xf32>
      %1291 = arith.addf %1286, %1290 : vector<8x256xf32>
      %c239_i32_1146 = arith.constant 239 : i32
      %1292 = tpu.dynamic_rotate %1132 by %c239_i32_1146 dim 1 : vector<8x256xf32>, i32 -> vector<8x256xf32>
      %c8_1147 = arith.constant 8 : index
      %c0_1148 = arith.constant 0 : index
      %c0_1149 = arith.constant 0 : index
      %c0_1150 = arith.constant 0 : index
      %1293 = vector.load %arg4[%c8_1147, %c0_1148, %c0_1149, %c0_1150] : memref<9x4x8x256xf32, #tpu.memory_space<vmem>>, vector<1x1x8x256xf32>
      %1294 = vector.shape_cast %1293 : vector<1x1x8x256xf32> to vector<8x256xf32>
      %1295 = arith.mulf %1294, %1292 : vector<8x256xf32>
      %1296 = arith.addf %1291, %1295 : vector<8x256xf32>
      %c6_i32_1151 = arith.constant 6 : i32
      %1297 = tpu.dynamic_rotate %1292 by %c6_i32_1151 dim 0 : vector<8x256xf32>, i32 -> vector<8x256xf32>
      %c8_1152 = arith.constant 8 : index
      %c1_1153 = arith.constant 1 : index
      %c0_1154 = arith.constant 0 : index
      %c0_1155 = arith.constant 0 : index
      %1298 = vector.load %arg4[%c8_1152, %c1_1153, %c0_1154, %c0_1155] : memref<9x4x8x256xf32, #tpu.memory_space<vmem>>, vector<1x1x8x256xf32>
      %1299 = vector.shape_cast %1298 : vector<1x1x8x256xf32> to vector<8x256xf32>
      %1300 = arith.mulf %1299, %1297 : vector<8x256xf32>
      %1301 = arith.addf %1296, %1300 : vector<8x256xf32>
      %c4_i32_1156 = arith.constant 4 : i32
      %1302 = tpu.dynamic_rotate %1292 by %c4_i32_1156 dim 0 : vector<8x256xf32>, i32 -> vector<8x256xf32>
      %c8_1157 = arith.constant 8 : index
      %c2_1158 = arith.constant 2 : index
      %c0_1159 = arith.constant 0 : index
      %c0_1160 = arith.constant 0 : index
      %1303 = vector.load %arg4[%c8_1157, %c2_1158, %c0_1159, %c0_1160] : memref<9x4x8x256xf32, #tpu.memory_space<vmem>>, vector<1x1x8x256xf32>
      %1304 = vector.shape_cast %1303 : vector<1x1x8x256xf32> to vector<8x256xf32>
      %1305 = arith.mulf %1304, %1302 : vector<8x256xf32>
      %1306 = arith.addf %1301, %1305 : vector<8x256xf32>
      %c2_i32_1161 = arith.constant 2 : i32
      %1307 = tpu.dynamic_rotate %1292 by %c2_i32_1161 dim 0 : vector<8x256xf32>, i32 -> vector<8x256xf32>
      %c8_1162 = arith.constant 8 : index
      %c3_1163 = arith.constant 3 : index
      %c0_1164 = arith.constant 0 : index
      %c0_1165 = arith.constant 0 : index
      %1308 = vector.load %arg4[%c8_1162, %c3_1163, %c0_1164, %c0_1165] : memref<9x4x8x256xf32, #tpu.memory_space<vmem>>, vector<1x1x8x256xf32>
      %1309 = vector.shape_cast %1308 : vector<1x1x8x256xf32> to vector<8x256xf32>
      %1310 = arith.mulf %1309, %1307 : vector<8x256xf32>
      %1311 = arith.addf %1306, %1310 : vector<8x256xf32>
      %cst_1166 = arith.constant dense<0.000000e+00> : vector<8xf32>
      %1312 = vector.multi_reduction <add>, %1311, %cst_1166 [1] : vector<8x256xf32> to vector<8xf32>
      %1313 = vector.shape_cast %1312 : vector<8xf32> to vector<8x1xf32>
      %1314 = arith.mulf %1311, %1311 : vector<8x256xf32>
      %cst_1167 = arith.constant dense<0.000000e+00> : vector<8xf32>
      %1315 = vector.multi_reduction <add>, %1314, %cst_1167 [1] : vector<8x256xf32> to vector<8xf32>
      %1316 = vector.shape_cast %1315 : vector<8xf32> to vector<8x1xf32>
      %cst_1168 = arith.constant 3.906250e-03 : f32
      %1317 = vector.broadcast %cst_1168 : f32 to vector<8x1xf32>
      %1318 = arith.mulf %1313, %1317 : vector<8x1xf32>
      %cst_1169 = arith.constant 3.906250e-03 : f32
      %1319 = vector.broadcast %cst_1169 : f32 to vector<8x1xf32>
      %1320 = arith.mulf %1316, %1319 : vector<8x1xf32>
      %1321 = arith.mulf %1318, %1318 : vector<8x1xf32>
      %1322 = arith.subf %1320, %1321 : vector<8x1xf32>
      %cst_1170 = arith.constant 0.000000e+00 : f32
      %1323 = vector.broadcast %cst_1170 : f32 to vector<8x1xf32>
      %1324 = arith.maximumf %1322, %1323 : vector<8x1xf32>
      %cst_1171 = arith.constant 9.99999974E-6 : f32
      %1325 = vector.broadcast %cst_1171 : f32 to vector<8x1xf32>
      %1326 = arith.addf %1324, %1325 : vector<8x1xf32>
      %1327 = math.rsqrt %1326 : vector<8x1xf32>
      %1328 = vector.broadcast %1318 : vector<8x1xf32> to vector<8x256xf32>
      %1329 = arith.subf %1311, %1328 : vector<8x256xf32>
      %c0_1172 = arith.constant 0 : index
      %c0_1173 = arith.constant 0 : index
      %1330 = vector.load %arg11[%c0_1172, %c0_1173] : memref<8x256xf32, #tpu.memory_space<vmem>>, vector<8x256xf32>
      %1331 = vector.broadcast %1327 : vector<8x1xf32> to vector<8x256xf32>
      %1332 = arith.mulf %1331, %1330 : vector<8x256xf32>
      %1333 = arith.mulf %1329, %1332 : vector<8x256xf32>
      %c0_1174 = arith.constant 0 : index
      %c0_1175 = arith.constant 0 : index
      %1334 = vector.load %arg12[%c0_1174, %c0_1175] : memref<8x256xf32, #tpu.memory_space<vmem>>, vector<8x256xf32>
      %1335 = arith.addf %1333, %1334 : vector<8x256xf32>
      %cst_1176 = arith.constant 2.500000e-01 : f32
      %1336 = vector.broadcast %cst_1176 : f32 to vector<8x256xf32>
      %1337 = arith.mulf %1336, %1335 : vector<8x256xf32>
      %1338 = arith.addf %arg15, %1337 : vector<8x256xf32>
      %cst_1177 = arith.constant 2.500000e-01 : f32
      %1339 = arith.addf %6, %cst_1177 : f32
      %c0_1178 = arith.constant 0 : index
      %c0_1179 = arith.constant 0 : index
      %1340 = vector.load %arg2[%c0_1178, %c0_1179] : memref<8x256xf32, #tpu.memory_space<vmem>>, vector<8x256xf32>
      %c0_1180 = arith.constant 0 : index
      %c0_1181 = arith.constant 0 : index
      %1341 = vector.load %arg3[%c0_1180, %c0_1181] : memref<8x256xf32, #tpu.memory_space<vmem>>, vector<8x256xf32>
      %1342 = vector.broadcast %1339 : f32 to vector<8x256xf32>
      %1343 = arith.mulf %1342, %1341 : vector<8x256xf32>
      %1344 = arith.addf %1340, %1343 : vector<8x256xf32>
      %c0_1182 = arith.constant 0 : index
      %c0_1183 = arith.constant 0 : index
      %1345 = vector.load %arg5[%c0_1182, %c0_1183] : memref<8x256xf32, #tpu.memory_space<vmem>>, vector<8x256xf32>
      %c0_1184 = arith.constant 0 : index
      %c0_1185 = arith.constant 0 : index
      %1346 = vector.load %arg6[%c0_1184, %c0_1185] : memref<8x256xf32, #tpu.memory_space<vmem>>, vector<8x256xf32>
      %1347 = vector.broadcast %1339 : f32 to vector<8x256xf32>
      %1348 = arith.mulf %1347, %1346 : vector<8x256xf32>
      %1349 = arith.addf %1345, %1348 : vector<8x256xf32>
      %cst_1186 = arith.constant dense<0.000000e+00> : vector<8xf32>
      %1350 = vector.multi_reduction <add>, %1338, %cst_1186 [1] : vector<8x256xf32> to vector<8xf32>
      %1351 = vector.shape_cast %1350 : vector<8xf32> to vector<8x1xf32>
      %1352 = arith.mulf %1338, %1338 : vector<8x256xf32>
      %cst_1187 = arith.constant dense<0.000000e+00> : vector<8xf32>
      %1353 = vector.multi_reduction <add>, %1352, %cst_1187 [1] : vector<8x256xf32> to vector<8xf32>
      %1354 = vector.shape_cast %1353 : vector<8xf32> to vector<8x1xf32>
      %cst_1188 = arith.constant 3.906250e-03 : f32
      %1355 = vector.broadcast %cst_1188 : f32 to vector<8x1xf32>
      %1356 = arith.mulf %1351, %1355 : vector<8x1xf32>
      %cst_1189 = arith.constant 3.906250e-03 : f32
      %1357 = vector.broadcast %cst_1189 : f32 to vector<8x1xf32>
      %1358 = arith.mulf %1354, %1357 : vector<8x1xf32>
      %1359 = arith.mulf %1356, %1356 : vector<8x1xf32>
      %1360 = arith.subf %1358, %1359 : vector<8x1xf32>
      %cst_1190 = arith.constant 0.000000e+00 : f32
      %1361 = vector.broadcast %cst_1190 : f32 to vector<8x1xf32>
      %1362 = arith.maximumf %1360, %1361 : vector<8x1xf32>
      %cst_1191 = arith.constant 9.99999974E-6 : f32
      %1363 = vector.broadcast %cst_1191 : f32 to vector<8x1xf32>
      %1364 = arith.addf %1362, %1363 : vector<8x1xf32>
      %1365 = math.rsqrt %1364 : vector<8x1xf32>
      %1366 = vector.broadcast %1356 : vector<8x1xf32> to vector<8x256xf32>
      %1367 = arith.subf %1338, %1366 : vector<8x256xf32>
      %c0_1192 = arith.constant 0 : index
      %c0_1193 = arith.constant 0 : index
      %1368 = vector.load %arg7[%c0_1192, %c0_1193] : memref<8x256xf32, #tpu.memory_space<vmem>>, vector<8x256xf32>
      %1369 = vector.broadcast %1365 : vector<8x1xf32> to vector<8x256xf32>
      %1370 = arith.mulf %1369, %1368 : vector<8x256xf32>
      %1371 = arith.mulf %1367, %1370 : vector<8x256xf32>
      %c0_1194 = arith.constant 0 : index
      %c0_1195 = arith.constant 0 : index
      %1372 = vector.load %arg8[%c0_1194, %c0_1195] : memref<8x256xf32, #tpu.memory_space<vmem>>, vector<8x256xf32>
      %1373 = arith.addf %1371, %1372 : vector<8x256xf32>
      %cst_1196 = arith.constant 0.000000e+00 : f32
      %1374 = vector.broadcast %cst_1196 : f32 to vector<8x256xf32>
      %1375 = arith.maximumf %1373, %1374 : vector<8x256xf32>
      %c17_i32_1197 = arith.constant 17 : i32
      %1376 = tpu.dynamic_rotate %1375 by %c17_i32_1197 dim 1 : vector<8x256xf32>, i32 -> vector<8x256xf32>
      %c0_1198 = arith.constant 0 : index
      %c0_1199 = arith.constant 0 : index
      %c0_1200 = arith.constant 0 : index
      %c0_1201 = arith.constant 0 : index
      %1377 = vector.load %arg1[%c0_1198, %c0_1199, %c0_1200, %c0_1201] : memref<9x4x8x256xf32, #tpu.memory_space<vmem>>, vector<1x1x8x256xf32>
      %1378 = vector.shape_cast %1377 : vector<1x1x8x256xf32> to vector<8x256xf32>
      %1379 = arith.mulf %1378, %1376 : vector<8x256xf32>
      %1380 = arith.addf %1344, %1379 : vector<8x256xf32>
      %c6_i32_1202 = arith.constant 6 : i32
      %1381 = tpu.dynamic_rotate %1376 by %c6_i32_1202 dim 0 : vector<8x256xf32>, i32 -> vector<8x256xf32>
      %c0_1203 = arith.constant 0 : index
      %c1_1204 = arith.constant 1 : index
      %c0_1205 = arith.constant 0 : index
      %c0_1206 = arith.constant 0 : index
      %1382 = vector.load %arg1[%c0_1203, %c1_1204, %c0_1205, %c0_1206] : memref<9x4x8x256xf32, #tpu.memory_space<vmem>>, vector<1x1x8x256xf32>
      %1383 = vector.shape_cast %1382 : vector<1x1x8x256xf32> to vector<8x256xf32>
      %1384 = arith.mulf %1383, %1381 : vector<8x256xf32>
      %1385 = arith.addf %1380, %1384 : vector<8x256xf32>
      %c4_i32_1207 = arith.constant 4 : i32
      %1386 = tpu.dynamic_rotate %1376 by %c4_i32_1207 dim 0 : vector<8x256xf32>, i32 -> vector<8x256xf32>
      %c0_1208 = arith.constant 0 : index
      %c2_1209 = arith.constant 2 : index
      %c0_1210 = arith.constant 0 : index
      %c0_1211 = arith.constant 0 : index
      %1387 = vector.load %arg1[%c0_1208, %c2_1209, %c0_1210, %c0_1211] : memref<9x4x8x256xf32, #tpu.memory_space<vmem>>, vector<1x1x8x256xf32>
      %1388 = vector.shape_cast %1387 : vector<1x1x8x256xf32> to vector<8x256xf32>
      %1389 = arith.mulf %1388, %1386 : vector<8x256xf32>
      %1390 = arith.addf %1385, %1389 : vector<8x256xf32>
      %c2_i32_1212 = arith.constant 2 : i32
      %1391 = tpu.dynamic_rotate %1376 by %c2_i32_1212 dim 0 : vector<8x256xf32>, i32 -> vector<8x256xf32>
      %c0_1213 = arith.constant 0 : index
      %c3_1214 = arith.constant 3 : index
      %c0_1215 = arith.constant 0 : index
      %c0_1216 = arith.constant 0 : index
      %1392 = vector.load %arg1[%c0_1213, %c3_1214, %c0_1215, %c0_1216] : memref<9x4x8x256xf32, #tpu.memory_space<vmem>>, vector<1x1x8x256xf32>
      %1393 = vector.shape_cast %1392 : vector<1x1x8x256xf32> to vector<8x256xf32>
      %1394 = arith.mulf %1393, %1391 : vector<8x256xf32>
      %1395 = arith.addf %1390, %1394 : vector<8x256xf32>
      %c16_i32_1217 = arith.constant 16 : i32
      %1396 = tpu.dynamic_rotate %1375 by %c16_i32_1217 dim 1 : vector<8x256xf32>, i32 -> vector<8x256xf32>
      %c1_1218 = arith.constant 1 : index
      %c0_1219 = arith.constant 0 : index
      %c0_1220 = arith.constant 0 : index
      %c0_1221 = arith.constant 0 : index
      %1397 = vector.load %arg1[%c1_1218, %c0_1219, %c0_1220, %c0_1221] : memref<9x4x8x256xf32, #tpu.memory_space<vmem>>, vector<1x1x8x256xf32>
      %1398 = vector.shape_cast %1397 : vector<1x1x8x256xf32> to vector<8x256xf32>
      %1399 = arith.mulf %1398, %1396 : vector<8x256xf32>
      %1400 = arith.addf %1395, %1399 : vector<8x256xf32>
      %c6_i32_1222 = arith.constant 6 : i32
      %1401 = tpu.dynamic_rotate %1396 by %c6_i32_1222 dim 0 : vector<8x256xf32>, i32 -> vector<8x256xf32>
      %c1_1223 = arith.constant 1 : index
      %c1_1224 = arith.constant 1 : index
      %c0_1225 = arith.constant 0 : index
      %c0_1226 = arith.constant 0 : index
      %1402 = vector.load %arg1[%c1_1223, %c1_1224, %c0_1225, %c0_1226] : memref<9x4x8x256xf32, #tpu.memory_space<vmem>>, vector<1x1x8x256xf32>
      %1403 = vector.shape_cast %1402 : vector<1x1x8x256xf32> to vector<8x256xf32>
      %1404 = arith.mulf %1403, %1401 : vector<8x256xf32>
      %1405 = arith.addf %1400, %1404 : vector<8x256xf32>
      %c4_i32_1227 = arith.constant 4 : i32
      %1406 = tpu.dynamic_rotate %1396 by %c4_i32_1227 dim 0 : vector<8x256xf32>, i32 -> vector<8x256xf32>
      %c1_1228 = arith.constant 1 : index
      %c2_1229 = arith.constant 2 : index
      %c0_1230 = arith.constant 0 : index
      %c0_1231 = arith.constant 0 : index
      %1407 = vector.load %arg1[%c1_1228, %c2_1229, %c0_1230, %c0_1231] : memref<9x4x8x256xf32, #tpu.memory_space<vmem>>, vector<1x1x8x256xf32>
      %1408 = vector.shape_cast %1407 : vector<1x1x8x256xf32> to vector<8x256xf32>
      %1409 = arith.mulf %1408, %1406 : vector<8x256xf32>
      %1410 = arith.addf %1405, %1409 : vector<8x256xf32>
      %c2_i32_1232 = arith.constant 2 : i32
      %1411 = tpu.dynamic_rotate %1396 by %c2_i32_1232 dim 0 : vector<8x256xf32>, i32 -> vector<8x256xf32>
      %c1_1233 = arith.constant 1 : index
      %c3_1234 = arith.constant 3 : index
      %c0_1235 = arith.constant 0 : index
      %c0_1236 = arith.constant 0 : index
      %1412 = vector.load %arg1[%c1_1233, %c3_1234, %c0_1235, %c0_1236] : memref<9x4x8x256xf32, #tpu.memory_space<vmem>>, vector<1x1x8x256xf32>
      %1413 = vector.shape_cast %1412 : vector<1x1x8x256xf32> to vector<8x256xf32>
      %1414 = arith.mulf %1413, %1411 : vector<8x256xf32>
      %1415 = arith.addf %1410, %1414 : vector<8x256xf32>
      %c15_i32_1237 = arith.constant 15 : i32
      %1416 = tpu.dynamic_rotate %1375 by %c15_i32_1237 dim 1 : vector<8x256xf32>, i32 -> vector<8x256xf32>
      %c2_1238 = arith.constant 2 : index
      %c0_1239 = arith.constant 0 : index
      %c0_1240 = arith.constant 0 : index
      %c0_1241 = arith.constant 0 : index
      %1417 = vector.load %arg1[%c2_1238, %c0_1239, %c0_1240, %c0_1241] : memref<9x4x8x256xf32, #tpu.memory_space<vmem>>, vector<1x1x8x256xf32>
      %1418 = vector.shape_cast %1417 : vector<1x1x8x256xf32> to vector<8x256xf32>
      %1419 = arith.mulf %1418, %1416 : vector<8x256xf32>
      %1420 = arith.addf %1415, %1419 : vector<8x256xf32>
      %c6_i32_1242 = arith.constant 6 : i32
      %1421 = tpu.dynamic_rotate %1416 by %c6_i32_1242 dim 0 : vector<8x256xf32>, i32 -> vector<8x256xf32>
      %c2_1243 = arith.constant 2 : index
      %c1_1244 = arith.constant 1 : index
      %c0_1245 = arith.constant 0 : index
      %c0_1246 = arith.constant 0 : index
      %1422 = vector.load %arg1[%c2_1243, %c1_1244, %c0_1245, %c0_1246] : memref<9x4x8x256xf32, #tpu.memory_space<vmem>>, vector<1x1x8x256xf32>
      %1423 = vector.shape_cast %1422 : vector<1x1x8x256xf32> to vector<8x256xf32>
      %1424 = arith.mulf %1423, %1421 : vector<8x256xf32>
      %1425 = arith.addf %1420, %1424 : vector<8x256xf32>
      %c4_i32_1247 = arith.constant 4 : i32
      %1426 = tpu.dynamic_rotate %1416 by %c4_i32_1247 dim 0 : vector<8x256xf32>, i32 -> vector<8x256xf32>
      %c2_1248 = arith.constant 2 : index
      %c2_1249 = arith.constant 2 : index
      %c0_1250 = arith.constant 0 : index
      %c0_1251 = arith.constant 0 : index
      %1427 = vector.load %arg1[%c2_1248, %c2_1249, %c0_1250, %c0_1251] : memref<9x4x8x256xf32, #tpu.memory_space<vmem>>, vector<1x1x8x256xf32>
      %1428 = vector.shape_cast %1427 : vector<1x1x8x256xf32> to vector<8x256xf32>
      %1429 = arith.mulf %1428, %1426 : vector<8x256xf32>
      %1430 = arith.addf %1425, %1429 : vector<8x256xf32>
      %c2_i32_1252 = arith.constant 2 : i32
      %1431 = tpu.dynamic_rotate %1416 by %c2_i32_1252 dim 0 : vector<8x256xf32>, i32 -> vector<8x256xf32>
      %c2_1253 = arith.constant 2 : index
      %c3_1254 = arith.constant 3 : index
      %c0_1255 = arith.constant 0 : index
      %c0_1256 = arith.constant 0 : index
      %1432 = vector.load %arg1[%c2_1253, %c3_1254, %c0_1255, %c0_1256] : memref<9x4x8x256xf32, #tpu.memory_space<vmem>>, vector<1x1x8x256xf32>
      %1433 = vector.shape_cast %1432 : vector<1x1x8x256xf32> to vector<8x256xf32>
      %1434 = arith.mulf %1433, %1431 : vector<8x256xf32>
      %1435 = arith.addf %1430, %1434 : vector<8x256xf32>
      %c1_i32_1257 = arith.constant 1 : i32
      %1436 = tpu.dynamic_rotate %1375 by %c1_i32_1257 dim 1 : vector<8x256xf32>, i32 -> vector<8x256xf32>
      %c3_1258 = arith.constant 3 : index
      %c0_1259 = arith.constant 0 : index
      %c0_1260 = arith.constant 0 : index
      %c0_1261 = arith.constant 0 : index
      %1437 = vector.load %arg1[%c3_1258, %c0_1259, %c0_1260, %c0_1261] : memref<9x4x8x256xf32, #tpu.memory_space<vmem>>, vector<1x1x8x256xf32>
      %1438 = vector.shape_cast %1437 : vector<1x1x8x256xf32> to vector<8x256xf32>
      %1439 = arith.mulf %1438, %1436 : vector<8x256xf32>
      %1440 = arith.addf %1435, %1439 : vector<8x256xf32>
      %c6_i32_1262 = arith.constant 6 : i32
      %1441 = tpu.dynamic_rotate %1436 by %c6_i32_1262 dim 0 : vector<8x256xf32>, i32 -> vector<8x256xf32>
      %c3_1263 = arith.constant 3 : index
      %c1_1264 = arith.constant 1 : index
      %c0_1265 = arith.constant 0 : index
      %c0_1266 = arith.constant 0 : index
      %1442 = vector.load %arg1[%c3_1263, %c1_1264, %c0_1265, %c0_1266] : memref<9x4x8x256xf32, #tpu.memory_space<vmem>>, vector<1x1x8x256xf32>
      %1443 = vector.shape_cast %1442 : vector<1x1x8x256xf32> to vector<8x256xf32>
      %1444 = arith.mulf %1443, %1441 : vector<8x256xf32>
      %1445 = arith.addf %1440, %1444 : vector<8x256xf32>
      %c4_i32_1267 = arith.constant 4 : i32
      %1446 = tpu.dynamic_rotate %1436 by %c4_i32_1267 dim 0 : vector<8x256xf32>, i32 -> vector<8x256xf32>
      %c3_1268 = arith.constant 3 : index
      %c2_1269 = arith.constant 2 : index
      %c0_1270 = arith.constant 0 : index
      %c0_1271 = arith.constant 0 : index
      %1447 = vector.load %arg1[%c3_1268, %c2_1269, %c0_1270, %c0_1271] : memref<9x4x8x256xf32, #tpu.memory_space<vmem>>, vector<1x1x8x256xf32>
      %1448 = vector.shape_cast %1447 : vector<1x1x8x256xf32> to vector<8x256xf32>
      %1449 = arith.mulf %1448, %1446 : vector<8x256xf32>
      %1450 = arith.addf %1445, %1449 : vector<8x256xf32>
      %c2_i32_1272 = arith.constant 2 : i32
      %1451 = tpu.dynamic_rotate %1436 by %c2_i32_1272 dim 0 : vector<8x256xf32>, i32 -> vector<8x256xf32>
      %c3_1273 = arith.constant 3 : index
      %c3_1274 = arith.constant 3 : index
      %c0_1275 = arith.constant 0 : index
      %c0_1276 = arith.constant 0 : index
      %1452 = vector.load %arg1[%c3_1273, %c3_1274, %c0_1275, %c0_1276] : memref<9x4x8x256xf32, #tpu.memory_space<vmem>>, vector<1x1x8x256xf32>
      %1453 = vector.shape_cast %1452 : vector<1x1x8x256xf32> to vector<8x256xf32>
      %1454 = arith.mulf %1453, %1451 : vector<8x256xf32>
      %1455 = arith.addf %1450, %1454 : vector<8x256xf32>
      %c4_1277 = arith.constant 4 : index
      %c0_1278 = arith.constant 0 : index
      %c0_1279 = arith.constant 0 : index
      %c0_1280 = arith.constant 0 : index
      %1456 = vector.load %arg1[%c4_1277, %c0_1278, %c0_1279, %c0_1280] : memref<9x4x8x256xf32, #tpu.memory_space<vmem>>, vector<1x1x8x256xf32>
      %1457 = vector.shape_cast %1456 : vector<1x1x8x256xf32> to vector<8x256xf32>
      %1458 = arith.mulf %1457, %1375 : vector<8x256xf32>
      %1459 = arith.addf %1455, %1458 : vector<8x256xf32>
      %c6_i32_1281 = arith.constant 6 : i32
      %1460 = tpu.dynamic_rotate %1375 by %c6_i32_1281 dim 0 : vector<8x256xf32>, i32 -> vector<8x256xf32>
      %c4_1282 = arith.constant 4 : index
      %c1_1283 = arith.constant 1 : index
      %c0_1284 = arith.constant 0 : index
      %c0_1285 = arith.constant 0 : index
      %1461 = vector.load %arg1[%c4_1282, %c1_1283, %c0_1284, %c0_1285] : memref<9x4x8x256xf32, #tpu.memory_space<vmem>>, vector<1x1x8x256xf32>
      %1462 = vector.shape_cast %1461 : vector<1x1x8x256xf32> to vector<8x256xf32>
      %1463 = arith.mulf %1462, %1460 : vector<8x256xf32>
      %1464 = arith.addf %1459, %1463 : vector<8x256xf32>
      %c4_i32_1286 = arith.constant 4 : i32
      %1465 = tpu.dynamic_rotate %1375 by %c4_i32_1286 dim 0 : vector<8x256xf32>, i32 -> vector<8x256xf32>
      %c4_1287 = arith.constant 4 : index
      %c2_1288 = arith.constant 2 : index
      %c0_1289 = arith.constant 0 : index
      %c0_1290 = arith.constant 0 : index
      %1466 = vector.load %arg1[%c4_1287, %c2_1288, %c0_1289, %c0_1290] : memref<9x4x8x256xf32, #tpu.memory_space<vmem>>, vector<1x1x8x256xf32>
      %1467 = vector.shape_cast %1466 : vector<1x1x8x256xf32> to vector<8x256xf32>
      %1468 = arith.mulf %1467, %1465 : vector<8x256xf32>
      %1469 = arith.addf %1464, %1468 : vector<8x256xf32>
      %c2_i32_1291 = arith.constant 2 : i32
      %1470 = tpu.dynamic_rotate %1375 by %c2_i32_1291 dim 0 : vector<8x256xf32>, i32 -> vector<8x256xf32>
      %c4_1292 = arith.constant 4 : index
      %c3_1293 = arith.constant 3 : index
      %c0_1294 = arith.constant 0 : index
      %c0_1295 = arith.constant 0 : index
      %1471 = vector.load %arg1[%c4_1292, %c3_1293, %c0_1294, %c0_1295] : memref<9x4x8x256xf32, #tpu.memory_space<vmem>>, vector<1x1x8x256xf32>
      %1472 = vector.shape_cast %1471 : vector<1x1x8x256xf32> to vector<8x256xf32>
      %1473 = arith.mulf %1472, %1470 : vector<8x256xf32>
      %1474 = arith.addf %1469, %1473 : vector<8x256xf32>
      %c255_i32_1296 = arith.constant 255 : i32
      %1475 = tpu.dynamic_rotate %1375 by %c255_i32_1296 dim 1 : vector<8x256xf32>, i32 -> vector<8x256xf32>
      %c5_1297 = arith.constant 5 : index
      %c0_1298 = arith.constant 0 : index
      %c0_1299 = arith.constant 0 : index
      %c0_1300 = arith.constant 0 : index
      %1476 = vector.load %arg1[%c5_1297, %c0_1298, %c0_1299, %c0_1300] : memref<9x4x8x256xf32, #tpu.memory_space<vmem>>, vector<1x1x8x256xf32>
      %1477 = vector.shape_cast %1476 : vector<1x1x8x256xf32> to vector<8x256xf32>
      %1478 = arith.mulf %1477, %1475 : vector<8x256xf32>
      %1479 = arith.addf %1474, %1478 : vector<8x256xf32>
      %c6_i32_1301 = arith.constant 6 : i32
      %1480 = tpu.dynamic_rotate %1475 by %c6_i32_1301 dim 0 : vector<8x256xf32>, i32 -> vector<8x256xf32>
      %c5_1302 = arith.constant 5 : index
      %c1_1303 = arith.constant 1 : index
      %c0_1304 = arith.constant 0 : index
      %c0_1305 = arith.constant 0 : index
      %1481 = vector.load %arg1[%c5_1302, %c1_1303, %c0_1304, %c0_1305] : memref<9x4x8x256xf32, #tpu.memory_space<vmem>>, vector<1x1x8x256xf32>
      %1482 = vector.shape_cast %1481 : vector<1x1x8x256xf32> to vector<8x256xf32>
      %1483 = arith.mulf %1482, %1480 : vector<8x256xf32>
      %1484 = arith.addf %1479, %1483 : vector<8x256xf32>
      %c4_i32_1306 = arith.constant 4 : i32
      %1485 = tpu.dynamic_rotate %1475 by %c4_i32_1306 dim 0 : vector<8x256xf32>, i32 -> vector<8x256xf32>
      %c5_1307 = arith.constant 5 : index
      %c2_1308 = arith.constant 2 : index
      %c0_1309 = arith.constant 0 : index
      %c0_1310 = arith.constant 0 : index
      %1486 = vector.load %arg1[%c5_1307, %c2_1308, %c0_1309, %c0_1310] : memref<9x4x8x256xf32, #tpu.memory_space<vmem>>, vector<1x1x8x256xf32>
      %1487 = vector.shape_cast %1486 : vector<1x1x8x256xf32> to vector<8x256xf32>
      %1488 = arith.mulf %1487, %1485 : vector<8x256xf32>
      %1489 = arith.addf %1484, %1488 : vector<8x256xf32>
      %c2_i32_1311 = arith.constant 2 : i32
      %1490 = tpu.dynamic_rotate %1475 by %c2_i32_1311 dim 0 : vector<8x256xf32>, i32 -> vector<8x256xf32>
      %c5_1312 = arith.constant 5 : index
      %c3_1313 = arith.constant 3 : index
      %c0_1314 = arith.constant 0 : index
      %c0_1315 = arith.constant 0 : index
      %1491 = vector.load %arg1[%c5_1312, %c3_1313, %c0_1314, %c0_1315] : memref<9x4x8x256xf32, #tpu.memory_space<vmem>>, vector<1x1x8x256xf32>
      %1492 = vector.shape_cast %1491 : vector<1x1x8x256xf32> to vector<8x256xf32>
      %1493 = arith.mulf %1492, %1490 : vector<8x256xf32>
      %1494 = arith.addf %1489, %1493 : vector<8x256xf32>
      %c241_i32_1316 = arith.constant 241 : i32
      %1495 = tpu.dynamic_rotate %1375 by %c241_i32_1316 dim 1 : vector<8x256xf32>, i32 -> vector<8x256xf32>
      %c6_1317 = arith.constant 6 : index
      %c0_1318 = arith.constant 0 : index
      %c0_1319 = arith.constant 0 : index
      %c0_1320 = arith.constant 0 : index
      %1496 = vector.load %arg1[%c6_1317, %c0_1318, %c0_1319, %c0_1320] : memref<9x4x8x256xf32, #tpu.memory_space<vmem>>, vector<1x1x8x256xf32>
      %1497 = vector.shape_cast %1496 : vector<1x1x8x256xf32> to vector<8x256xf32>
      %1498 = arith.mulf %1497, %1495 : vector<8x256xf32>
      %1499 = arith.addf %1494, %1498 : vector<8x256xf32>
      %c6_i32_1321 = arith.constant 6 : i32
      %1500 = tpu.dynamic_rotate %1495 by %c6_i32_1321 dim 0 : vector<8x256xf32>, i32 -> vector<8x256xf32>
      %c6_1322 = arith.constant 6 : index
      %c1_1323 = arith.constant 1 : index
      %c0_1324 = arith.constant 0 : index
      %c0_1325 = arith.constant 0 : index
      %1501 = vector.load %arg1[%c6_1322, %c1_1323, %c0_1324, %c0_1325] : memref<9x4x8x256xf32, #tpu.memory_space<vmem>>, vector<1x1x8x256xf32>
      %1502 = vector.shape_cast %1501 : vector<1x1x8x256xf32> to vector<8x256xf32>
      %1503 = arith.mulf %1502, %1500 : vector<8x256xf32>
      %1504 = arith.addf %1499, %1503 : vector<8x256xf32>
      %c4_i32_1326 = arith.constant 4 : i32
      %1505 = tpu.dynamic_rotate %1495 by %c4_i32_1326 dim 0 : vector<8x256xf32>, i32 -> vector<8x256xf32>
      %c6_1327 = arith.constant 6 : index
      %c2_1328 = arith.constant 2 : index
      %c0_1329 = arith.constant 0 : index
      %c0_1330 = arith.constant 0 : index
      %1506 = vector.load %arg1[%c6_1327, %c2_1328, %c0_1329, %c0_1330] : memref<9x4x8x256xf32, #tpu.memory_space<vmem>>, vector<1x1x8x256xf32>
      %1507 = vector.shape_cast %1506 : vector<1x1x8x256xf32> to vector<8x256xf32>
      %1508 = arith.mulf %1507, %1505 : vector<8x256xf32>
      %1509 = arith.addf %1504, %1508 : vector<8x256xf32>
      %c2_i32_1331 = arith.constant 2 : i32
      %1510 = tpu.dynamic_rotate %1495 by %c2_i32_1331 dim 0 : vector<8x256xf32>, i32 -> vector<8x256xf32>
      %c6_1332 = arith.constant 6 : index
      %c3_1333 = arith.constant 3 : index
      %c0_1334 = arith.constant 0 : index
      %c0_1335 = arith.constant 0 : index
      %1511 = vector.load %arg1[%c6_1332, %c3_1333, %c0_1334, %c0_1335] : memref<9x4x8x256xf32, #tpu.memory_space<vmem>>, vector<1x1x8x256xf32>
      %1512 = vector.shape_cast %1511 : vector<1x1x8x256xf32> to vector<8x256xf32>
      %1513 = arith.mulf %1512, %1510 : vector<8x256xf32>
      %1514 = arith.addf %1509, %1513 : vector<8x256xf32>
      %c240_i32_1336 = arith.constant 240 : i32
      %1515 = tpu.dynamic_rotate %1375 by %c240_i32_1336 dim 1 : vector<8x256xf32>, i32 -> vector<8x256xf32>
      %c7_1337 = arith.constant 7 : index
      %c0_1338 = arith.constant 0 : index
      %c0_1339 = arith.constant 0 : index
      %c0_1340 = arith.constant 0 : index
      %1516 = vector.load %arg1[%c7_1337, %c0_1338, %c0_1339, %c0_1340] : memref<9x4x8x256xf32, #tpu.memory_space<vmem>>, vector<1x1x8x256xf32>
      %1517 = vector.shape_cast %1516 : vector<1x1x8x256xf32> to vector<8x256xf32>
      %1518 = arith.mulf %1517, %1515 : vector<8x256xf32>
      %1519 = arith.addf %1514, %1518 : vector<8x256xf32>
      %c6_i32_1341 = arith.constant 6 : i32
      %1520 = tpu.dynamic_rotate %1515 by %c6_i32_1341 dim 0 : vector<8x256xf32>, i32 -> vector<8x256xf32>
      %c7_1342 = arith.constant 7 : index
      %c1_1343 = arith.constant 1 : index
      %c0_1344 = arith.constant 0 : index
      %c0_1345 = arith.constant 0 : index
      %1521 = vector.load %arg1[%c7_1342, %c1_1343, %c0_1344, %c0_1345] : memref<9x4x8x256xf32, #tpu.memory_space<vmem>>, vector<1x1x8x256xf32>
      %1522 = vector.shape_cast %1521 : vector<1x1x8x256xf32> to vector<8x256xf32>
      %1523 = arith.mulf %1522, %1520 : vector<8x256xf32>
      %1524 = arith.addf %1519, %1523 : vector<8x256xf32>
      %c4_i32_1346 = arith.constant 4 : i32
      %1525 = tpu.dynamic_rotate %1515 by %c4_i32_1346 dim 0 : vector<8x256xf32>, i32 -> vector<8x256xf32>
      %c7_1347 = arith.constant 7 : index
      %c2_1348 = arith.constant 2 : index
      %c0_1349 = arith.constant 0 : index
      %c0_1350 = arith.constant 0 : index
      %1526 = vector.load %arg1[%c7_1347, %c2_1348, %c0_1349, %c0_1350] : memref<9x4x8x256xf32, #tpu.memory_space<vmem>>, vector<1x1x8x256xf32>
      %1527 = vector.shape_cast %1526 : vector<1x1x8x256xf32> to vector<8x256xf32>
      %1528 = arith.mulf %1527, %1525 : vector<8x256xf32>
      %1529 = arith.addf %1524, %1528 : vector<8x256xf32>
      %c2_i32_1351 = arith.constant 2 : i32
      %1530 = tpu.dynamic_rotate %1515 by %c2_i32_1351 dim 0 : vector<8x256xf32>, i32 -> vector<8x256xf32>
      %c7_1352 = arith.constant 7 : index
      %c3_1353 = arith.constant 3 : index
      %c0_1354 = arith.constant 0 : index
      %c0_1355 = arith.constant 0 : index
      %1531 = vector.load %arg1[%c7_1352, %c3_1353, %c0_1354, %c0_1355] : memref<9x4x8x256xf32, #tpu.memory_space<vmem>>, vector<1x1x8x256xf32>
      %1532 = vector.shape_cast %1531 : vector<1x1x8x256xf32> to vector<8x256xf32>
      %1533 = arith.mulf %1532, %1530 : vector<8x256xf32>
      %1534 = arith.addf %1529, %1533 : vector<8x256xf32>
      %c239_i32_1356 = arith.constant 239 : i32
      %1535 = tpu.dynamic_rotate %1375 by %c239_i32_1356 dim 1 : vector<8x256xf32>, i32 -> vector<8x256xf32>
      %c8_1357 = arith.constant 8 : index
      %c0_1358 = arith.constant 0 : index
      %c0_1359 = arith.constant 0 : index
      %c0_1360 = arith.constant 0 : index
      %1536 = vector.load %arg1[%c8_1357, %c0_1358, %c0_1359, %c0_1360] : memref<9x4x8x256xf32, #tpu.memory_space<vmem>>, vector<1x1x8x256xf32>
      %1537 = vector.shape_cast %1536 : vector<1x1x8x256xf32> to vector<8x256xf32>
      %1538 = arith.mulf %1537, %1535 : vector<8x256xf32>
      %1539 = arith.addf %1534, %1538 : vector<8x256xf32>
      %c6_i32_1361 = arith.constant 6 : i32
      %1540 = tpu.dynamic_rotate %1535 by %c6_i32_1361 dim 0 : vector<8x256xf32>, i32 -> vector<8x256xf32>
      %c8_1362 = arith.constant 8 : index
      %c1_1363 = arith.constant 1 : index
      %c0_1364 = arith.constant 0 : index
      %c0_1365 = arith.constant 0 : index
      %1541 = vector.load %arg1[%c8_1362, %c1_1363, %c0_1364, %c0_1365] : memref<9x4x8x256xf32, #tpu.memory_space<vmem>>, vector<1x1x8x256xf32>
      %1542 = vector.shape_cast %1541 : vector<1x1x8x256xf32> to vector<8x256xf32>
      %1543 = arith.mulf %1542, %1540 : vector<8x256xf32>
      %1544 = arith.addf %1539, %1543 : vector<8x256xf32>
      %c4_i32_1366 = arith.constant 4 : i32
      %1545 = tpu.dynamic_rotate %1535 by %c4_i32_1366 dim 0 : vector<8x256xf32>, i32 -> vector<8x256xf32>
      %c8_1367 = arith.constant 8 : index
      %c2_1368 = arith.constant 2 : index
      %c0_1369 = arith.constant 0 : index
      %c0_1370 = arith.constant 0 : index
      %1546 = vector.load %arg1[%c8_1367, %c2_1368, %c0_1369, %c0_1370] : memref<9x4x8x256xf32, #tpu.memory_space<vmem>>, vector<1x1x8x256xf32>
      %1547 = vector.shape_cast %1546 : vector<1x1x8x256xf32> to vector<8x256xf32>
      %1548 = arith.mulf %1547, %1545 : vector<8x256xf32>
      %1549 = arith.addf %1544, %1548 : vector<8x256xf32>
      %c2_i32_1371 = arith.constant 2 : i32
      %1550 = tpu.dynamic_rotate %1535 by %c2_i32_1371 dim 0 : vector<8x256xf32>, i32 -> vector<8x256xf32>
      %c8_1372 = arith.constant 8 : index
      %c3_1373 = arith.constant 3 : index
      %c0_1374 = arith.constant 0 : index
      %c0_1375 = arith.constant 0 : index
      %1551 = vector.load %arg1[%c8_1372, %c3_1373, %c0_1374, %c0_1375] : memref<9x4x8x256xf32, #tpu.memory_space<vmem>>, vector<1x1x8x256xf32>
      %1552 = vector.shape_cast %1551 : vector<1x1x8x256xf32> to vector<8x256xf32>
      %1553 = arith.mulf %1552, %1550 : vector<8x256xf32>
      %1554 = arith.addf %1549, %1553 : vector<8x256xf32>
      %cst_1376 = arith.constant dense<0.000000e+00> : vector<8xf32>
      %1555 = vector.multi_reduction <add>, %1554, %cst_1376 [1] : vector<8x256xf32> to vector<8xf32>
      %1556 = vector.shape_cast %1555 : vector<8xf32> to vector<8x1xf32>
      %1557 = arith.mulf %1554, %1554 : vector<8x256xf32>
      %cst_1377 = arith.constant dense<0.000000e+00> : vector<8xf32>
      %1558 = vector.multi_reduction <add>, %1557, %cst_1377 [1] : vector<8x256xf32> to vector<8xf32>
      %1559 = vector.shape_cast %1558 : vector<8xf32> to vector<8x1xf32>
      %cst_1378 = arith.constant 3.906250e-03 : f32
      %1560 = vector.broadcast %cst_1378 : f32 to vector<8x1xf32>
      %1561 = arith.mulf %1556, %1560 : vector<8x1xf32>
      %cst_1379 = arith.constant 3.906250e-03 : f32
      %1562 = vector.broadcast %cst_1379 : f32 to vector<8x1xf32>
      %1563 = arith.mulf %1559, %1562 : vector<8x1xf32>
      %1564 = arith.mulf %1561, %1561 : vector<8x1xf32>
      %1565 = arith.subf %1563, %1564 : vector<8x1xf32>
      %cst_1380 = arith.constant 0.000000e+00 : f32
      %1566 = vector.broadcast %cst_1380 : f32 to vector<8x1xf32>
      %1567 = arith.maximumf %1565, %1566 : vector<8x1xf32>
      %cst_1381 = arith.constant 9.99999974E-6 : f32
      %1568 = vector.broadcast %cst_1381 : f32 to vector<8x1xf32>
      %1569 = arith.addf %1567, %1568 : vector<8x1xf32>
      %1570 = math.rsqrt %1569 : vector<8x1xf32>
      %1571 = vector.broadcast %1561 : vector<8x1xf32> to vector<8x256xf32>
      %1572 = arith.subf %1554, %1571 : vector<8x256xf32>
      %c0_1382 = arith.constant 0 : index
      %c0_1383 = arith.constant 0 : index
      %1573 = vector.load %arg9[%c0_1382, %c0_1383] : memref<8x256xf32, #tpu.memory_space<vmem>>, vector<8x256xf32>
      %1574 = vector.broadcast %1570 : vector<8x1xf32> to vector<8x256xf32>
      %1575 = arith.mulf %1574, %1573 : vector<8x256xf32>
      %1576 = arith.mulf %1572, %1575 : vector<8x256xf32>
      %c0_1384 = arith.constant 0 : index
      %c0_1385 = arith.constant 0 : index
      %1577 = vector.load %arg10[%c0_1384, %c0_1385] : memref<8x256xf32, #tpu.memory_space<vmem>>, vector<8x256xf32>
      %1578 = arith.addf %1576, %1577 : vector<8x256xf32>
      %cst_1386 = arith.constant 0.000000e+00 : f32
      %1579 = vector.broadcast %cst_1386 : f32 to vector<8x256xf32>
      %1580 = arith.maximumf %1578, %1579 : vector<8x256xf32>
      %c17_i32_1387 = arith.constant 17 : i32
      %1581 = tpu.dynamic_rotate %1580 by %c17_i32_1387 dim 1 : vector<8x256xf32>, i32 -> vector<8x256xf32>
      %c0_1388 = arith.constant 0 : index
      %c0_1389 = arith.constant 0 : index
      %c0_1390 = arith.constant 0 : index
      %c0_1391 = arith.constant 0 : index
      %1582 = vector.load %arg4[%c0_1388, %c0_1389, %c0_1390, %c0_1391] : memref<9x4x8x256xf32, #tpu.memory_space<vmem>>, vector<1x1x8x256xf32>
      %1583 = vector.shape_cast %1582 : vector<1x1x8x256xf32> to vector<8x256xf32>
      %1584 = arith.mulf %1583, %1581 : vector<8x256xf32>
      %1585 = arith.addf %1349, %1584 : vector<8x256xf32>
      %c6_i32_1392 = arith.constant 6 : i32
      %1586 = tpu.dynamic_rotate %1581 by %c6_i32_1392 dim 0 : vector<8x256xf32>, i32 -> vector<8x256xf32>
      %c0_1393 = arith.constant 0 : index
      %c1_1394 = arith.constant 1 : index
      %c0_1395 = arith.constant 0 : index
      %c0_1396 = arith.constant 0 : index
      %1587 = vector.load %arg4[%c0_1393, %c1_1394, %c0_1395, %c0_1396] : memref<9x4x8x256xf32, #tpu.memory_space<vmem>>, vector<1x1x8x256xf32>
      %1588 = vector.shape_cast %1587 : vector<1x1x8x256xf32> to vector<8x256xf32>
      %1589 = arith.mulf %1588, %1586 : vector<8x256xf32>
      %1590 = arith.addf %1585, %1589 : vector<8x256xf32>
      %c4_i32_1397 = arith.constant 4 : i32
      %1591 = tpu.dynamic_rotate %1581 by %c4_i32_1397 dim 0 : vector<8x256xf32>, i32 -> vector<8x256xf32>
      %c0_1398 = arith.constant 0 : index
      %c2_1399 = arith.constant 2 : index
      %c0_1400 = arith.constant 0 : index
      %c0_1401 = arith.constant 0 : index
      %1592 = vector.load %arg4[%c0_1398, %c2_1399, %c0_1400, %c0_1401] : memref<9x4x8x256xf32, #tpu.memory_space<vmem>>, vector<1x1x8x256xf32>
      %1593 = vector.shape_cast %1592 : vector<1x1x8x256xf32> to vector<8x256xf32>
      %1594 = arith.mulf %1593, %1591 : vector<8x256xf32>
      %1595 = arith.addf %1590, %1594 : vector<8x256xf32>
      %c2_i32_1402 = arith.constant 2 : i32
      %1596 = tpu.dynamic_rotate %1581 by %c2_i32_1402 dim 0 : vector<8x256xf32>, i32 -> vector<8x256xf32>
      %c0_1403 = arith.constant 0 : index
      %c3_1404 = arith.constant 3 : index
      %c0_1405 = arith.constant 0 : index
      %c0_1406 = arith.constant 0 : index
      %1597 = vector.load %arg4[%c0_1403, %c3_1404, %c0_1405, %c0_1406] : memref<9x4x8x256xf32, #tpu.memory_space<vmem>>, vector<1x1x8x256xf32>
      %1598 = vector.shape_cast %1597 : vector<1x1x8x256xf32> to vector<8x256xf32>
      %1599 = arith.mulf %1598, %1596 : vector<8x256xf32>
      %1600 = arith.addf %1595, %1599 : vector<8x256xf32>
      %c16_i32_1407 = arith.constant 16 : i32
      %1601 = tpu.dynamic_rotate %1580 by %c16_i32_1407 dim 1 : vector<8x256xf32>, i32 -> vector<8x256xf32>
      %c1_1408 = arith.constant 1 : index
      %c0_1409 = arith.constant 0 : index
      %c0_1410 = arith.constant 0 : index
      %c0_1411 = arith.constant 0 : index
      %1602 = vector.load %arg4[%c1_1408, %c0_1409, %c0_1410, %c0_1411] : memref<9x4x8x256xf32, #tpu.memory_space<vmem>>, vector<1x1x8x256xf32>
      %1603 = vector.shape_cast %1602 : vector<1x1x8x256xf32> to vector<8x256xf32>
      %1604 = arith.mulf %1603, %1601 : vector<8x256xf32>
      %1605 = arith.addf %1600, %1604 : vector<8x256xf32>
      %c6_i32_1412 = arith.constant 6 : i32
      %1606 = tpu.dynamic_rotate %1601 by %c6_i32_1412 dim 0 : vector<8x256xf32>, i32 -> vector<8x256xf32>
      %c1_1413 = arith.constant 1 : index
      %c1_1414 = arith.constant 1 : index
      %c0_1415 = arith.constant 0 : index
      %c0_1416 = arith.constant 0 : index
      %1607 = vector.load %arg4[%c1_1413, %c1_1414, %c0_1415, %c0_1416] : memref<9x4x8x256xf32, #tpu.memory_space<vmem>>, vector<1x1x8x256xf32>
      %1608 = vector.shape_cast %1607 : vector<1x1x8x256xf32> to vector<8x256xf32>
      %1609 = arith.mulf %1608, %1606 : vector<8x256xf32>
      %1610 = arith.addf %1605, %1609 : vector<8x256xf32>
      %c4_i32_1417 = arith.constant 4 : i32
      %1611 = tpu.dynamic_rotate %1601 by %c4_i32_1417 dim 0 : vector<8x256xf32>, i32 -> vector<8x256xf32>
      %c1_1418 = arith.constant 1 : index
      %c2_1419 = arith.constant 2 : index
      %c0_1420 = arith.constant 0 : index
      %c0_1421 = arith.constant 0 : index
      %1612 = vector.load %arg4[%c1_1418, %c2_1419, %c0_1420, %c0_1421] : memref<9x4x8x256xf32, #tpu.memory_space<vmem>>, vector<1x1x8x256xf32>
      %1613 = vector.shape_cast %1612 : vector<1x1x8x256xf32> to vector<8x256xf32>
      %1614 = arith.mulf %1613, %1611 : vector<8x256xf32>
      %1615 = arith.addf %1610, %1614 : vector<8x256xf32>
      %c2_i32_1422 = arith.constant 2 : i32
      %1616 = tpu.dynamic_rotate %1601 by %c2_i32_1422 dim 0 : vector<8x256xf32>, i32 -> vector<8x256xf32>
      %c1_1423 = arith.constant 1 : index
      %c3_1424 = arith.constant 3 : index
      %c0_1425 = arith.constant 0 : index
      %c0_1426 = arith.constant 0 : index
      %1617 = vector.load %arg4[%c1_1423, %c3_1424, %c0_1425, %c0_1426] : memref<9x4x8x256xf32, #tpu.memory_space<vmem>>, vector<1x1x8x256xf32>
      %1618 = vector.shape_cast %1617 : vector<1x1x8x256xf32> to vector<8x256xf32>
      %1619 = arith.mulf %1618, %1616 : vector<8x256xf32>
      %1620 = arith.addf %1615, %1619 : vector<8x256xf32>
      %c15_i32_1427 = arith.constant 15 : i32
      %1621 = tpu.dynamic_rotate %1580 by %c15_i32_1427 dim 1 : vector<8x256xf32>, i32 -> vector<8x256xf32>
      %c2_1428 = arith.constant 2 : index
      %c0_1429 = arith.constant 0 : index
      %c0_1430 = arith.constant 0 : index
      %c0_1431 = arith.constant 0 : index
      %1622 = vector.load %arg4[%c2_1428, %c0_1429, %c0_1430, %c0_1431] : memref<9x4x8x256xf32, #tpu.memory_space<vmem>>, vector<1x1x8x256xf32>
      %1623 = vector.shape_cast %1622 : vector<1x1x8x256xf32> to vector<8x256xf32>
      %1624 = arith.mulf %1623, %1621 : vector<8x256xf32>
      %1625 = arith.addf %1620, %1624 : vector<8x256xf32>
      %c6_i32_1432 = arith.constant 6 : i32
      %1626 = tpu.dynamic_rotate %1621 by %c6_i32_1432 dim 0 : vector<8x256xf32>, i32 -> vector<8x256xf32>
      %c2_1433 = arith.constant 2 : index
      %c1_1434 = arith.constant 1 : index
      %c0_1435 = arith.constant 0 : index
      %c0_1436 = arith.constant 0 : index
      %1627 = vector.load %arg4[%c2_1433, %c1_1434, %c0_1435, %c0_1436] : memref<9x4x8x256xf32, #tpu.memory_space<vmem>>, vector<1x1x8x256xf32>
      %1628 = vector.shape_cast %1627 : vector<1x1x8x256xf32> to vector<8x256xf32>
      %1629 = arith.mulf %1628, %1626 : vector<8x256xf32>
      %1630 = arith.addf %1625, %1629 : vector<8x256xf32>
      %c4_i32_1437 = arith.constant 4 : i32
      %1631 = tpu.dynamic_rotate %1621 by %c4_i32_1437 dim 0 : vector<8x256xf32>, i32 -> vector<8x256xf32>
      %c2_1438 = arith.constant 2 : index
      %c2_1439 = arith.constant 2 : index
      %c0_1440 = arith.constant 0 : index
      %c0_1441 = arith.constant 0 : index
      %1632 = vector.load %arg4[%c2_1438, %c2_1439, %c0_1440, %c0_1441] : memref<9x4x8x256xf32, #tpu.memory_space<vmem>>, vector<1x1x8x256xf32>
      %1633 = vector.shape_cast %1632 : vector<1x1x8x256xf32> to vector<8x256xf32>
      %1634 = arith.mulf %1633, %1631 : vector<8x256xf32>
      %1635 = arith.addf %1630, %1634 : vector<8x256xf32>
      %c2_i32_1442 = arith.constant 2 : i32
      %1636 = tpu.dynamic_rotate %1621 by %c2_i32_1442 dim 0 : vector<8x256xf32>, i32 -> vector<8x256xf32>
      %c2_1443 = arith.constant 2 : index
      %c3_1444 = arith.constant 3 : index
      %c0_1445 = arith.constant 0 : index
      %c0_1446 = arith.constant 0 : index
      %1637 = vector.load %arg4[%c2_1443, %c3_1444, %c0_1445, %c0_1446] : memref<9x4x8x256xf32, #tpu.memory_space<vmem>>, vector<1x1x8x256xf32>
      %1638 = vector.shape_cast %1637 : vector<1x1x8x256xf32> to vector<8x256xf32>
      %1639 = arith.mulf %1638, %1636 : vector<8x256xf32>
      %1640 = arith.addf %1635, %1639 : vector<8x256xf32>
      %c1_i32_1447 = arith.constant 1 : i32
      %1641 = tpu.dynamic_rotate %1580 by %c1_i32_1447 dim 1 : vector<8x256xf32>, i32 -> vector<8x256xf32>
      %c3_1448 = arith.constant 3 : index
      %c0_1449 = arith.constant 0 : index
      %c0_1450 = arith.constant 0 : index
      %c0_1451 = arith.constant 0 : index
      %1642 = vector.load %arg4[%c3_1448, %c0_1449, %c0_1450, %c0_1451] : memref<9x4x8x256xf32, #tpu.memory_space<vmem>>, vector<1x1x8x256xf32>
      %1643 = vector.shape_cast %1642 : vector<1x1x8x256xf32> to vector<8x256xf32>
      %1644 = arith.mulf %1643, %1641 : vector<8x256xf32>
      %1645 = arith.addf %1640, %1644 : vector<8x256xf32>
      %c6_i32_1452 = arith.constant 6 : i32
      %1646 = tpu.dynamic_rotate %1641 by %c6_i32_1452 dim 0 : vector<8x256xf32>, i32 -> vector<8x256xf32>
      %c3_1453 = arith.constant 3 : index
      %c1_1454 = arith.constant 1 : index
      %c0_1455 = arith.constant 0 : index
      %c0_1456 = arith.constant 0 : index
      %1647 = vector.load %arg4[%c3_1453, %c1_1454, %c0_1455, %c0_1456] : memref<9x4x8x256xf32, #tpu.memory_space<vmem>>, vector<1x1x8x256xf32>
      %1648 = vector.shape_cast %1647 : vector<1x1x8x256xf32> to vector<8x256xf32>
      %1649 = arith.mulf %1648, %1646 : vector<8x256xf32>
      %1650 = arith.addf %1645, %1649 : vector<8x256xf32>
      %c4_i32_1457 = arith.constant 4 : i32
      %1651 = tpu.dynamic_rotate %1641 by %c4_i32_1457 dim 0 : vector<8x256xf32>, i32 -> vector<8x256xf32>
      %c3_1458 = arith.constant 3 : index
      %c2_1459 = arith.constant 2 : index
      %c0_1460 = arith.constant 0 : index
      %c0_1461 = arith.constant 0 : index
      %1652 = vector.load %arg4[%c3_1458, %c2_1459, %c0_1460, %c0_1461] : memref<9x4x8x256xf32, #tpu.memory_space<vmem>>, vector<1x1x8x256xf32>
      %1653 = vector.shape_cast %1652 : vector<1x1x8x256xf32> to vector<8x256xf32>
      %1654 = arith.mulf %1653, %1651 : vector<8x256xf32>
      %1655 = arith.addf %1650, %1654 : vector<8x256xf32>
      %c2_i32_1462 = arith.constant 2 : i32
      %1656 = tpu.dynamic_rotate %1641 by %c2_i32_1462 dim 0 : vector<8x256xf32>, i32 -> vector<8x256xf32>
      %c3_1463 = arith.constant 3 : index
      %c3_1464 = arith.constant 3 : index
      %c0_1465 = arith.constant 0 : index
      %c0_1466 = arith.constant 0 : index
      %1657 = vector.load %arg4[%c3_1463, %c3_1464, %c0_1465, %c0_1466] : memref<9x4x8x256xf32, #tpu.memory_space<vmem>>, vector<1x1x8x256xf32>
      %1658 = vector.shape_cast %1657 : vector<1x1x8x256xf32> to vector<8x256xf32>
      %1659 = arith.mulf %1658, %1656 : vector<8x256xf32>
      %1660 = arith.addf %1655, %1659 : vector<8x256xf32>
      %c4_1467 = arith.constant 4 : index
      %c0_1468 = arith.constant 0 : index
      %c0_1469 = arith.constant 0 : index
      %c0_1470 = arith.constant 0 : index
      %1661 = vector.load %arg4[%c4_1467, %c0_1468, %c0_1469, %c0_1470] : memref<9x4x8x256xf32, #tpu.memory_space<vmem>>, vector<1x1x8x256xf32>
      %1662 = vector.shape_cast %1661 : vector<1x1x8x256xf32> to vector<8x256xf32>
      %1663 = arith.mulf %1662, %1580 : vector<8x256xf32>
      %1664 = arith.addf %1660, %1663 : vector<8x256xf32>
      %c6_i32_1471 = arith.constant 6 : i32
      %1665 = tpu.dynamic_rotate %1580 by %c6_i32_1471 dim 0 : vector<8x256xf32>, i32 -> vector<8x256xf32>
      %c4_1472 = arith.constant 4 : index
      %c1_1473 = arith.constant 1 : index
      %c0_1474 = arith.constant 0 : index
      %c0_1475 = arith.constant 0 : index
      %1666 = vector.load %arg4[%c4_1472, %c1_1473, %c0_1474, %c0_1475] : memref<9x4x8x256xf32, #tpu.memory_space<vmem>>, vector<1x1x8x256xf32>
      %1667 = vector.shape_cast %1666 : vector<1x1x8x256xf32> to vector<8x256xf32>
      %1668 = arith.mulf %1667, %1665 : vector<8x256xf32>
      %1669 = arith.addf %1664, %1668 : vector<8x256xf32>
      %c4_i32_1476 = arith.constant 4 : i32
      %1670 = tpu.dynamic_rotate %1580 by %c4_i32_1476 dim 0 : vector<8x256xf32>, i32 -> vector<8x256xf32>
      %c4_1477 = arith.constant 4 : index
      %c2_1478 = arith.constant 2 : index
      %c0_1479 = arith.constant 0 : index
      %c0_1480 = arith.constant 0 : index
      %1671 = vector.load %arg4[%c4_1477, %c2_1478, %c0_1479, %c0_1480] : memref<9x4x8x256xf32, #tpu.memory_space<vmem>>, vector<1x1x8x256xf32>
      %1672 = vector.shape_cast %1671 : vector<1x1x8x256xf32> to vector<8x256xf32>
      %1673 = arith.mulf %1672, %1670 : vector<8x256xf32>
      %1674 = arith.addf %1669, %1673 : vector<8x256xf32>
      %c2_i32_1481 = arith.constant 2 : i32
      %1675 = tpu.dynamic_rotate %1580 by %c2_i32_1481 dim 0 : vector<8x256xf32>, i32 -> vector<8x256xf32>
      %c4_1482 = arith.constant 4 : index
      %c3_1483 = arith.constant 3 : index
      %c0_1484 = arith.constant 0 : index
      %c0_1485 = arith.constant 0 : index
      %1676 = vector.load %arg4[%c4_1482, %c3_1483, %c0_1484, %c0_1485] : memref<9x4x8x256xf32, #tpu.memory_space<vmem>>, vector<1x1x8x256xf32>
      %1677 = vector.shape_cast %1676 : vector<1x1x8x256xf32> to vector<8x256xf32>
      %1678 = arith.mulf %1677, %1675 : vector<8x256xf32>
      %1679 = arith.addf %1674, %1678 : vector<8x256xf32>
      %c255_i32_1486 = arith.constant 255 : i32
      %1680 = tpu.dynamic_rotate %1580 by %c255_i32_1486 dim 1 : vector<8x256xf32>, i32 -> vector<8x256xf32>
      %c5_1487 = arith.constant 5 : index
      %c0_1488 = arith.constant 0 : index
      %c0_1489 = arith.constant 0 : index
      %c0_1490 = arith.constant 0 : index
      %1681 = vector.load %arg4[%c5_1487, %c0_1488, %c0_1489, %c0_1490] : memref<9x4x8x256xf32, #tpu.memory_space<vmem>>, vector<1x1x8x256xf32>
      %1682 = vector.shape_cast %1681 : vector<1x1x8x256xf32> to vector<8x256xf32>
      %1683 = arith.mulf %1682, %1680 : vector<8x256xf32>
      %1684 = arith.addf %1679, %1683 : vector<8x256xf32>
      %c6_i32_1491 = arith.constant 6 : i32
      %1685 = tpu.dynamic_rotate %1680 by %c6_i32_1491 dim 0 : vector<8x256xf32>, i32 -> vector<8x256xf32>
      %c5_1492 = arith.constant 5 : index
      %c1_1493 = arith.constant 1 : index
      %c0_1494 = arith.constant 0 : index
      %c0_1495 = arith.constant 0 : index
      %1686 = vector.load %arg4[%c5_1492, %c1_1493, %c0_1494, %c0_1495] : memref<9x4x8x256xf32, #tpu.memory_space<vmem>>, vector<1x1x8x256xf32>
      %1687 = vector.shape_cast %1686 : vector<1x1x8x256xf32> to vector<8x256xf32>
      %1688 = arith.mulf %1687, %1685 : vector<8x256xf32>
      %1689 = arith.addf %1684, %1688 : vector<8x256xf32>
      %c4_i32_1496 = arith.constant 4 : i32
      %1690 = tpu.dynamic_rotate %1680 by %c4_i32_1496 dim 0 : vector<8x256xf32>, i32 -> vector<8x256xf32>
      %c5_1497 = arith.constant 5 : index
      %c2_1498 = arith.constant 2 : index
      %c0_1499 = arith.constant 0 : index
      %c0_1500 = arith.constant 0 : index
      %1691 = vector.load %arg4[%c5_1497, %c2_1498, %c0_1499, %c0_1500] : memref<9x4x8x256xf32, #tpu.memory_space<vmem>>, vector<1x1x8x256xf32>
      %1692 = vector.shape_cast %1691 : vector<1x1x8x256xf32> to vector<8x256xf32>
      %1693 = arith.mulf %1692, %1690 : vector<8x256xf32>
      %1694 = arith.addf %1689, %1693 : vector<8x256xf32>
      %c2_i32_1501 = arith.constant 2 : i32
      %1695 = tpu.dynamic_rotate %1680 by %c2_i32_1501 dim 0 : vector<8x256xf32>, i32 -> vector<8x256xf32>
      %c5_1502 = arith.constant 5 : index
      %c3_1503 = arith.constant 3 : index
      %c0_1504 = arith.constant 0 : index
      %c0_1505 = arith.constant 0 : index
      %1696 = vector.load %arg4[%c5_1502, %c3_1503, %c0_1504, %c0_1505] : memref<9x4x8x256xf32, #tpu.memory_space<vmem>>, vector<1x1x8x256xf32>
      %1697 = vector.shape_cast %1696 : vector<1x1x8x256xf32> to vector<8x256xf32>
      %1698 = arith.mulf %1697, %1695 : vector<8x256xf32>
      %1699 = arith.addf %1694, %1698 : vector<8x256xf32>
      %c241_i32_1506 = arith.constant 241 : i32
      %1700 = tpu.dynamic_rotate %1580 by %c241_i32_1506 dim 1 : vector<8x256xf32>, i32 -> vector<8x256xf32>
      %c6_1507 = arith.constant 6 : index
      %c0_1508 = arith.constant 0 : index
      %c0_1509 = arith.constant 0 : index
      %c0_1510 = arith.constant 0 : index
      %1701 = vector.load %arg4[%c6_1507, %c0_1508, %c0_1509, %c0_1510] : memref<9x4x8x256xf32, #tpu.memory_space<vmem>>, vector<1x1x8x256xf32>
      %1702 = vector.shape_cast %1701 : vector<1x1x8x256xf32> to vector<8x256xf32>
      %1703 = arith.mulf %1702, %1700 : vector<8x256xf32>
      %1704 = arith.addf %1699, %1703 : vector<8x256xf32>
      %c6_i32_1511 = arith.constant 6 : i32
      %1705 = tpu.dynamic_rotate %1700 by %c6_i32_1511 dim 0 : vector<8x256xf32>, i32 -> vector<8x256xf32>
      %c6_1512 = arith.constant 6 : index
      %c1_1513 = arith.constant 1 : index
      %c0_1514 = arith.constant 0 : index
      %c0_1515 = arith.constant 0 : index
      %1706 = vector.load %arg4[%c6_1512, %c1_1513, %c0_1514, %c0_1515] : memref<9x4x8x256xf32, #tpu.memory_space<vmem>>, vector<1x1x8x256xf32>
      %1707 = vector.shape_cast %1706 : vector<1x1x8x256xf32> to vector<8x256xf32>
      %1708 = arith.mulf %1707, %1705 : vector<8x256xf32>
      %1709 = arith.addf %1704, %1708 : vector<8x256xf32>
      %c4_i32_1516 = arith.constant 4 : i32
      %1710 = tpu.dynamic_rotate %1700 by %c4_i32_1516 dim 0 : vector<8x256xf32>, i32 -> vector<8x256xf32>
      %c6_1517 = arith.constant 6 : index
      %c2_1518 = arith.constant 2 : index
      %c0_1519 = arith.constant 0 : index
      %c0_1520 = arith.constant 0 : index
      %1711 = vector.load %arg4[%c6_1517, %c2_1518, %c0_1519, %c0_1520] : memref<9x4x8x256xf32, #tpu.memory_space<vmem>>, vector<1x1x8x256xf32>
      %1712 = vector.shape_cast %1711 : vector<1x1x8x256xf32> to vector<8x256xf32>
      %1713 = arith.mulf %1712, %1710 : vector<8x256xf32>
      %1714 = arith.addf %1709, %1713 : vector<8x256xf32>
      %c2_i32_1521 = arith.constant 2 : i32
      %1715 = tpu.dynamic_rotate %1700 by %c2_i32_1521 dim 0 : vector<8x256xf32>, i32 -> vector<8x256xf32>
      %c6_1522 = arith.constant 6 : index
      %c3_1523 = arith.constant 3 : index
      %c0_1524 = arith.constant 0 : index
      %c0_1525 = arith.constant 0 : index
      %1716 = vector.load %arg4[%c6_1522, %c3_1523, %c0_1524, %c0_1525] : memref<9x4x8x256xf32, #tpu.memory_space<vmem>>, vector<1x1x8x256xf32>
      %1717 = vector.shape_cast %1716 : vector<1x1x8x256xf32> to vector<8x256xf32>
      %1718 = arith.mulf %1717, %1715 : vector<8x256xf32>
      %1719 = arith.addf %1714, %1718 : vector<8x256xf32>
      %c240_i32_1526 = arith.constant 240 : i32
      %1720 = tpu.dynamic_rotate %1580 by %c240_i32_1526 dim 1 : vector<8x256xf32>, i32 -> vector<8x256xf32>
      %c7_1527 = arith.constant 7 : index
      %c0_1528 = arith.constant 0 : index
      %c0_1529 = arith.constant 0 : index
      %c0_1530 = arith.constant 0 : index
      %1721 = vector.load %arg4[%c7_1527, %c0_1528, %c0_1529, %c0_1530] : memref<9x4x8x256xf32, #tpu.memory_space<vmem>>, vector<1x1x8x256xf32>
      %1722 = vector.shape_cast %1721 : vector<1x1x8x256xf32> to vector<8x256xf32>
      %1723 = arith.mulf %1722, %1720 : vector<8x256xf32>
      %1724 = arith.addf %1719, %1723 : vector<8x256xf32>
      %c6_i32_1531 = arith.constant 6 : i32
      %1725 = tpu.dynamic_rotate %1720 by %c6_i32_1531 dim 0 : vector<8x256xf32>, i32 -> vector<8x256xf32>
      %c7_1532 = arith.constant 7 : index
      %c1_1533 = arith.constant 1 : index
      %c0_1534 = arith.constant 0 : index
      %c0_1535 = arith.constant 0 : index
      %1726 = vector.load %arg4[%c7_1532, %c1_1533, %c0_1534, %c0_1535] : memref<9x4x8x256xf32, #tpu.memory_space<vmem>>, vector<1x1x8x256xf32>
      %1727 = vector.shape_cast %1726 : vector<1x1x8x256xf32> to vector<8x256xf32>
      %1728 = arith.mulf %1727, %1725 : vector<8x256xf32>
      %1729 = arith.addf %1724, %1728 : vector<8x256xf32>
      %c4_i32_1536 = arith.constant 4 : i32
      %1730 = tpu.dynamic_rotate %1720 by %c4_i32_1536 dim 0 : vector<8x256xf32>, i32 -> vector<8x256xf32>
      %c7_1537 = arith.constant 7 : index
      %c2_1538 = arith.constant 2 : index
      %c0_1539 = arith.constant 0 : index
      %c0_1540 = arith.constant 0 : index
      %1731 = vector.load %arg4[%c7_1537, %c2_1538, %c0_1539, %c0_1540] : memref<9x4x8x256xf32, #tpu.memory_space<vmem>>, vector<1x1x8x256xf32>
      %1732 = vector.shape_cast %1731 : vector<1x1x8x256xf32> to vector<8x256xf32>
      %1733 = arith.mulf %1732, %1730 : vector<8x256xf32>
      %1734 = arith.addf %1729, %1733 : vector<8x256xf32>
      %c2_i32_1541 = arith.constant 2 : i32
      %1735 = tpu.dynamic_rotate %1720 by %c2_i32_1541 dim 0 : vector<8x256xf32>, i32 -> vector<8x256xf32>
      %c7_1542 = arith.constant 7 : index
      %c3_1543 = arith.constant 3 : index
      %c0_1544 = arith.constant 0 : index
      %c0_1545 = arith.constant 0 : index
      %1736 = vector.load %arg4[%c7_1542, %c3_1543, %c0_1544, %c0_1545] : memref<9x4x8x256xf32, #tpu.memory_space<vmem>>, vector<1x1x8x256xf32>
      %1737 = vector.shape_cast %1736 : vector<1x1x8x256xf32> to vector<8x256xf32>
      %1738 = arith.mulf %1737, %1735 : vector<8x256xf32>
      %1739 = arith.addf %1734, %1738 : vector<8x256xf32>
      %c239_i32_1546 = arith.constant 239 : i32
      %1740 = tpu.dynamic_rotate %1580 by %c239_i32_1546 dim 1 : vector<8x256xf32>, i32 -> vector<8x256xf32>
      %c8_1547 = arith.constant 8 : index
      %c0_1548 = arith.constant 0 : index
      %c0_1549 = arith.constant 0 : index
      %c0_1550 = arith.constant 0 : index
      %1741 = vector.load %arg4[%c8_1547, %c0_1548, %c0_1549, %c0_1550] : memref<9x4x8x256xf32, #tpu.memory_space<vmem>>, vector<1x1x8x256xf32>
      %1742 = vector.shape_cast %1741 : vector<1x1x8x256xf32> to vector<8x256xf32>
      %1743 = arith.mulf %1742, %1740 : vector<8x256xf32>
      %1744 = arith.addf %1739, %1743 : vector<8x256xf32>
      %c6_i32_1551 = arith.constant 6 : i32
      %1745 = tpu.dynamic_rotate %1740 by %c6_i32_1551 dim 0 : vector<8x256xf32>, i32 -> vector<8x256xf32>
      %c8_1552 = arith.constant 8 : index
      %c1_1553 = arith.constant 1 : index
      %c0_1554 = arith.constant 0 : index
      %c0_1555 = arith.constant 0 : index
      %1746 = vector.load %arg4[%c8_1552, %c1_1553, %c0_1554, %c0_1555] : memref<9x4x8x256xf32, #tpu.memory_space<vmem>>, vector<1x1x8x256xf32>
      %1747 = vector.shape_cast %1746 : vector<1x1x8x256xf32> to vector<8x256xf32>
      %1748 = arith.mulf %1747, %1745 : vector<8x256xf32>
      %1749 = arith.addf %1744, %1748 : vector<8x256xf32>
      %c4_i32_1556 = arith.constant 4 : i32
      %1750 = tpu.dynamic_rotate %1740 by %c4_i32_1556 dim 0 : vector<8x256xf32>, i32 -> vector<8x256xf32>
      %c8_1557 = arith.constant 8 : index
      %c2_1558 = arith.constant 2 : index
      %c0_1559 = arith.constant 0 : index
      %c0_1560 = arith.constant 0 : index
      %1751 = vector.load %arg4[%c8_1557, %c2_1558, %c0_1559, %c0_1560] : memref<9x4x8x256xf32, #tpu.memory_space<vmem>>, vector<1x1x8x256xf32>
      %1752 = vector.shape_cast %1751 : vector<1x1x8x256xf32> to vector<8x256xf32>
      %1753 = arith.mulf %1752, %1750 : vector<8x256xf32>
      %1754 = arith.addf %1749, %1753 : vector<8x256xf32>
      %c2_i32_1561 = arith.constant 2 : i32
      %1755 = tpu.dynamic_rotate %1740 by %c2_i32_1561 dim 0 : vector<8x256xf32>, i32 -> vector<8x256xf32>
      %c8_1562 = arith.constant 8 : index
      %c3_1563 = arith.constant 3 : index
      %c0_1564 = arith.constant 0 : index
      %c0_1565 = arith.constant 0 : index
      %1756 = vector.load %arg4[%c8_1562, %c3_1563, %c0_1564, %c0_1565] : memref<9x4x8x256xf32, #tpu.memory_space<vmem>>, vector<1x1x8x256xf32>
      %1757 = vector.shape_cast %1756 : vector<1x1x8x256xf32> to vector<8x256xf32>
      %1758 = arith.mulf %1757, %1755 : vector<8x256xf32>
      %1759 = arith.addf %1754, %1758 : vector<8x256xf32>
      %cst_1566 = arith.constant dense<0.000000e+00> : vector<8xf32>
      %1760 = vector.multi_reduction <add>, %1759, %cst_1566 [1] : vector<8x256xf32> to vector<8xf32>
      %1761 = vector.shape_cast %1760 : vector<8xf32> to vector<8x1xf32>
      %1762 = arith.mulf %1759, %1759 : vector<8x256xf32>
      %cst_1567 = arith.constant dense<0.000000e+00> : vector<8xf32>
      %1763 = vector.multi_reduction <add>, %1762, %cst_1567 [1] : vector<8x256xf32> to vector<8xf32>
      %1764 = vector.shape_cast %1763 : vector<8xf32> to vector<8x1xf32>
      %cst_1568 = arith.constant 3.906250e-03 : f32
      %1765 = vector.broadcast %cst_1568 : f32 to vector<8x1xf32>
      %1766 = arith.mulf %1761, %1765 : vector<8x1xf32>
      %cst_1569 = arith.constant 3.906250e-03 : f32
      %1767 = vector.broadcast %cst_1569 : f32 to vector<8x1xf32>
      %1768 = arith.mulf %1764, %1767 : vector<8x1xf32>
      %1769 = arith.mulf %1766, %1766 : vector<8x1xf32>
      %1770 = arith.subf %1768, %1769 : vector<8x1xf32>
      %cst_1570 = arith.constant 0.000000e+00 : f32
      %1771 = vector.broadcast %cst_1570 : f32 to vector<8x1xf32>
      %1772 = arith.maximumf %1770, %1771 : vector<8x1xf32>
      %cst_1571 = arith.constant 9.99999974E-6 : f32
      %1773 = vector.broadcast %cst_1571 : f32 to vector<8x1xf32>
      %1774 = arith.addf %1772, %1773 : vector<8x1xf32>
      %1775 = math.rsqrt %1774 : vector<8x1xf32>
      %1776 = vector.broadcast %1766 : vector<8x1xf32> to vector<8x256xf32>
      %1777 = arith.subf %1759, %1776 : vector<8x256xf32>
      %c0_1572 = arith.constant 0 : index
      %c0_1573 = arith.constant 0 : index
      %1778 = vector.load %arg11[%c0_1572, %c0_1573] : memref<8x256xf32, #tpu.memory_space<vmem>>, vector<8x256xf32>
      %1779 = vector.broadcast %1775 : vector<8x1xf32> to vector<8x256xf32>
      %1780 = arith.mulf %1779, %1778 : vector<8x256xf32>
      %1781 = arith.mulf %1777, %1780 : vector<8x256xf32>
      %c0_1574 = arith.constant 0 : index
      %c0_1575 = arith.constant 0 : index
      %1782 = vector.load %arg12[%c0_1574, %c0_1575] : memref<8x256xf32, #tpu.memory_space<vmem>>, vector<8x256xf32>
      %1783 = arith.addf %1781, %1782 : vector<8x256xf32>
      %cst_1576 = arith.constant 2.000000e+00 : f32
      %1784 = vector.broadcast %cst_1576 : f32 to vector<8x256xf32>
      %1785 = arith.mulf %1784, %898 : vector<8x256xf32>
      %1786 = arith.addf %450, %1785 : vector<8x256xf32>
      %cst_1577 = arith.constant 2.000000e+00 : f32
      %1787 = vector.broadcast %cst_1577 : f32 to vector<8x256xf32>
      %1788 = arith.mulf %1787, %1335 : vector<8x256xf32>
      %1789 = arith.addf %1786, %1788 : vector<8x256xf32>
      %1790 = arith.addf %1789, %1783 : vector<8x256xf32>
      %cst_1578 = arith.constant 0.0416666679 : f32
      %1791 = vector.broadcast %cst_1578 : f32 to vector<8x256xf32>
      %1792 = arith.mulf %1791, %1790 : vector<8x256xf32>
      %1793 = arith.addf %arg15, %1792 : vector<8x256xf32>
      scf.yield %1793 : vector<8x256xf32>
    }
    %c20_i32_1 = arith.constant 20 : i32
    %c0_2 = arith.constant 0 : index
    %c0_3 = arith.constant 0 : index
    %3 = vector.load %arg13[%c0_2, %c0_3] : memref<8x256xf32, #tpu.memory_space<vmem>>, vector<8x256xf32>
    tpu.vector_store %arg13[%c0_2, %c0_3], %2 {strides = array<i32>} : memref<8x256xf32, #tpu.memory_space<vmem>>, vector<8x256xf32>,
    return
  }
}

</mosaic_0001>

<llo_original>
// kernel: ode_block_forward.1
$region0: #{ode_block_forward.1}
  #allocation0 [shape = 'u32[]', space=smem, size = 0x4, offset = 0x4, fixed_abs, tag = 'smem constant byte address 0x4 - core index']
  #allocation1 [shape = 'u32[144,128]{1,0:T(1,128)}', space=vmem, size = 0x12000, scoped, tag = 'internal scratch']
  %s0 = inlined_call_operand.vmem [shape: f32[8,256], index: 0, kind: input, shape index: {}]
  %s1 = inlined_call_operand.vmem [shape: f32[9,4,8,256], index: 1, kind: input, shape index: {}]
  %s2 = inlined_call_operand.vmem [shape: f32[8,256], index: 2, kind: input, shape index: {}]
  %s3 = inlined_call_operand.vmem [shape: f32[8,256], index: 3, kind: input, shape index: {}]
  %s4 = inlined_call_operand.vmem [shape: f32[9,4,8,256], index: 4, kind: input, shape index: {}]
  %s5 = inlined_call_operand.vmem [shape: f32[8,256], index: 5, kind: input, shape index: {}]
  %s6 = inlined_call_operand.vmem [shape: f32[8,256], index: 6, kind: input, shape index: {}]
  %s7 = inlined_call_operand.vmem [shape: f32[8,256], index: 7, kind: input, shape index: {}]
  %s8 = inlined_call_operand.vmem [shape: f32[8,256], index: 8, kind: input, shape index: {}]
  %s9 = inlined_call_operand.vmem [shape: f32[8,256], index: 9, kind: input, shape index: {}]
  %s10 = inlined_call_operand.vmem [shape: f32[8,256], index: 10, kind: input, shape index: {}]
  %s11 = inlined_call_operand.vmem [shape: f32[8,256], index: 11, kind: input, shape index: {}]
  %s12 = inlined_call_operand.vmem [shape: f32[8,256], index: 12, kind: input, shape index: {}]
  %s13 = inlined_call_operand.vmem [shape: f32[8,256], index: 13, kind: output, shape index: {}]
  %s14 = sld [smem:[#allocation0]]
  $region69: #{ode_block_forward.1} parent=0
    _
  %s16 = ssub.s32 1, %s14
  %s17 = scalar_select 0, %s16, %s14
  // Predicated region
  $region2: #{ode_block_forward.1} parent=0 // pred_check
    _
  $region3: #{ode_block_forward.1} parent=0 // pred_check_branch
    %19 = sbr.rel (0) target = $region5
  $region4: #{ode_block_forward.1} parent=0 // pred_region
    _
  $region5: #{ode_block_forward.1} parent=0 // pred_fallthru
    _
  // Predicated region
  $region6: #{ode_block_forward.1} parent=0 // pred_check
    _
  $region7: #{ode_block_forward.1} parent=0 // pred_check_branch
    %21 = sbr.rel (0) target = $region9
  $region8: #{ode_block_forward.1} parent=0 // pred_region
    _
  $region9: #{ode_block_forward.1} parent=0 // pred_fallthru
    _
  // Predicated region
  $region10: #{ode_block_forward.1} parent=0 // pred_check
    _
  $region11: #{ode_block_forward.1} parent=0 // pred_check_branch
    %23 = sbr.rel (0) target = $region13
  $region12: #{ode_block_forward.1} parent=0 // pred_region
    _
  $region13: #{ode_block_forward.1} parent=0 // pred_fallthru
    _
  // Predicated region
  $region14: #{ode_block_forward.1} parent=0 // pred_check
    _
  $region15: #{ode_block_forward.1} parent=0 // pred_check_branch
    %25 = sbr.rel (0) target = $region17
  $region16: #{ode_block_forward.1} parent=0 // pred_region
    _
  $region17: #{ode_block_forward.1} parent=0 // pred_fallthru
    _
  // Predicated region
  $region18: #{ode_block_forward.1} parent=0 // pred_check
    _
  $region19: #{ode_block_forward.1} parent=0 // pred_check_branch
    %27 = sbr.rel (0) target = $region21
  $region20: #{ode_block_forward.1} parent=0 // pred_region
    _
  $region21: #{ode_block_forward.1} parent=0 // pred_fallthru
    _
  // Predicated region
  $region22: #{ode_block_forward.1} parent=0 // pred_check
    _
  $region23: #{ode_block_forward.1} parent=0 // pred_check_branch
    %29 = sbr.rel (0) target = $region25
  $region24: #{ode_block_forward.1} parent=0 // pred_region
    _
  $region25: #{ode_block_forward.1} parent=0 // pred_fallthru
    _
  // Predicated region
  $region26: #{ode_block_forward.1} parent=0 // pred_check
    _
  $region27: #{ode_block_forward.1} parent=0 // pred_check_branch
    %31 = sbr.rel (0) target = $region29
  $region28: #{ode_block_forward.1} parent=0 // pred_region
    _
  $region29: #{ode_block_forward.1} parent=0 // pred_fallthru
    _
  // Predicated region
  $region30: #{ode_block_forward.1} parent=0 // pred_check
    _
  $region31: #{ode_block_forward.1} parent=0 // pred_check_branch
    %33 = sbr.rel (0) target = $region33
  $region32: #{ode_block_forward.1} parent=0 // pred_region
    _
  $region33: #{ode_block_forward.1} parent=0 // pred_fallthru
    _
  // Predicated region
  $region34: #{ode_block_forward.1} parent=0 // pred_check
    _
  $region35: #{ode_block_forward.1} parent=0 // pred_check_branch
    %35 = sbr.rel (0) target = $region37
  $region36: #{ode_block_forward.1} parent=0 // pred_region
    _
  $region37: #{ode_block_forward.1} parent=0 // pred_fallthru
    _
  // Predicated region
  $region38: #{ode_block_forward.1} parent=0 // pred_check
    _
  $region39: #{ode_block_forward.1} parent=0 // pred_check_branch
    %37 = sbr.rel (0) target = $region41
  $region40: #{ode_block_forward.1} parent=0 // pred_region
    _
  $region41: #{ode_block_forward.1} parent=0 // pred_fallthru
    _
  // Predicated region
  $region42: #{ode_block_forward.1} parent=0 // pred_check
    _
  $region43: #{ode_block_forward.1} parent=0 // pred_check_branch
    %39 = sbr.rel (0) target = $region45
  $region44: #{ode_block_forward.1} parent=0 // pred_region
    _
  $region45: #{ode_block_forward.1} parent=0 // pred_fallthru
    _
  // Predicated region
  $region46: #{ode_block_forward.1} parent=0 // pred_check
    _
  $region47: #{ode_block_forward.1} parent=0 // pred_check_branch
    %41 = sbr.rel (0) target = $region49
  $region48: #{ode_block_forward.1} parent=0 // pred_region
    _
  $region49: #{ode_block_forward.1} parent=0 // pred_fallthru
    _
  // Predicated region
  $region50: #{ode_block_forward.1} parent=0 // pred_check
    _
  $region51: #{ode_block_forward.1} parent=0 // pred_check_branch
    %43 = sbr.rel (0) target = $region53
  $region52: #{ode_block_forward.1} parent=0 // pred_region
    _
  $region53: #{ode_block_forward.1} parent=0 // pred_fallthru
    _
  %v44 = vld [vmem:[%s0] sm:$0xff]
  %v45 = vld [vmem:[%s0 + $0x8] sm:$0xff]
  loop: start=0, step=1, limit=20
  $region54: #{ode_block_forward.1} parent=0 // loop_pre_header
    _
  $region55: #{ode_block_forward.1} parent=0 // loop_header
    %s47 = sphi 0, %s51
    %p48 = scmp.ge.s32.totalorder %s47, 20
    %v52 = vphi %v44, %v2614
    %v53 = vphi %v45, %v2615
  $region56: #{ode_block_forward.1} parent=0 // loop_header_branch
    %50 = sbr.rel (%p48) target = $region60
  $region57: #{ode_block_forward.1} parent=0 // loop_body
    %s54 = scvt.s32.f32 %s47
    %s55 = smul.f32 %s54, 0.25
    %s56 = sadd.f32 %s55, 0.0
    %v57 = vld [vmem:[%s2] sm:$0xff]
    %v58 = vld [vmem:[%s2 + $0x8] sm:$0xff]
    %v59 = vld [vmem:[%s3] sm:$0xff]
    %v60 = vld [vmem:[%s3 + $0x8] sm:$0xff]
    %v61 = vstv %s56
    %v62 = vmul.f32 %v61, %v59
    %v63 = vmul.f32 %v61, %v60
    %v64 = vadd.f32 %v57, %v62
    %v65 = vadd.f32 %v58, %v63
    %v66 = vld [vmem:[%s5] sm:$0xff]
    %v67 = vld [vmem:[%s5 + $0x8] sm:$0xff]
    %v68 = vld [vmem:[%s6] sm:$0xff]
    %v69 = vld [vmem:[%s6 + $0x8] sm:$0xff]
    %v70 = vmul.f32 %v61, %v68
    %v71 = vmul.f32 %v61, %v69
    %v72 = vadd.f32 %v66, %v70
    %v73 = vadd.f32 %v67, %v71
    %v74 = vadd.f32 %v52, %v53
    %75 = vadd.xlane.f32.xlu0 %v74
    %v76 = vpop.xlane.xlu0 %75
    %v77 = vmul.f32 %v52, %v52
    %v78 = vmul.f32 %v53, %v53
    %v79 = vadd.f32 %v77, %v78
    %80 = vadd.xlane.f32.xlu0 %v79
    %v81 = vpop.xlane.xlu0 %80
    %v82 = vmul.f32 %v76, 0.00390625
    %v83 = vmul.f32 %v81, 0.00390625
    %v84 = vmul.f32 %v82, %v82
    %v85 = vsub.f32 %v83, %v84
    %v86 = vmax.f32 %v85, 0.0
    %v87 = vadd.f32 %v86, 1e-05
    %v88 = vrsqrt.pop %v87
    %v89 = vsub.f32 %v52, %v82
    %v90 = vsub.f32 %v53, %v82
    %v91 = vld [vmem:[%s7] sm:$0xff]
    %v92 = vld [vmem:[%s7 + $0x8] sm:$0xff]
    %v93 = vmul.f32 %v88, %v91
    %v94 = vmul.f32 %v88, %v92
    %v95 = vmul.f32 %v89, %v93
    %v96 = vmul.f32 %v90, %v94
    %v97 = vld [vmem:[%s8] sm:$0xff]
    %v98 = vld [vmem:[%s8 + $0x8] sm:$0xff]
    %v99 = vadd.f32 %v95, %v97
    %v100 = vadd.f32 %v96, %v98
    %v101 = vmax.f32 %v99, 0.0
    %v102 = vmax.f32 %v100, 0.0
    %103 = vrot.lane.b32.xlu0 %v101, 17
    %v104 = vpop.permute.xlu0 %103
    %105 = vrot.lane.b32.xlu0 %v102, 17
    %v106 = vpop.permute.xlu0 %105
    %v107 = vlaneseq
    %v108 = vand.u32 %v107, 127
    %vm109 = vcmp.lt.s32.totalorder %v108, 17
    %v110 = vsel %vm109, %v104, %v106
    %v111 = vsel %vm109, %v106, %v104
    %v112 = vld [vmem:[%s1] sm:$0xff]
    %v113 = vld [vmem:[%s1 + $0x8] sm:$0xff]
    %v114 = vmul.f32 %v112, %v111
    %v115 = vmul.f32 %v113, %v110
    %v116 = vadd.f32 %v64, %v114
    %v117 = vadd.f32 %v65, %v115
    %v118 = vrot.slane %v111, 2
    %v119 = vrot.slane %v110, 2
    %s120 = scalar_lea.vmem %s1, 16
    %v121 = vld [vmem:[%s120] sm:$0xff]
    %v122 = vld [vmem:[%s120 + $0x8] sm:$0xff]
    %v123 = vmul.f32 %v121, %v118
    %v124 = vmul.f32 %v122, %v119
    %v125 = vadd.f32 %v116, %v123
    %v126 = vadd.f32 %v117, %v124
    %v127 = vrot.slane %v111, 4
    %v128 = vrot.slane %v110, 4
    %s129 = scalar_lea.vmem %s1, 32
    %v130 = vld [vmem:[%s129] sm:$0xff]
    %v131 = vld [vmem:[%s129 + $0x8] sm:$0xff]
    %v132 = vmul.f32 %v130, %v127
    %v133 = vmul.f32 %v131, %v128
    %v134 = vadd.f32 %v125, %v132
    %v135 = vadd.f32 %v126, %v133
    %v136 = vrot.slane %v111, 6
    %v137 = vrot.slane %v110, 6
    %s138 = scalar_lea.vmem %s1, 48
    %v139 = vld [vmem:[%s138] sm:$0xff]
    %v140 = vld [vmem:[%s138 + $0x8] sm:$0xff]
    %v141 = vmul.f32 %v139, %v136
    %v142 = vmul.f32 %v140, %v137
    %v143 = vadd.f32 %v134, %v141
    %v144 = vadd.f32 %v135, %v142
    %145 = vrot.lane.b32.xlu0 %v101, 16
    %v146 = vpop.permute.xlu0 %145
    %147 = vrot.lane.b32.xlu0 %v102, 16
    %v148 = vpop.permute.xlu0 %147
    %vm149 = vcmp.lt.s32.totalorder %v108, 16
    %v150 = vsel %vm149, %v146, %v148
    %v151 = vsel %vm149, %v148, %v146
    %s152 = scalar_lea.vmem %s1, 64
    %v153 = vld [vmem:[%s152] sm:$0xff]
    %v154 = vld [vmem:[%s152 + $0x8] sm:$0xff]
    %v155 = vmul.f32 %v153, %v151
    %v156 = vmul.f32 %v154, %v150
    %v157 = vadd.f32 %v143, %v155
    %v158 = vadd.f32 %v144, %v156
    %v159 = vrot.slane %v151, 2
    %v160 = vrot.slane %v150, 2
    %s161 = scalar_lea.vmem %s1, 80
    %v162 = vld [vmem:[%s161] sm:$0xff]
    %v163 = vld [vmem:[%s161 + $0x8] sm:$0xff]
    %v164 = vmul.f32 %v162, %v159
    %v165 = vmul.f32 %v163, %v160
    %v166 = vadd.f32 %v157, %v164
    %v167 = vadd.f32 %v158, %v165
    %v168 = vrot.slane %v151, 4
    %v169 = vrot.slane %v150, 4
    %s170 = scalar_lea.vmem %s1, 96
    %v171 = vld [vmem:[%s170] sm:$0xff]
    %v172 = vld [vmem:[%s170 + $0x8] sm:$0xff]
    %v173 = vmul.f32 %v171, %v168
    %v174 = vmul.f32 %v172, %v169
    %v175 = vadd.f32 %v166, %v173
    %v176 = vadd.f32 %v167, %v174
    %v177 = vrot.slane %v151, 6
    %v178 = vrot.slane %v150, 6
    %s179 = scalar_lea.vmem %s1, 112
    %v180 = vld [vmem:[%s179] sm:$0xff]
    %v181 = vld [vmem:[%s179 + $0x8] sm:$0xff]
    %v182 = vmul.f32 %v180, %v177
    %v183 = vmul.f32 %v181, %v178
    %v184 = vadd.f32 %v175, %v182
    %v185 = vadd.f32 %v176, %v183
    %186 = vrot.lane.b32.xlu0 %v101, 15
    %v187 = vpop.permute.xlu0 %186
    %188 = vrot.lane.b32.xlu0 %v102, 15
    %v189 = vpop.permute.xlu0 %188
    %vm190 = vcmp.lt.s32.totalorder %v108, 15
    %v191 = vsel %vm190, %v187, %v189
    %v192 = vsel %vm190, %v189, %v187
    %s193 = scalar_lea.vmem %s1, 128
    %v194 = vld [vmem:[%s193] sm:$0xff]
    %v195 = vld [vmem:[%s193 + $0x8] sm:$0xff]
    %v196 = vmul.f32 %v194, %v192
    %v197 = vmul.f32 %v195, %v191
    %v198 = vadd.f32 %v184, %v196
    %v199 = vadd.f32 %v185, %v197
    %v200 = vrot.slane %v192, 2
    %v201 = vrot.slane %v191, 2
    %s202 = scalar_lea.vmem %s1, 144
    %v203 = vld [vmem:[%s202] sm:$0xff]
    %v204 = vld [vmem:[%s202 + $0x8] sm:$0xff]
    %v205 = vmul.f32 %v203, %v200
    %v206 = vmul.f32 %v204, %v201
    %v207 = vadd.f32 %v198, %v205
    %v208 = vadd.f32 %v199, %v206
    %v209 = vrot.slane %v192, 4
    %v210 = vrot.slane %v191, 4
    %s211 = scalar_lea.vmem %s1, 160
    %v212 = vld [vmem:[%s211] sm:$0xff]
    %v213 = vld [vmem:[%s211 + $0x8] sm:$0xff]
    %v214 = vmul.f32 %v212, %v209
    %v215 = vmul.f32 %v213, %v210
    %v216 = vadd.f32 %v207, %v214
    %v217 = vadd.f32 %v208, %v215
    %v218 = vrot.slane %v192, 6
    %v219 = vrot.slane %v191, 6
    %s220 = scalar_lea.vmem %s1, 176
    %v221 = vld [vmem:[%s220] sm:$0xff]
    %v222 = vld [vmem:[%s220 + $0x8] sm:$0xff]
    %v223 = vmul.f32 %v221, %v218
    %v224 = vmul.f32 %v222, %v219
    %v225 = vadd.f32 %v216, %v223
    %v226 = vadd.f32 %v217, %v224
    %227 = vrot.lane.b32.xlu0 %v101, 1
    %v228 = vpop.permute.xlu0 %227
    %229 = vrot.lane.b32.xlu0 %v102, 1
    %v230 = vpop.permute.xlu0 %229
    %vm231 = vcmp.lt.s32.totalorder %v108, 1
    %v232 = vsel %vm231, %v228, %v230
    %v233 = vsel %vm231, %v230, %v228
    %s234 = scalar_lea.vmem %s1, 192
    %v235 = vld [vmem:[%s234] sm:$0xff]
    %v236 = vld [vmem:[%s234 + $0x8] sm:$0xff]
    %v237 = vmul.f32 %v235, %v233
    %v238 = vmul.f32 %v236, %v232
    %v239 = vadd.f32 %v225, %v237
    %v240 = vadd.f32 %v226, %v238
    %v241 = vrot.slane %v233, 2
    %v242 = vrot.slane %v232, 2
    %s243 = scalar_lea.vmem %s1, 208
    %v244 = vld [vmem:[%s243] sm:$0xff]
    %v245 = vld [vmem:[%s243 + $0x8] sm:$0xff]
    %v246 = vmul.f32 %v244, %v241
    %v247 = vmul.f32 %v245, %v242
    %v248 = vadd.f32 %v239, %v246
    %v249 = vadd.f32 %v240, %v247
    %v250 = vrot.slane %v233, 4
    %v251 = vrot.slane %v232, 4
    %s252 = scalar_lea.vmem %s1, 224
    %v253 = vld [vmem:[%s252] sm:$0xff]
    %v254 = vld [vmem:[%s252 + $0x8] sm:$0xff]
    %v255 = vmul.f32 %v253, %v250
    %v256 = vmul.f32 %v254, %v251
    %v257 = vadd.f32 %v248, %v255
    %v258 = vadd.f32 %v249, %v256
    %v259 = vrot.slane %v233, 6
    %v260 = vrot.slane %v232, 6
    %s261 = scalar_lea.vmem %s1, 240
    %v262 = vld [vmem:[%s261] sm:$0xff]
    %v263 = vld [vmem:[%s261 + $0x8] sm:$0xff]
    %v264 = vmul.f32 %v262, %v259
    %v265 = vmul.f32 %v263, %v260
    %v266 = vadd.f32 %v257, %v264
    %v267 = vadd.f32 %v258, %v265
    %s268 = scalar_lea.vmem %s1, 256
    %v269 = vld [vmem:[%s268] sm:$0xff]
    %v270 = vld [vmem:[%s268 + $0x8] sm:$0xff]
    %v271 = vmul.f32 %v269, %v101
    %v272 = vmul.f32 %v270, %v102
    %v273 = vadd.f32 %v266, %v271
    %v274 = vadd.f32 %v267, %v272
    %v275 = vrot.slane %v101, 2
    %v276 = vrot.slane %v102, 2
    %s277 = scalar_lea.vmem %s1, 272
    %v278 = vld [vmem:[%s277] sm:$0xff]
    %v279 = vld [vmem:[%s277 + $0x8] sm:$0xff]
    %v280 = vmul.f32 %v278, %v275
    %v281 = vmul.f32 %v279, %v276
    %v282 = vadd.f32 %v273, %v280
    %v283 = vadd.f32 %v274, %v281
    %v284 = vrot.slane %v101, 4
    %v285 = vrot.slane %v102, 4
    %s286 = scalar_lea.vmem %s1, 288
    %v287 = vld [vmem:[%s286] sm:$0xff]
    %v288 = vld [vmem:[%s286 + $0x8] sm:$0xff]
    %v289 = vmul.f32 %v287, %v284
    %v290 = vmul.f32 %v288, %v285
    %v291 = vadd.f32 %v282, %v289
    %v292 = vadd.f32 %v283, %v290
    %v293 = vrot.slane %v101, 6
    %v294 = vrot.slane %v102, 6
    %s295 = scalar_lea.vmem %s1, 304
    %v296 = vld [vmem:[%s295] sm:$0xff]
    %v297 = vld [vmem:[%s295 + $0x8] sm:$0xff]
    %v298 = vmul.f32 %v296, %v293
    %v299 = vmul.f32 %v297, %v294
    %v300 = vadd.f32 %v291, %v298
    %v301 = vadd.f32 %v292, %v299
    %302 = vrot.lane.b32.xlu0 %v101, 127
    %v303 = vpop.permute.xlu0 %302
    %304 = vrot.lane.b32.xlu0 %v102, 127
    %v305 = vpop.permute.xlu0 %304
    %vm306 = vcmp.lt.s32.totalorder %v108, 127
    %v307 = vsel %vm306, %v303, %v305
    %v308 = vsel %vm306, %v305, %v303
    %s309 = scalar_lea.vmem %s1, 320
    %v310 = vld [vmem:[%s309] sm:$0xff]
    %v311 = vld [vmem:[%s309 + $0x8] sm:$0xff]
    %v312 = vmul.f32 %v310, %v307
    %v313 = vmul.f32 %v311, %v308
    %v314 = vadd.f32 %v300, %v312
    %v315 = vadd.f32 %v301, %v313
    %v316 = vrot.slane %v307, 2
    %v317 = vrot.slane %v308, 2
    %s318 = scalar_lea.vmem %s1, 336
    %v319 = vld [vmem:[%s318] sm:$0xff]
    %v320 = vld [vmem:[%s318 + $0x8] sm:$0xff]
    %v321 = vmul.f32 %v319, %v316
    %v322 = vmul.f32 %v320, %v317
    %v323 = vadd.f32 %v314, %v321
    %v324 = vadd.f32 %v315, %v322
    %v325 = vrot.slane %v307, 4
    %v326 = vrot.slane %v308, 4
    %s327 = scalar_lea.vmem %s1, 352
    %v328 = vld [vmem:[%s327] sm:$0xff]
    %v329 = vld [vmem:[%s327 + $0x8] sm:$0xff]
    %v330 = vmul.f32 %v328, %v325
    %v331 = vmul.f32 %v329, %v326
    %v332 = vadd.f32 %v323, %v330
    %v333 = vadd.f32 %v324, %v331
    %v334 = vrot.slane %v307, 6
    %v335 = vrot.slane %v308, 6
    %s336 = scalar_lea.vmem %s1, 368
    %v337 = vld [vmem:[%s336] sm:$0xff]
    %v338 = vld [vmem:[%s336 + $0x8] sm:$0xff]
    %v339 = vmul.f32 %v337, %v334
    %v340 = vmul.f32 %v338, %v335
    %v341 = vadd.f32 %v332, %v339
    %v342 = vadd.f32 %v333, %v340
    %343 = vrot.lane.b32.xlu0 %v101, 113
    %v344 = vpop.permute.xlu0 %343
    %345 = vrot.lane.b32.xlu0 %v102, 113
    %v346 = vpop.permute.xlu0 %345
    %vm347 = vcmp.lt.s32.totalorder %v108, 113
    %v348 = vsel %vm347, %v344, %v346
    %v349 = vsel %vm347, %v346, %v344
    %s350 = scalar_lea.vmem %s1, 384
    %v351 = vld [vmem:[%s350] sm:$0xff]
    %v352 = vld [vmem:[%s350 + $0x8] sm:$0xff]
    %v353 = vmul.f32 %v351, %v348
    %v354 = vmul.f32 %v352, %v349
    %v355 = vadd.f32 %v341, %v353
    %v356 = vadd.f32 %v342, %v354
    %v357 = vrot.slane %v348, 2
    %v358 = vrot.slane %v349, 2
    %s359 = scalar_lea.vmem %s1, 400
    %v360 = vld [vmem:[%s359] sm:$0xff]
    %v361 = vld [vmem:[%s359 + $0x8] sm:$0xff]
    %v362 = vmul.f32 %v360, %v357
    %v363 = vmul.f32 %v361, %v358
    %v364 = vadd.f32 %v355, %v362
    %v365 = vadd.f32 %v356, %v363
    %v366 = vrot.slane %v348, 4
    %v367 = vrot.slane %v349, 4
    %s368 = scalar_lea.vmem %s1, 416
    %v369 = vld [vmem:[%s368] sm:$0xff]
    %v370 = vld [vmem:[%s368 + $0x8] sm:$0xff]
    %v371 = vmul.f32 %v369, %v366
    %v372 = vmul.f32 %v370, %v367
    %v373 = vadd.f32 %v364, %v371
    %v374 = vadd.f32 %v365, %v372
    %v375 = vrot.slane %v348, 6
    %v376 = vrot.slane %v349, 6
    %s377 = scalar_lea.vmem %s1, 432
    %v378 = vld [vmem:[%s377] sm:$0xff]
    %v379 = vld [vmem:[%s377 + $0x8] sm:$0xff]
    %v380 = vmul.f32 %v378, %v375
    %v381 = vmul.f32 %v379, %v376
    %v382 = vadd.f32 %v373, %v380
    %v383 = vadd.f32 %v374, %v381
    %384 = vrot.lane.b32.xlu0 %v101, 112
    %v385 = vpop.permute.xlu0 %384
    %386 = vrot.lane.b32.xlu0 %v102, 112
    %v387 = vpop.permute.xlu0 %386
    %vm388 = vcmp.lt.s32.totalorder %v108, 112
    %v389 = vsel %vm388, %v385, %v387
    %v390 = vsel %vm388, %v387, %v385
    %s391 = scalar_lea.vmem %s1, 448
    %v392 = vld [vmem:[%s391] sm:$0xff]
    %v393 = vld [vmem:[%s391 + $0x8] sm:$0xff]
    %v394 = vmul.f32 %v392, %v389
    %v395 = vmul.f32 %v393, %v390
    %v396 = vadd.f32 %v382, %v394
    %v397 = vadd.f32 %v383, %v395
    %v398 = vrot.slane %v389, 2
    %v399 = vrot.slane %v390, 2
    %s400 = scalar_lea.vmem %s1, 464
    %v401 = vld [vmem:[%s400] sm:$0xff]
    %v402 = vld [vmem:[%s400 + $0x8] sm:$0xff]
    %v403 = vmul.f32 %v401, %v398
    %v404 = vmul.f32 %v402, %v399
    %v405 = vadd.f32 %v396, %v403
    %v406 = vadd.f32 %v397, %v404
    %v407 = vrot.slane %v389, 4
    %v408 = vrot.slane %v390, 4
    %s409 = scalar_lea.vmem %s1, 480
    %v410 = vld [vmem:[%s409] sm:$0xff]
    %v411 = vld [vmem:[%s409 + $0x8] sm:$0xff]
    %v412 = vmul.f32 %v410, %v407
    %v413 = vmul.f32 %v411, %v408
    %v414 = vadd.f32 %v405, %v412
    %v415 = vadd.f32 %v406, %v413
    %v416 = vrot.slane %v389, 6
    %v417 = vrot.slane %v390, 6
    %s418 = scalar_lea.vmem %s1, 496
    %v419 = vld [vmem:[%s418] sm:$0xff]
    %v420 = vld [vmem:[%s418 + $0x8] sm:$0xff]
    %v421 = vmul.f32 %v419, %v416
    %v422 = vmul.f32 %v420, %v417
    %v423 = vadd.f32 %v414, %v421
    %v424 = vadd.f32 %v415, %v422
    %425 = vrot.lane.b32.xlu0 %v101, 111
    %v426 = vpop.permute.xlu0 %425
    %427 = vrot.lane.b32.xlu0 %v102, 111
    %v428 = vpop.permute.xlu0 %427
    %vm429 = vcmp.lt.s32.totalorder %v108, 111
    %v430 = vsel %vm429, %v426, %v428
    %v431 = vsel %vm429, %v428, %v426
    %s432 = scalar_lea.vmem %s1, 512
    %v433 = vld [vmem:[%s432] sm:$0xff]
    %v434 = vld [vmem:[%s432 + $0x8] sm:$0xff]
    %v435 = vmul.f32 %v433, %v430
    %v436 = vmul.f32 %v434, %v431
    %v437 = vadd.f32 %v423, %v435
    %v438 = vadd.f32 %v424, %v436
    %v439 = vrot.slane %v430, 2
    %v440 = vrot.slane %v431, 2
    %s441 = scalar_lea.vmem %s1, 528
    %v442 = vld [vmem:[%s441] sm:$0xff]
    %v443 = vld [vmem:[%s441 + $0x8] sm:$0xff]
    %v444 = vmul.f32 %v442, %v439
    %v445 = vmul.f32 %v443, %v440
    %v446 = vadd.f32 %v437, %v444
    %v447 = vadd.f32 %v438, %v445
    %v448 = vrot.slane %v430, 4
    %v449 = vrot.slane %v431, 4
    %s450 = scalar_lea.vmem %s1, 544
    %v451 = vld [vmem:[%s450] sm:$0xff]
    %v452 = vld [vmem:[%s450 + $0x8] sm:$0xff]
    %v453 = vmul.f32 %v451, %v448
    %v454 = vmul.f32 %v452, %v449
    %v455 = vadd.f32 %v446, %v453
    %v456 = vadd.f32 %v447, %v454
    %v457 = vrot.slane %v430, 6
    %v458 = vrot.slane %v431, 6
    %s459 = scalar_lea.vmem %s1, 560
    %v460 = vld [vmem:[%s459] sm:$0xff]
    %v461 = vld [vmem:[%s459 + $0x8] sm:$0xff]
    %v462 = vmul.f32 %v460, %v457
    %v463 = vmul.f32 %v461, %v458
    %v464 = vadd.f32 %v455, %v462
    %v465 = vadd.f32 %v456, %v463
    %v466 = vadd.f32 %v464, %v465
    %467 = vadd.xlane.f32.xlu0 %v466
    %v468 = vpop.xlane.xlu0 %467
    %v469 = vmul.f32 %v464, %v464
    %v470 = vmul.f32 %v465, %v465
    %v471 = vadd.f32 %v469, %v470
    %472 = vadd.xlane.f32.xlu0 %v471
    %v473 = vpop.xlane.xlu0 %472
    %v474 = vmul.f32 %v468, 0.00390625
    %v475 = vmul.f32 %v473, 0.00390625
    %v476 = vmul.f32 %v474, %v474
    %v477 = vsub.f32 %v475, %v476
    %v478 = vmax.f32 %v477, 0.0
    %v479 = vadd.f32 %v478, 1e-05
    %v480 = vrsqrt.pop %v479
    %v481 = vsub.f32 %v464, %v474
    %v482 = vsub.f32 %v465, %v474
    %v483 = vld [vmem:[%s9] sm:$0xff]
    %v484 = vld [vmem:[%s9 + $0x8] sm:$0xff]
    %v485 = vmul.f32 %v480, %v483
    %v486 = vmul.f32 %v480, %v484
    %v487 = vmul.f32 %v481, %v485
    %v488 = vmul.f32 %v482, %v486
    %v489 = vld [vmem:[%s10] sm:$0xff]
    %v490 = vld [vmem:[%s10 + $0x8] sm:$0xff]
    %v491 = vadd.f32 %v487, %v489
    %v492 = vadd.f32 %v488, %v490
    %v493 = vmax.f32 %v491, 0.0
    %v494 = vmax.f32 %v492, 0.0
    %495 = vrot.lane.b32.xlu0 %v493, 17
    %v496 = vpop.permute.xlu0 %495
    %497 = vrot.lane.b32.xlu0 %v494, 17
    %v498 = vpop.permute.xlu0 %497
    %v499 = vsel %vm109, %v496, %v498
    %v500 = vsel %vm109, %v498, %v496
    %v501 = vld [vmem:[%s4] sm:$0xff]
    %v502 = vld [vmem:[%s4 + $0x8] sm:$0xff]
    %v503 = vmul.f32 %v501, %v500
    %v504 = vmul.f32 %v502, %v499
    %v505 = vadd.f32 %v72, %v503
    %v506 = vadd.f32 %v73, %v504
    %v507 = vrot.slane %v500, 2
    %v508 = vrot.slane %v499, 2
    %s509 = scalar_lea.vmem %s4, 16
    %v510 = vld [vmem:[%s509] sm:$0xff]
    %v511 = vld [vmem:[%s509 + $0x8] sm:$0xff]
    %v512 = vmul.f32 %v510, %v507
    %v513 = vmul.f32 %v511, %v508
    %v514 = vadd.f32 %v505, %v512
    %v515 = vadd.f32 %v506, %v513
    %v516 = vrot.slane %v500, 4
    %v517 = vrot.slane %v499, 4
    %s518 = scalar_lea.vmem %s4, 32
    %v519 = vld [vmem:[%s518] sm:$0xff]
    %v520 = vld [vmem:[%s518 + $0x8] sm:$0xff]
    %v521 = vmul.f32 %v519, %v516
    %v522 = vmul.f32 %v520, %v517
    %v523 = vadd.f32 %v514, %v521
    %v524 = vadd.f32 %v515, %v522
    %v525 = vrot.slane %v500, 6
    %v526 = vrot.slane %v499, 6
    %s527 = scalar_lea.vmem %s4, 48
    %v528 = vld [vmem:[%s527] sm:$0xff]
    %v529 = vld [vmem:[%s527 + $0x8] sm:$0xff]
    %v530 = vmul.f32 %v528, %v525
    %v531 = vmul.f32 %v529, %v526
    %v532 = vadd.f32 %v523, %v530
    %v533 = vadd.f32 %v524, %v531
    %534 = vrot.lane.b32.xlu0 %v493, 16
    %v535 = vpop.permute.xlu0 %534
    %536 = vrot.lane.b32.xlu0 %v494, 16
    %v537 = vpop.permute.xlu0 %536
    %v538 = vsel %vm149, %v535, %v537
    %v539 = vsel %vm149, %v537, %v535
    %s540 = scalar_lea.vmem %s4, 64
    %v541 = vld [vmem:[%s540] sm:$0xff]
    %v542 = vld [vmem:[%s540 + $0x8] sm:$0xff]
    %v543 = vmul.f32 %v541, %v539
    %v544 = vmul.f32 %v542, %v538
    %v545 = vadd.f32 %v532, %v543
    %v546 = vadd.f32 %v533, %v544
    %v547 = vrot.slane %v539, 2
    %v548 = vrot.slane %v538, 2
    %s549 = scalar_lea.vmem %s4, 80
    %v550 = vld [vmem:[%s549] sm:$0xff]
    %v551 = vld [vmem:[%s549 + $0x8] sm:$0xff]
    %v552 = vmul.f32 %v550, %v547
    %v553 = vmul.f32 %v551, %v548
    %v554 = vadd.f32 %v545, %v552
    %v555 = vadd.f32 %v546, %v553
    %v556 = vrot.slane %v539, 4
    %v557 = vrot.slane %v538, 4
    %s558 = scalar_lea.vmem %s4, 96
    %v559 = vld [vmem:[%s558] sm:$0xff]
    %v560 = vld [vmem:[%s558 + $0x8] sm:$0xff]
    %v561 = vmul.f32 %v559, %v556
    %v562 = vmul.f32 %v560, %v557
    %v563 = vadd.f32 %v554, %v561
    %v564 = vadd.f32 %v555, %v562
    %v565 = vrot.slane %v539, 6
    %v566 = vrot.slane %v538, 6
    %s567 = scalar_lea.vmem %s4, 112
    %v568 = vld [vmem:[%s567] sm:$0xff]
    %v569 = vld [vmem:[%s567 + $0x8] sm:$0xff]
    %v570 = vmul.f32 %v568, %v565
    %v571 = vmul.f32 %v569, %v566
    %v572 = vadd.f32 %v563, %v570
    %v573 = vadd.f32 %v564, %v571
    %574 = vrot.lane.b32.xlu0 %v493, 15
    %v575 = vpop.permute.xlu0 %574
    %576 = vrot.lane.b32.xlu0 %v494, 15
    %v577 = vpop.permute.xlu0 %576
    %v578 = vsel %vm190, %v575, %v577
    %v579 = vsel %vm190, %v577, %v575
    %s580 = scalar_lea.vmem %s4, 128
    %v581 = vld [vmem:[%s580] sm:$0xff]
    %v582 = vld [vmem:[%s580 + $0x8] sm:$0xff]
    %v583 = vmul.f32 %v581, %v579
    %v584 = vmul.f32 %v582, %v578
    %v585 = vadd.f32 %v572, %v583
    %v586 = vadd.f32 %v573, %v584
    %v587 = vrot.slane %v579, 2
    %v588 = vrot.slane %v578, 2
    %s589 = scalar_lea.vmem %s4, 144
    %v590 = vld [vmem:[%s589] sm:$0xff]
    %v591 = vld [vmem:[%s589 + $0x8] sm:$0xff]
    %v592 = vmul.f32 %v590, %v587
    %v593 = vmul.f32 %v591, %v588
    %v594 = vadd.f32 %v585, %v592
    %v595 = vadd.f32 %v586, %v593
    %v596 = vrot.slane %v579, 4
    %v597 = vrot.slane %v578, 4
    %s598 = scalar_lea.vmem %s4, 160
    %v599 = vld [vmem:[%s598] sm:$0xff]
    %v600 = vld [vmem:[%s598 + $0x8] sm:$0xff]
    %v601 = vmul.f32 %v599, %v596
    %v602 = vmul.f32 %v600, %v597
    %v603 = vadd.f32 %v594, %v601
    %v604 = vadd.f32 %v595, %v602
    %v605 = vrot.slane %v579, 6
    %v606 = vrot.slane %v578, 6
    %s607 = scalar_lea.vmem %s4, 176
    %v608 = vld [vmem:[%s607] sm:$0xff]
    %v609 = vld [vmem:[%s607 + $0x8] sm:$0xff]
    %v610 = vmul.f32 %v608, %v605
    %v611 = vmul.f32 %v609, %v606
    %v612 = vadd.f32 %v603, %v610
    %v613 = vadd.f32 %v604, %v611
    %614 = vrot.lane.b32.xlu0 %v493, 1
    %v615 = vpop.permute.xlu0 %614
    %616 = vrot.lane.b32.xlu0 %v494, 1
    %v617 = vpop.permute.xlu0 %616
    %v618 = vsel %vm231, %v615, %v617
    %v619 = vsel %vm231, %v617, %v615
    %s620 = scalar_lea.vmem %s4, 192
    %v621 = vld [vmem:[%s620] sm:$0xff]
    %v622 = vld [vmem:[%s620 + $0x8] sm:$0xff]
    %v623 = vmul.f32 %v621, %v619
    %v624 = vmul.f32 %v622, %v618
    %v625 = vadd.f32 %v612, %v623
    %v626 = vadd.f32 %v613, %v624
    %v627 = vrot.slane %v619, 2
    %v628 = vrot.slane %v618, 2
    %s629 = scalar_lea.vmem %s4, 208
    %v630 = vld [vmem:[%s629] sm:$0xff]
    %v631 = vld [vmem:[%s629 + $0x8] sm:$0xff]
    %v632 = vmul.f32 %v630, %v627
    %v633 = vmul.f32 %v631, %v628
    %v634 = vadd.f32 %v625, %v632
    %v635 = vadd.f32 %v626, %v633
    %v636 = vrot.slane %v619, 4
    %v637 = vrot.slane %v618, 4
    %s638 = scalar_lea.vmem %s4, 224
    %v639 = vld [vmem:[%s638] sm:$0xff]
    %v640 = vld [vmem:[%s638 + $0x8] sm:$0xff]
    %v641 = vmul.f32 %v639, %v636
    %v642 = vmul.f32 %v640, %v637
    %v643 = vadd.f32 %v634, %v641
    %v644 = vadd.f32 %v635, %v642
    %v645 = vrot.slane %v619, 6
    %v646 = vrot.slane %v618, 6
    %s647 = scalar_lea.vmem %s4, 240
    %v648 = vld [vmem:[%s647] sm:$0xff]
    %v649 = vld [vmem:[%s647 + $0x8] sm:$0xff]
    %v650 = vmul.f32 %v648, %v645
    %v651 = vmul.f32 %v649, %v646
    %v652 = vadd.f32 %v643, %v650
    %v653 = vadd.f32 %v644, %v651
    %s654 = scalar_lea.vmem %s4, 256
    %v655 = vld [vmem:[%s654] sm:$0xff]
    %v656 = vld [vmem:[%s654 + $0x8] sm:$0xff]
    %v657 = vmul.f32 %v655, %v493
    %v658 = vmul.f32 %v656, %v494
    %v659 = vadd.f32 %v652, %v657
    %v660 = vadd.f32 %v653, %v658
    %v661 = vrot.slane %v493, 2
    %v662 = vrot.slane %v494, 2
    %s663 = scalar_lea.vmem %s4, 272
    %v664 = vld [vmem:[%s663] sm:$0xff]
    %v665 = vld [vmem:[%s663 + $0x8] sm:$0xff]
    %v666 = vmul.f32 %v664, %v661
    %v667 = vmul.f32 %v665, %v662
    %v668 = vadd.f32 %v659, %v666
    %v669 = vadd.f32 %v660, %v667
    %v670 = vrot.slane %v493, 4
    %v671 = vrot.slane %v494, 4
    %s672 = scalar_lea.vmem %s4, 288
    %v673 = vld [vmem:[%s672] sm:$0xff]
    %v674 = vld [vmem:[%s672 + $0x8] sm:$0xff]
    %v675 = vmul.f32 %v673, %v670
    %v676 = vmul.f32 %v674, %v671
    %v677 = vadd.f32 %v668, %v675
    %v678 = vadd.f32 %v669, %v676
    %v679 = vrot.slane %v493, 6
    %v680 = vrot.slane %v494, 6
    %s681 = scalar_lea.vmem %s4, 304
    %v682 = vld [vmem:[%s681] sm:$0xff]
    %v683 = vld [vmem:[%s681 + $0x8] sm:$0xff]
    %v684 = vmul.f32 %v682, %v679
    %v685 = vmul.f32 %v683, %v680
    %v686 = vadd.f32 %v677, %v684
    %v687 = vadd.f32 %v678, %v685
    %688 = vrot.lane.b32.xlu0 %v493, 127
    %v689 = vpop.permute.xlu0 %688
    %690 = vrot.lane.b32.xlu0 %v494, 127
    %v691 = vpop.permute.xlu0 %690
    %v692 = vsel %vm306, %v689, %v691
    %v693 = vsel %vm306, %v691, %v689
    %s694 = scalar_lea.vmem %s4, 320
    %v695 = vld [vmem:[%s694] sm:$0xff]
    %v696 = vld [vmem:[%s694 + $0x8] sm:$0xff]
    %v697 = vmul.f32 %v695, %v692
    %v698 = vmul.f32 %v696, %v693
    %v699 = vadd.f32 %v686, %v697
    %v700 = vadd.f32 %v687, %v698
    %v701 = vrot.slane %v692, 2
    %v702 = vrot.slane %v693, 2
    %s703 = scalar_lea.vmem %s4, 336
    %v704 = vld [vmem:[%s703] sm:$0xff]
    %v705 = vld [vmem:[%s703 + $0x8] sm:$0xff]
    %v706 = vmul.f32 %v704, %v701
    %v707 = vmul.f32 %v705, %v702
    %v708 = vadd.f32 %v699, %v706
    %v709 = vadd.f32 %v700, %v707
    %v710 = vrot.slane %v692, 4
    %v711 = vrot.slane %v693, 4
    %s712 = scalar_lea.vmem %s4, 352
    %v713 = vld [vmem:[%s712] sm:$0xff]
    %v714 = vld [vmem:[%s712 + $0x8] sm:$0xff]
    %v715 = vmul.f32 %v713, %v710
    %v716 = vmul.f32 %v714, %v711
    %v717 = vadd.f32 %v708, %v715
    %v718 = vadd.f32 %v709, %v716
    %v719 = vrot.slane %v692, 6
    %v720 = vrot.slane %v693, 6
    %s721 = scalar_lea.vmem %s4, 368
    %v722 = vld [vmem:[%s721] sm:$0xff]
    %v723 = vld [vmem:[%s721 + $0x8] sm:$0xff]
    %v724 = vmul.f32 %v722, %v719
    %v725 = vmul.f32 %v723, %v720
    %v726 = vadd.f32 %v717, %v724
    %v727 = vadd.f32 %v718, %v725
    %728 = vrot.lane.b32.xlu0 %v493, 113
    %v729 = vpop.permute.xlu0 %728
    %730 = vrot.lane.b32.xlu0 %v494, 113
    %v731 = vpop.permute.xlu0 %730
    %v732 = vsel %vm347, %v729, %v731
    %v733 = vsel %vm347, %v731, %v729
    %s734 = scalar_lea.vmem %s4, 384
    %v735 = vld [vmem:[%s734] sm:$0xff]
    %v736 = vld [vmem:[%s734 + $0x8] sm:$0xff]
    %v737 = vmul.f32 %v735, %v732
    %v738 = vmul.f32 %v736, %v733
    %v739 = vadd.f32 %v726, %v737
    %v740 = vadd.f32 %v727, %v738
    %v741 = vrot.slane %v732, 2
    %v742 = vrot.slane %v733, 2
    %s743 = scalar_lea.vmem %s4, 400
    %v744 = vld [vmem:[%s743] sm:$0xff]
    %v745 = vld [vmem:[%s743 + $0x8] sm:$0xff]
    %v746 = vmul.f32 %v744, %v741
    %v747 = vmul.f32 %v745, %v742
    %v748 = vadd.f32 %v739, %v746
    %v749 = vadd.f32 %v740, %v747
    %v750 = vrot.slane %v732, 4
    %v751 = vrot.slane %v733, 4
    %s752 = scalar_lea.vmem %s4, 416
    %v753 = vld [vmem:[%s752] sm:$0xff]
    %v754 = vld [vmem:[%s752 + $0x8] sm:$0xff]
    %v755 = vmul.f32 %v753, %v750
    %v756 = vmul.f32 %v754, %v751
    %v757 = vadd.f32 %v748, %v755
    %v758 = vadd.f32 %v749, %v756
    %v759 = vrot.slane %v732, 6
    %v760 = vrot.slane %v733, 6
    %s761 = scalar_lea.vmem %s4, 432
    %v762 = vld [vmem:[%s761] sm:$0xff]
    %v763 = vld [vmem:[%s761 + $0x8] sm:$0xff]
    %v764 = vmul.f32 %v762, %v759
    %v765 = vmul.f32 %v763, %v760
    %v766 = vadd.f32 %v757, %v764
    %v767 = vadd.f32 %v758, %v765
    %768 = vrot.lane.b32.xlu0 %v493, 112
    %v769 = vpop.permute.xlu0 %768
    %770 = vrot.lane.b32.xlu0 %v494, 112
    %v771 = vpop.permute.xlu0 %770
    %v772 = vsel %vm388, %v769, %v771
    %v773 = vsel %vm388, %v771, %v769
    %s774 = scalar_lea.vmem %s4, 448
    %v775 = vld [vmem:[%s774] sm:$0xff]
    %v776 = vld [vmem:[%s774 + $0x8] sm:$0xff]
    %v777 = vmul.f32 %v775, %v772
    %v778 = vmul.f32 %v776, %v773
    %v779 = vadd.f32 %v766, %v777
    %v780 = vadd.f32 %v767, %v778
    %v781 = vrot.slane %v772, 2
    %v782 = vrot.slane %v773, 2
    %s783 = scalar_lea.vmem %s4, 464
    %v784 = vld [vmem:[%s783] sm:$0xff]
    %v785 = vld [vmem:[%s783 + $0x8] sm:$0xff]
    %v786 = vmul.f32 %v784, %v781
    %v787 = vmul.f32 %v785, %v782
    %v788 = vadd.f32 %v779, %v786
    %v789 = vadd.f32 %v780, %v787
    %v790 = vrot.slane %v772, 4
    %v791 = vrot.slane %v773, 4
    %s792 = scalar_lea.vmem %s4, 480
    %v793 = vld [vmem:[%s792] sm:$0xff]
    %v794 = vld [vmem:[%s792 + $0x8] sm:$0xff]
    %v795 = vmul.f32 %v793, %v790
    %v796 = vmul.f32 %v794, %v791
    %v797 = vadd.f32 %v788, %v795
    %v798 = vadd.f32 %v789, %v796
    %v799 = vrot.slane %v772, 6
    %v800 = vrot.slane %v773, 6
    %s801 = scalar_lea.vmem %s4, 496
    %v802 = vld [vmem:[%s801] sm:$0xff]
    %v803 = vld [vmem:[%s801 + $0x8] sm:$0xff]
    %v804 = vmul.f32 %v802, %v799
    %v805 = vmul.f32 %v803, %v800
    %v806 = vadd.f32 %v797, %v804
    %v807 = vadd.f32 %v798, %v805
    %808 = vrot.lane.b32.xlu0 %v493, 111
    %v809 = vpop.permute.xlu0 %808
    %810 = vrot.lane.b32.xlu0 %v494, 111
    %v811 = vpop.permute.xlu0 %810
    %v812 = vsel %vm429, %v809, %v811
    %v813 = vsel %vm429, %v811, %v809
    %s814 = scalar_lea.vmem %s4, 512
    %v815 = vld [vmem:[%s814] sm:$0xff]
    %v816 = vld [vmem:[%s814 + $0x8] sm:$0xff]
    %v817 = vmul.f32 %v815, %v812
    %v818 = vmul.f32 %v816, %v813
    %v819 = vadd.f32 %v806, %v817
    %v820 = vadd.f32 %v807, %v818
    %v821 = vrot.slane %v812, 2
    %v822 = vrot.slane %v813, 2
    %s823 = scalar_lea.vmem %s4, 528
    %v824 = vld [vmem:[%s823] sm:$0xff]
    %v825 = vld [vmem:[%s823 + $0x8] sm:$0xff]
    %v826 = vmul.f32 %v824, %v821
    %v827 = vmul.f32 %v825, %v822
    %v828 = vadd.f32 %v819, %v826
    %v829 = vadd.f32 %v820, %v827
    %v830 = vrot.slane %v812, 4
    %v831 = vrot.slane %v813, 4
    %s832 = scalar_lea.vmem %s4, 544
    %v833 = vld [vmem:[%s832] sm:$0xff]
    %v834 = vld [vmem:[%s832 + $0x8] sm:$0xff]
    %v835 = vmul.f32 %v833, %v830
    %v836 = vmul.f32 %v834, %v831
    %v837 = vadd.f32 %v828, %v835
    %v838 = vadd.f32 %v829, %v836
    %v839 = vrot.slane %v812, 6
    %v840 = vrot.slane %v813, 6
    %s841 = scalar_lea.vmem %s4, 560
    %v842 = vld [vmem:[%s841] sm:$0xff]
    %v843 = vld [vmem:[%s841 + $0x8] sm:$0xff]
    %v844 = vmul.f32 %v842, %v839
    %v845 = vmul.f32 %v843, %v840
    %v846 = vadd.f32 %v837, %v844
    %v847 = vadd.f32 %v838, %v845
    %v848 = vadd.f32 %v846, %v847
    %849 = vadd.xlane.f32.xlu0 %v848
    %v850 = vpop.xlane.xlu0 %849
    %v851 = vmul.f32 %v846, %v846
    %v852 = vmul.f32 %v847, %v847
    %v853 = vadd.f32 %v851, %v852
    %854 = vadd.xlane.f32.xlu0 %v853
    %v855 = vpop.xlane.xlu0 %854
    %v856 = vmul.f32 %v850, 0.00390625
    %v857 = vmul.f32 %v855, 0.00390625
    %v858 = vmul.f32 %v856, %v856
    %v859 = vsub.f32 %v857, %v858
    %v860 = vmax.f32 %v859, 0.0
    %v861 = vadd.f32 %v860, 1e-05
    %v862 = vrsqrt.pop %v861
    %v863 = vsub.f32 %v846, %v856
    %v864 = vsub.f32 %v847, %v856
    %v865 = vld [vmem:[%s11] sm:$0xff]
    %v866 = vld [vmem:[%s11 + $0x8] sm:$0xff]
    %v867 = vmul.f32 %v862, %v865
    %v868 = vmul.f32 %v862, %v866
    %v869 = vmul.f32 %v863, %v867
    %v870 = vmul.f32 %v864, %v868
    %v871 = vld [vmem:[%s12] sm:$0xff]
    %v872 = vld [vmem:[%s12 + $0x8] sm:$0xff]
    %v873 = vadd.f32 %v869, %v871
    %v874 = vadd.f32 %v870, %v872
    %s875 = sadd.f32 %s56, 0.125
    %v876 = vstv %s875
    %v877 = vmul.f32 %v876, %v59
    %v878 = vmul.f32 %v876, %v60
    %v879 = vadd.f32 %v57, %v877
    %v880 = vadd.f32 %v58, %v878
    %v881 = vmul.f32 %v876, %v68
    %v882 = vmul.f32 %v876, %v69
    %v883 = vadd.f32 %v66, %v881
    %v884 = vadd.f32 %v67, %v882
    %v885 = vmul.f32 %v873, 0.125
    %v886 = vmul.f32 %v874, 0.125
    %v887 = vadd.f32 %v52, %v885
    %v888 = vadd.f32 %v53, %v886
    %v889 = vadd.f32 %v887, %v888
    %890 = vadd.xlane.f32.xlu0 %v889
    %v891 = vpop.xlane.xlu0 %890
    %v892 = vmul.f32 %v887, %v887
    %v893 = vmul.f32 %v888, %v888
    %v894 = vadd.f32 %v892, %v893
    %895 = vadd.xlane.f32.xlu0 %v894
    %v896 = vpop.xlane.xlu0 %895
    %v897 = vmul.f32 %v891, 0.00390625
    %v898 = vmul.f32 %v896, 0.00390625
    %v899 = vmul.f32 %v897, %v897
    %v900 = vsub.f32 %v898, %v899
    %v901 = vmax.f32 %v900, 0.0
    %v902 = vadd.f32 %v901, 1e-05
    %v903 = vrsqrt.pop %v902
    %v904 = vsub.f32 %v887, %v897
    %v905 = vsub.f32 %v888, %v897
    %v906 = vmul.f32 %v903, %v91
    %v907 = vmul.f32 %v903, %v92
    %v908 = vmul.f32 %v904, %v906
    %v909 = vmul.f32 %v905, %v907
    %v910 = vadd.f32 %v908, %v97
    %v911 = vadd.f32 %v909, %v98
    %v912 = vmax.f32 %v910, 0.0
    %v913 = vmax.f32 %v911, 0.0
    %914 = vrot.lane.b32.xlu0 %v912, 17
    %v915 = vpop.permute.xlu0 %914
    %916 = vrot.lane.b32.xlu0 %v913, 17
    %v917 = vpop.permute.xlu0 %916
    %v918 = vsel %vm109, %v915, %v917
    %v919 = vsel %vm109, %v917, %v915
    %v920 = vmul.f32 %v112, %v919
    %v921 = vmul.f32 %v113, %v918
    %v922 = vadd.f32 %v879, %v920
    %v923 = vadd.f32 %v880, %v921
    %v924 = vrot.slane %v919, 2
    %v925 = vrot.slane %v918, 2
    %v926 = vmul.f32 %v121, %v924
    %v927 = vmul.f32 %v122, %v925
    %v928 = vadd.f32 %v922, %v926
    %v929 = vadd.f32 %v923, %v927
    %v930 = vrot.slane %v919, 4
    %v931 = vrot.slane %v918, 4
    %v932 = vmul.f32 %v130, %v930
    %v933 = vmul.f32 %v131, %v931
    %v934 = vadd.f32 %v928, %v932
    %v935 = vadd.f32 %v929, %v933
    %v936 = vrot.slane %v919, 6
    %v937 = vrot.slane %v918, 6
    %v938 = vmul.f32 %v139, %v936
    %v939 = vmul.f32 %v140, %v937
    %v940 = vadd.f32 %v934, %v938
    %v941 = vadd.f32 %v935, %v939
    %942 = vrot.lane.b32.xlu0 %v912, 16
    %v943 = vpop.permute.xlu0 %942
    %944 = vrot.lane.b32.xlu0 %v913, 16
    %v945 = vpop.permute.xlu0 %944
    %v946 = vsel %vm149, %v943, %v945
    %v947 = vsel %vm149, %v945, %v943
    %v948 = vmul.f32 %v153, %v947
    %v949 = vmul.f32 %v154, %v946
    %v950 = vadd.f32 %v940, %v948
    %v951 = vadd.f32 %v941, %v949
    %v952 = vrot.slane %v947, 2
    %v953 = vrot.slane %v946, 2
    %v954 = vmul.f32 %v162, %v952
    %v955 = vmul.f32 %v163, %v953
    %v956 = vadd.f32 %v950, %v954
    %v957 = vadd.f32 %v951, %v955
    %v958 = vrot.slane %v947, 4
    %v959 = vrot.slane %v946, 4
    %v960 = vmul.f32 %v171, %v958
    %v961 = vmul.f32 %v172, %v959
    %v962 = vadd.f32 %v956, %v960
    %v963 = vadd.f32 %v957, %v961
    %v964 = vrot.slane %v947, 6
    %v965 = vrot.slane %v946, 6
    %v966 = vmul.f32 %v180, %v964
    %v967 = vmul.f32 %v181, %v965
    %v968 = vadd.f32 %v962, %v966
    %v969 = vadd.f32 %v963, %v967
    %970 = vrot.lane.b32.xlu0 %v912, 15
    %v971 = vpop.permute.xlu0 %970
    %972 = vrot.lane.b32.xlu0 %v913, 15
    %v973 = vpop.permute.xlu0 %972
    %v974 = vsel %vm190, %v971, %v973
    %v975 = vsel %vm190, %v973, %v971
    %v976 = vmul.f32 %v194, %v975
    %v977 = vmul.f32 %v195, %v974
    %v978 = vadd.f32 %v968, %v976
    %v979 = vadd.f32 %v969, %v977
    %v980 = vrot.slane %v975, 2
    %v981 = vrot.slane %v974, 2
    %v982 = vmul.f32 %v203, %v980
    %v983 = vmul.f32 %v204, %v981
    %v984 = vadd.f32 %v978, %v982
    %v985 = vadd.f32 %v979, %v983
    %v986 = vrot.slane %v975, 4
    %v987 = vrot.slane %v974, 4
    %v988 = vmul.f32 %v212, %v986
    %v989 = vmul.f32 %v213, %v987
    %v990 = vadd.f32 %v984, %v988
    %v991 = vadd.f32 %v985, %v989
    %v992 = vrot.slane %v975, 6
    %v993 = vrot.slane %v974, 6
    %v994 = vmul.f32 %v221, %v992
    %v995 = vmul.f32 %v222, %v993
    %v996 = vadd.f32 %v990, %v994
    %v997 = vadd.f32 %v991, %v995
    %998 = vrot.lane.b32.xlu0 %v912, 1
    %v999 = vpop.permute.xlu0 %998
    %1000 = vrot.lane.b32.xlu0 %v913, 1
    %v1001 = vpop.permute.xlu0 %1000
    %v1002 = vsel %vm231, %v999, %v1001
    %v1003 = vsel %vm231, %v1001, %v999
    %v1004 = vmul.f32 %v235, %v1003
    %v1005 = vmul.f32 %v236, %v1002
    %v1006 = vadd.f32 %v996, %v1004
    %v1007 = vadd.f32 %v997, %v1005
    %v1008 = vrot.slane %v1003, 2
    %v1009 = vrot.slane %v1002, 2
    %v1010 = vmul.f32 %v244, %v1008
    %v1011 = vmul.f32 %v245, %v1009
    %v1012 = vadd.f32 %v1006, %v1010
    %v1013 = vadd.f32 %v1007, %v1011
    %v1014 = vrot.slane %v1003, 4
    %v1015 = vrot.slane %v1002, 4
    %v1016 = vmul.f32 %v253, %v1014
    %v1017 = vmul.f32 %v254, %v1015
    %v1018 = vadd.f32 %v1012, %v1016
    %v1019 = vadd.f32 %v1013, %v1017
    %v1020 = vrot.slane %v1003, 6
    %v1021 = vrot.slane %v1002, 6
    %v1022 = vmul.f32 %v262, %v1020
    %v1023 = vmul.f32 %v263, %v1021
    %v1024 = vadd.f32 %v1018, %v1022
    %v1025 = vadd.f32 %v1019, %v1023
    %v1026 = vmul.f32 %v269, %v912
    %v1027 = vmul.f32 %v270, %v913
    %v1028 = vadd.f32 %v1024, %v1026
    %v1029 = vadd.f32 %v1025, %v1027
    %v1030 = vrot.slane %v912, 2
    %v1031 = vrot.slane %v913, 2
    %v1032 = vmul.f32 %v278, %v1030
    %v1033 = vmul.f32 %v279, %v1031
    %v1034 = vadd.f32 %v1028, %v1032
    %v1035 = vadd.f32 %v1029, %v1033
    %v1036 = vrot.slane %v912, 4
    %v1037 = vrot.slane %v913, 4
    %v1038 = vmul.f32 %v287, %v1036
    %v1039 = vmul.f32 %v288, %v1037
    %v1040 = vadd.f32 %v1034, %v1038
    %v1041 = vadd.f32 %v1035, %v1039
    %v1042 = vrot.slane %v912, 6
    %v1043 = vrot.slane %v913, 6
    %v1044 = vmul.f32 %v296, %v1042
    %v1045 = vmul.f32 %v297, %v1043
    %v1046 = vadd.f32 %v1040, %v1044
    %v1047 = vadd.f32 %v1041, %v1045
    %1048 = vrot.lane.b32.xlu0 %v912, 127
    %v1049 = vpop.permute.xlu0 %1048
    %1050 = vrot.lane.b32.xlu0 %v913, 127
    %v1051 = vpop.permute.xlu0 %1050
    %v1052 = vsel %vm306, %v1049, %v1051
    %v1053 = vsel %vm306, %v1051, %v1049
    %v1054 = vmul.f32 %v310, %v1052
    %v1055 = vmul.f32 %v311, %v1053
    %v1056 = vadd.f32 %v1046, %v1054
    %v1057 = vadd.f32 %v1047, %v1055
    %v1058 = vrot.slane %v1052, 2
    %v1059 = vrot.slane %v1053, 2
    %v1060 = vmul.f32 %v319, %v1058
    %v1061 = vmul.f32 %v320, %v1059
    %v1062 = vadd.f32 %v1056, %v1060
    %v1063 = vadd.f32 %v1057, %v1061
    %v1064 = vrot.slane %v1052, 4
    %v1065 = vrot.slane %v1053, 4
    %v1066 = vmul.f32 %v328, %v1064
    %v1067 = vmul.f32 %v329, %v1065
    %v1068 = vadd.f32 %v1062, %v1066
    %v1069 = vadd.f32 %v1063, %v1067
    %v1070 = vrot.slane %v1052, 6
    %v1071 = vrot.slane %v1053, 6
    %v1072 = vmul.f32 %v337, %v1070
    %v1073 = vmul.f32 %v338, %v1071
    %v1074 = vadd.f32 %v1068, %v1072
    %v1075 = vadd.f32 %v1069, %v1073
    %1076 = vrot.lane.b32.xlu0 %v912, 113
    %v1077 = vpop.permute.xlu0 %1076
    %1078 = vrot.lane.b32.xlu0 %v913, 113
    %v1079 = vpop.permute.xlu0 %1078
    %v1080 = vsel %vm347, %v1077, %v1079
    %v1081 = vsel %vm347, %v1079, %v1077
    %v1082 = vmul.f32 %v351, %v1080
    %v1083 = vmul.f32 %v352, %v1081
    %v1084 = vadd.f32 %v1074, %v1082
    %v1085 = vadd.f32 %v1075, %v1083
    %v1086 = vrot.slane %v1080, 2
    %v1087 = vrot.slane %v1081, 2
    %v1088 = vmul.f32 %v360, %v1086
    %v1089 = vmul.f32 %v361, %v1087
    %v1090 = vadd.f32 %v1084, %v1088
    %v1091 = vadd.f32 %v1085, %v1089
    %v1092 = vrot.slane %v1080, 4
    %v1093 = vrot.slane %v1081, 4
    %v1094 = vmul.f32 %v369, %v1092
    %v1095 = vmul.f32 %v370, %v1093
    %v1096 = vadd.f32 %v1090, %v1094
    %v1097 = vadd.f32 %v1091, %v1095
    %v1098 = vrot.slane %v1080, 6
    %v1099 = vrot.slane %v1081, 6
    %v1100 = vmul.f32 %v378, %v1098
    %v1101 = vmul.f32 %v379, %v1099
    %v1102 = vadd.f32 %v1096, %v1100
    %v1103 = vadd.f32 %v1097, %v1101
    %1104 = vrot.lane.b32.xlu0 %v912, 112
    %v1105 = vpop.permute.xlu0 %1104
    %1106 = vrot.lane.b32.xlu0 %v913, 112
    %v1107 = vpop.permute.xlu0 %1106
    %v1108 = vsel %vm388, %v1105, %v1107
    %v1109 = vsel %vm388, %v1107, %v1105
    %v1110 = vmul.f32 %v392, %v1108
    %v1111 = vmul.f32 %v393, %v1109
    %v1112 = vadd.f32 %v1102, %v1110
    %v1113 = vadd.f32 %v1103, %v1111
    %v1114 = vrot.slane %v1108, 2
    %v1115 = vrot.slane %v1109, 2
    %v1116 = vmul.f32 %v401, %v1114
    %v1117 = vmul.f32 %v402, %v1115
    %v1118 = vadd.f32 %v1112, %v1116
    %v1119 = vadd.f32 %v1113, %v1117
    %v1120 = vrot.slane %v1108, 4
    %v1121 = vrot.slane %v1109, 4
    %v1122 = vmul.f32 %v410, %v1120
    %v1123 = vmul.f32 %v411, %v1121
    %v1124 = vadd.f32 %v1118, %v1122
    %v1125 = vadd.f32 %v1119, %v1123
    %v1126 = vrot.slane %v1108, 6
    %v1127 = vrot.slane %v1109, 6
    %v1128 = vmul.f32 %v419, %v1126
    %v1129 = vmul.f32 %v420, %v1127
    %v1130 = vadd.f32 %v1124, %v1128
    %v1131 = vadd.f32 %v1125, %v1129
    %1132 = vrot.lane.b32.xlu0 %v912, 111
    %v1133 = vpop.permute.xlu0 %1132
    %1134 = vrot.lane.b32.xlu0 %v913, 111
    %v1135 = vpop.permute.xlu0 %1134
    %v1136 = vsel %vm429, %v1133, %v1135
    %v1137 = vsel %vm429, %v1135, %v1133
    %v1138 = vmul.f32 %v433, %v1136
    %v1139 = vmul.f32 %v434, %v1137
    %v1140 = vadd.f32 %v1130, %v1138
    %v1141 = vadd.f32 %v1131, %v1139
    %v1142 = vrot.slane %v1136, 2
    %v1143 = vrot.slane %v1137, 2
    %v1144 = vmul.f32 %v442, %v1142
    %v1145 = vmul.f32 %v443, %v1143
    %v1146 = vadd.f32 %v1140, %v1144
    %v1147 = vadd.f32 %v1141, %v1145
    %v1148 = vrot.slane %v1136, 4
    %v1149 = vrot.slane %v1137, 4
    %v1150 = vmul.f32 %v451, %v1148
    %v1151 = vmul.f32 %v452, %v1149
    %v1152 = vadd.f32 %v1146, %v1150
    %v1153 = vadd.f32 %v1147, %v1151
    %v1154 = vrot.slane %v1136, 6
    %v1155 = vrot.slane %v1137, 6
    %v1156 = vmul.f32 %v460, %v1154
    %v1157 = vmul.f32 %v461, %v1155
    %v1158 = vadd.f32 %v1152, %v1156
    %v1159 = vadd.f32 %v1153, %v1157
    %v1160 = vadd.f32 %v1158, %v1159
    %1161 = vadd.xlane.f32.xlu0 %v1160
    %v1162 = vpop.xlane.xlu0 %1161
    %v1163 = vmul.f32 %v1158, %v1158
    %v1164 = vmul.f32 %v1159, %v1159
    %v1165 = vadd.f32 %v1163, %v1164
    %1166 = vadd.xlane.f32.xlu0 %v1165
    %v1167 = vpop.xlane.xlu0 %1166
    %v1168 = vmul.f32 %v1162, 0.00390625
    %v1169 = vmul.f32 %v1167, 0.00390625
    %v1170 = vmul.f32 %v1168, %v1168
    %v1171 = vsub.f32 %v1169, %v1170
    %v1172 = vmax.f32 %v1171, 0.0
    %v1173 = vadd.f32 %v1172, 1e-05
    %v1174 = vrsqrt.pop %v1173
    %v1175 = vsub.f32 %v1158, %v1168
    %v1176 = vsub.f32 %v1159, %v1168
    %v1177 = vmul.f32 %v1174, %v483
    %v1178 = vmul.f32 %v1174, %v484
    %v1179 = vmul.f32 %v1175, %v1177
    %v1180 = vmul.f32 %v1176, %v1178
    %v1181 = vadd.f32 %v1179, %v489
    %v1182 = vadd.f32 %v1180, %v490
    %v1183 = vmax.f32 %v1181, 0.0
    %v1184 = vmax.f32 %v1182, 0.0
    %1185 = vrot.lane.b32.xlu0 %v1183, 17
    %v1186 = vpop.permute.xlu0 %1185
    %1187 = vrot.lane.b32.xlu0 %v1184, 17
    %v1188 = vpop.permute.xlu0 %1187
    %v1189 = vsel %vm109, %v1186, %v1188
    %v1190 = vsel %vm109, %v1188, %v1186
    %v1191 = vmul.f32 %v501, %v1190
    %v1192 = vmul.f32 %v502, %v1189
    %v1193 = vadd.f32 %v883, %v1191
    %v1194 = vadd.f32 %v884, %v1192
    %v1195 = vrot.slane %v1190, 2
    %v1196 = vrot.slane %v1189, 2
    %v1197 = vmul.f32 %v510, %v1195
    %v1198 = vmul.f32 %v511, %v1196
    %v1199 = vadd.f32 %v1193, %v1197
    %v1200 = vadd.f32 %v1194, %v1198
    %v1201 = vrot.slane %v1190, 4
    %v1202 = vrot.slane %v1189, 4
    %v1203 = vmul.f32 %v519, %v1201
    %v1204 = vmul.f32 %v520, %v1202
    %v1205 = vadd.f32 %v1199, %v1203
    %v1206 = vadd.f32 %v1200, %v1204
    %v1207 = vrot.slane %v1190, 6
    %v1208 = vrot.slane %v1189, 6
    %v1209 = vmul.f32 %v528, %v1207
    %v1210 = vmul.f32 %v529, %v1208
    %v1211 = vadd.f32 %v1205, %v1209
    %v1212 = vadd.f32 %v1206, %v1210
    %1213 = vrot.lane.b32.xlu0 %v1183, 16
    %v1214 = vpop.permute.xlu0 %1213
    %1215 = vrot.lane.b32.xlu0 %v1184, 16
    %v1216 = vpop.permute.xlu0 %1215
    %v1217 = vsel %vm149, %v1214, %v1216
    %v1218 = vsel %vm149, %v1216, %v1214
    %v1219 = vmul.f32 %v541, %v1218
    %v1220 = vmul.f32 %v542, %v1217
    %v1221 = vadd.f32 %v1211, %v1219
    %v1222 = vadd.f32 %v1212, %v1220
    %v1223 = vrot.slane %v1218, 2
    %v1224 = vrot.slane %v1217, 2
    %v1225 = vmul.f32 %v550, %v1223
    %v1226 = vmul.f32 %v551, %v1224
    %v1227 = vadd.f32 %v1221, %v1225
    %v1228 = vadd.f32 %v1222, %v1226
    %v1229 = vrot.slane %v1218, 4
    %v1230 = vrot.slane %v1217, 4
    %v1231 = vmul.f32 %v559, %v1229
    %v1232 = vmul.f32 %v560, %v1230
    %v1233 = vadd.f32 %v1227, %v1231
    %v1234 = vadd.f32 %v1228, %v1232
    %v1235 = vrot.slane %v1218, 6
    %v1236 = vrot.slane %v1217, 6
    %v1237 = vmul.f32 %v568, %v1235
    %v1238 = vmul.f32 %v569, %v1236
    %v1239 = vadd.f32 %v1233, %v1237
    %v1240 = vadd.f32 %v1234, %v1238
    %1241 = vrot.lane.b32.xlu0 %v1183, 15
    %v1242 = vpop.permute.xlu0 %1241
    %1243 = vrot.lane.b32.xlu0 %v1184, 15
    %v1244 = vpop.permute.xlu0 %1243
    %v1245 = vsel %vm190, %v1242, %v1244
    %v1246 = vsel %vm190, %v1244, %v1242
    %v1247 = vmul.f32 %v581, %v1246
    %v1248 = vmul.f32 %v582, %v1245
    %v1249 = vadd.f32 %v1239, %v1247
    %v1250 = vadd.f32 %v1240, %v1248
    %v1251 = vrot.slane %v1246, 2
    %v1252 = vrot.slane %v1245, 2
    %v1253 = vmul.f32 %v590, %v1251
    %v1254 = vmul.f32 %v591, %v1252
    %v1255 = vadd.f32 %v1249, %v1253
    %v1256 = vadd.f32 %v1250, %v1254
    %v1257 = vrot.slane %v1246, 4
    %v1258 = vrot.slane %v1245, 4
    %v1259 = vmul.f32 %v599, %v1257
    %v1260 = vmul.f32 %v600, %v1258
    %v1261 = vadd.f32 %v1255, %v1259
    %v1262 = vadd.f32 %v1256, %v1260
    %v1263 = vrot.slane %v1246, 6
    %v1264 = vrot.slane %v1245, 6
    %v1265 = vmul.f32 %v608, %v1263
    %v1266 = vmul.f32 %v609, %v1264
    %v1267 = vadd.f32 %v1261, %v1265
    %v1268 = vadd.f32 %v1262, %v1266
    %1269 = vrot.lane.b32.xlu0 %v1183, 1
    %v1270 = vpop.permute.xlu0 %1269
    %1271 = vrot.lane.b32.xlu0 %v1184, 1
    %v1272 = vpop.permute.xlu0 %1271
    %v1273 = vsel %vm231, %v1270, %v1272
    %v1274 = vsel %vm231, %v1272, %v1270
    %v1275 = vmul.f32 %v621, %v1274
    %v1276 = vmul.f32 %v622, %v1273
    %v1277 = vadd.f32 %v1267, %v1275
    %v1278 = vadd.f32 %v1268, %v1276
    %v1279 = vrot.slane %v1274, 2
    %v1280 = vrot.slane %v1273, 2
    %v1281 = vmul.f32 %v630, %v1279
    %v1282 = vmul.f32 %v631, %v1280
    %v1283 = vadd.f32 %v1277, %v1281
    %v1284 = vadd.f32 %v1278, %v1282
    %v1285 = vrot.slane %v1274, 4
    %v1286 = vrot.slane %v1273, 4
    %v1287 = vmul.f32 %v639, %v1285
    %v1288 = vmul.f32 %v640, %v1286
    %v1289 = vadd.f32 %v1283, %v1287
    %v1290 = vadd.f32 %v1284, %v1288
    %v1291 = vrot.slane %v1274, 6
    %v1292 = vrot.slane %v1273, 6
    %v1293 = vmul.f32 %v648, %v1291
    %v1294 = vmul.f32 %v649, %v1292
    %v1295 = vadd.f32 %v1289, %v1293
    %v1296 = vadd.f32 %v1290, %v1294
    %v1297 = vmul.f32 %v655, %v1183
    %v1298 = vmul.f32 %v656, %v1184
    %v1299 = vadd.f32 %v1295, %v1297
    %v1300 = vadd.f32 %v1296, %v1298
    %v1301 = vrot.slane %v1183, 2
    %v1302 = vrot.slane %v1184, 2
    %v1303 = vmul.f32 %v664, %v1301
    %v1304 = vmul.f32 %v665, %v1302
    %v1305 = vadd.f32 %v1299, %v1303
    %v1306 = vadd.f32 %v1300, %v1304
    %v1307 = vrot.slane %v1183, 4
    %v1308 = vrot.slane %v1184, 4
    %v1309 = vmul.f32 %v673, %v1307
    %v1310 = vmul.f32 %v674, %v1308
    %v1311 = vadd.f32 %v1305, %v1309
    %v1312 = vadd.f32 %v1306, %v1310
    %v1313 = vrot.slane %v1183, 6
    %v1314 = vrot.slane %v1184, 6
    %v1315 = vmul.f32 %v682, %v1313
    %v1316 = vmul.f32 %v683, %v1314
    %v1317 = vadd.f32 %v1311, %v1315
    %v1318 = vadd.f32 %v1312, %v1316
    %1319 = vrot.lane.b32.xlu0 %v1183, 127
    %v1320 = vpop.permute.xlu0 %1319
    %1321 = vrot.lane.b32.xlu0 %v1184, 127
    %v1322 = vpop.permute.xlu0 %1321
    %v1323 = vsel %vm306, %v1320, %v1322
    %v1324 = vsel %vm306, %v1322, %v1320
    %v1325 = vmul.f32 %v695, %v1323
    %v1326 = vmul.f32 %v696, %v1324
    %v1327 = vadd.f32 %v1317, %v1325
    %v1328 = vadd.f32 %v1318, %v1326
    %v1329 = vrot.slane %v1323, 2
    %v1330 = vrot.slane %v1324, 2
    %v1331 = vmul.f32 %v704, %v1329
    %v1332 = vmul.f32 %v705, %v1330
    %v1333 = vadd.f32 %v1327, %v1331
    %v1334 = vadd.f32 %v1328, %v1332
    %v1335 = vrot.slane %v1323, 4
    %v1336 = vrot.slane %v1324, 4
    %v1337 = vmul.f32 %v713, %v1335
    %v1338 = vmul.f32 %v714, %v1336
    %v1339 = vadd.f32 %v1333, %v1337
    %v1340 = vadd.f32 %v1334, %v1338
    %v1341 = vrot.slane %v1323, 6
    %v1342 = vrot.slane %v1324, 6
    %v1343 = vmul.f32 %v722, %v1341
    %v1344 = vmul.f32 %v723, %v1342
    %v1345 = vadd.f32 %v1339, %v1343
    %v1346 = vadd.f32 %v1340, %v1344
    %1347 = vrot.lane.b32.xlu0 %v1183, 113
    %v1348 = vpop.permute.xlu0 %1347
    %1349 = vrot.lane.b32.xlu0 %v1184, 113
    %v1350 = vpop.permute.xlu0 %1349
    %v1351 = vsel %vm347, %v1348, %v1350
    %v1352 = vsel %vm347, %v1350, %v1348
    %v1353 = vmul.f32 %v735, %v1351
    %v1354 = vmul.f32 %v736, %v1352
    %v1355 = vadd.f32 %v1345, %v1353
    %v1356 = vadd.f32 %v1346, %v1354
    %v1357 = vrot.slane %v1351, 2
    %v1358 = vrot.slane %v1352, 2
    %v1359 = vmul.f32 %v744, %v1357
    %v1360 = vmul.f32 %v745, %v1358
    %v1361 = vadd.f32 %v1355, %v1359
    %v1362 = vadd.f32 %v1356, %v1360
    %v1363 = vrot.slane %v1351, 4
    %v1364 = vrot.slane %v1352, 4
    %v1365 = vmul.f32 %v753, %v1363
    %v1366 = vmul.f32 %v754, %v1364
    %v1367 = vadd.f32 %v1361, %v1365
    %v1368 = vadd.f32 %v1362, %v1366
    %v1369 = vrot.slane %v1351, 6
    %v1370 = vrot.slane %v1352, 6
    %v1371 = vmul.f32 %v762, %v1369
    %v1372 = vmul.f32 %v763, %v1370
    %v1373 = vadd.f32 %v1367, %v1371
    %v1374 = vadd.f32 %v1368, %v1372
    %1375 = vrot.lane.b32.xlu0 %v1183, 112
    %v1376 = vpop.permute.xlu0 %1375
    %1377 = vrot.lane.b32.xlu0 %v1184, 112
    %v1378 = vpop.permute.xlu0 %1377
    %v1379 = vsel %vm388, %v1376, %v1378
    %v1380 = vsel %vm388, %v1378, %v1376
    %v1381 = vmul.f32 %v775, %v1379
    %v1382 = vmul.f32 %v776, %v1380
    %v1383 = vadd.f32 %v1373, %v1381
    %v1384 = vadd.f32 %v1374, %v1382
    %v1385 = vrot.slane %v1379, 2
    %v1386 = vrot.slane %v1380, 2
    %v1387 = vmul.f32 %v784, %v1385
    %v1388 = vmul.f32 %v785, %v1386
    %v1389 = vadd.f32 %v1383, %v1387
    %v1390 = vadd.f32 %v1384, %v1388
    %v1391 = vrot.slane %v1379, 4
    %v1392 = vrot.slane %v1380, 4
    %v1393 = vmul.f32 %v793, %v1391
    %v1394 = vmul.f32 %v794, %v1392
    %v1395 = vadd.f32 %v1389, %v1393
    %v1396 = vadd.f32 %v1390, %v1394
    %v1397 = vrot.slane %v1379, 6
    %v1398 = vrot.slane %v1380, 6
    %v1399 = vmul.f32 %v802, %v1397
    %v1400 = vmul.f32 %v803, %v1398
    %v1401 = vadd.f32 %v1395, %v1399
    %v1402 = vadd.f32 %v1396, %v1400
    %1403 = vrot.lane.b32.xlu0 %v1183, 111
    %v1404 = vpop.permute.xlu0 %1403
    %1405 = vrot.lane.b32.xlu0 %v1184, 111
    %v1406 = vpop.permute.xlu0 %1405
    %v1407 = vsel %vm429, %v1404, %v1406
    %v1408 = vsel %vm429, %v1406, %v1404
    %v1409 = vmul.f32 %v815, %v1407
    %v1410 = vmul.f32 %v816, %v1408
    %v1411 = vadd.f32 %v1401, %v1409
    %v1412 = vadd.f32 %v1402, %v1410
    %v1413 = vrot.slane %v1407, 2
    %v1414 = vrot.slane %v1408, 2
    %v1415 = vmul.f32 %v824, %v1413
    %v1416 = vmul.f32 %v825, %v1414
    %v1417 = vadd.f32 %v1411, %v1415
    %v1418 = vadd.f32 %v1412, %v1416
    %v1419 = vrot.slane %v1407, 4
    %v1420 = vrot.slane %v1408, 4
    %v1421 = vmul.f32 %v833, %v1419
    %v1422 = vmul.f32 %v834, %v1420
    %v1423 = vadd.f32 %v1417, %v1421
    %v1424 = vadd.f32 %v1418, %v1422
    %v1425 = vrot.slane %v1407, 6
    %v1426 = vrot.slane %v1408, 6
    %v1427 = vmul.f32 %v842, %v1425
    %v1428 = vmul.f32 %v843, %v1426
    %v1429 = vadd.f32 %v1423, %v1427
    %v1430 = vadd.f32 %v1424, %v1428
    %v1431 = vadd.f32 %v1429, %v1430
    %1432 = vadd.xlane.f32.xlu0 %v1431
    %v1433 = vpop.xlane.xlu0 %1432
    %v1434 = vmul.f32 %v1429, %v1429
    %v1435 = vmul.f32 %v1430, %v1430
    %v1436 = vadd.f32 %v1434, %v1435
    %1437 = vadd.xlane.f32.xlu0 %v1436
    %v1438 = vpop.xlane.xlu0 %1437
    %v1439 = vmul.f32 %v1433, 0.00390625
    %v1440 = vmul.f32 %v1438, 0.00390625
    %v1441 = vmul.f32 %v1439, %v1439
    %v1442 = vsub.f32 %v1440, %v1441
    %v1443 = vmax.f32 %v1442, 0.0
    %v1444 = vadd.f32 %v1443, 1e-05
    %v1445 = vrsqrt.pop %v1444
    %v1446 = vsub.f32 %v1429, %v1439
    %v1447 = vsub.f32 %v1430, %v1439
    %v1448 = vmul.f32 %v1445, %v865
    %v1449 = vmul.f32 %v1445, %v866
    %v1450 = vmul.f32 %v1446, %v1448
    %v1451 = vmul.f32 %v1447, %v1449
    %v1452 = vadd.f32 %v1450, %v871
    %v1453 = vadd.f32 %v1451, %v872
    %v1454 = vmul.f32 %v1452, 0.125
    %v1455 = vmul.f32 %v1453, 0.125
    %v1456 = vadd.f32 %v52, %v1454
    %v1457 = vadd.f32 %v53, %v1455
    %v1458 = vadd.f32 %v1456, %v1457
    %1459 = vadd.xlane.f32.xlu0 %v1458
    %v1460 = vpop.xlane.xlu0 %1459
    %v1461 = vmul.f32 %v1456, %v1456
    %v1462 = vmul.f32 %v1457, %v1457
    %v1463 = vadd.f32 %v1461, %v1462
    %1464 = vadd.xlane.f32.xlu0 %v1463
    %v1465 = vpop.xlane.xlu0 %1464
    %v1466 = vmul.f32 %v1460, 0.00390625
    %v1467 = vmul.f32 %v1465, 0.00390625
    %v1468 = vmul.f32 %v1466, %v1466
    %v1469 = vsub.f32 %v1467, %v1468
    %v1470 = vmax.f32 %v1469, 0.0
    %v1471 = vadd.f32 %v1470, 1e-05
    %v1472 = vrsqrt.pop %v1471
    %v1473 = vsub.f32 %v1456, %v1466
    %v1474 = vsub.f32 %v1457, %v1466
    %v1475 = vmul.f32 %v1472, %v91
    %v1476 = vmul.f32 %v1472, %v92
    %v1477 = vmul.f32 %v1473, %v1475
    %v1478 = vmul.f32 %v1474, %v1476
    %v1479 = vadd.f32 %v1477, %v97
    %v1480 = vadd.f32 %v1478, %v98
    %v1481 = vmax.f32 %v1479, 0.0
    %v1482 = vmax.f32 %v1480, 0.0
    %1483 = vrot.lane.b32.xlu0 %v1481, 17
    %v1484 = vpop.permute.xlu0 %1483
    %1485 = vrot.lane.b32.xlu0 %v1482, 17
    %v1486 = vpop.permute.xlu0 %1485
    %v1487 = vsel %vm109, %v1484, %v1486
    %v1488 = vsel %vm109, %v1486, %v1484
    %v1489 = vmul.f32 %v112, %v1488
    %v1490 = vmul.f32 %v113, %v1487
    %v1491 = vadd.f32 %v879, %v1489
    %v1492 = vadd.f32 %v880, %v1490
    %v1493 = vrot.slane %v1488, 2
    %v1494 = vrot.slane %v1487, 2
    %v1495 = vmul.f32 %v121, %v1493
    %v1496 = vmul.f32 %v122, %v1494
    %v1497 = vadd.f32 %v1491, %v1495
    %v1498 = vadd.f32 %v1492, %v1496
    %v1499 = vrot.slane %v1488, 4
    %v1500 = vrot.slane %v1487, 4
    %v1501 = vmul.f32 %v130, %v1499
    %v1502 = vmul.f32 %v131, %v1500
    %v1503 = vadd.f32 %v1497, %v1501
    %v1504 = vadd.f32 %v1498, %v1502
    %v1505 = vrot.slane %v1488, 6
    %v1506 = vrot.slane %v1487, 6
    %v1507 = vmul.f32 %v139, %v1505
    %v1508 = vmul.f32 %v140, %v1506
    %v1509 = vadd.f32 %v1503, %v1507
    %v1510 = vadd.f32 %v1504, %v1508
    %1511 = vrot.lane.b32.xlu0 %v1481, 16
    %v1512 = vpop.permute.xlu0 %1511
    %1513 = vrot.lane.b32.xlu0 %v1482, 16
    %v1514 = vpop.permute.xlu0 %1513
    %v1515 = vsel %vm149, %v1512, %v1514
    %v1516 = vsel %vm149, %v1514, %v1512
    %v1517 = vmul.f32 %v153, %v1516
    %v1518 = vmul.f32 %v154, %v1515
    %v1519 = vadd.f32 %v1509, %v1517
    %v1520 = vadd.f32 %v1510, %v1518
    %v1521 = vrot.slane %v1516, 2
    %v1522 = vrot.slane %v1515, 2
    %v1523 = vmul.f32 %v162, %v1521
    %v1524 = vmul.f32 %v163, %v1522
    %v1525 = vadd.f32 %v1519, %v1523
    %v1526 = vadd.f32 %v1520, %v1524
    %v1527 = vrot.slane %v1516, 4
    %v1528 = vrot.slane %v1515, 4
    %v1529 = vmul.f32 %v171, %v1527
    %v1530 = vmul.f32 %v172, %v1528
    %v1531 = vadd.f32 %v1525, %v1529
    %v1532 = vadd.f32 %v1526, %v1530
    %v1533 = vrot.slane %v1516, 6
    %v1534 = vrot.slane %v1515, 6
    %v1535 = vmul.f32 %v180, %v1533
    %v1536 = vmul.f32 %v181, %v1534
    %v1537 = vadd.f32 %v1531, %v1535
    %v1538 = vadd.f32 %v1532, %v1536
    %1539 = vrot.lane.b32.xlu0 %v1481, 15
    %v1540 = vpop.permute.xlu0 %1539
    %1541 = vrot.lane.b32.xlu0 %v1482, 15
    %v1542 = vpop.permute.xlu0 %1541
    %v1543 = vsel %vm190, %v1540, %v1542
    %v1544 = vsel %vm190, %v1542, %v1540
    %v1545 = vmul.f32 %v194, %v1544
    %v1546 = vmul.f32 %v195, %v1543
    %v1547 = vadd.f32 %v1537, %v1545
    %v1548 = vadd.f32 %v1538, %v1546
    %v1549 = vrot.slane %v1544, 2
    %v1550 = vrot.slane %v1543, 2
    %v1551 = vmul.f32 %v203, %v1549
    %v1552 = vmul.f32 %v204, %v1550
    %v1553 = vadd.f32 %v1547, %v1551
    %v1554 = vadd.f32 %v1548, %v1552
    %v1555 = vrot.slane %v1544, 4
    %v1556 = vrot.slane %v1543, 4
    %v1557 = vmul.f32 %v212, %v1555
    %v1558 = vmul.f32 %v213, %v1556
    %v1559 = vadd.f32 %v1553, %v1557
    %v1560 = vadd.f32 %v1554, %v1558
    %v1561 = vrot.slane %v1544, 6
    %v1562 = vrot.slane %v1543, 6
    %v1563 = vmul.f32 %v221, %v1561
    %v1564 = vmul.f32 %v222, %v1562
    %v1565 = vadd.f32 %v1559, %v1563
    %v1566 = vadd.f32 %v1560, %v1564
    %1567 = vrot.lane.b32.xlu0 %v1481, 1
    %v1568 = vpop.permute.xlu0 %1567
    %1569 = vrot.lane.b32.xlu0 %v1482, 1
    %v1570 = vpop.permute.xlu0 %1569
    %v1571 = vsel %vm231, %v1568, %v1570
    %v1572 = vsel %vm231, %v1570, %v1568
    %v1573 = vmul.f32 %v235, %v1572
    %v1574 = vmul.f32 %v236, %v1571
    %v1575 = vadd.f32 %v1565, %v1573
    %v1576 = vadd.f32 %v1566, %v1574
    %v1577 = vrot.slane %v1572, 2
    %v1578 = vrot.slane %v1571, 2
    %v1579 = vmul.f32 %v244, %v1577
    %v1580 = vmul.f32 %v245, %v1578
    %v1581 = vadd.f32 %v1575, %v1579
    %v1582 = vadd.f32 %v1576, %v1580
    %v1583 = vrot.slane %v1572, 4
    %v1584 = vrot.slane %v1571, 4
    %v1585 = vmul.f32 %v253, %v1583
    %v1586 = vmul.f32 %v254, %v1584
    %v1587 = vadd.f32 %v1581, %v1585
    %v1588 = vadd.f32 %v1582, %v1586
    %v1589 = vrot.slane %v1572, 6
    %v1590 = vrot.slane %v1571, 6
    %v1591 = vmul.f32 %v262, %v1589
    %v1592 = vmul.f32 %v263, %v1590
    %v1593 = vadd.f32 %v1587, %v1591
    %v1594 = vadd.f32 %v1588, %v1592
    %v1595 = vmul.f32 %v269, %v1481
    %v1596 = vmul.f32 %v270, %v1482
    %v1597 = vadd.f32 %v1593, %v1595
    %v1598 = vadd.f32 %v1594, %v1596
    %v1599 = vrot.slane %v1481, 2
    %v1600 = vrot.slane %v1482, 2
    %v1601 = vmul.f32 %v278, %v1599
    %v1602 = vmul.f32 %v279, %v1600
    %v1603 = vadd.f32 %v1597, %v1601
    %v1604 = vadd.f32 %v1598, %v1602
    %v1605 = vrot.slane %v1481, 4
    %v1606 = vrot.slane %v1482, 4
    %v1607 = vmul.f32 %v287, %v1605
    %v1608 = vmul.f32 %v288, %v1606
    %v1609 = vadd.f32 %v1603, %v1607
    %v1610 = vadd.f32 %v1604, %v1608
    %v1611 = vrot.slane %v1481, 6
    %v1612 = vrot.slane %v1482, 6
    %v1613 = vmul.f32 %v296, %v1611
    %v1614 = vmul.f32 %v297, %v1612
    %v1615 = vadd.f32 %v1609, %v1613
    %v1616 = vadd.f32 %v1610, %v1614
    %1617 = vrot.lane.b32.xlu0 %v1481, 127
    %v1618 = vpop.permute.xlu0 %1617
    %1619 = vrot.lane.b32.xlu0 %v1482, 127
    %v1620 = vpop.permute.xlu0 %1619
    %v1621 = vsel %vm306, %v1618, %v1620
    %v1622 = vsel %vm306, %v1620, %v1618
    %v1623 = vmul.f32 %v310, %v1621
    %v1624 = vmul.f32 %v311, %v1622
    %v1625 = vadd.f32 %v1615, %v1623
    %v1626 = vadd.f32 %v1616, %v1624
    %v1627 = vrot.slane %v1621, 2
    %v1628 = vrot.slane %v1622, 2
    %v1629 = vmul.f32 %v319, %v1627
    %v1630 = vmul.f32 %v320, %v1628
    %v1631 = vadd.f32 %v1625, %v1629
    %v1632 = vadd.f32 %v1626, %v1630
    %v1633 = vrot.slane %v1621, 4
    %v1634 = vrot.slane %v1622, 4
    %v1635 = vmul.f32 %v328, %v1633
    %v1636 = vmul.f32 %v329, %v1634
    %v1637 = vadd.f32 %v1631, %v1635
    %v1638 = vadd.f32 %v1632, %v1636
    %v1639 = vrot.slane %v1621, 6
    %v1640 = vrot.slane %v1622, 6
    %v1641 = vmul.f32 %v337, %v1639
    %v1642 = vmul.f32 %v338, %v1640
    %v1643 = vadd.f32 %v1637, %v1641
    %v1644 = vadd.f32 %v1638, %v1642
    %1645 = vrot.lane.b32.xlu0 %v1481, 113
    %v1646 = vpop.permute.xlu0 %1645
    %1647 = vrot.lane.b32.xlu0 %v1482, 113
    %v1648 = vpop.permute.xlu0 %1647
    %v1649 = vsel %vm347, %v1646, %v1648
    %v1650 = vsel %vm347, %v1648, %v1646
    %v1651 = vmul.f32 %v351, %v1649
    %v1652 = vmul.f32 %v352, %v1650
    %v1653 = vadd.f32 %v1643, %v1651
    %v1654 = vadd.f32 %v1644, %v1652
    %v1655 = vrot.slane %v1649, 2
    %v1656 = vrot.slane %v1650, 2
    %v1657 = vmul.f32 %v360, %v1655
    %v1658 = vmul.f32 %v361, %v1656
    %v1659 = vadd.f32 %v1653, %v1657
    %v1660 = vadd.f32 %v1654, %v1658
    %v1661 = vrot.slane %v1649, 4
    %v1662 = vrot.slane %v1650, 4
    %v1663 = vmul.f32 %v369, %v1661
    %v1664 = vmul.f32 %v370, %v1662
    %v1665 = vadd.f32 %v1659, %v1663
    %v1666 = vadd.f32 %v1660, %v1664
    %v1667 = vrot.slane %v1649, 6
    %v1668 = vrot.slane %v1650, 6
    %v1669 = vmul.f32 %v378, %v1667
    %v1670 = vmul.f32 %v379, %v1668
    %v1671 = vadd.f32 %v1665, %v1669
    %v1672 = vadd.f32 %v1666, %v1670
    %1673 = vrot.lane.b32.xlu0 %v1481, 112
    %v1674 = vpop.permute.xlu0 %1673
    %1675 = vrot.lane.b32.xlu0 %v1482, 112
    %v1676 = vpop.permute.xlu0 %1675
    %v1677 = vsel %vm388, %v1674, %v1676
    %v1678 = vsel %vm388, %v1676, %v1674
    %v1679 = vmul.f32 %v392, %v1677
    %v1680 = vmul.f32 %v393, %v1678
    %v1681 = vadd.f32 %v1671, %v1679
    %v1682 = vadd.f32 %v1672, %v1680
    %v1683 = vrot.slane %v1677, 2
    %v1684 = vrot.slane %v1678, 2
    %v1685 = vmul.f32 %v401, %v1683
    %v1686 = vmul.f32 %v402, %v1684
    %v1687 = vadd.f32 %v1681, %v1685
    %v1688 = vadd.f32 %v1682, %v1686
    %v1689 = vrot.slane %v1677, 4
    %v1690 = vrot.slane %v1678, 4
    %v1691 = vmul.f32 %v410, %v1689
    %v1692 = vmul.f32 %v411, %v1690
    %v1693 = vadd.f32 %v1687, %v1691
    %v1694 = vadd.f32 %v1688, %v1692
    %v1695 = vrot.slane %v1677, 6
    %v1696 = vrot.slane %v1678, 6
    %v1697 = vmul.f32 %v419, %v1695
    %v1698 = vmul.f32 %v420, %v1696
    %v1699 = vadd.f32 %v1693, %v1697
    %v1700 = vadd.f32 %v1694, %v1698
    %1701 = vrot.lane.b32.xlu0 %v1481, 111
    %v1702 = vpop.permute.xlu0 %1701
    %1703 = vrot.lane.b32.xlu0 %v1482, 111
    %v1704 = vpop.permute.xlu0 %1703
    %v1705 = vsel %vm429, %v1702, %v1704
    %v1706 = vsel %vm429, %v1704, %v1702
    %v1707 = vmul.f32 %v433, %v1705
    %v1708 = vmul.f32 %v434, %v1706
    %v1709 = vadd.f32 %v1699, %v1707
    %v1710 = vadd.f32 %v1700, %v1708
    %v1711 = vrot.slane %v1705, 2
    %v1712 = vrot.slane %v1706, 2
    %v1713 = vmul.f32 %v442, %v1711
    %v1714 = vmul.f32 %v443, %v1712
    %v1715 = vadd.f32 %v1709, %v1713
    %v1716 = vadd.f32 %v1710, %v1714
    %v1717 = vrot.slane %v1705, 4
    %v1718 = vrot.slane %v1706, 4
    %v1719 = vmul.f32 %v451, %v1717
    %v1720 = vmul.f32 %v452, %v1718
    %v1721 = vadd.f32 %v1715, %v1719
    %v1722 = vadd.f32 %v1716, %v1720
    %v1723 = vrot.slane %v1705, 6
    %v1724 = vrot.slane %v1706, 6
    %v1725 = vmul.f32 %v460, %v1723
    %v1726 = vmul.f32 %v461, %v1724
    %v1727 = vadd.f32 %v1721, %v1725
    %v1728 = vadd.f32 %v1722, %v1726
    %v1729 = vadd.f32 %v1727, %v1728
    %1730 = vadd.xlane.f32.xlu0 %v1729
    %v1731 = vpop.xlane.xlu0 %1730
    %v1732 = vmul.f32 %v1727, %v1727
    %v1733 = vmul.f32 %v1728, %v1728
    %v1734 = vadd.f32 %v1732, %v1733
    %1735 = vadd.xlane.f32.xlu0 %v1734
    %v1736 = vpop.xlane.xlu0 %1735
    %v1737 = vmul.f32 %v1731, 0.00390625
    %v1738 = vmul.f32 %v1736, 0.00390625
    %v1739 = vmul.f32 %v1737, %v1737
    %v1740 = vsub.f32 %v1738, %v1739
    %v1741 = vmax.f32 %v1740, 0.0
    %v1742 = vadd.f32 %v1741, 1e-05
    %v1743 = vrsqrt.pop %v1742
    %v1744 = vsub.f32 %v1727, %v1737
    %v1745 = vsub.f32 %v1728, %v1737
    %v1746 = vmul.f32 %v1743, %v483
    %v1747 = vmul.f32 %v1743, %v484
    %v1748 = vmul.f32 %v1744, %v1746
    %v1749 = vmul.f32 %v1745, %v1747
    %v1750 = vadd.f32 %v1748, %v489
    %v1751 = vadd.f32 %v1749, %v490
    %v1752 = vmax.f32 %v1750, 0.0
    %v1753 = vmax.f32 %v1751, 0.0
    %1754 = vrot.lane.b32.xlu0 %v1752, 17
    %v1755 = vpop.permute.xlu0 %1754
    %1756 = vrot.lane.b32.xlu0 %v1753, 17
    %v1757 = vpop.permute.xlu0 %1756
    %v1758 = vsel %vm109, %v1755, %v1757
    %v1759 = vsel %vm109, %v1757, %v1755
    %v1760 = vmul.f32 %v501, %v1759
    %v1761 = vmul.f32 %v502, %v1758
    %v1762 = vadd.f32 %v883, %v1760
    %v1763 = vadd.f32 %v884, %v1761
    %v1764 = vrot.slane %v1759, 2
    %v1765 = vrot.slane %v1758, 2
    %v1766 = vmul.f32 %v510, %v1764
    %v1767 = vmul.f32 %v511, %v1765
    %v1768 = vadd.f32 %v1762, %v1766
    %v1769 = vadd.f32 %v1763, %v1767
    %v1770 = vrot.slane %v1759, 4
    %v1771 = vrot.slane %v1758, 4
    %v1772 = vmul.f32 %v519, %v1770
    %v1773 = vmul.f32 %v520, %v1771
    %v1774 = vadd.f32 %v1768, %v1772
    %v1775 = vadd.f32 %v1769, %v1773
    %v1776 = vrot.slane %v1759, 6
    %v1777 = vrot.slane %v1758, 6
    %v1778 = vmul.f32 %v528, %v1776
    %v1779 = vmul.f32 %v529, %v1777
    %v1780 = vadd.f32 %v1774, %v1778
    %v1781 = vadd.f32 %v1775, %v1779
    %1782 = vrot.lane.b32.xlu0 %v1752, 16
    %v1783 = vpop.permute.xlu0 %1782
    %1784 = vrot.lane.b32.xlu0 %v1753, 16
    %v1785 = vpop.permute.xlu0 %1784
    %v1786 = vsel %vm149, %v1783, %v1785
    %v1787 = vsel %vm149, %v1785, %v1783
    %v1788 = vmul.f32 %v541, %v1787
    %v1789 = vmul.f32 %v542, %v1786
    %v1790 = vadd.f32 %v1780, %v1788
    %v1791 = vadd.f32 %v1781, %v1789
    %v1792 = vrot.slane %v1787, 2
    %v1793 = vrot.slane %v1786, 2
    %v1794 = vmul.f32 %v550, %v1792
    %v1795 = vmul.f32 %v551, %v1793
    %v1796 = vadd.f32 %v1790, %v1794
    %v1797 = vadd.f32 %v1791, %v1795
    %v1798 = vrot.slane %v1787, 4
    %v1799 = vrot.slane %v1786, 4
    %v1800 = vmul.f32 %v559, %v1798
    %v1801 = vmul.f32 %v560, %v1799
    %v1802 = vadd.f32 %v1796, %v1800
    %v1803 = vadd.f32 %v1797, %v1801
    %v1804 = vrot.slane %v1787, 6
    %v1805 = vrot.slane %v1786, 6
    %v1806 = vmul.f32 %v568, %v1804
    %v1807 = vmul.f32 %v569, %v1805
    %v1808 = vadd.f32 %v1802, %v1806
    %v1809 = vadd.f32 %v1803, %v1807
    %1810 = vrot.lane.b32.xlu0 %v1752, 15
    %v1811 = vpop.permute.xlu0 %1810
    %1812 = vrot.lane.b32.xlu0 %v1753, 15
    %v1813 = vpop.permute.xlu0 %1812
    %v1814 = vsel %vm190, %v1811, %v1813
    %v1815 = vsel %vm190, %v1813, %v1811
    %v1816 = vmul.f32 %v581, %v1815
    %v1817 = vmul.f32 %v582, %v1814
    %v1818 = vadd.f32 %v1808, %v1816
    %v1819 = vadd.f32 %v1809, %v1817
    %v1820 = vrot.slane %v1815, 2
    %v1821 = vrot.slane %v1814, 2
    %v1822 = vmul.f32 %v590, %v1820
    %v1823 = vmul.f32 %v591, %v1821
    %v1824 = vadd.f32 %v1818, %v1822
    %v1825 = vadd.f32 %v1819, %v1823
    %v1826 = vrot.slane %v1815, 4
    %v1827 = vrot.slane %v1814, 4
    %v1828 = vmul.f32 %v599, %v1826
    %v1829 = vmul.f32 %v600, %v1827
    %v1830 = vadd.f32 %v1824, %v1828
    %v1831 = vadd.f32 %v1825, %v1829
    %v1832 = vrot.slane %v1815, 6
    %v1833 = vrot.slane %v1814, 6
    %v1834 = vmul.f32 %v608, %v1832
    %v1835 = vmul.f32 %v609, %v1833
    %v1836 = vadd.f32 %v1830, %v1834
    %v1837 = vadd.f32 %v1831, %v1835
    %1838 = vrot.lane.b32.xlu0 %v1752, 1
    %v1839 = vpop.permute.xlu0 %1838
    %1840 = vrot.lane.b32.xlu0 %v1753, 1
    %v1841 = vpop.permute.xlu0 %1840
    %v1842 = vsel %vm231, %v1839, %v1841
    %v1843 = vsel %vm231, %v1841, %v1839
    %v1844 = vmul.f32 %v621, %v1843
    %v1845 = vmul.f32 %v622, %v1842
    %v1846 = vadd.f32 %v1836, %v1844
    %v1847 = vadd.f32 %v1837, %v1845
    %v1848 = vrot.slane %v1843, 2
    %v1849 = vrot.slane %v1842, 2
    %v1850 = vmul.f32 %v630, %v1848
    %v1851 = vmul.f32 %v631, %v1849
    %v1852 = vadd.f32 %v1846, %v1850
    %v1853 = vadd.f32 %v1847, %v1851
    %v1854 = vrot.slane %v1843, 4
    %v1855 = vrot.slane %v1842, 4
    %v1856 = vmul.f32 %v639, %v1854
    %v1857 = vmul.f32 %v640, %v1855
    %v1858 = vadd.f32 %v1852, %v1856
    %v1859 = vadd.f32 %v1853, %v1857
    %v1860 = vrot.slane %v1843, 6
    %v1861 = vrot.slane %v1842, 6
    %v1862 = vmul.f32 %v648, %v1860
    %v1863 = vmul.f32 %v649, %v1861
    %v1864 = vadd.f32 %v1858, %v1862
    %v1865 = vadd.f32 %v1859, %v1863
    %v1866 = vmul.f32 %v655, %v1752
    %v1867 = vmul.f32 %v656, %v1753
    %v1868 = vadd.f32 %v1864, %v1866
    %v1869 = vadd.f32 %v1865, %v1867
    %v1870 = vrot.slane %v1752, 2
    %v1871 = vrot.slane %v1753, 2
    %v1872 = vmul.f32 %v664, %v1870
    %v1873 = vmul.f32 %v665, %v1871
    %v1874 = vadd.f32 %v1868, %v1872
    %v1875 = vadd.f32 %v1869, %v1873
    %v1876 = vrot.slane %v1752, 4
    %v1877 = vrot.slane %v1753, 4
    %v1878 = vmul.f32 %v673, %v1876
    %v1879 = vmul.f32 %v674, %v1877
    %v1880 = vadd.f32 %v1874, %v1878
    %v1881 = vadd.f32 %v1875, %v1879
    %v1882 = vrot.slane %v1752, 6
    %v1883 = vrot.slane %v1753, 6
    %v1884 = vmul.f32 %v682, %v1882
    %v1885 = vmul.f32 %v683, %v1883
    %v1886 = vadd.f32 %v1880, %v1884
    %v1887 = vadd.f32 %v1881, %v1885
    %1888 = vrot.lane.b32.xlu0 %v1752, 127
    %v1889 = vpop.permute.xlu0 %1888
    %1890 = vrot.lane.b32.xlu0 %v1753, 127
    %v1891 = vpop.permute.xlu0 %1890
    %v1892 = vsel %vm306, %v1889, %v1891
    %v1893 = vsel %vm306, %v1891, %v1889
    %v1894 = vmul.f32 %v695, %v1892
    %v1895 = vmul.f32 %v696, %v1893
    %v1896 = vadd.f32 %v1886, %v1894
    %v1897 = vadd.f32 %v1887, %v1895
    %v1898 = vrot.slane %v1892, 2
    %v1899 = vrot.slane %v1893, 2
    %v1900 = vmul.f32 %v704, %v1898
    %v1901 = vmul.f32 %v705, %v1899
    %v1902 = vadd.f32 %v1896, %v1900
    %v1903 = vadd.f32 %v1897, %v1901
    %v1904 = vrot.slane %v1892, 4
    %v1905 = vrot.slane %v1893, 4
    %v1906 = vmul.f32 %v713, %v1904
    %v1907 = vmul.f32 %v714, %v1905
    %v1908 = vadd.f32 %v1902, %v1906
    %v1909 = vadd.f32 %v1903, %v1907
    %v1910 = vrot.slane %v1892, 6
    %v1911 = vrot.slane %v1893, 6
    %v1912 = vmul.f32 %v722, %v1910
    %v1913 = vmul.f32 %v723, %v1911
    %v1914 = vadd.f32 %v1908, %v1912
    %v1915 = vadd.f32 %v1909, %v1913
    %1916 = vrot.lane.b32.xlu0 %v1752, 113
    %v1917 = vpop.permute.xlu0 %1916
    %1918 = vrot.lane.b32.xlu0 %v1753, 113
    %v1919 = vpop.permute.xlu0 %1918
    %v1920 = vsel %vm347, %v1917, %v1919
    %v1921 = vsel %vm347, %v1919, %v1917
    %v1922 = vmul.f32 %v735, %v1920
    %v1923 = vmul.f32 %v736, %v1921
    %v1924 = vadd.f32 %v1914, %v1922
    %v1925 = vadd.f32 %v1915, %v1923
    %v1926 = vrot.slane %v1920, 2
    %v1927 = vrot.slane %v1921, 2
    %v1928 = vmul.f32 %v744, %v1926
    %v1929 = vmul.f32 %v745, %v1927
    %v1930 = vadd.f32 %v1924, %v1928
    %v1931 = vadd.f32 %v1925, %v1929
    %v1932 = vrot.slane %v1920, 4
    %v1933 = vrot.slane %v1921, 4
    %v1934 = vmul.f32 %v753, %v1932
    %v1935 = vmul.f32 %v754, %v1933
    %v1936 = vadd.f32 %v1930, %v1934
    %v1937 = vadd.f32 %v1931, %v1935
    %v1938 = vrot.slane %v1920, 6
    %v1939 = vrot.slane %v1921, 6
    %v1940 = vmul.f32 %v762, %v1938
    %v1941 = vmul.f32 %v763, %v1939
    %v1942 = vadd.f32 %v1936, %v1940
    %v1943 = vadd.f32 %v1937, %v1941
    %1944 = vrot.lane.b32.xlu0 %v1752, 112
    %v1945 = vpop.permute.xlu0 %1944
    %1946 = vrot.lane.b32.xlu0 %v1753, 112
    %v1947 = vpop.permute.xlu0 %1946
    %v1948 = vsel %vm388, %v1945, %v1947
    %v1949 = vsel %vm388, %v1947, %v1945
    %v1950 = vmul.f32 %v775, %v1948
    %v1951 = vmul.f32 %v776, %v1949
    %v1952 = vadd.f32 %v1942, %v1950
    %v1953 = vadd.f32 %v1943, %v1951
    %v1954 = vrot.slane %v1948, 2
    %v1955 = vrot.slane %v1949, 2
    %v1956 = vmul.f32 %v784, %v1954
    %v1957 = vmul.f32 %v785, %v1955
    %v1958 = vadd.f32 %v1952, %v1956
    %v1959 = vadd.f32 %v1953, %v1957
    %v1960 = vrot.slane %v1948, 4
    %v1961 = vrot.slane %v1949, 4
    %v1962 = vmul.f32 %v793, %v1960
    %v1963 = vmul.f32 %v794, %v1961
    %v1964 = vadd.f32 %v1958, %v1962
    %v1965 = vadd.f32 %v1959, %v1963
    %v1966 = vrot.slane %v1948, 6
    %v1967 = vrot.slane %v1949, 6
    %v1968 = vmul.f32 %v802, %v1966
    %v1969 = vmul.f32 %v803, %v1967
    %v1970 = vadd.f32 %v1964, %v1968
    %v1971 = vadd.f32 %v1965, %v1969
    %1972 = vrot.lane.b32.xlu0 %v1752, 111
    %v1973 = vpop.permute.xlu0 %1972
    %1974 = vrot.lane.b32.xlu0 %v1753, 111
    %v1975 = vpop.permute.xlu0 %1974
    %v1976 = vsel %vm429, %v1973, %v1975
    %v1977 = vsel %vm429, %v1975, %v1973
    %v1978 = vmul.f32 %v815, %v1976
    %v1979 = vmul.f32 %v816, %v1977
    %v1980 = vadd.f32 %v1970, %v1978
    %v1981 = vadd.f32 %v1971, %v1979
    %v1982 = vrot.slane %v1976, 2
    %v1983 = vrot.slane %v1977, 2
    %v1984 = vmul.f32 %v824, %v1982
    %v1985 = vmul.f32 %v825, %v1983
    %v1986 = vadd.f32 %v1980, %v1984
    %v1987 = vadd.f32 %v1981, %v1985
    %v1988 = vrot.slane %v1976, 4
    %v1989 = vrot.slane %v1977, 4
    %v1990 = vmul.f32 %v833, %v1988
    %v1991 = vmul.f32 %v834, %v1989
    %v1992 = vadd.f32 %v1986, %v1990
    %v1993 = vadd.f32 %v1987, %v1991
    %v1994 = vrot.slane %v1976, 6
    %v1995 = vrot.slane %v1977, 6
    %v1996 = vmul.f32 %v842, %v1994
    %v1997 = vmul.f32 %v843, %v1995
    %v1998 = vadd.f32 %v1992, %v1996
    %v1999 = vadd.f32 %v1993, %v1997
    %v2000 = vadd.f32 %v1998, %v1999
    %2001 = vadd.xlane.f32.xlu0 %v2000
    %v2002 = vpop.xlane.xlu0 %2001
    %v2003 = vmul.f32 %v1998, %v1998
    %v2004 = vmul.f32 %v1999, %v1999
    %v2005 = vadd.f32 %v2003, %v2004
    %2006 = vadd.xlane.f32.xlu0 %v2005
    %v2007 = vpop.xlane.xlu0 %2006
    %v2008 = vmul.f32 %v2002, 0.00390625
    %v2009 = vmul.f32 %v2007, 0.00390625
    %v2010 = vmul.f32 %v2008, %v2008
    %v2011 = vsub.f32 %v2009, %v2010
    %v2012 = vmax.f32 %v2011, 0.0
    %v2013 = vadd.f32 %v2012, 1e-05
    %v2014 = vrsqrt.pop %v2013
    %v2015 = vsub.f32 %v1998, %v2008
    %v2016 = vsub.f32 %v1999, %v2008
    %v2017 = vmul.f32 %v2014, %v865
    %v2018 = vmul.f32 %v2014, %v866
    %v2019 = vmul.f32 %v2015, %v2017
    %v2020 = vmul.f32 %v2016, %v2018
    %v2021 = vadd.f32 %v2019, %v871
    %v2022 = vadd.f32 %v2020, %v872
    %v2023 = vmul.f32 %v2021, 0.25
    %v2024 = vmul.f32 %v2022, 0.25
    %v2025 = vadd.f32 %v52, %v2023
    %v2026 = vadd.f32 %v53, %v2024
    %s2027 = sadd.f32 %s56, 0.25
    %v2028 = vstv %s2027
    %v2029 = vmul.f32 %v2028, %v59
    %v2030 = vmul.f32 %v2028, %v60
    %v2031 = vadd.f32 %v57, %v2029
    %v2032 = vadd.f32 %v58, %v2030
    %v2033 = vmul.f32 %v2028, %v68
    %v2034 = vmul.f32 %v2028, %v69
    %v2035 = vadd.f32 %v66, %v2033
    %v2036 = vadd.f32 %v67, %v2034
    %v2037 = vadd.f32 %v2025, %v2026
    %2038 = vadd.xlane.f32.xlu0 %v2037
    %v2039 = vpop.xlane.xlu0 %2038
    %v2040 = vmul.f32 %v2025, %v2025
    %v2041 = vmul.f32 %v2026, %v2026
    %v2042 = vadd.f32 %v2040, %v2041
    %2043 = vadd.xlane.f32.xlu0 %v2042
    %v2044 = vpop.xlane.xlu0 %2043
    %v2045 = vmul.f32 %v2039, 0.00390625
    %v2046 = vmul.f32 %v2044, 0.00390625
    %v2047 = vmul.f32 %v2045, %v2045
    %v2048 = vsub.f32 %v2046, %v2047
    %v2049 = vmax.f32 %v2048, 0.0
    %v2050 = vadd.f32 %v2049, 1e-05
    %v2051 = vrsqrt.pop %v2050
    %v2052 = vsub.f32 %v2025, %v2045
    %v2053 = vsub.f32 %v2026, %v2045
    %v2054 = vmul.f32 %v2051, %v91
    %v2055 = vmul.f32 %v2051, %v92
    %v2056 = vmul.f32 %v2052, %v2054
    %v2057 = vmul.f32 %v2053, %v2055
    %v2058 = vadd.f32 %v2056, %v97
    %v2059 = vadd.f32 %v2057, %v98
    %v2060 = vmax.f32 %v2058, 0.0
    %v2061 = vmax.f32 %v2059, 0.0
    %2062 = vrot.lane.b32.xlu0 %v2060, 17
    %v2063 = vpop.permute.xlu0 %2062
    %2064 = vrot.lane.b32.xlu0 %v2061, 17
    %v2065 = vpop.permute.xlu0 %2064
    %v2066 = vsel %vm109, %v2063, %v2065
    %v2067 = vsel %vm109, %v2065, %v2063
    %v2068 = vmul.f32 %v112, %v2067
    %v2069 = vmul.f32 %v113, %v2066
    %v2070 = vadd.f32 %v2031, %v2068
    %v2071 = vadd.f32 %v2032, %v2069
    %v2072 = vrot.slane %v2067, 2
    %v2073 = vrot.slane %v2066, 2
    %v2074 = vmul.f32 %v121, %v2072
    %v2075 = vmul.f32 %v122, %v2073
    %v2076 = vadd.f32 %v2070, %v2074
    %v2077 = vadd.f32 %v2071, %v2075
    %v2078 = vrot.slane %v2067, 4
    %v2079 = vrot.slane %v2066, 4
    %v2080 = vmul.f32 %v130, %v2078
    %v2081 = vmul.f32 %v131, %v2079
    %v2082 = vadd.f32 %v2076, %v2080
    %v2083 = vadd.f32 %v2077, %v2081
    %v2084 = vrot.slane %v2067, 6
    %v2085 = vrot.slane %v2066, 6
    %v2086 = vmul.f32 %v139, %v2084
    %v2087 = vmul.f32 %v140, %v2085
    %v2088 = vadd.f32 %v2082, %v2086
    %v2089 = vadd.f32 %v2083, %v2087
    %2090 = vrot.lane.b32.xlu0 %v2060, 16
    %v2091 = vpop.permute.xlu0 %2090
    %2092 = vrot.lane.b32.xlu0 %v2061, 16
    %v2093 = vpop.permute.xlu0 %2092
    %v2094 = vsel %vm149, %v2091, %v2093
    %v2095 = vsel %vm149, %v2093, %v2091
    %v2096 = vmul.f32 %v153, %v2095
    %v2097 = vmul.f32 %v154, %v2094
    %v2098 = vadd.f32 %v2088, %v2096
    %v2099 = vadd.f32 %v2089, %v2097
    %v2100 = vrot.slane %v2095, 2
    %v2101 = vrot.slane %v2094, 2
    %v2102 = vmul.f32 %v162, %v2100
    %v2103 = vmul.f32 %v163, %v2101
    %v2104 = vadd.f32 %v2098, %v2102
    %v2105 = vadd.f32 %v2099, %v2103
    %v2106 = vrot.slane %v2095, 4
    %v2107 = vrot.slane %v2094, 4
    %v2108 = vmul.f32 %v171, %v2106
    %v2109 = vmul.f32 %v172, %v2107
    %v2110 = vadd.f32 %v2104, %v2108
    %v2111 = vadd.f32 %v2105, %v2109
    %v2112 = vrot.slane %v2095, 6
    %v2113 = vrot.slane %v2094, 6
    %v2114 = vmul.f32 %v180, %v2112
    %v2115 = vmul.f32 %v181, %v2113
    %v2116 = vadd.f32 %v2110, %v2114
    %v2117 = vadd.f32 %v2111, %v2115
    %2118 = vrot.lane.b32.xlu0 %v2060, 15
    %v2119 = vpop.permute.xlu0 %2118
    %2120 = vrot.lane.b32.xlu0 %v2061, 15
    %v2121 = vpop.permute.xlu0 %2120
    %v2122 = vsel %vm190, %v2119, %v2121
    %v2123 = vsel %vm190, %v2121, %v2119
    %v2124 = vmul.f32 %v194, %v2123
    %v2125 = vmul.f32 %v195, %v2122
    %v2126 = vadd.f32 %v2116, %v2124
    %v2127 = vadd.f32 %v2117, %v2125
    %v2128 = vrot.slane %v2123, 2
    %v2129 = vrot.slane %v2122, 2
    %v2130 = vmul.f32 %v203, %v2128
    %v2131 = vmul.f32 %v204, %v2129
    %v2132 = vadd.f32 %v2126, %v2130
    %v2133 = vadd.f32 %v2127, %v2131
    %v2134 = vrot.slane %v2123, 4
    %v2135 = vrot.slane %v2122, 4
    %v2136 = vmul.f32 %v212, %v2134
    %v2137 = vmul.f32 %v213, %v2135
    %v2138 = vadd.f32 %v2132, %v2136
    %v2139 = vadd.f32 %v2133, %v2137
    %v2140 = vrot.slane %v2123, 6
    %v2141 = vrot.slane %v2122, 6
    %v2142 = vmul.f32 %v221, %v2140
    %v2143 = vmul.f32 %v222, %v2141
    %v2144 = vadd.f32 %v2138, %v2142
    %v2145 = vadd.f32 %v2139, %v2143
    %2146 = vrot.lane.b32.xlu0 %v2060, 1
    %v2147 = vpop.permute.xlu0 %2146
    %2148 = vrot.lane.b32.xlu0 %v2061, 1
    %v2149 = vpop.permute.xlu0 %2148
    %v2150 = vsel %vm231, %v2147, %v2149
    %v2151 = vsel %vm231, %v2149, %v2147
    %v2152 = vmul.f32 %v235, %v2151
    %v2153 = vmul.f32 %v236, %v2150
    %v2154 = vadd.f32 %v2144, %v2152
    %v2155 = vadd.f32 %v2145, %v2153
    %v2156 = vrot.slane %v2151, 2
    %v2157 = vrot.slane %v2150, 2
    %v2158 = vmul.f32 %v244, %v2156
    %v2159 = vmul.f32 %v245, %v2157
    %v2160 = vadd.f32 %v2154, %v2158
    %v2161 = vadd.f32 %v2155, %v2159
    %v2162 = vrot.slane %v2151, 4
    %v2163 = vrot.slane %v2150, 4
    %v2164 = vmul.f32 %v253, %v2162
    %v2165 = vmul.f32 %v254, %v2163
    %v2166 = vadd.f32 %v2160, %v2164
    %v2167 = vadd.f32 %v2161, %v2165
    %v2168 = vrot.slane %v2151, 6
    %v2169 = vrot.slane %v2150, 6
    %v2170 = vmul.f32 %v262, %v2168
    %v2171 = vmul.f32 %v263, %v2169
    %v2172 = vadd.f32 %v2166, %v2170
    %v2173 = vadd.f32 %v2167, %v2171
    %v2174 = vmul.f32 %v269, %v2060
    %v2175 = vmul.f32 %v270, %v2061
    %v2176 = vadd.f32 %v2172, %v2174
    %v2177 = vadd.f32 %v2173, %v2175
    %v2178 = vrot.slane %v2060, 2
    %v2179 = vrot.slane %v2061, 2
    %v2180 = vmul.f32 %v278, %v2178
    %v2181 = vmul.f32 %v279, %v2179
    %v2182 = vadd.f32 %v2176, %v2180
    %v2183 = vadd.f32 %v2177, %v2181
    %v2184 = vrot.slane %v2060, 4
    %v2185 = vrot.slane %v2061, 4
    %v2186 = vmul.f32 %v287, %v2184
    %v2187 = vmul.f32 %v288, %v2185
    %v2188 = vadd.f32 %v2182, %v2186
    %v2189 = vadd.f32 %v2183, %v2187
    %v2190 = vrot.slane %v2060, 6
    %v2191 = vrot.slane %v2061, 6
    %v2192 = vmul.f32 %v296, %v2190
    %v2193 = vmul.f32 %v297, %v2191
    %v2194 = vadd.f32 %v2188, %v2192
    %v2195 = vadd.f32 %v2189, %v2193
    %2196 = vrot.lane.b32.xlu0 %v2060, 127
    %v2197 = vpop.permute.xlu0 %2196
    %2198 = vrot.lane.b32.xlu0 %v2061, 127
    %v2199 = vpop.permute.xlu0 %2198
    %v2200 = vsel %vm306, %v2197, %v2199
    %v2201 = vsel %vm306, %v2199, %v2197
    %v2202 = vmul.f32 %v310, %v2200
    %v2203 = vmul.f32 %v311, %v2201
    %v2204 = vadd.f32 %v2194, %v2202
    %v2205 = vadd.f32 %v2195, %v2203
    %v2206 = vrot.slane %v2200, 2
    %v2207 = vrot.slane %v2201, 2
    %v2208 = vmul.f32 %v319, %v2206
    %v2209 = vmul.f32 %v320, %v2207
    %v2210 = vadd.f32 %v2204, %v2208
    %v2211 = vadd.f32 %v2205, %v2209
    %v2212 = vrot.slane %v2200, 4
    %v2213 = vrot.slane %v2201, 4
    %v2214 = vmul.f32 %v328, %v2212
    %v2215 = vmul.f32 %v329, %v2213
    %v2216 = vadd.f32 %v2210, %v2214
    %v2217 = vadd.f32 %v2211, %v2215
    %v2218 = vrot.slane %v2200, 6
    %v2219 = vrot.slane %v2201, 6
    %v2220 = vmul.f32 %v337, %v2218
    %v2221 = vmul.f32 %v338, %v2219
    %v2222 = vadd.f32 %v2216, %v2220
    %v2223 = vadd.f32 %v2217, %v2221
    %2224 = vrot.lane.b32.xlu0 %v2060, 113
    %v2225 = vpop.permute.xlu0 %2224
    %2226 = vrot.lane.b32.xlu0 %v2061, 113
    %v2227 = vpop.permute.xlu0 %2226
    %v2228 = vsel %vm347, %v2225, %v2227
    %v2229 = vsel %vm347, %v2227, %v2225
    %v2230 = vmul.f32 %v351, %v2228
    %v2231 = vmul.f32 %v352, %v2229
    %v2232 = vadd.f32 %v2222, %v2230
    %v2233 = vadd.f32 %v2223, %v2231
    %v2234 = vrot.slane %v2228, 2
    %v2235 = vrot.slane %v2229, 2
    %v2236 = vmul.f32 %v360, %v2234
    %v2237 = vmul.f32 %v361, %v2235
    %v2238 = vadd.f32 %v2232, %v2236
    %v2239 = vadd.f32 %v2233, %v2237
    %v2240 = vrot.slane %v2228, 4
    %v2241 = vrot.slane %v2229, 4
    %v2242 = vmul.f32 %v369, %v2240
    %v2243 = vmul.f32 %v370, %v2241
    %v2244 = vadd.f32 %v2238, %v2242
    %v2245 = vadd.f32 %v2239, %v2243
    %v2246 = vrot.slane %v2228, 6
    %v2247 = vrot.slane %v2229, 6
    %v2248 = vmul.f32 %v378, %v2246
    %v2249 = vmul.f32 %v379, %v2247
    %v2250 = vadd.f32 %v2244, %v2248
    %v2251 = vadd.f32 %v2245, %v2249
    %2252 = vrot.lane.b32.xlu0 %v2060, 112
    %v2253 = vpop.permute.xlu0 %2252
    %2254 = vrot.lane.b32.xlu0 %v2061, 112
    %v2255 = vpop.permute.xlu0 %2254
    %v2256 = vsel %vm388, %v2253, %v2255
    %v2257 = vsel %vm388, %v2255, %v2253
    %v2258 = vmul.f32 %v392, %v2256
    %v2259 = vmul.f32 %v393, %v2257
    %v2260 = vadd.f32 %v2250, %v2258
    %v2261 = vadd.f32 %v2251, %v2259
    %v2262 = vrot.slane %v2256, 2
    %v2263 = vrot.slane %v2257, 2
    %v2264 = vmul.f32 %v401, %v2262
    %v2265 = vmul.f32 %v402, %v2263
    %v2266 = vadd.f32 %v2260, %v2264
    %v2267 = vadd.f32 %v2261, %v2265
    %v2268 = vrot.slane %v2256, 4
    %v2269 = vrot.slane %v2257, 4
    %v2270 = vmul.f32 %v410, %v2268
    %v2271 = vmul.f32 %v411, %v2269
    %v2272 = vadd.f32 %v2266, %v2270
    %v2273 = vadd.f32 %v2267, %v2271
    %v2274 = vrot.slane %v2256, 6
    %v2275 = vrot.slane %v2257, 6
    %v2276 = vmul.f32 %v419, %v2274
    %v2277 = vmul.f32 %v420, %v2275
    %v2278 = vadd.f32 %v2272, %v2276
    %v2279 = vadd.f32 %v2273, %v2277
    %2280 = vrot.lane.b32.xlu0 %v2060, 111
    %v2281 = vpop.permute.xlu0 %2280
    %2282 = vrot.lane.b32.xlu0 %v2061, 111
    %v2283 = vpop.permute.xlu0 %2282
    %v2284 = vsel %vm429, %v2281, %v2283
    %v2285 = vsel %vm429, %v2283, %v2281
    %v2286 = vmul.f32 %v433, %v2284
    %v2287 = vmul.f32 %v434, %v2285
    %v2288 = vadd.f32 %v2278, %v2286
    %v2289 = vadd.f32 %v2279, %v2287
    %v2290 = vrot.slane %v2284, 2
    %v2291 = vrot.slane %v2285, 2
    %v2292 = vmul.f32 %v442, %v2290
    %v2293 = vmul.f32 %v443, %v2291
    %v2294 = vadd.f32 %v2288, %v2292
    %v2295 = vadd.f32 %v2289, %v2293
    %v2296 = vrot.slane %v2284, 4
    %v2297 = vrot.slane %v2285, 4
    %v2298 = vmul.f32 %v451, %v2296
    %v2299 = vmul.f32 %v452, %v2297
    %v2300 = vadd.f32 %v2294, %v2298
    %v2301 = vadd.f32 %v2295, %v2299
    %v2302 = vrot.slane %v2284, 6
    %v2303 = vrot.slane %v2285, 6
    %v2304 = vmul.f32 %v460, %v2302
    %v2305 = vmul.f32 %v461, %v2303
    %v2306 = vadd.f32 %v2300, %v2304
    %v2307 = vadd.f32 %v2301, %v2305
    %v2308 = vadd.f32 %v2306, %v2307
    %2309 = vadd.xlane.f32.xlu0 %v2308
    %v2310 = vpop.xlane.xlu0 %2309
    %v2311 = vmul.f32 %v2306, %v2306
    %v2312 = vmul.f32 %v2307, %v2307
    %v2313 = vadd.f32 %v2311, %v2312
    %2314 = vadd.xlane.f32.xlu0 %v2313
    %v2315 = vpop.xlane.xlu0 %2314
    %v2316 = vmul.f32 %v2310, 0.00390625
    %v2317 = vmul.f32 %v2315, 0.00390625
    %v2318 = vmul.f32 %v2316, %v2316
    %v2319 = vsub.f32 %v2317, %v2318
    %v2320 = vmax.f32 %v2319, 0.0
    %v2321 = vadd.f32 %v2320, 1e-05
    %v2322 = vrsqrt.pop %v2321
    %v2323 = vsub.f32 %v2306, %v2316
    %v2324 = vsub.f32 %v2307, %v2316
    %v2325 = vmul.f32 %v2322, %v483
    %v2326 = vmul.f32 %v2322, %v484
    %v2327 = vmul.f32 %v2323, %v2325
    %v2328 = vmul.f32 %v2324, %v2326
    %v2329 = vadd.f32 %v2327, %v489
    %v2330 = vadd.f32 %v2328, %v490
    %v2331 = vmax.f32 %v2329, 0.0
    %v2332 = vmax.f32 %v2330, 0.0
    %2333 = vrot.lane.b32.xlu0 %v2331, 17
    %v2334 = vpop.permute.xlu0 %2333
    %2335 = vrot.lane.b32.xlu0 %v2332, 17
    %v2336 = vpop.permute.xlu0 %2335
    %v2337 = vsel %vm109, %v2334, %v2336
    %v2338 = vsel %vm109, %v2336, %v2334
    %v2339 = vmul.f32 %v501, %v2338
    %v2340 = vmul.f32 %v502, %v2337
    %v2341 = vadd.f32 %v2035, %v2339
    %v2342 = vadd.f32 %v2036, %v2340
    %v2343 = vrot.slane %v2338, 2
    %v2344 = vrot.slane %v2337, 2
    %v2345 = vmul.f32 %v510, %v2343
    %v2346 = vmul.f32 %v511, %v2344
    %v2347 = vadd.f32 %v2341, %v2345
    %v2348 = vadd.f32 %v2342, %v2346
    %v2349 = vrot.slane %v2338, 4
    %v2350 = vrot.slane %v2337, 4
    %v2351 = vmul.f32 %v519, %v2349
    %v2352 = vmul.f32 %v520, %v2350
    %v2353 = vadd.f32 %v2347, %v2351
    %v2354 = vadd.f32 %v2348, %v2352
    %v2355 = vrot.slane %v2338, 6
    %v2356 = vrot.slane %v2337, 6
    %v2357 = vmul.f32 %v528, %v2355
    %v2358 = vmul.f32 %v529, %v2356
    %v2359 = vadd.f32 %v2353, %v2357
    %v2360 = vadd.f32 %v2354, %v2358
    %2361 = vrot.lane.b32.xlu0 %v2331, 16
    %v2362 = vpop.permute.xlu0 %2361
    %2363 = vrot.lane.b32.xlu0 %v2332, 16
    %v2364 = vpop.permute.xlu0 %2363
    %v2365 = vsel %vm149, %v2362, %v2364
    %v2366 = vsel %vm149, %v2364, %v2362
    %v2367 = vmul.f32 %v541, %v2366
    %v2368 = vmul.f32 %v542, %v2365
    %v2369 = vadd.f32 %v2359, %v2367
    %v2370 = vadd.f32 %v2360, %v2368
    %v2371 = vrot.slane %v2366, 2
    %v2372 = vrot.slane %v2365, 2
    %v2373 = vmul.f32 %v550, %v2371
    %v2374 = vmul.f32 %v551, %v2372
    %v2375 = vadd.f32 %v2369, %v2373
    %v2376 = vadd.f32 %v2370, %v2374
    %v2377 = vrot.slane %v2366, 4
    %v2378 = vrot.slane %v2365, 4
    %v2379 = vmul.f32 %v559, %v2377
    %v2380 = vmul.f32 %v560, %v2378
    %v2381 = vadd.f32 %v2375, %v2379
    %v2382 = vadd.f32 %v2376, %v2380
    %v2383 = vrot.slane %v2366, 6
    %v2384 = vrot.slane %v2365, 6
    %v2385 = vmul.f32 %v568, %v2383
    %v2386 = vmul.f32 %v569, %v2384
    %v2387 = vadd.f32 %v2381, %v2385
    %v2388 = vadd.f32 %v2382, %v2386
    %2389 = vrot.lane.b32.xlu0 %v2331, 15
    %v2390 = vpop.permute.xlu0 %2389
    %2391 = vrot.lane.b32.xlu0 %v2332, 15
    %v2392 = vpop.permute.xlu0 %2391
    %v2393 = vsel %vm190, %v2390, %v2392
    %v2394 = vsel %vm190, %v2392, %v2390
    %v2395 = vmul.f32 %v581, %v2394
    %v2396 = vmul.f32 %v582, %v2393
    %v2397 = vadd.f32 %v2387, %v2395
    %v2398 = vadd.f32 %v2388, %v2396
    %v2399 = vrot.slane %v2394, 2
    %v2400 = vrot.slane %v2393, 2
    %v2401 = vmul.f32 %v590, %v2399
    %v2402 = vmul.f32 %v591, %v2400
    %v2403 = vadd.f32 %v2397, %v2401
    %v2404 = vadd.f32 %v2398, %v2402
    %v2405 = vrot.slane %v2394, 4
    %v2406 = vrot.slane %v2393, 4
    %v2407 = vmul.f32 %v599, %v2405
    %v2408 = vmul.f32 %v600, %v2406
    %v2409 = vadd.f32 %v2403, %v2407
    %v2410 = vadd.f32 %v2404, %v2408
    %v2411 = vrot.slane %v2394, 6
    %v2412 = vrot.slane %v2393, 6
    %v2413 = vmul.f32 %v608, %v2411
    %v2414 = vmul.f32 %v609, %v2412
    %v2415 = vadd.f32 %v2409, %v2413
    %v2416 = vadd.f32 %v2410, %v2414
    %2417 = vrot.lane.b32.xlu0 %v2331, 1
    %v2418 = vpop.permute.xlu0 %2417
    %2419 = vrot.lane.b32.xlu0 %v2332, 1
    %v2420 = vpop.permute.xlu0 %2419
    %v2421 = vsel %vm231, %v2418, %v2420
    %v2422 = vsel %vm231, %v2420, %v2418
    %v2423 = vmul.f32 %v621, %v2422
    %v2424 = vmul.f32 %v622, %v2421
    %v2425 = vadd.f32 %v2415, %v2423
    %v2426 = vadd.f32 %v2416, %v2424
    %v2427 = vrot.slane %v2422, 2
    %v2428 = vrot.slane %v2421, 2
    %v2429 = vmul.f32 %v630, %v2427
    %v2430 = vmul.f32 %v631, %v2428
    %v2431 = vadd.f32 %v2425, %v2429
    %v2432 = vadd.f32 %v2426, %v2430
    %v2433 = vrot.slane %v2422, 4
    %v2434 = vrot.slane %v2421, 4
    %v2435 = vmul.f32 %v639, %v2433
    %v2436 = vmul.f32 %v640, %v2434
    %v2437 = vadd.f32 %v2431, %v2435
    %v2438 = vadd.f32 %v2432, %v2436
    %v2439 = vrot.slane %v2422, 6
    %v2440 = vrot.slane %v2421, 6
    %v2441 = vmul.f32 %v648, %v2439
    %v2442 = vmul.f32 %v649, %v2440
    %v2443 = vadd.f32 %v2437, %v2441
    %v2444 = vadd.f32 %v2438, %v2442
    %v2445 = vmul.f32 %v655, %v2331
    %v2446 = vmul.f32 %v656, %v2332
    %v2447 = vadd.f32 %v2443, %v2445
    %v2448 = vadd.f32 %v2444, %v2446
    %v2449 = vrot.slane %v2331, 2
    %v2450 = vrot.slane %v2332, 2
    %v2451 = vmul.f32 %v664, %v2449
    %v2452 = vmul.f32 %v665, %v2450
    %v2453 = vadd.f32 %v2447, %v2451
    %v2454 = vadd.f32 %v2448, %v2452
    %v2455 = vrot.slane %v2331, 4
    %v2456 = vrot.slane %v2332, 4
    %v2457 = vmul.f32 %v673, %v2455
    %v2458 = vmul.f32 %v674, %v2456
    %v2459 = vadd.f32 %v2453, %v2457
    %v2460 = vadd.f32 %v2454, %v2458
    %v2461 = vrot.slane %v2331, 6
    %v2462 = vrot.slane %v2332, 6
    %v2463 = vmul.f32 %v682, %v2461
    %v2464 = vmul.f32 %v683, %v2462
    %v2465 = vadd.f32 %v2459, %v2463
    %v2466 = vadd.f32 %v2460, %v2464
    %2467 = vrot.lane.b32.xlu0 %v2331, 127
    %v2468 = vpop.permute.xlu0 %2467
    %2469 = vrot.lane.b32.xlu0 %v2332, 127
    %v2470 = vpop.permute.xlu0 %2469
    %v2471 = vsel %vm306, %v2468, %v2470
    %v2472 = vsel %vm306, %v2470, %v2468
    %v2473 = vmul.f32 %v695, %v2471
    %v2474 = vmul.f32 %v696, %v2472
    %v2475 = vadd.f32 %v2465, %v2473
    %v2476 = vadd.f32 %v2466, %v2474
    %v2477 = vrot.slane %v2471, 2
    %v2478 = vrot.slane %v2472, 2
    %v2479 = vmul.f32 %v704, %v2477
    %v2480 = vmul.f32 %v705, %v2478
    %v2481 = vadd.f32 %v2475, %v2479
    %v2482 = vadd.f32 %v2476, %v2480
    %v2483 = vrot.slane %v2471, 4
    %v2484 = vrot.slane %v2472, 4
    %v2485 = vmul.f32 %v713, %v2483
    %v2486 = vmul.f32 %v714, %v2484
    %v2487 = vadd.f32 %v2481, %v2485
    %v2488 = vadd.f32 %v2482, %v2486
    %v2489 = vrot.slane %v2471, 6
    %v2490 = vrot.slane %v2472, 6
    %v2491 = vmul.f32 %v722, %v2489
    %v2492 = vmul.f32 %v723, %v2490
    %v2493 = vadd.f32 %v2487, %v2491
    %v2494 = vadd.f32 %v2488, %v2492
    %2495 = vrot.lane.b32.xlu0 %v2331, 113
    %v2496 = vpop.permute.xlu0 %2495
    %2497 = vrot.lane.b32.xlu0 %v2332, 113
    %v2498 = vpop.permute.xlu0 %2497
    %v2499 = vsel %vm347, %v2496, %v2498
    %v2500 = vsel %vm347, %v2498, %v2496
    %v2501 = vmul.f32 %v735, %v2499
    %v2502 = vmul.f32 %v736, %v2500
    %v2503 = vadd.f32 %v2493, %v2501
    %v2504 = vadd.f32 %v2494, %v2502
    %v2505 = vrot.slane %v2499, 2
    %v2506 = vrot.slane %v2500, 2
    %v2507 = vmul.f32 %v744, %v2505
    %v2508 = vmul.f32 %v745, %v2506
    %v2509 = vadd.f32 %v2503, %v2507
    %v2510 = vadd.f32 %v2504, %v2508
    %v2511 = vrot.slane %v2499, 4
    %v2512 = vrot.slane %v2500, 4
    %v2513 = vmul.f32 %v753, %v2511
    %v2514 = vmul.f32 %v754, %v2512
    %v2515 = vadd.f32 %v2509, %v2513
    %v2516 = vadd.f32 %v2510, %v2514
    %v2517 = vrot.slane %v2499, 6
    %v2518 = vrot.slane %v2500, 6
    %v2519 = vmul.f32 %v762, %v2517
    %v2520 = vmul.f32 %v763, %v2518
    %v2521 = vadd.f32 %v2515, %v2519
    %v2522 = vadd.f32 %v2516, %v2520
    %2523 = vrot.lane.b32.xlu0 %v2331, 112
    %v2524 = vpop.permute.xlu0 %2523
    %2525 = vrot.lane.b32.xlu0 %v2332, 112
    %v2526 = vpop.permute.xlu0 %2525
    %v2527 = vsel %vm388, %v2524, %v2526
    %v2528 = vsel %vm388, %v2526, %v2524
    %v2529 = vmul.f32 %v775, %v2527
    %v2530 = vmul.f32 %v776, %v2528
    %v2531 = vadd.f32 %v2521, %v2529
    %v2532 = vadd.f32 %v2522, %v2530
    %v2533 = vrot.slane %v2527, 2
    %v2534 = vrot.slane %v2528, 2
    %v2535 = vmul.f32 %v784, %v2533
    %v2536 = vmul.f32 %v785, %v2534
    %v2537 = vadd.f32 %v2531, %v2535
    %v2538 = vadd.f32 %v2532, %v2536
    %v2539 = vrot.slane %v2527, 4
    %v2540 = vrot.slane %v2528, 4
    %v2541 = vmul.f32 %v793, %v2539
    %v2542 = vmul.f32 %v794, %v2540
    %v2543 = vadd.f32 %v2537, %v2541
    %v2544 = vadd.f32 %v2538, %v2542
    %v2545 = vrot.slane %v2527, 6
    %v2546 = vrot.slane %v2528, 6
    %v2547 = vmul.f32 %v802, %v2545
    %v2548 = vmul.f32 %v803, %v2546
    %v2549 = vadd.f32 %v2543, %v2547
    %v2550 = vadd.f32 %v2544, %v2548
    %2551 = vrot.lane.b32.xlu0 %v2331, 111
    %v2552 = vpop.permute.xlu0 %2551
    %2553 = vrot.lane.b32.xlu0 %v2332, 111
    %v2554 = vpop.permute.xlu0 %2553
    %v2555 = vsel %vm429, %v2552, %v2554
    %v2556 = vsel %vm429, %v2554, %v2552
    %v2557 = vmul.f32 %v815, %v2555
    %v2558 = vmul.f32 %v816, %v2556
    %v2559 = vadd.f32 %v2549, %v2557
    %v2560 = vadd.f32 %v2550, %v2558
    %v2561 = vrot.slane %v2555, 2
    %v2562 = vrot.slane %v2556, 2
    %v2563 = vmul.f32 %v824, %v2561
    %v2564 = vmul.f32 %v825, %v2562
    %v2565 = vadd.f32 %v2559, %v2563
    %v2566 = vadd.f32 %v2560, %v2564
    %v2567 = vrot.slane %v2555, 4
    %v2568 = vrot.slane %v2556, 4
    %v2569 = vmul.f32 %v833, %v2567
    %v2570 = vmul.f32 %v834, %v2568
    %v2571 = vadd.f32 %v2565, %v2569
    %v2572 = vadd.f32 %v2566, %v2570
    %v2573 = vrot.slane %v2555, 6
    %v2574 = vrot.slane %v2556, 6
    %v2575 = vmul.f32 %v842, %v2573
    %v2576 = vmul.f32 %v843, %v2574
    %v2577 = vadd.f32 %v2571, %v2575
    %v2578 = vadd.f32 %v2572, %v2576
    %v2579 = vadd.f32 %v2577, %v2578
    %2580 = vadd.xlane.f32.xlu0 %v2579
    %v2581 = vpop.xlane.xlu0 %2580
    %v2582 = vmul.f32 %v2577, %v2577
    %v2583 = vmul.f32 %v2578, %v2578
    %v2584 = vadd.f32 %v2582, %v2583
    %2585 = vadd.xlane.f32.xlu0 %v2584
    %v2586 = vpop.xlane.xlu0 %2585
    %v2587 = vmul.f32 %v2581, 0.00390625
    %v2588 = vmul.f32 %v2586, 0.00390625
    %v2589 = vmul.f32 %v2587, %v2587
    %v2590 = vsub.f32 %v2588, %v2589
    %v2591 = vmax.f32 %v2590, 0.0
    %v2592 = vadd.f32 %v2591, 1e-05
    %v2593 = vrsqrt.pop %v2592
    %v2594 = vsub.f32 %v2577, %v2587
    %v2595 = vsub.f32 %v2578, %v2587
    %v2596 = vmul.f32 %v2593, %v865
    %v2597 = vmul.f32 %v2593, %v866
    %v2598 = vmul.f32 %v2594, %v2596
    %v2599 = vmul.f32 %v2595, %v2597
    %v2600 = vadd.f32 %v2598, %v871
    %v2601 = vadd.f32 %v2599, %v872
    %v2602 = vmul.f32 %v1452, 2.0
    %v2603 = vmul.f32 %v1453, 2.0
    %v2604 = vadd.f32 %v873, %v2602
    %v2605 = vadd.f32 %v874, %v2603
    %v2606 = vmul.f32 %v2021, 2.0
    %v2607 = vmul.f32 %v2022, 2.0
    %v2608 = vadd.f32 %v2604, %v2606
    %v2609 = vadd.f32 %v2605, %v2607
    %v2610 = vadd.f32 %v2608, %v2600
    %v2611 = vadd.f32 %v2609, %v2601
    %v2612 = vmul.f32 %v2610, 0.041666668
    %v2613 = vmul.f32 %v2611, 0.041666668
    %v2614 = vadd.f32 %v52, %v2612
    %v2615 = vadd.f32 %v53, %v2613
  $region58: #{ode_block_forward.1} parent=0 // loop_footer
    %s51 = sadd.s32 1, %s47
  $region59: #{ode_block_forward.1} parent=0 // loop_footer_branch
    %46 = sbr.rel target = $region55
  $region60: #{ode_block_forward.1} parent=0 // loop_exit
    _
  %2616 = vst [vmem:[%s13] sm:$0xff] %v52
  %2617 = vst [vmem:[%s13 + $0x8] sm:$0xff] %v53
  // Predicated region
  $region61: #{ode_block_forward.1} parent=0 // pred_check
    _
  $region62: #{ode_block_forward.1} parent=0 // pred_check_branch
    %2619 = sbr.rel (0) target = $region64
  $region63: #{ode_block_forward.1} parent=0 // pred_region
    _
  $region64: #{ode_block_forward.1} parent=0 // pred_fallthru
    _
  // Predicated region
  $region65: #{ode_block_forward.1} parent=0 // pred_check
    _
  $region66: #{ode_block_forward.1} parent=0 // pred_check_branch
    %2621 = sbr.rel (0) target = $region68
  $region67: #{ode_block_forward.1} parent=0 // pred_region
    _
  $region68: #{ode_block_forward.1} parent=0 // pred_fallthru
    _

</llo_original>
